<compile_context>
chip_gen: v7x
topology: tpu7x:2x2x1
jax: 0.10.0
libtpu: 0.0.40
codegen_flags: <defaults>
</compile_context>

<pallas_src>
import jax
import jax.numpy as jnp
from jax import lax
from jax.experimental import pallas as pl
from jax.experimental.pallas import tpu as pltpu


def cnn_kernel(x_ref, w1_ref, s1_ref, t1_ref,
               w2_ref, b2_ref,
               w3_ref, s3_ref, t3_ref,
               fc1w_ref, fc1b_ref, fc2w_ref, fc2b_ref,
               out_ref,
               h1_scr, h2_scr, h3_scr):
    """One grid step == TB samples, stacked along the sublane (M) axis."""
    f32 = jnp.float32
    bf16 = jnp.bfloat16
    TB = out_ref.shape[0]
    M = x_ref.shape[0]                    # TB * L
    L = M // TB
    L2, L4, L8 = L // 2, L // 4, L // 8
    M2, M4 = TB * L2, TB * L4

    def conv_taps(v, Lc):
        """k=3, pad=1 taps of a per-sample-stacked (Mv, C) value.

        left/right neighbours come from pltpu.roll on the sublane axis (XLU,
        free slot here); rows whose neighbour would cross a per-sample boundary
        are masked to 0 (the conv's zero padding)."""
        Mv = v.shape[0]
        pos = lax.broadcasted_iota(jnp.int32, (Mv, 1), 0) % Lc
        left = jnp.where(pos == 0, 0.0, pltpu.roll(v, 1, axis=0))        # x[l-1]
        right = jnp.where(pos == Lc - 1, 0.0,
                          pltpu.roll(v, Mv - 1, axis=0))                 # x[l+1]
        return left, v, right

    # ------- conv1 (1 -> 32, k=3, pad=1) + folded BN1 (pre-activation) -------
    x0 = x_ref[...]                                                      # (M, 1)
    a0, a1, a2 = conv_taps(x0, L)
    h1 = a0 * w1_ref[0:1, :] + a1 * w1_ref[1:2, :] + a2 * w1_ref[2:3, :]
    h1_scr[...] = h1 * s1_ref[...] + t1_ref[...]                         # (M, 32)

    # ------- maxpool(2) then ReLU (relu∘max == max∘relu) ----------------------
    p1 = jnp.maximum(h1_scr[pl.ds(0, M2, stride=2), :],
                     h1_scr[pl.ds(1, M2, stride=2), :])
    p1 = jnp.maximum(p1, 0.0)                                            # (M2, 32)

    # ------- conv2 (32 -> 64) pre-activation (bn2 unused, as in reference) ----
    q0, q1, q2 = conv_taps(p1, L2)
    x2 = jnp.concatenate([q0, q1, q2], axis=1).astype(bf16)              # (M2, 96)
    h2_scr[...] = (jnp.dot(x2, w2_ref[...], preferred_element_type=f32)
                   + b2_ref[...])                                        # (M2, 64)

    # ------- maxpool(2) then ReLU ---------------------------------------------
    p2 = jnp.maximum(h2_scr[pl.ds(0, M4, stride=2), :],
                     h2_scr[pl.ds(1, M4, stride=2), :])
    p2 = jnp.maximum(p2, 0.0)                                            # (M4, 64)

    # ------- conv3 (64 -> 128) + folded BN3 (pre-activation) ------------------
    r0, r1, r2 = conv_taps(p2, L4)
    x3 = jnp.concatenate([r0, r1, r2], axis=1).astype(bf16)              # (M4, 192)
    h3 = jnp.dot(x3, w3_ref[...], preferred_element_type=f32)
    h3_scr[...] = h3 * s3_ref[...] + t3_ref[...]                         # (M4, 128)

    # ------- maxpool(2) fused with PyTorch (C, L)-major flatten, then ReLU ----
    slabs = []
    for l in range(L8):
        even = h3_scr[pl.ds(2 * l, TB, stride=L4), :]                    # (TB, 128)
        odd = h3_scr[pl.ds(2 * l + 1, TB, stride=L4), :]
        slabs.append(jnp.maximum(even, odd))
    xf = slabs[0] if L8 == 1 else jnp.concatenate(slabs, axis=1)         # (TB, L8*128)
    xf = jnp.maximum(xf, 0.0).astype(bf16)

    # ------- dropout (identity in eval) + fc1 + ReLU + fc2 --------------------
    hf = jnp.maximum(
        jnp.dot(xf, fc1w_ref[...], preferred_element_type=f32) + fc1b_ref[...],
        0.0)                                                             # (TB, 128)
    out_ref[...] = (jnp.dot(hf.astype(bf16), fc2w_ref[...],
                            preferred_element_type=f32) + fc2b_ref[...])  # (TB, NCpad)


def cnn_forward(x, p, *, tb=None):
    """x: (B, L) float32.  p: dict of kernel-layout parameters."""
    B, L = x.shape
    assert L % 8 == 0, "input_size must be divisible by 8 (three maxpools)"
    if tb is None:
        # Two equal grid steps when possible: both v7x TensorCores get work,
        # and 2 fat steps amortize per-step overhead on single-TC v5e/v6e.
        tb = B // 2 if (B % 2 == 0 and B >= 2) else B
        cap = max(1, 8192 // L)          # keep per-step activation VMEM modest
        while tb > cap and tb % 2 == 0:
            tb //= 2
    assert B % tb == 0, "batch must be divisible by the batch tile"
    L8 = L // 8
    ncp = p["fc2_w"].shape[1]              # lane-padded class count
    nc = p["num_classes"]

    xcol = x.reshape(B * L, 1).astype(jnp.float32)  # samples stacked along M
    # NOTE: the (tb*L, 1) x block is lane-sparse; fine at these sizes — see
    # module TODO for the very-large-L restructuring.
    rep = lambda b: (0, 0)

    in_specs = [
        pl.BlockSpec((tb * L, 1), lambda b: (b, 0)),   # x, TB samples / step
        pl.BlockSpec((3, 32), rep),                    # conv1 weight (k, out)
        pl.BlockSpec((1, 32), rep),                    # bn1 scale
        pl.BlockSpec((1, 32), rep),                    # bn1 shift (+conv1 bias)
        pl.BlockSpec((96, 64), rep),                   # conv2 im2col weight (bf16)
        pl.BlockSpec((1, 64), rep),                    # conv2 bias
        pl.BlockSpec((192, 128), rep),                 # conv3 im2col weight (bf16)
        pl.BlockSpec((1, 128), rep),                   # bn3 scale
        pl.BlockSpec((1, 128), rep),                   # bn3 shift (+conv3 bias)
        pl.BlockSpec((L8 * 128, 128), rep),            # fc1 weight (l*128+c, out) bf16
        pl.BlockSpec((1, 128), rep),                   # fc1 bias
        pl.BlockSpec((128, ncp), rep),                 # fc2 weight (lane-padded) bf16
        pl.BlockSpec((1, ncp), rep),                   # fc2 bias   (lane-padded)
    ]
    out_specs = pl.BlockSpec((tb, ncp), lambda b: (b, 0))

    scratch = [
        pltpu.VMEM((tb * L, 32), jnp.float32),       # conv1 pre-act (pre-pool)
        pltpu.VMEM((tb * L // 2, 64), jnp.float32),  # conv2 pre-act (pre-pool)
        pltpu.VMEM((tb * L // 4, 128), jnp.float32), # conv3 pre-act (pre-pool)
    ]

    # Advisory cost estimate so XLA schedules around the custom call sensibly.
    flops = 2 * B * (L * 3 * 32 + (L // 2) * 96 * 64 + (L // 4) * 192 * 128
                     + L8 * 128 * 128 + 128 * ncp)
    param_bytes = sum(int(v.size) * v.dtype.itemsize
                      for k, v in p.items() if k != "num_classes")
    bytes_accessed = xcol.size * 4 + param_bytes + B * ncp * 4

    fn = pl.pallas_call(
        cnn_kernel,
        out_shape=jax.ShapeDtypeStruct((B, ncp), jnp.float32),
        grid_spec=pltpu.PrefetchScalarGridSpec(
            num_scalar_prefetch=0,
            grid=(B // tb,),
            in_specs=in_specs,
            out_specs=out_specs,
            scratch_shapes=scratch),
        compiler_params=pltpu.CompilerParams(
            dimension_semantics=("parallel",),
            # Footprint at the default tile is a few MiB; 32 MiB leaves generous
            # headroom yet stays inside every generation's scoped budget.
            vmem_limit_bytes=32 * 1024 * 1024),
        cost_estimate=pl.CostEstimate(flops=int(flops), transcendentals=0,
                                      bytes_accessed=int(bytes_accessed)),
    )
    out = fn(xcol, p["w1"], p["s1"], p["t1"], p["w2"], p["b2"],
             p["w3"], p["s3"], p["t3"],
             p["fc1_w"], p["fc1_b"], p["fc2_w"], p["fc2_b"])
    return out[:, :nc]


def make_params(key, input_size, num_classes):
    """Deterministic synthetic parameters (PyTorch shapes -> kernel layout)."""
    L8 = input_size // 8
    eps = 1e-5
    ncp = ((num_classes + 127) // 128) * 128   # lane-dense padded output width
    ks = jax.random.split(key, 18)
    nrm = lambda k, s, sc=0.1: sc * jax.random.normal(k, s, jnp.float32)
    bf16 = jnp.bfloat16

    # PyTorch-convention parameters
    conv1_w = nrm(ks[0], (32, 1, 3));    conv1_b = nrm(ks[1], (32,))
    conv2_w = nrm(ks[2], (64, 32, 3));   conv2_b = nrm(ks[3], (64,))
    conv3_w = nrm(ks[4], (128, 64, 3));  conv3_b = nrm(ks[5], (128,))
    bn1_g = 1.0 + nrm(ks[6], (32,));     bn1_b = nrm(ks[7], (32,))
    bn1_m = nrm(ks[8], (32,));           bn1_v = 1.0 + jnp.abs(nrm(ks[9], (32,)))
    bn3_g = 1.0 + nrm(ks[10], (128,));   bn3_b = nrm(ks[11], (128,))
    bn3_m = nrm(ks[12], (128,));         bn3_v = 1.0 + jnp.abs(nrm(ks[13], (128,)))
    fc1_w = nrm(ks[14], (128, 128 * L8)); fc1_b = nrm(ks[15], (128,))
    fc2_w = nrm(ks[16], (num_classes, 128)); fc2_b = nrm(ks[17], (num_classes,))

    # Fold eval-mode BatchNorm into per-channel scale/shift
    s1 = bn1_g * jax.lax.rsqrt(bn1_v + eps); t1 = bn1_b - bn1_m * s1
    s3 = bn3_g * jax.lax.rsqrt(bn3_v + eps); t3 = bn3_b - bn3_m * s3

    kernel_params = dict(
        num_classes=num_classes,
        w1=conv1_w[:, 0, :].T,                                   # (3, 32) f32 (VPU)
        s1=s1.reshape(1, 32),
        t1=(t1 + conv1_b * s1).reshape(1, 32),                   # conv bias folded
        # MXU weights stored bf16 (half DMA/VMEM, full-rate MXU).
        w2=jnp.transpose(conv2_w, (2, 1, 0)).reshape(96, 64).astype(bf16),
        b2=conv2_b.reshape(1, 64),
        w3=jnp.transpose(conv3_w, (2, 1, 0)).reshape(192, 128).astype(bf16),
        s3=s3.reshape(1, 128),
        t3=(t3 + conv3_b * s3).reshape(1, 128),                  # conv bias folded
        # PyTorch flatten index is c*L8 + l; kernel fc1-input lane is l*128 + c.
        fc1_w=fc1_w.reshape(128, 128, L8).transpose(2, 1, 0)
                   .reshape(L8 * 128, 128).astype(bf16),
        fc1_b=fc1_b.reshape(1, 128),
        fc2_w=jnp.zeros((128, ncp), jnp.float32)
                 .at[:, :num_classes].set(fc2_w.T).astype(bf16),
        fc2_b=jnp.zeros((1, ncp), jnp.float32).at[0, :num_classes].set(fc2_b),
    )
    torch_params = dict(conv1_w=conv1_w, conv1_b=conv1_b, conv2_w=conv2_w,
                        conv2_b=conv2_b, conv3_w=conv3_w, conv3_b=conv3_b,
                        s1=s1, t1=t1, s3=s3, t3=t3,
                        fc1_w=fc1_w, fc1_b=fc1_b, fc2_w=fc2_w, fc2_b=fc2_b)
    return kernel_params, torch_params


def reference_forward(x, tp):
    """Pure-JAX f32 reference with PyTorch semantics (eval mode)."""
    B, L = x.shape

    def conv1d(h, w_oik, b):                   # h: (B, Lc, Cin), w: (O, I, 3)
        w = jnp.transpose(w_oik, (2, 1, 0))    # (3, I, O)
        hp = jnp.pad(h, ((0, 0), (1, 1), (0, 0)))
        Lc = h.shape[1]
        return (jnp.einsum('bli,io->blo', hp[:, 0:Lc], w[0]) +
                jnp.einsum('bli,io->blo', hp[:, 1:Lc + 1], w[1]) +
                jnp.einsum('bli,io->blo', hp[:, 2:Lc + 2], w[2]) + b)

    def pool(h):
        Bq, Lc, C = h.shape
        return jnp.max(h.reshape(Bq, Lc // 2, 2, C), axis=2)

    h = x[:, :, None]
    h = pool(jnp.maximum(conv1d(h, tp["conv1_w"], tp["conv1_b"]) * tp["s1"] + tp["t1"], 0.0))
    h = pool(jnp.maximum(conv1d(h, tp["conv2_w"], tp["conv2_b"]), 0.0))
    h = pool(jnp.maximum(conv1d(h, tp["conv3_w"], tp["conv3_b"]) * tp["s3"] + tp["t3"], 0.0))
    flat = jnp.transpose(h, (0, 2, 1)).reshape(B, -1)   # PyTorch (C, L)-major flatten
    hf = jnp.maximum(flat @ tp["fc1_w"].T + tp["fc1_b"], 0.0)
    return hf @ tp["fc2_w"].T + tp["fc2_b"]


if __name__ == "__main__":
    # B=128, tb=64 -> grid of 2 steps (both v7x TCs busy), M4 = 256 MXU rows.
    B, INPUT_SIZE, NUM_CLASSES = 128, 16, 3
    key = jax.random.PRNGKey(0)
    k_x, k_p = jax.random.split(key)
    x = jax.random.normal(k_x, (B, INPUT_SIZE), jnp.float32)

    kp, tp = make_params(k_p, INPUT_SIZE, NUM_CLASSES)

    out = jax.block_until_ready(cnn_forward(x, kp))
    ref = jax.block_until_ready(reference_forward(x, tp))

    assert out.shape == (B, NUM_CLASSES)
    # bf16 MXU operands -> looser tolerance than a pure-f32 pipeline.
    if not bool(jnp.allclose(out, ref, atol=2e-2, rtol=2e-2)):
        err = float(jnp.max(jnp.abs(out - ref)))
        raise AssertionError(f"Pallas kernel disagrees with JAX reference (max err {err})")
    print("KERNEL_OK")
</pallas_src>

<mosaic_0001>
module attributes {stable_mosaic.version = 11 : i64} {
  func.func @cnn_kernel(%arg0: i32, %arg1: memref<1024x1xf32, #tpu.memory_space<vmem>>, %arg2: memref<3x32xf32, #tpu.memory_space<vmem>>, %arg3: memref<1x32xf32, #tpu.memory_space<vmem>>, %arg4: memref<1x32xf32, #tpu.memory_space<vmem>>, %arg5: memref<96x64xbf16, #tpu.memory_space<vmem>>, %arg6: memref<1x64xf32, #tpu.memory_space<vmem>>, %arg7: memref<192x128xbf16, #tpu.memory_space<vmem>>, %arg8: memref<1x128xf32, #tpu.memory_space<vmem>>, %arg9: memref<1x128xf32, #tpu.memory_space<vmem>>, %arg10: memref<256x128xbf16, #tpu.memory_space<vmem>>, %arg11: memref<1x128xf32, #tpu.memory_space<vmem>>, %arg12: memref<128x128xbf16, #tpu.memory_space<vmem>>, %arg13: memref<1x128xf32, #tpu.memory_space<vmem>>, %arg14: memref<64x128xf32, #tpu.memory_space<vmem>>, %arg15: memref<1024x32xf32, #tpu.memory_space<vmem>>, %arg16: memref<512x64xf32, #tpu.memory_space<vmem>>, %arg17: memref<256x128xf32, #tpu.memory_space<vmem>>) attributes {dimension_semantics = [#tpu.dimension_semantics<parallel>], iteration_bounds = array<i64: 2>, scalar_prefetch = 0 : i64, scratch_operands = 3 : i64, tpu.core_type = #tpu.core_type<tc>, window_params = [{transform_indices = @transform_0, window_bounds = array<i64: 1024, 1>}, {pipeline_mode = #tpu.pipeline_mode<synchronous>, transform_indices = @transform_1, window_bounds = array<i64: 3, 32>}, {pipeline_mode = #tpu.pipeline_mode<synchronous>, transform_indices = @transform_2, window_bounds = array<i64: 1, 32>}, {pipeline_mode = #tpu.pipeline_mode<synchronous>, transform_indices = @transform_3, window_bounds = array<i64: 1, 32>}, {pipeline_mode = #tpu.pipeline_mode<synchronous>, transform_indices = @transform_4, window_bounds = array<i64: 96, 64>}, {pipeline_mode = #tpu.pipeline_mode<synchronous>, transform_indices = @transform_5, window_bounds = array<i64: 1, 64>}, {pipeline_mode = #tpu.pipeline_mode<synchronous>, transform_indices = @transform_6, window_bounds = array<i64: 192, 128>}, {pipeline_mode = #tpu.pipeline_mode<synchronous>, transform_indices = @transform_7, window_bounds = array<i64: 1, 128>}, {pipeline_mode = #tpu.pipeline_mode<synchronous>, transform_indices = @transform_8, window_bounds = array<i64: 1, 128>}, {pipeline_mode = #tpu.pipeline_mode<synchronous>, transform_indices = @transform_9, window_bounds = array<i64: 256, 128>}, {pipeline_mode = #tpu.pipeline_mode<synchronous>, transform_indices = @transform_10, window_bounds = array<i64: 1, 128>}, {pipeline_mode = #tpu.pipeline_mode<synchronous>, transform_indices = @transform_11, window_bounds = array<i64: 128, 128>}, {pipeline_mode = #tpu.pipeline_mode<synchronous>, transform_indices = @transform_12, window_bounds = array<i64: 1, 128>}, {transform_indices = @transform_13, window_bounds = array<i64: 64, 128>}]} {
    %c0 = arith.constant 0 : index
    %c0_0 = arith.constant 0 : index
    %0 = vector.load %arg1[%c0, %c0_0] : memref<1024x1xf32, #tpu.memory_space<vmem>>, vector<1024x1xf32>
    %1 = tpu.iota {dimensions = array<i32: 0>} : vector<1024x1xi32>
    %c16_i32 = arith.constant 16 : i32
    %c0_i32 = arith.constant 0 : i32
    %2 = arith.cmpi eq, %c16_i32, %c0_i32 : i32
    %c1_i32 = arith.constant 1 : i32
    %3 = arith.select %2, %c1_i32, %c16_i32 : i32
    %4 = vector.broadcast %3 : i32 to vector<1024x1xi32>
    %5 = arith.remsi %1, %4 : vector<1024x1xi32>
    %c0_i32_1 = arith.constant 0 : i32
    %6 = vector.broadcast %c0_i32_1 : i32 to vector<1024x1xi32>
    %7 = arith.cmpi ne, %5, %6 : vector<1024x1xi32>
    %c0_i32_2 = arith.constant 0 : i32
    %8 = vector.broadcast %c0_i32_2 : i32 to vector<1024x1xi32>
    %9 = arith.cmpi slt, %5, %8 : vector<1024x1xi32>
    %c0_i32_3 = arith.constant 0 : i32
    %10 = arith.cmpi slt, %3, %c0_i32_3 : i32
    %11 = vector.broadcast %10 : i1 to vector<1024x1xi1>
    %12 = vector.broadcast %11 : vector<1024x1xi1> to vector<1024x1xi1>
    %13 = arith.xori %9, %12 : vector<1024x1xi1>
    %14 = arith.andi %13, %7 : vector<1024x1xi1>
    %15 = vector.broadcast %3 : i32 to vector<1024x1xi32>
    %16 = arith.addi %5, %15 : vector<1024x1xi32>
    %17 = arith.select %14, %16, %5 : vector<1024x1xi1>, vector<1024x1xi32>
    %c0_i32_4 = arith.constant 0 : i32
    %18 = vector.broadcast %c0_i32_4 : i32 to vector<1024x1xi32>
    %19 = arith.cmpi eq, %17, %18 : vector<1024x1xi32>
    %c1_i32_5 = arith.constant 1 : i32
    %20 = tpu.dynamic_rotate %0 by %c1_i32_5 dim 0 : vector<1024x1xf32>, i32 -> vector<1024x1xf32>
    %cst = arith.constant 0.000000e+00 : f32
    %21 = vector.broadcast %cst : f32 to vector<1024x1xf32>
    %22 = arith.select %19, %21, %20 : vector<1024x1xi1>, vector<1024x1xf32>
    %c15_i32 = arith.constant 15 : i32
    %23 = vector.broadcast %c15_i32 : i32 to vector<1024x1xi32>
    %24 = arith.cmpi eq, %17, %23 : vector<1024x1xi32>
    %c1023_i32 = arith.constant 1023 : i32
    %25 = tpu.dynamic_rotate %0 by %c1023_i32 dim 0 : vector<1024x1xf32>, i32 -> vector<1024x1xf32>
    %cst_6 = arith.constant 0.000000e+00 : f32
    %26 = vector.broadcast %cst_6 : f32 to vector<1024x1xf32>
    %27 = arith.select %24, %26, %25 : vector<1024x1xi1>, vector<1024x1xf32>
    %c0_7 = arith.constant 0 : index
    %c0_8 = arith.constant 0 : index
    %28 = vector.load %arg2[%c0_7, %c0_8] : memref<3x32xf32, #tpu.memory_space<vmem>>, vector<1x32xf32>
    %29 = vector.broadcast %22 : vector<1024x1xf32> to vector<1024x32xf32>
    %30 = vector.broadcast %28 : vector<1x32xf32> to vector<1024x32xf32>
    %31 = arith.mulf %29, %30 : vector<1024x32xf32>
    %c1 = arith.constant 1 : index
    %c0_9 = arith.constant 0 : index
    %32 = vector.load %arg2[%c1, %c0_9] : memref<3x32xf32, #tpu.memory_space<vmem>>, vector<1x32xf32>
    %33 = vector.broadcast %0 : vector<1024x1xf32> to vector<1024x32xf32>
    %34 = vector.broadcast %32 : vector<1x32xf32> to vector<1024x32xf32>
    %35 = arith.mulf %33, %34 : vector<1024x32xf32>
    %36 = arith.addf %31, %35 : vector<1024x32xf32>
    %c2 = arith.constant 2 : index
    %c0_10 = arith.constant 0 : index
    %37 = vector.load %arg2[%c2, %c0_10] : memref<3x32xf32, #tpu.memory_space<vmem>>, vector<1x32xf32>
    %38 = vector.broadcast %27 : vector<1024x1xf32> to vector<1024x32xf32>
    %39 = vector.broadcast %37 : vector<1x32xf32> to vector<1024x32xf32>
    %40 = arith.mulf %38, %39 : vector<1024x32xf32>
    %41 = arith.addf %36, %40 : vector<1024x32xf32>
    %c0_11 = arith.constant 0 : index
    %c0_12 = arith.constant 0 : index
    %42 = vector.load %arg3[%c0_11, %c0_12] : memref<1x32xf32, #tpu.memory_space<vmem>>, vector<1x32xf32>
    %43 = vector.broadcast %42 : vector<1x32xf32> to vector<1024x32xf32>
    %44 = arith.mulf %41, %43 : vector<1024x32xf32>
    %c0_13 = arith.constant 0 : index
    %c0_14 = arith.constant 0 : index
    %45 = vector.load %arg4[%c0_13, %c0_14] : memref<1x32xf32, #tpu.memory_space<vmem>>, vector<1x32xf32>
    %46 = vector.broadcast %45 : vector<1x32xf32> to vector<1024x32xf32>
    %47 = arith.addf %44, %46 : vector<1024x32xf32>
    %c0_15 = arith.constant 0 : index
    %c0_16 = arith.constant 0 : index
    %48 = vector.load %arg15[%c0_15, %c0_16] : memref<1024x32xf32, #tpu.memory_space<vmem>>, vector<1024x32xf32>
    tpu.vector_store %arg15[%c0_15, %c0_16], %47 {strides = array<i32>} : memref<1024x32xf32, #tpu.memory_space<vmem>>, vector<1024x32xf32>,
    %c0_17 = arith.constant 0 : index
    %c0_18 = arith.constant 0 : index
    %49 = tpu.strided_load %arg15[%c0_17, %c0_18] {strides = array<i32: 2, 1>} : memref<1024x32xf32, #tpu.memory_space<vmem>>, vector<512x32xf32>
    %c1_19 = arith.constant 1 : index
    %c0_20 = arith.constant 0 : index
    %50 = tpu.strided_load %arg15[%c1_19, %c0_20] {strides = array<i32: 2, 1>} : memref<1024x32xf32, #tpu.memory_space<vmem>>, vector<512x32xf32>
    %51 = arith.maximumf %49, %50 : vector<512x32xf32>
    %cst_21 = arith.constant 0.000000e+00 : f32
    %52 = vector.broadcast %cst_21 : f32 to vector<512x32xf32>
    %53 = arith.maximumf %51, %52 : vector<512x32xf32>
    %54 = tpu.iota {dimensions = array<i32: 0>} : vector<512x1xi32>
    %c8_i32 = arith.constant 8 : i32
    %c0_i32_22 = arith.constant 0 : i32
    %55 = arith.cmpi eq, %c8_i32, %c0_i32_22 : i32
    %c1_i32_23 = arith.constant 1 : i32
    %56 = arith.select %55, %c1_i32_23, %c8_i32 : i32
    %57 = vector.broadcast %56 : i32 to vector<512x1xi32>
    %58 = arith.remsi %54, %57 : vector<512x1xi32>
    %c0_i32_24 = arith.constant 0 : i32
    %59 = vector.broadcast %c0_i32_24 : i32 to vector<512x1xi32>
    %60 = arith.cmpi ne, %58, %59 : vector<512x1xi32>
    %c0_i32_25 = arith.constant 0 : i32
    %61 = vector.broadcast %c0_i32_25 : i32 to vector<512x1xi32>
    %62 = arith.cmpi slt, %58, %61 : vector<512x1xi32>
    %c0_i32_26 = arith.constant 0 : i32
    %63 = arith.cmpi slt, %56, %c0_i32_26 : i32
    %64 = vector.broadcast %63 : i1 to vector<512x1xi1>
    %65 = vector.broadcast %64 : vector<512x1xi1> to vector<512x1xi1>
    %66 = arith.xori %62, %65 : vector<512x1xi1>
    %67 = arith.andi %66, %60 : vector<512x1xi1>
    %68 = vector.broadcast %56 : i32 to vector<512x1xi32>
    %69 = arith.addi %58, %68 : vector<512x1xi32>
    %70 = arith.select %67, %69, %58 : vector<512x1xi1>, vector<512x1xi32>
    %c0_i32_27 = arith.constant 0 : i32
    %71 = vector.broadcast %c0_i32_27 : i32 to vector<512x1xi32>
    %72 = arith.cmpi eq, %70, %71 : vector<512x1xi32>
    %c1_i32_28 = arith.constant 1 : i32
    %73 = tpu.dynamic_rotate %53 by %c1_i32_28 dim 0 : vector<512x32xf32>, i32 -> vector<512x32xf32>
    %cst_29 = arith.constant 0.000000e+00 : f32
    %74 = vector.shape_cast %72 : vector<512x1xi1> to vector<512x1xi1>
    %75 = vector.broadcast %74 : vector<512x1xi1> to vector<512x32xi1>
    %76 = vector.broadcast %cst_29 : f32 to vector<512x32xf32>
    %77 = arith.select %75, %76, %73 : vector<512x32xi1>, vector<512x32xf32>
    %c7_i32 = arith.constant 7 : i32
    %78 = vector.broadcast %c7_i32 : i32 to vector<512x1xi32>
    %79 = arith.cmpi eq, %70, %78 : vector<512x1xi32>
    %c511_i32 = arith.constant 511 : i32
    %80 = tpu.dynamic_rotate %53 by %c511_i32 dim 0 : vector<512x32xf32>, i32 -> vector<512x32xf32>
    %cst_30 = arith.constant 0.000000e+00 : f32
    %81 = vector.shape_cast %79 : vector<512x1xi1> to vector<512x1xi1>
    %82 = vector.broadcast %81 : vector<512x1xi1> to vector<512x32xi1>
    %83 = vector.broadcast %cst_30 : f32 to vector<512x32xf32>
    %84 = arith.select %82, %83, %80 : vector<512x32xi1>, vector<512x32xf32>
    %85 = tpu.concatenate %77, %53, %84 in 1 : vector<512x32xf32>, vector<512x32xf32>, vector<512x32xf32> -> vector<512x96xf32>
    %86 = arith.truncf %85 : vector<512x96xf32> to vector<512x96xbf16>
    %c0_31 = arith.constant 0 : index
    %c0_32 = arith.constant 0 : index
    %87 = vector.load %arg5[%c0_31, %c0_32] : memref<96x64xbf16, #tpu.memory_space<vmem>>, vector<96x64xbf16>
    %cst_33 = arith.constant dense<0.000000e+00> : vector<512x64xf32>
    %88 = tpu.matmul %86, %87, %cst_33 {dimension_numbers = #tpu.dot_dimension_numbers<[1], [0], [0], [1], [0, 0, 1, 1], [], []>} : vector<512x96xbf16>, vector<96x64xbf16>, vector<512x64xf32> -> vector<512x64xf32>
    %c0_34 = arith.constant 0 : index
    %c0_35 = arith.constant 0 : index
    %89 = vector.load %arg6[%c0_34, %c0_35] : memref<1x64xf32, #tpu.memory_space<vmem>>, vector<1x64xf32>
    %90 = vector.broadcast %89 : vector<1x64xf32> to vector<512x64xf32>
    %91 = arith.addf %88, %90 : vector<512x64xf32>
    %c0_36 = arith.constant 0 : index
    %c0_37 = arith.constant 0 : index
    %92 = vector.load %arg16[%c0_36, %c0_37] : memref<512x64xf32, #tpu.memory_space<vmem>>, vector<512x64xf32>
    tpu.vector_store %arg16[%c0_36, %c0_37], %91 {strides = array<i32>} : memref<512x64xf32, #tpu.memory_space<vmem>>, vector<512x64xf32>,
    %c0_38 = arith.constant 0 : index
    %c0_39 = arith.constant 0 : index
    %93 = tpu.strided_load %arg16[%c0_38, %c0_39] {strides = array<i32: 2, 1>} : memref<512x64xf32, #tpu.memory_space<vmem>>, vector<256x64xf32>
    %c1_40 = arith.constant 1 : index
    %c0_41 = arith.constant 0 : index
    %94 = tpu.strided_load %arg16[%c1_40, %c0_41] {strides = array<i32: 2, 1>} : memref<512x64xf32, #tpu.memory_space<vmem>>, vector<256x64xf32>
    %95 = arith.maximumf %93, %94 : vector<256x64xf32>
    %cst_42 = arith.constant 0.000000e+00 : f32
    %96 = vector.broadcast %cst_42 : f32 to vector<256x64xf32>
    %97 = arith.maximumf %95, %96 : vector<256x64xf32>
    %98 = tpu.iota {dimensions = array<i32: 0>} : vector<256x1xi32>
    %c4_i32 = arith.constant 4 : i32
    %c0_i32_43 = arith.constant 0 : i32
    %99 = arith.cmpi eq, %c4_i32, %c0_i32_43 : i32
    %c1_i32_44 = arith.constant 1 : i32
    %100 = arith.select %99, %c1_i32_44, %c4_i32 : i32
    %101 = vector.broadcast %100 : i32 to vector<256x1xi32>
    %102 = arith.remsi %98, %101 : vector<256x1xi32>
    %c0_i32_45 = arith.constant 0 : i32
    %103 = vector.broadcast %c0_i32_45 : i32 to vector<256x1xi32>
    %104 = arith.cmpi ne, %102, %103 : vector<256x1xi32>
    %c0_i32_46 = arith.constant 0 : i32
    %105 = vector.broadcast %c0_i32_46 : i32 to vector<256x1xi32>
    %106 = arith.cmpi slt, %102, %105 : vector<256x1xi32>
    %c0_i32_47 = arith.constant 0 : i32
    %107 = arith.cmpi slt, %100, %c0_i32_47 : i32
    %108 = vector.broadcast %107 : i1 to vector<256x1xi1>
    %109 = vector.broadcast %108 : vector<256x1xi1> to vector<256x1xi1>
    %110 = arith.xori %106, %109 : vector<256x1xi1>
    %111 = arith.andi %110, %104 : vector<256x1xi1>
    %112 = vector.broadcast %100 : i32 to vector<256x1xi32>
    %113 = arith.addi %102, %112 : vector<256x1xi32>
    %114 = arith.select %111, %113, %102 : vector<256x1xi1>, vector<256x1xi32>
    %c0_i32_48 = arith.constant 0 : i32
    %115 = vector.broadcast %c0_i32_48 : i32 to vector<256x1xi32>
    %116 = arith.cmpi eq, %114, %115 : vector<256x1xi32>
    %c1_i32_49 = arith.constant 1 : i32
    %117 = tpu.dynamic_rotate %97 by %c1_i32_49 dim 0 : vector<256x64xf32>, i32 -> vector<256x64xf32>
    %cst_50 = arith.constant 0.000000e+00 : f32
    %118 = vector.shape_cast %116 : vector<256x1xi1> to vector<256x1xi1>
    %119 = vector.broadcast %118 : vector<256x1xi1> to vector<256x64xi1>
    %120 = vector.broadcast %cst_50 : f32 to vector<256x64xf32>
    %121 = arith.select %119, %120, %117 : vector<256x64xi1>, vector<256x64xf32>
    %c3_i32 = arith.constant 3 : i32
    %122 = vector.broadcast %c3_i32 : i32 to vector<256x1xi32>
    %123 = arith.cmpi eq, %114, %122 : vector<256x1xi32>
    %c255_i32 = arith.constant 255 : i32
    %124 = tpu.dynamic_rotate %97 by %c255_i32 dim 0 : vector<256x64xf32>, i32 -> vector<256x64xf32>
    %cst_51 = arith.constant 0.000000e+00 : f32
    %125 = vector.shape_cast %123 : vector<256x1xi1> to vector<256x1xi1>
    %126 = vector.broadcast %125 : vector<256x1xi1> to vector<256x64xi1>
    %127 = vector.broadcast %cst_51 : f32 to vector<256x64xf32>
    %128 = arith.select %126, %127, %124 : vector<256x64xi1>, vector<256x64xf32>
    %129 = tpu.concatenate %121, %97, %128 in 1 : vector<256x64xf32>, vector<256x64xf32>, vector<256x64xf32> -> vector<256x192xf32>
    %130 = arith.truncf %129 : vector<256x192xf32> to vector<256x192xbf16>
    %c0_52 = arith.constant 0 : index
    %c0_53 = arith.constant 0 : index
    %131 = vector.load %arg7[%c0_52, %c0_53] : memref<192x128xbf16, #tpu.memory_space<vmem>>, vector<192x128xbf16>
    %cst_54 = arith.constant dense<0.000000e+00> : vector<256x128xf32>
    %132 = tpu.matmul %130, %131, %cst_54 {dimension_numbers = #tpu.dot_dimension_numbers<[1], [0], [0], [1], [0, 0, 1, 1], [], []>} : vector<256x192xbf16>, vector<192x128xbf16>, vector<256x128xf32> -> vector<256x128xf32>
    %c0_55 = arith.constant 0 : index
    %c0_56 = arith.constant 0 : index
    %133 = vector.load %arg8[%c0_55, %c0_56] : memref<1x128xf32, #tpu.memory_space<vmem>>, vector<1x128xf32>
    %134 = vector.broadcast %133 : vector<1x128xf32> to vector<256x128xf32>
    %135 = arith.mulf %132, %134 : vector<256x128xf32>
    %c0_57 = arith.constant 0 : index
    %c0_58 = arith.constant 0 : index
    %136 = vector.load %arg9[%c0_57, %c0_58] : memref<1x128xf32, #tpu.memory_space<vmem>>, vector<1x128xf32>
    %137 = vector.broadcast %136 : vector<1x128xf32> to vector<256x128xf32>
    %138 = arith.addf %135, %137 : vector<256x128xf32>
    %c0_59 = arith.constant 0 : index
    %c0_60 = arith.constant 0 : index
    %139 = vector.load %arg17[%c0_59, %c0_60] : memref<256x128xf32, #tpu.memory_space<vmem>>, vector<256x128xf32>
    tpu.vector_store %arg17[%c0_59, %c0_60], %138 {strides = array<i32>} : memref<256x128xf32, #tpu.memory_space<vmem>>, vector<256x128xf32>,
    %c0_61 = arith.constant 0 : index
    %c0_62 = arith.constant 0 : index
    %140 = tpu.strided_load %arg17[%c0_61, %c0_62] {strides = array<i32: 4, 1>} : memref<256x128xf32, #tpu.memory_space<vmem>>, vector<64x128xf32>
    %c1_63 = arith.constant 1 : index
    %c0_64 = arith.constant 0 : index
    %141 = tpu.strided_load %arg17[%c1_63, %c0_64] {strides = array<i32: 4, 1>} : memref<256x128xf32, #tpu.memory_space<vmem>>, vector<64x128xf32>
    %142 = arith.maximumf %140, %141 : vector<64x128xf32>
    %c2_65 = arith.constant 2 : index
    %c0_66 = arith.constant 0 : index
    %143 = tpu.strided_load %arg17[%c2_65, %c0_66] {strides = array<i32: 4, 1>} : memref<256x128xf32, #tpu.memory_space<vmem>>, vector<64x128xf32>
    %c3 = arith.constant 3 : index
    %c0_67 = arith.constant 0 : index
    %144 = tpu.strided_load %arg17[%c3, %c0_67] {strides = array<i32: 4, 1>} : memref<256x128xf32, #tpu.memory_space<vmem>>, vector<64x128xf32>
    %145 = arith.maximumf %143, %144 : vector<64x128xf32>
    %146 = tpu.concatenate %142, %145 in 1 : vector<64x128xf32>, vector<64x128xf32> -> vector<64x256xf32>
    %cst_68 = arith.constant 0.000000e+00 : f32
    %147 = vector.broadcast %cst_68 : f32 to vector<64x256xf32>
    %148 = arith.maximumf %146, %147 : vector<64x256xf32>
    %149 = arith.truncf %148 : vector<64x256xf32> to vector<64x256xbf16>
    %c0_69 = arith.constant 0 : index
    %c0_70 = arith.constant 0 : index
    %150 = vector.load %arg10[%c0_69, %c0_70] : memref<256x128xbf16, #tpu.memory_space<vmem>>, vector<256x128xbf16>
    %cst_71 = arith.constant dense<0.000000e+00> : vector<64x128xf32>
    %151 = tpu.matmul %149, %150, %cst_71 {dimension_numbers = #tpu.dot_dimension_numbers<[1], [0], [0], [1], [0, 0, 1, 1], [], []>} : vector<64x256xbf16>, vector<256x128xbf16>, vector<64x128xf32> -> vector<64x128xf32>
    %c0_72 = arith.constant 0 : index
    %c0_73 = arith.constant 0 : index
    %152 = vector.load %arg11[%c0_72, %c0_73] : memref<1x128xf32, #tpu.memory_space<vmem>>, vector<1x128xf32>
    %153 = vector.broadcast %152 : vector<1x128xf32> to vector<64x128xf32>
    %154 = arith.addf %151, %153 : vector<64x128xf32>
    %cst_74 = arith.constant 0.000000e+00 : f32
    %155 = vector.broadcast %cst_74 : f32 to vector<64x128xf32>
    %156 = arith.maximumf %154, %155 : vector<64x128xf32>
    %157 = arith.truncf %156 : vector<64x128xf32> to vector<64x128xbf16>
    %c0_75 = arith.constant 0 : index
    %c0_76 = arith.constant 0 : index
    %158 = vector.load %arg12[%c0_75, %c0_76] : memref<128x128xbf16, #tpu.memory_space<vmem>>, vector<128x128xbf16>
    %cst_77 = arith.constant dense<0.000000e+00> : vector<64x128xf32>
    %159 = tpu.matmul %157, %158, %cst_77 {dimension_numbers = #tpu.dot_dimension_numbers<[1], [0], [0], [1], [0, 0, 1, 1], [], []>} : vector<64x128xbf16>, vector<128x128xbf16>, vector<64x128xf32> -> vector<64x128xf32>
    %c0_78 = arith.constant 0 : index
    %c0_79 = arith.constant 0 : index
    %160 = vector.load %arg13[%c0_78, %c0_79] : memref<1x128xf32, #tpu.memory_space<vmem>>, vector<1x128xf32>
    %161 = vector.broadcast %160 : vector<1x128xf32> to vector<64x128xf32>
    %162 = arith.addf %159, %161 : vector<64x128xf32>
    %c0_80 = arith.constant 0 : index
    %c0_81 = arith.constant 0 : index
    %163 = vector.load %arg14[%c0_80, %c0_81] : memref<64x128xf32, #tpu.memory_space<vmem>>, vector<64x128xf32>
    tpu.vector_store %arg14[%c0_80, %c0_81], %162 {strides = array<i32>} : memref<64x128xf32, #tpu.memory_space<vmem>>, vector<64x128xf32>,
    return
  }
  func.func @transform_0(%arg0: i32) -> (i32, i32) {
    %c0_i32 = arith.constant 0 : i32
    %c0_i32_0 = arith.constant 0 : i32
    return %arg0, %c0_i32 : i32, i32
  }
  func.func @transform_1(%arg0: i32) -> (i32, i32) {
    %c0_i32 = arith.constant 0 : i32
    %c0_i32_0 = arith.constant 0 : i32
    %c0_i32_1 = arith.constant 0 : i32
    return %c0_i32, %c0_i32_0 : i32, i32
  }
  func.func @transform_2(%arg0: i32) -> (i32, i32) {
    %c0_i32 = arith.constant 0 : i32
    %c0_i32_0 = arith.constant 0 : i32
    %c0_i32_1 = arith.constant 0 : i32
    return %c0_i32, %c0_i32_0 : i32, i32
  }
  func.func @transform_3(%arg0: i32) -> (i32, i32) {
    %c0_i32 = arith.constant 0 : i32
    %c0_i32_0 = arith.constant 0 : i32
    %c0_i32_1 = arith.constant 0 : i32
    return %c0_i32, %c0_i32_0 : i32, i32
  }
  func.func @transform_4(%arg0: i32) -> (i32, i32) {
    %c0_i32 = arith.constant 0 : i32
    %c0_i32_0 = arith.constant 0 : i32
    %c0_i32_1 = arith.constant 0 : i32
    return %c0_i32, %c0_i32_0 : i32, i32
  }
  func.func @transform_5(%arg0: i32) -> (i32, i32) {
    %c0_i32 = arith.constant 0 : i32
    %c0_i32_0 = arith.constant 0 : i32
    %c0_i32_1 = arith.constant 0 : i32
    return %c0_i32, %c0_i32_0 : i32, i32
  }
  func.func @transform_6(%arg0: i32) -> (i32, i32) {
    %c0_i32 = arith.constant 0 : i32
    %c0_i32_0 = arith.constant 0 : i32
    %c0_i32_1 = arith.constant 0 : i32
    return %c0_i32, %c0_i32_0 : i32, i32
  }
  func.func @transform_7(%arg0: i32) -> (i32, i32) {
    %c0_i32 = arith.constant 0 : i32
    %c0_i32_0 = arith.constant 0 : i32
    %c0_i32_1 = arith.constant 0 : i32
    return %c0_i32, %c0_i32_0 : i32, i32
  }
  func.func @transform_8(%arg0: i32) -> (i32, i32) {
    %c0_i32 = arith.constant 0 : i32
    %c0_i32_0 = arith.constant 0 : i32
    %c0_i32_1 = arith.constant 0 : i32
    return %c0_i32, %c0_i32_0 : i32, i32
  }
  func.func @transform_9(%arg0: i32) -> (i32, i32) {
    %c0_i32 = arith.constant 0 : i32
    %c0_i32_0 = arith.constant 0 : i32
    %c0_i32_1 = arith.constant 0 : i32
    return %c0_i32, %c0_i32_0 : i32, i32
  }
  func.func @transform_10(%arg0: i32) -> (i32, i32) {
    %c0_i32 = arith.constant 0 : i32
    %c0_i32_0 = arith.constant 0 : i32
    %c0_i32_1 = arith.constant 0 : i32
    return %c0_i32, %c0_i32_0 : i32, i32
  }
  func.func @transform_11(%arg0: i32) -> (i32, i32) {
    %c0_i32 = arith.constant 0 : i32
    %c0_i32_0 = arith.constant 0 : i32
    %c0_i32_1 = arith.constant 0 : i32
    return %c0_i32, %c0_i32_0 : i32, i32
  }
  func.func @transform_12(%arg0: i32) -> (i32, i32) {
    %c0_i32 = arith.constant 0 : i32
    %c0_i32_0 = arith.constant 0 : i32
    %c0_i32_1 = arith.constant 0 : i32
    return %c0_i32, %c0_i32_0 : i32, i32
  }
  func.func @transform_13(%arg0: i32) -> (i32, i32) {
    %c0_i32 = arith.constant 0 : i32
    %c0_i32_0 = arith.constant 0 : i32
    return %arg0, %c0_i32 : i32, i32
  }
}

</mosaic_0001>

<llo_original>
// kernel: tpu_custom_call.1
$region0: #{tpu_custom_call.1}
  #allocation0 [shape = 'u32[]', space=smem, size = 0x4, offset = 0x4, fixed_abs, tag = 'smem constant byte address 0x4 - core index']
  #allocation1 [shape = 'u32[144,128]{1,0:T(1,128)}', space=vmem, size = 0x12000, scoped, tag = 'internal scratch']
  #allocation2 [shape = 'f32[1024,32]{1,0:T(8,128)}', space=vmem, size = 0x80000, scoped, tag = 'scratch operand']
  #allocation3 [shape = 'f32[512,64]{1,0:T(8,128)}', space=vmem, size = 0x40000, scoped, tag = 'scratch operand']
  #allocation4 [shape = 'f32[256,128]{1,0:T(8,128)}', space=vmem, size = 0x20000, scoped, tag = 'scratch operand']
  %s0 = inlined_call_operand.vmem [shape: f32[2048,1], index: 0, kind: input, shape index: {}]
  %s1 = inlined_call_operand.vmem [shape: f32[3,32], index: 1, kind: input, shape index: {}]
  %s2 = inlined_call_operand.vmem [shape: f32[1,32], index: 2, kind: input, shape index: {}]
  %s3 = inlined_call_operand.vmem [shape: f32[1,32], index: 3, kind: input, shape index: {}]
  %s4 = inlined_call_operand.vmem [shape: bf16[96,64], index: 4, kind: input, shape index: {}]
  %s5 = inlined_call_operand.vmem [shape: f32[1,64], index: 5, kind: input, shape index: {}]
  %s6 = inlined_call_operand.vmem [shape: bf16[192,128], index: 6, kind: input, shape index: {}]
  %s7 = inlined_call_operand.vmem [shape: f32[1,128], index: 7, kind: input, shape index: {}]
  %s8 = inlined_call_operand.vmem [shape: f32[1,128], index: 8, kind: input, shape index: {}]
  %s9 = inlined_call_operand.vmem [shape: bf16[256,128], index: 9, kind: input, shape index: {}]
  %s10 = inlined_call_operand.vmem [shape: f32[1,128], index: 10, kind: input, shape index: {}]
  %s11 = inlined_call_operand.vmem [shape: bf16[128,128], index: 11, kind: input, shape index: {}]
  %s12 = inlined_call_operand.vmem [shape: f32[1,128], index: 12, kind: input, shape index: {}]
  %s13 = inlined_call_operand.hbm [shape: f32[128,128], index: 13, kind: output, shape index: {}]
  %s14 = sld [smem:[#allocation0]]
  $region85: #{tpu_custom_call.1} parent=0
    _
  %s16 = ssub.s32 1, %s14
  %s17 = scalar_select 0, %s16, %s14
  $region1: #{tpu_custom_call.1} parent=0
    #allocation5 [shape = 'u8[65536]{0}', space=vmem, size = 0x10000, scoped, tag = 'output window, operand 0']
    #allocation6 [shape = 's32[2]{0}', space=sflag, size = 0x8, scoped, tag = 'scoped memory for tpu_custom_call.1']
    %18 = vsyncpa [#allocation6], 0
    %s19 = scalar_lea.sflag [#allocation6], 1
    %20 = vsyncpa %s19, 0
    loop: start=0, step=1, limit=4
    $region2: #{tpu_custom_call.1} parent=1 // loop_pre_header
      _
    $region3: #{tpu_custom_call.1} parent=1 // loop_header
      %s22 = sphi 0, %s26
      %p23 = scmp.ge.s32.totalorder %s22, 4
      %s32 = sphi 0, %s34
      %s35 = sphi 0, %s32
      %s36 = sphi 0, %s35
      %s52 = sphi 0, %s36
      %s56 = sphi 0, %s56
      %s58 = sphi 0, %s56
      %s59 = sphi 0, %s58
      %s73 = sphi 0, %s59
      %s77 = sphi 0, %s77
      %s79 = sphi 0, %s77
      %s80 = sphi 0, %s79
      %s94 = sphi 0, %s80
      %s98 = sphi 0, %s98
      %s100 = sphi 0, %s98
      %s101 = sphi 0, %s100
      %s115 = sphi 0, %s101
      %s119 = sphi 0, %s119
      %s121 = sphi 0, %s119
      %s122 = sphi 0, %s121
      %s136 = sphi 0, %s122
      %s140 = sphi 0, %s140
      %s142 = sphi 0, %s140
      %s143 = sphi 0, %s142
      %s157 = sphi 0, %s143
      %s161 = sphi 0, %s161
      %s163 = sphi 0, %s161
      %s164 = sphi 0, %s163
      %s178 = sphi 0, %s164
      %s182 = sphi 0, %s182
      %s184 = sphi 0, %s182
      %s185 = sphi 0, %s184
      %s199 = sphi 0, %s185
      %s203 = sphi 0, %s203
      %s205 = sphi 0, %s203
      %s206 = sphi 0, %s205
      %s220 = sphi 0, %s206
      %s224 = sphi 0, %s224
      %s226 = sphi 0, %s224
      %s227 = sphi 0, %s226
      %s241 = sphi 0, %s227
      %s245 = sphi 0, %s245
      %s247 = sphi 0, %s245
      %s248 = sphi 0, %s247
      %s262 = sphi 0, %s248
      %s266 = sphi 0, %s266
      %s268 = sphi 0, %s266
      %s269 = sphi 0, %s268
      %s283 = sphi 0, %s269
      %s287 = sphi 0, %s287
      %s289 = sphi 0, %s287
      %s290 = sphi 0, %s289
      %s304 = sphi 0, %s290
      %s310 = sphi 0, %s312
      %s313 = sphi 0, %s310
      %s314 = sphi 0, %s313
      %s330 = sphi 0, %s314
    $region4: #{tpu_custom_call.1} parent=1 // loop_header_branch
      %25 = sbr.rel (%p23) target = $region8
    $region5: #{tpu_custom_call.1} parent=1 // loop_body
      %s27 = ssub.s32 %s22, 1
      %s28 = ssub.s32 %s22, 2
      %s29 = sadd.s32 %s22, 1
      %s30 = ssub.s32 %s22, %s29
      %p31 = scmp.eq.s32.totalorder %s30, 0
      %s33 = sadd.s32 %s32, 1
      %s34 = scalar_select %p31, %s32, %s33
      %p37 = pneg %p31
      %p38 = scmp.eq.s32.totalorder %s22, 1
      %p39 = por %p37, %p38
      %p40 = scmp.ne.s32.totalorder %s32, %s35
      %p41 = scmp.eq.s32.totalorder %s22, 0
      %p42 = por %p40, %p41
      %p43 = scmp.ne.s32.totalorder %s32, %s35
      %p44 = scmp.eq.s32.totalorder %s27, 1
      %p45 = por %p43, %p44
      %p46 = scmp.ne.s32.totalorder %s35, %s36
      %p47 = scmp.eq.s32.totalorder %s27, 0
      %p48 = por %p46, %p47
      %p49 = scmp.ne.s32.totalorder %s35, %s36
      %p50 = scmp.eq.s32.totalorder %s28, 1
      %p51 = por %p49, %p50
      %p53 = scmp.ne.s32.totalorder %s36, %s52
      %p54 = scmp.eq.s32.totalorder %s28, 0
      %p55 = por %p53, %p54
      %s57 = sadd.s32 %s56, 1
      %p60 = scmp.eq.s32.totalorder %s22, 1
      %p61 = scmp.ne.s32.totalorder %s56, %s58
      %p62 = scmp.eq.s32.totalorder %s22, 0
      %p63 = por %p61, %p62
      %p64 = scmp.ne.s32.totalorder %s56, %s58
      %p65 = scmp.eq.s32.totalorder %s27, 1
      %p66 = por %p64, %p65
      %p67 = scmp.ne.s32.totalorder %s58, %s59
      %p68 = scmp.eq.s32.totalorder %s27, 0
      %p69 = por %p67, %p68
      %p70 = scmp.ne.s32.totalorder %s58, %s59
      %p71 = scmp.eq.s32.totalorder %s28, 1
      %p72 = por %p70, %p71
      %p74 = scmp.ne.s32.totalorder %s59, %s73
      %p75 = scmp.eq.s32.totalorder %s28, 0
      %p76 = por %p74, %p75
      %s78 = sadd.s32 %s77, 1
      %p81 = scmp.eq.s32.totalorder %s22, 1
      %p82 = scmp.ne.s32.totalorder %s77, %s79
      %p83 = scmp.eq.s32.totalorder %s22, 0
      %p84 = por %p82, %p83
      %p85 = scmp.ne.s32.totalorder %s77, %s79
      %p86 = scmp.eq.s32.totalorder %s27, 1
      %p87 = por %p85, %p86
      %p88 = scmp.ne.s32.totalorder %s79, %s80
      %p89 = scmp.eq.s32.totalorder %s27, 0
      %p90 = por %p88, %p89
      %p91 = scmp.ne.s32.totalorder %s79, %s80
      %p92 = scmp.eq.s32.totalorder %s28, 1
      %p93 = por %p91, %p92
      %p95 = scmp.ne.s32.totalorder %s80, %s94
      %p96 = scmp.eq.s32.totalorder %s28, 0
      %p97 = por %p95, %p96
      %s99 = sadd.s32 %s98, 1
      %p102 = scmp.eq.s32.totalorder %s22, 1
      %p103 = scmp.ne.s32.totalorder %s98, %s100
      %p104 = scmp.eq.s32.totalorder %s22, 0
      %p105 = por %p103, %p104
      %p106 = scmp.ne.s32.totalorder %s98, %s100
      %p107 = scmp.eq.s32.totalorder %s27, 1
      %p108 = por %p106, %p107
      %p109 = scmp.ne.s32.totalorder %s100, %s101
      %p110 = scmp.eq.s32.totalorder %s27, 0
      %p111 = por %p109, %p110
      %p112 = scmp.ne.s32.totalorder %s100, %s101
      %p113 = scmp.eq.s32.totalorder %s28, 1
      %p114 = por %p112, %p113
      %p116 = scmp.ne.s32.totalorder %s101, %s115
      %p117 = scmp.eq.s32.totalorder %s28, 0
      %p118 = por %p116, %p117
      %s120 = sadd.s32 %s119, 1
      %p123 = scmp.eq.s32.totalorder %s22, 1
      %p124 = scmp.ne.s32.totalorder %s119, %s121
      %p125 = scmp.eq.s32.totalorder %s22, 0
      %p126 = por %p124, %p125
      %p127 = scmp.ne.s32.totalorder %s119, %s121
      %p128 = scmp.eq.s32.totalorder %s27, 1
      %p129 = por %p127, %p128
      %p130 = scmp.ne.s32.totalorder %s121, %s122
      %p131 = scmp.eq.s32.totalorder %s27, 0
      %p132 = por %p130, %p131
      %p133 = scmp.ne.s32.totalorder %s121, %s122
      %p134 = scmp.eq.s32.totalorder %s28, 1
      %p135 = por %p133, %p134
      %p137 = scmp.ne.s32.totalorder %s122, %s136
      %p138 = scmp.eq.s32.totalorder %s28, 0
      %p139 = por %p137, %p138
      %s141 = sadd.s32 %s140, 1
      %p144 = scmp.eq.s32.totalorder %s22, 1
      %p145 = scmp.ne.s32.totalorder %s140, %s142
      %p146 = scmp.eq.s32.totalorder %s22, 0
      %p147 = por %p145, %p146
      %p148 = scmp.ne.s32.totalorder %s140, %s142
      %p149 = scmp.eq.s32.totalorder %s27, 1
      %p150 = por %p148, %p149
      %p151 = scmp.ne.s32.totalorder %s142, %s143
      %p152 = scmp.eq.s32.totalorder %s27, 0
      %p153 = por %p151, %p152
      %p154 = scmp.ne.s32.totalorder %s142, %s143
      %p155 = scmp.eq.s32.totalorder %s28, 1
      %p156 = por %p154, %p155
      %p158 = scmp.ne.s32.totalorder %s143, %s157
      %p159 = scmp.eq.s32.totalorder %s28, 0
      %p160 = por %p158, %p159
      %s162 = sadd.s32 %s161, 1
      %p165 = scmp.eq.s32.totalorder %s22, 1
      %p166 = scmp.ne.s32.totalorder %s161, %s163
      %p167 = scmp.eq.s32.totalorder %s22, 0
      %p168 = por %p166, %p167
      %p169 = scmp.ne.s32.totalorder %s161, %s163
      %p170 = scmp.eq.s32.totalorder %s27, 1
      %p171 = por %p169, %p170
      %p172 = scmp.ne.s32.totalorder %s163, %s164
      %p173 = scmp.eq.s32.totalorder %s27, 0
      %p174 = por %p172, %p173
      %p175 = scmp.ne.s32.totalorder %s163, %s164
      %p176 = scmp.eq.s32.totalorder %s28, 1
      %p177 = por %p175, %p176
      %p179 = scmp.ne.s32.totalorder %s164, %s178
      %p180 = scmp.eq.s32.totalorder %s28, 0
      %p181 = por %p179, %p180
      %s183 = sadd.s32 %s182, 1
      %p186 = scmp.eq.s32.totalorder %s22, 1
      %p187 = scmp.ne.s32.totalorder %s182, %s184
      %p188 = scmp.eq.s32.totalorder %s22, 0
      %p189 = por %p187, %p188
      %p190 = scmp.ne.s32.totalorder %s182, %s184
      %p191 = scmp.eq.s32.totalorder %s27, 1
      %p192 = por %p190, %p191
      %p193 = scmp.ne.s32.totalorder %s184, %s185
      %p194 = scmp.eq.s32.totalorder %s27, 0
      %p195 = por %p193, %p194
      %p196 = scmp.ne.s32.totalorder %s184, %s185
      %p197 = scmp.eq.s32.totalorder %s28, 1
      %p198 = por %p196, %p197
      %p200 = scmp.ne.s32.totalorder %s185, %s199
      %p201 = scmp.eq.s32.totalorder %s28, 0
      %p202 = por %p200, %p201
      %s204 = sadd.s32 %s203, 1
      %p207 = scmp.eq.s32.totalorder %s22, 1
      %p208 = scmp.ne.s32.totalorder %s203, %s205
      %p209 = scmp.eq.s32.totalorder %s22, 0
      %p210 = por %p208, %p209
      %p211 = scmp.ne.s32.totalorder %s203, %s205
      %p212 = scmp.eq.s32.totalorder %s27, 1
      %p213 = por %p211, %p212
      %p214 = scmp.ne.s32.totalorder %s205, %s206
      %p215 = scmp.eq.s32.totalorder %s27, 0
      %p216 = por %p214, %p215
      %p217 = scmp.ne.s32.totalorder %s205, %s206
      %p218 = scmp.eq.s32.totalorder %s28, 1
      %p219 = por %p217, %p218
      %p221 = scmp.ne.s32.totalorder %s206, %s220
      %p222 = scmp.eq.s32.totalorder %s28, 0
      %p223 = por %p221, %p222
      %s225 = sadd.s32 %s224, 1
      %p228 = scmp.eq.s32.totalorder %s22, 1
      %p229 = scmp.ne.s32.totalorder %s224, %s226
      %p230 = scmp.eq.s32.totalorder %s22, 0
      %p231 = por %p229, %p230
      %p232 = scmp.ne.s32.totalorder %s224, %s226
      %p233 = scmp.eq.s32.totalorder %s27, 1
      %p234 = por %p232, %p233
      %p235 = scmp.ne.s32.totalorder %s226, %s227
      %p236 = scmp.eq.s32.totalorder %s27, 0
      %p237 = por %p235, %p236
      %p238 = scmp.ne.s32.totalorder %s226, %s227
      %p239 = scmp.eq.s32.totalorder %s28, 1
      %p240 = por %p238, %p239
      %p242 = scmp.ne.s32.totalorder %s227, %s241
      %p243 = scmp.eq.s32.totalorder %s28, 0
      %p244 = por %p242, %p243
      %s246 = sadd.s32 %s245, 1
      %p249 = scmp.eq.s32.totalorder %s22, 1
      %p250 = scmp.ne.s32.totalorder %s245, %s247
      %p251 = scmp.eq.s32.totalorder %s22, 0
      %p252 = por %p250, %p251
      %p253 = scmp.ne.s32.totalorder %s245, %s247
      %p254 = scmp.eq.s32.totalorder %s27, 1
      %p255 = por %p253, %p254
      %p256 = scmp.ne.s32.totalorder %s247, %s248
      %p257 = scmp.eq.s32.totalorder %s27, 0
      %p258 = por %p256, %p257
      %p259 = scmp.ne.s32.totalorder %s247, %s248
      %p260 = scmp.eq.s32.totalorder %s28, 1
      %p261 = por %p259, %p260
      %p263 = scmp.ne.s32.totalorder %s248, %s262
      %p264 = scmp.eq.s32.totalorder %s28, 0
      %p265 = por %p263, %p264
      %s267 = sadd.s32 %s266, 1
      %p270 = scmp.eq.s32.totalorder %s22, 1
      %p271 = scmp.ne.s32.totalorder %s266, %s268
      %p272 = scmp.eq.s32.totalorder %s22, 0
      %p273 = por %p271, %p272
      %p274 = scmp.ne.s32.totalorder %s266, %s268
      %p275 = scmp.eq.s32.totalorder %s27, 1
      %p276 = por %p274, %p275
      %p277 = scmp.ne.s32.totalorder %s268, %s269
      %p278 = scmp.eq.s32.totalorder %s27, 0
      %p279 = por %p277, %p278
      %p280 = scmp.ne.s32.totalorder %s268, %s269
      %p281 = scmp.eq.s32.totalorder %s28, 1
      %p282 = por %p280, %p281
      %p284 = scmp.ne.s32.totalorder %s269, %s283
      %p285 = scmp.eq.s32.totalorder %s28, 0
      %p286 = por %p284, %p285
      %s288 = sadd.s32 %s287, 1
      %p291 = scmp.eq.s32.totalorder %s22, 1
      %p292 = scmp.ne.s32.totalorder %s287, %s289
      %p293 = scmp.eq.s32.totalorder %s22, 0
      %p294 = por %p292, %p293
      %p295 = scmp.ne.s32.totalorder %s287, %s289
      %p296 = scmp.eq.s32.totalorder %s27, 1
      %p297 = por %p295, %p296
      %p298 = scmp.ne.s32.totalorder %s289, %s290
      %p299 = scmp.eq.s32.totalorder %s27, 0
      %p300 = por %p298, %p299
      %p301 = scmp.ne.s32.totalorder %s289, %s290
      %p302 = scmp.eq.s32.totalorder %s28, 1
      %p303 = por %p301, %p302
      %p305 = scmp.ne.s32.totalorder %s290, %s304
      %p306 = scmp.eq.s32.totalorder %s28, 0
      %p307 = por %p305, %p306
      %s308 = ssub.s32 %s22, %s29
      %p309 = scmp.eq.s32.totalorder %s308, 0
      %s311 = sadd.s32 %s310, 1
      %s312 = scalar_select %p309, %s310, %s311
      %p315 = pneg %p309
      %p316 = scmp.eq.s32.totalorder %s22, 1
      %p317 = por %p315, %p316
      %p318 = scmp.ne.s32.totalorder %s310, %s313
      %p319 = scmp.eq.s32.totalorder %s22, 0
      %p320 = por %p318, %p319
      %p321 = scmp.ne.s32.totalorder %s310, %s313
      %p322 = scmp.eq.s32.totalorder %s27, 1
      %p323 = por %p321, %p322
      %p324 = scmp.ne.s32.totalorder %s313, %s314
      %p325 = scmp.eq.s32.totalorder %s27, 0
      %p326 = por %p324, %p325
      %p327 = scmp.ne.s32.totalorder %s313, %s314
      %p328 = scmp.eq.s32.totalorder %s28, 1
      %p329 = por %p327, %p328
      %p331 = scmp.ne.s32.totalorder %s314, %s330
      %p332 = scmp.eq.s32.totalorder %s28, 0
      %p333 = por %p331, %p332
      %p334 = scmp.le.s32.totalorder 1, %s22
      %p335 = scmp.lt.s32.totalorder %s22, 3
      %p336 = pnand %p334, %p335
      %p337 = pneg %p336
      // Predicated region
      $region9: #{tpu_custom_call.1} parent=5 // pred_check
        _
      $region10: #{tpu_custom_call.1} parent=5 // pred_check_branch
        %339 = sbr.rel (%p336) target = $region12
      $region11: #{tpu_custom_call.1} parent=5 // pred_region
        %s340 = ssub.s32 %s22, 1
        // Predicated region
        $region13: #{tpu_custom_call.1} parent=11 // pred_check
          %p341 = pneg %p69
        $region14: #{tpu_custom_call.1} parent=11 // pred_check_branch
          %343 = sbr.rel (%p341) target = $region16
        $region15: #{tpu_custom_call.1} parent=11 // pred_region
          _
        $region16: #{tpu_custom_call.1} parent=11 // pred_fallthru
          _
        // Predicated region
        $region17: #{tpu_custom_call.1} parent=11 // pred_check
          %p344 = pneg %p90
        $region18: #{tpu_custom_call.1} parent=11 // pred_check_branch
          %346 = sbr.rel (%p344) target = $region20
        $region19: #{tpu_custom_call.1} parent=11 // pred_region
          _
        $region20: #{tpu_custom_call.1} parent=11 // pred_fallthru
          _
        // Predicated region
        $region21: #{tpu_custom_call.1} parent=11 // pred_check
          %p347 = pneg %p111
        $region22: #{tpu_custom_call.1} parent=11 // pred_check_branch
          %349 = sbr.rel (%p347) target = $region24
        $region23: #{tpu_custom_call.1} parent=11 // pred_region
          _
        $region24: #{tpu_custom_call.1} parent=11 // pred_fallthru
          _
        // Predicated region
        $region25: #{tpu_custom_call.1} parent=11 // pred_check
          %p350 = pneg %p132
        $region26: #{tpu_custom_call.1} parent=11 // pred_check_branch
          %352 = sbr.rel (%p350) target = $region28
        $region27: #{tpu_custom_call.1} parent=11 // pred_region
          _
        $region28: #{tpu_custom_call.1} parent=11 // pred_fallthru
          _
        // Predicated region
        $region29: #{tpu_custom_call.1} parent=11 // pred_check
          %p353 = pneg %p153
        $region30: #{tpu_custom_call.1} parent=11 // pred_check_branch
          %355 = sbr.rel (%p353) target = $region32
        $region31: #{tpu_custom_call.1} parent=11 // pred_region
          _
        $region32: #{tpu_custom_call.1} parent=11 // pred_fallthru
          _
        // Predicated region
        $region33: #{tpu_custom_call.1} parent=11 // pred_check
          %p356 = pneg %p174
        $region34: #{tpu_custom_call.1} parent=11 // pred_check_branch
          %358 = sbr.rel (%p356) target = $region36
        $region35: #{tpu_custom_call.1} parent=11 // pred_region
          _
        $region36: #{tpu_custom_call.1} parent=11 // pred_fallthru
          _
        // Predicated region
        $region37: #{tpu_custom_call.1} parent=11 // pred_check
          %p359 = pneg %p195
        $region38: #{tpu_custom_call.1} parent=11 // pred_check_branch
          %361 = sbr.rel (%p359) target = $region40
        $region39: #{tpu_custom_call.1} parent=11 // pred_region
          _
        $region40: #{tpu_custom_call.1} parent=11 // pred_fallthru
          _
        // Predicated region
        $region41: #{tpu_custom_call.1} parent=11 // pred_check
          %p362 = pneg %p216
        $region42: #{tpu_custom_call.1} parent=11 // pred_check_branch
          %364 = sbr.rel (%p362) target = $region44
        $region43: #{tpu_custom_call.1} parent=11 // pred_region
          _
        $region44: #{tpu_custom_call.1} parent=11 // pred_fallthru
          _
        // Predicated region
        $region45: #{tpu_custom_call.1} parent=11 // pred_check
          %p365 = pneg %p237
        $region46: #{tpu_custom_call.1} parent=11 // pred_check_branch
          %367 = sbr.rel (%p365) target = $region48
        $region47: #{tpu_custom_call.1} parent=11 // pred_region
          _
        $region48: #{tpu_custom_call.1} parent=11 // pred_fallthru
          _
        // Predicated region
        $region49: #{tpu_custom_call.1} parent=11 // pred_check
          %p368 = pneg %p258
        $region50: #{tpu_custom_call.1} parent=11 // pred_check_branch
          %370 = sbr.rel (%p368) target = $region52
        $region51: #{tpu_custom_call.1} parent=11 // pred_region
          _
        $region52: #{tpu_custom_call.1} parent=11 // pred_fallthru
          _
        // Predicated region
        $region53: #{tpu_custom_call.1} parent=11 // pred_check
          %p371 = pneg %p279
        $region54: #{tpu_custom_call.1} parent=11 // pred_check_branch
          %373 = sbr.rel (%p371) target = $region56
        $region55: #{tpu_custom_call.1} parent=11 // pred_region
          _
        $region56: #{tpu_custom_call.1} parent=11 // pred_fallthru
          _
        // Predicated region
        $region57: #{tpu_custom_call.1} parent=11 // pred_check
          %p374 = pneg %p300
        $region58: #{tpu_custom_call.1} parent=11 // pred_check_branch
          %376 = sbr.rel (%p374) target = $region60
        $region59: #{tpu_custom_call.1} parent=11 // pred_region
          _
        $region60: #{tpu_custom_call.1} parent=11 // pred_fallthru
          _
      $region12: #{tpu_custom_call.1} parent=5 // pred_fallthru
        _
      %p377 = scmp.lt.s32.totalorder %s22, 2
      // Predicated region
      $region61: #{tpu_custom_call.1} parent=5 // pred_check
        %p378 = pneg %p377
      $region62: #{tpu_custom_call.1} parent=5 // pred_check_branch
        %380 = sbr.rel (%p378) target = $region64
      $region63: #{tpu_custom_call.1} parent=5 // pred_region
        // Predicated region
        $region65: #{tpu_custom_call.1} parent=63 // pred_check
          %p381 = pneg %p42
        $region66: #{tpu_custom_call.1} parent=63 // pred_check_branch
          %383 = sbr.rel (%p381) target = $region68
        $region67: #{tpu_custom_call.1} parent=63 // pred_region
          %s384 = smul.u32 128, %s22
          %p385 = scmp.lt.s32.totalorder %s384, 255
          %s386 = scalar_select %p385, %s384, 255
          %s387 = smul.addr %s386, 8
          %s388 = scalar_lea.vmem %s0, %s387
          %s389 = smul.u32 128, %s22
        $region68: #{tpu_custom_call.1} parent=63 // pred_fallthru
          _
      $region64: #{tpu_custom_call.1} parent=5 // pred_fallthru
        _
      %p390 = scmp.le.s32.totalorder 1, %s22
      %p391 = scmp.lt.s32.totalorder %s22, 3
      %p392 = pnand %p390, %p391
      %p393 = pneg %p392
      // Predicated region
      $region69: #{tpu_custom_call.1} parent=5 // pred_check
        _
      $region70: #{tpu_custom_call.1} parent=5 // pred_check_branch
        %395 = sbr.rel (%p392) target = $region72
      $region71: #{tpu_custom_call.1} parent=5 // pred_region
        %s396 = ssub.s32 %s22, 1
        %s397 = smul.u32 128, %s27
        %p398 = scmp.lt.s32.totalorder %s397, 255
        %s399 = scalar_select %p398, %s397, 255
        %s400 = smul.addr %s399, 8
        %s401 = scalar_lea.vmem %s0, %s400
        %p402 = pneg %p48
        %p403 = pneg %p45
        %p404 = pneg %p69
        %p405 = pneg %p66
        %p406 = pneg %p90
        %p407 = pneg %p87
        %p408 = pneg %p111
        %p409 = pneg %p108
        %p410 = pneg %p132
        %p411 = pneg %p129
        %p412 = pneg %p153
        %p413 = pneg %p150
        %p414 = pneg %p174
        %p415 = pneg %p171
        %p416 = pneg %p195
        %p417 = pneg %p192
        %p418 = pneg %p216
        %p419 = pneg %p213
        %p420 = pneg %p237
        %p421 = pneg %p234
        %p422 = pneg %p258
        %p423 = pneg %p255
        %p424 = pneg %p279
        %p425 = pneg %p276
        %p426 = pneg %p300
        %p427 = pneg %p297
        %p428 = pneg %p326
        %p429 = pneg %p323
        %s430 = sand.u32 %s313, 1
        %s431 = scalar_lea.sflag [#allocation6], %s430
        %s432 = sand.u32 %s313, 1
        %s433 = smul.addr %s432, 64
        %s434 = scalar_lea.vmem [#allocation5], %s433
        %s435 = smul.u32 128, %s27
        %p436 = scmp.lt.s32.totalorder %s435, 255
        %s437 = scalar_select %p436, %s435, 255
        %s438 = smul.addr %s437, 8
        %s439 = scalar_lea.vmem %s0, %s438
        %s440 = smul.u32 128, %s27
        %s441 = smul.u32 8, %s27
        %v443 = vld [vmem:[%s439] sm:$0xff]
        %v444 = vld [vmem:[%s439 + $0x8] sm:$0xff]
        %v445 = vld [vmem:[%s439 + $0x10] sm:$0xff]
        %v446 = vld [vmem:[%s439 + $0x18] sm:$0xff]
        %v447 = vld [vmem:[%s439 + $0x20] sm:$0xff]
        %v448 = vld [vmem:[%s439 + $0x28] sm:$0xff]
        %v449 = vld [vmem:[%s439 + $0x30] sm:$0xff]
        %v450 = vld [vmem:[%s439 + $0x38] sm:$0xff]
        %v451 = vld [vmem:[%s439 + $0x40] sm:$0xff]
        %v452 = vld [vmem:[%s439 + $0x48] sm:$0xff]
        %v453 = vld [vmem:[%s439 + $0x50] sm:$0xff]
        %v454 = vld [vmem:[%s439 + $0x58] sm:$0xff]
        %v455 = vld [vmem:[%s439 + $0x60] sm:$0xff]
        %v456 = vld [vmem:[%s439 + $0x68] sm:$0xff]
        %v457 = vld [vmem:[%s439 + $0x70] sm:$0xff]
        %v458 = vld [vmem:[%s439 + $0x78] sm:$0xff]
        %v459 = vld [vmem:[%s439 + $0x80] sm:$0xff]
        %v460 = vld [vmem:[%s439 + $0x88] sm:$0xff]
        %v461 = vld [vmem:[%s439 + $0x90] sm:$0xff]
        %v462 = vld [vmem:[%s439 + $0x98] sm:$0xff]
        %v463 = vld [vmem:[%s439 + $0xa0] sm:$0xff]
        %v464 = vld [vmem:[%s439 + $0xa8] sm:$0xff]
        %v465 = vld [vmem:[%s439 + $0xb0] sm:$0xff]
        %v466 = vld [vmem:[%s439 + $0xb8] sm:$0xff]
        %v467 = vld [vmem:[%s439 + $0xc0] sm:$0xff]
        %v468 = vld [vmem:[%s439 + $0xc8] sm:$0xff]
        %v469 = vld [vmem:[%s439 + $0xd0] sm:$0xff]
        %v470 = vld [vmem:[%s439 + $0xd8] sm:$0xff]
        %v471 = vld [vmem:[%s439 + $0xe0] sm:$0xff]
        %v472 = vld [vmem:[%s439 + $0xe8] sm:$0xff]
        %v473 = vld [vmem:[%s439 + $0xf0] sm:$0xff]
        %v474 = vld [vmem:[%s439 + $0xf8] sm:$0xff]
        %v475 = vld [vmem:[%s439 + $0x100] sm:$0xff]
        %v476 = vld [vmem:[%s439 + $0x108] sm:$0xff]
        %v477 = vld [vmem:[%s439 + $0x110] sm:$0xff]
        %v478 = vld [vmem:[%s439 + $0x118] sm:$0xff]
        %v479 = vld [vmem:[%s439 + $0x120] sm:$0xff]
        %v480 = vld [vmem:[%s439 + $0x128] sm:$0xff]
        %v481 = vld [vmem:[%s439 + $0x130] sm:$0xff]
        %v482 = vld [vmem:[%s439 + $0x138] sm:$0xff]
        %v483 = vld [vmem:[%s439 + $0x140] sm:$0xff]
        %v484 = vld [vmem:[%s439 + $0x148] sm:$0xff]
        %v485 = vld [vmem:[%s439 + $0x150] sm:$0xff]
        %v486 = vld [vmem:[%s439 + $0x158] sm:$0xff]
        %v487 = vld [vmem:[%s439 + $0x160] sm:$0xff]
        %v488 = vld [vmem:[%s439 + $0x168] sm:$0xff]
        %v489 = vld [vmem:[%s439 + $0x170] sm:$0xff]
        %v490 = vld [vmem:[%s439 + $0x178] sm:$0xff]
        %v491 = vld [vmem:[%s439 + $0x180] sm:$0xff]
        %v492 = vld [vmem:[%s439 + $0x188] sm:$0xff]
        %v493 = vld [vmem:[%s439 + $0x190] sm:$0xff]
        %v494 = vld [vmem:[%s439 + $0x198] sm:$0xff]
        %v495 = vld [vmem:[%s439 + $0x1a0] sm:$0xff]
        %v496 = vld [vmem:[%s439 + $0x1a8] sm:$0xff]
        %v497 = vld [vmem:[%s439 + $0x1b0] sm:$0xff]
        %v498 = vld [vmem:[%s439 + $0x1b8] sm:$0xff]
        %v499 = vld [vmem:[%s439 + $0x1c0] sm:$0xff]
        %v500 = vld [vmem:[%s439 + $0x1c8] sm:$0xff]
        %v501 = vld [vmem:[%s439 + $0x1d0] sm:$0xff]
        %v502 = vld [vmem:[%s439 + $0x1d8] sm:$0xff]
        %v503 = vld [vmem:[%s439 + $0x1e0] sm:$0xff]
        %v504 = vld [vmem:[%s439 + $0x1e8] sm:$0xff]
        %v505 = vld [vmem:[%s439 + $0x1f0] sm:$0xff]
        %v506 = vld [vmem:[%s439 + $0x1f8] sm:$0xff]
        %v507 = vld [vmem:[%s439 + $0x200] sm:$0xff]
        %v508 = vld [vmem:[%s439 + $0x208] sm:$0xff]
        %v509 = vld [vmem:[%s439 + $0x210] sm:$0xff]
        %v510 = vld [vmem:[%s439 + $0x218] sm:$0xff]
        %v511 = vld [vmem:[%s439 + $0x220] sm:$0xff]
        %v512 = vld [vmem:[%s439 + $0x228] sm:$0xff]
        %v513 = vld [vmem:[%s439 + $0x230] sm:$0xff]
        %v514 = vld [vmem:[%s439 + $0x238] sm:$0xff]
        %v515 = vld [vmem:[%s439 + $0x240] sm:$0xff]
        %v516 = vld [vmem:[%s439 + $0x248] sm:$0xff]
        %v517 = vld [vmem:[%s439 + $0x250] sm:$0xff]
        %v518 = vld [vmem:[%s439 + $0x258] sm:$0xff]
        %v519 = vld [vmem:[%s439 + $0x260] sm:$0xff]
        %v520 = vld [vmem:[%s439 + $0x268] sm:$0xff]
        %v521 = vld [vmem:[%s439 + $0x270] sm:$0xff]
        %v522 = vld [vmem:[%s439 + $0x278] sm:$0xff]
        %v523 = vld [vmem:[%s439 + $0x280] sm:$0xff]
        %v524 = vld [vmem:[%s439 + $0x288] sm:$0xff]
        %v525 = vld [vmem:[%s439 + $0x290] sm:$0xff]
        %v526 = vld [vmem:[%s439 + $0x298] sm:$0xff]
        %v527 = vld [vmem:[%s439 + $0x2a0] sm:$0xff]
        %v528 = vld [vmem:[%s439 + $0x2a8] sm:$0xff]
        %v529 = vld [vmem:[%s439 + $0x2b0] sm:$0xff]
        %v530 = vld [vmem:[%s439 + $0x2b8] sm:$0xff]
        %v531 = vld [vmem:[%s439 + $0x2c0] sm:$0xff]
        %v532 = vld [vmem:[%s439 + $0x2c8] sm:$0xff]
        %v533 = vld [vmem:[%s439 + $0x2d0] sm:$0xff]
        %v534 = vld [vmem:[%s439 + $0x2d8] sm:$0xff]
        %v535 = vld [vmem:[%s439 + $0x2e0] sm:$0xff]
        %v536 = vld [vmem:[%s439 + $0x2e8] sm:$0xff]
        %v537 = vld [vmem:[%s439 + $0x2f0] sm:$0xff]
        %v538 = vld [vmem:[%s439 + $0x2f8] sm:$0xff]
        %v539 = vld [vmem:[%s439 + $0x300] sm:$0xff]
        %v540 = vld [vmem:[%s439 + $0x308] sm:$0xff]
        %v541 = vld [vmem:[%s439 + $0x310] sm:$0xff]
        %v542 = vld [vmem:[%s439 + $0x318] sm:$0xff]
        %v543 = vld [vmem:[%s439 + $0x320] sm:$0xff]
        %v544 = vld [vmem:[%s439 + $0x328] sm:$0xff]
        %v545 = vld [vmem:[%s439 + $0x330] sm:$0xff]
        %v546 = vld [vmem:[%s439 + $0x338] sm:$0xff]
        %v547 = vld [vmem:[%s439 + $0x340] sm:$0xff]
        %v548 = vld [vmem:[%s439 + $0x348] sm:$0xff]
        %v549 = vld [vmem:[%s439 + $0x350] sm:$0xff]
        %v550 = vld [vmem:[%s439 + $0x358] sm:$0xff]
        %v551 = vld [vmem:[%s439 + $0x360] sm:$0xff]
        %v552 = vld [vmem:[%s439 + $0x368] sm:$0xff]
        %v553 = vld [vmem:[%s439 + $0x370] sm:$0xff]
        %v554 = vld [vmem:[%s439 + $0x378] sm:$0xff]
        %v555 = vld [vmem:[%s439 + $0x380] sm:$0xff]
        %v556 = vld [vmem:[%s439 + $0x388] sm:$0xff]
        %v557 = vld [vmem:[%s439 + $0x390] sm:$0xff]
        %v558 = vld [vmem:[%s439 + $0x398] sm:$0xff]
        %v559 = vld [vmem:[%s439 + $0x3a0] sm:$0xff]
        %v560 = vld [vmem:[%s439 + $0x3a8] sm:$0xff]
        %v561 = vld [vmem:[%s439 + $0x3b0] sm:$0xff]
        %v562 = vld [vmem:[%s439 + $0x3b8] sm:$0xff]
        %v563 = vld [vmem:[%s439 + $0x3c0] sm:$0xff]
        %v564 = vld [vmem:[%s439 + $0x3c8] sm:$0xff]
        %v565 = vld [vmem:[%s439 + $0x3d0] sm:$0xff]
        %v566 = vld [vmem:[%s439 + $0x3d8] sm:$0xff]
        %v567 = vld [vmem:[%s439 + $0x3e0] sm:$0xff]
        %v568 = vld [vmem:[%s439 + $0x3e8] sm:$0xff]
        %v569 = vld [vmem:[%s439 + $0x3f0] sm:$0xff]
        %v570 = vld [vmem:[%s439 + $0x3f8] sm:$0xff]
        %v571 = vlaneseq
        %v572 = vshrl.u32 %v571, 7
        %v573 = vadd.s32 %v572, 8
        %v574 = vadd.s32 %v572, 16
        %v575 = vadd.s32 %v572, 24
        %v576 = vadd.s32 %v572, 32
        %v577 = vadd.s32 %v572, 40
        %v578 = vadd.s32 %v572, 48
        %v579 = vadd.s32 %v572, 56
        %v580 = vadd.s32 %v572, 64
        %v581 = vadd.s32 %v572, 72
        %v582 = vadd.s32 %v572, 80
        %v583 = vadd.s32 %v572, 88
        %v584 = vadd.s32 %v572, 96
        %v585 = vadd.s32 %v572, 104
        %v586 = vadd.s32 %v572, 112
        %v587 = vadd.s32 %v572, 120
        %v588 = vadd.s32 %v572, 128
        %v589 = vadd.s32 %v572, 136
        %v590 = vadd.s32 %v572, 144
        %v591 = vadd.s32 %v572, 152
        %v592 = vadd.s32 %v572, 160
        %v593 = vadd.s32 %v572, 168
        %v594 = vadd.s32 %v572, 176
        %v595 = vadd.s32 %v572, 184
        %v596 = vadd.s32 %v572, 192
        %v597 = vadd.s32 %v572, 200
        %v598 = vadd.s32 %v572, 208
        %v599 = vadd.s32 %v572, 216
        %v600 = vadd.s32 %v572, 224
        %v601 = vadd.s32 %v572, 232
        %v602 = vadd.s32 %v572, 240
        %v603 = vadd.s32 %v572, 248
        %v604 = vadd.s32 %v572, 256
        %v605 = vadd.s32 %v572, 264
        %v606 = vadd.s32 %v572, 272
        %v607 = vadd.s32 %v572, 280
        %v608 = vadd.s32 %v572, 288
        %v609 = vadd.s32 %v572, 296
        %v610 = vadd.s32 %v572, 304
        %v611 = vadd.s32 %v572, 312
        %v612 = vadd.s32 %v572, 320
        %v613 = vadd.s32 %v572, 328
        %v614 = vadd.s32 %v572, 336
        %v615 = vadd.s32 %v572, 344
        %v616 = vadd.s32 %v572, 352
        %v617 = vadd.s32 %v572, 360
        %v618 = vadd.s32 %v572, 368
        %v619 = vadd.s32 %v572, 376
        %v620 = vadd.s32 %v572, 384
        %v621 = vadd.s32 %v572, 392
        %v622 = vadd.s32 %v572, 400
        %v623 = vadd.s32 %v572, 408
        %v624 = vadd.s32 %v572, 416
        %v625 = vadd.s32 %v572, 424
        %v626 = vadd.s32 %v572, 432
        %v627 = vadd.s32 %v572, 440
        %v628 = vadd.s32 %v572, 448
        %v629 = vadd.s32 %v572, 456
        %v630 = vadd.s32 %v572, 464
        %v631 = vadd.s32 %v572, 472
        %v632 = vadd.s32 %v572, 480
        %v633 = vadd.s32 %v572, 488
        %v634 = vadd.s32 %v572, 496
        %v635 = vadd.s32 %v572, 504
        %v636 = vadd.s32 %v572, 512
        %v637 = vadd.s32 %v572, 520
        %v638 = vadd.s32 %v572, 528
        %v639 = vadd.s32 %v572, 536
        %v640 = vadd.s32 %v572, 544
        %v641 = vadd.s32 %v572, 552
        %v642 = vadd.s32 %v572, 560
        %v643 = vadd.s32 %v572, 568
        %v644 = vadd.s32 %v572, 576
        %v645 = vadd.s32 %v572, 584
        %v646 = vadd.s32 %v572, 592
        %v647 = vadd.s32 %v572, 600
        %v648 = vadd.s32 %v572, 608
        %v649 = vadd.s32 %v572, 616
        %v650 = vadd.s32 %v572, 624
        %v651 = vadd.s32 %v572, 632
        %v652 = vadd.s32 %v572, 640
        %v653 = vadd.s32 %v572, 648
        %v654 = vadd.s32 %v572, 656
        %v655 = vadd.s32 %v572, 664
        %v656 = vadd.s32 %v572, 672
        %v657 = vadd.s32 %v572, 680
        %v658 = vadd.s32 %v572, 688
        %v659 = vadd.s32 %v572, 696
        %v660 = vadd.s32 %v572, 704
        %v661 = vadd.s32 %v572, 712
        %v662 = vadd.s32 %v572, 720
        %v663 = vadd.s32 %v572, 728
        %v664 = vadd.s32 %v572, 736
        %v665 = vadd.s32 %v572, 744
        %v666 = vadd.s32 %v572, 752
        %v667 = vadd.s32 %v572, 760
        %v668 = vadd.s32 %v572, 768
        %v669 = vadd.s32 %v572, 776
        %v670 = vadd.s32 %v572, 784
        %v671 = vadd.s32 %v572, 792
        %v672 = vadd.s32 %v572, 800
        %v673 = vadd.s32 %v572, 808
        %v674 = vadd.s32 %v572, 816
        %v675 = vadd.s32 %v572, 824
        %v676 = vadd.s32 %v572, 832
        %v677 = vadd.s32 %v572, 840
        %v678 = vadd.s32 %v572, 848
        %v679 = vadd.s32 %v572, 856
        %v680 = vadd.s32 %v572, 864
        %v681 = vadd.s32 %v572, 872
        %v682 = vadd.s32 %v572, 880
        %v683 = vadd.s32 %v572, 888
        %v684 = vadd.s32 %v572, 896
        %v685 = vadd.s32 %v572, 904
        %v686 = vadd.s32 %v572, 912
        %v687 = vadd.s32 %v572, 920
        %v688 = vadd.s32 %v572, 928
        %v689 = vadd.s32 %v572, 936
        %v690 = vadd.s32 %v572, 944
        %v691 = vadd.s32 %v572, 952
        %v692 = vadd.s32 %v572, 960
        %v693 = vadd.s32 %v572, 968
        %v694 = vadd.s32 %v572, 976
        %v695 = vadd.s32 %v572, 984
        %v696 = vadd.s32 %v572, 992
        %v697 = vadd.s32 %v572, 1000
        %v698 = vadd.s32 %v572, 1008
        %v699 = vadd.s32 %v572, 1016
        %vm700 = vcmp.lt.s32.totalorder %v572, 0
        %v701 = vsub.s32 0, %v572
        %v702 = vsel %vm700, %v701, %v572
        %v703 = vshrl.u32 %v702, 4
        %v704 = vand.u32 %v702, 15
        %v705 = vsub.s32 0, %v704
        %v706 = vsel %vm700, %v705, %v704
        %vm707 = vcmp.lt.s32.totalorder %v573, 0
        %v708 = vsub.s32 0, %v573
        %v709 = vsel %vm707, %v708, %v573
        %v710 = vshrl.u32 %v709, 4
        %v711 = vand.u32 %v709, 15
        %v712 = vsub.s32 0, %v711
        %v713 = vsel %vm707, %v712, %v711
        %vm714 = vcmp.lt.s32.totalorder %v574, 0
        %v715 = vsub.s32 0, %v574
        %v716 = vsel %vm714, %v715, %v574
        %v717 = vshrl.u32 %v716, 4
        %v718 = vand.u32 %v716, 15
        %v719 = vsub.s32 0, %v718
        %v720 = vsel %vm714, %v719, %v718
        %vm721 = vcmp.lt.s32.totalorder %v575, 0
        %v722 = vsub.s32 0, %v575
        %v723 = vsel %vm721, %v722, %v575
        %v724 = vshrl.u32 %v723, 4
        %v725 = vand.u32 %v723, 15
        %v726 = vsub.s32 0, %v725
        %v727 = vsel %vm721, %v726, %v725
        %vm728 = vcmp.lt.s32.totalorder %v576, 0
        %v729 = vsub.s32 0, %v576
        %v730 = vsel %vm728, %v729, %v576
        %v731 = vshrl.u32 %v730, 4
        %v732 = vand.u32 %v730, 15
        %v733 = vsub.s32 0, %v732
        %v734 = vsel %vm728, %v733, %v732
        %vm735 = vcmp.lt.s32.totalorder %v577, 0
        %v736 = vsub.s32 0, %v577
        %v737 = vsel %vm735, %v736, %v577
        %v738 = vshrl.u32 %v737, 4
        %v739 = vand.u32 %v737, 15
        %v740 = vsub.s32 0, %v739
        %v741 = vsel %vm735, %v740, %v739
        %vm742 = vcmp.lt.s32.totalorder %v578, 0
        %v743 = vsub.s32 0, %v578
        %v744 = vsel %vm742, %v743, %v578
        %v745 = vshrl.u32 %v744, 4
        %v746 = vand.u32 %v744, 15
        %v747 = vsub.s32 0, %v746
        %v748 = vsel %vm742, %v747, %v746
        %vm749 = vcmp.lt.s32.totalorder %v579, 0
        %v750 = vsub.s32 0, %v579
        %v751 = vsel %vm749, %v750, %v579
        %v752 = vshrl.u32 %v751, 4
        %v753 = vand.u32 %v751, 15
        %v754 = vsub.s32 0, %v753
        %v755 = vsel %vm749, %v754, %v753
        %vm756 = vcmp.lt.s32.totalorder %v580, 0
        %v757 = vsub.s32 0, %v580
        %v758 = vsel %vm756, %v757, %v580
        %v759 = vshrl.u32 %v758, 4
        %v760 = vand.u32 %v758, 15
        %v761 = vsub.s32 0, %v760
        %v762 = vsel %vm756, %v761, %v760
        %vm763 = vcmp.lt.s32.totalorder %v581, 0
        %v764 = vsub.s32 0, %v581
        %v765 = vsel %vm763, %v764, %v581
        %v766 = vshrl.u32 %v765, 4
        %v767 = vand.u32 %v765, 15
        %v768 = vsub.s32 0, %v767
        %v769 = vsel %vm763, %v768, %v767
        %vm770 = vcmp.lt.s32.totalorder %v582, 0
        %v771 = vsub.s32 0, %v582
        %v772 = vsel %vm770, %v771, %v582
        %v773 = vshrl.u32 %v772, 4
        %v774 = vand.u32 %v772, 15
        %v775 = vsub.s32 0, %v774
        %v776 = vsel %vm770, %v775, %v774
        %vm777 = vcmp.lt.s32.totalorder %v583, 0
        %v778 = vsub.s32 0, %v583
        %v779 = vsel %vm777, %v778, %v583
        %v780 = vshrl.u32 %v779, 4
        %v781 = vand.u32 %v779, 15
        %v782 = vsub.s32 0, %v781
        %v783 = vsel %vm777, %v782, %v781
        %vm784 = vcmp.lt.s32.totalorder %v584, 0
        %v785 = vsub.s32 0, %v584
        %v786 = vsel %vm784, %v785, %v584
        %v787 = vshrl.u32 %v786, 4
        %v788 = vand.u32 %v786, 15
        %v789 = vsub.s32 0, %v788
        %v790 = vsel %vm784, %v789, %v788
        %vm791 = vcmp.lt.s32.totalorder %v585, 0
        %v792 = vsub.s32 0, %v585
        %v793 = vsel %vm791, %v792, %v585
        %v794 = vshrl.u32 %v793, 4
        %v795 = vand.u32 %v793, 15
        %v796 = vsub.s32 0, %v795
        %v797 = vsel %vm791, %v796, %v795
        %vm798 = vcmp.lt.s32.totalorder %v586, 0
        %v799 = vsub.s32 0, %v586
        %v800 = vsel %vm798, %v799, %v586
        %v801 = vshrl.u32 %v800, 4
        %v802 = vand.u32 %v800, 15
        %v803 = vsub.s32 0, %v802
        %v804 = vsel %vm798, %v803, %v802
        %vm805 = vcmp.lt.s32.totalorder %v587, 0
        %v806 = vsub.s32 0, %v587
        %v807 = vsel %vm805, %v806, %v587
        %v808 = vshrl.u32 %v807, 4
        %v809 = vand.u32 %v807, 15
        %v810 = vsub.s32 0, %v809
        %v811 = vsel %vm805, %v810, %v809
        %vm812 = vcmp.lt.s32.totalorder %v588, 0
        %v813 = vsub.s32 0, %v588
        %v814 = vsel %vm812, %v813, %v588
        %v815 = vshrl.u32 %v814, 4
        %v816 = vand.u32 %v814, 15
        %v817 = vsub.s32 0, %v816
        %v818 = vsel %vm812, %v817, %v816
        %vm819 = vcmp.lt.s32.totalorder %v589, 0
        %v820 = vsub.s32 0, %v589
        %v821 = vsel %vm819, %v820, %v589
        %v822 = vshrl.u32 %v821, 4
        %v823 = vand.u32 %v821, 15
        %v824 = vsub.s32 0, %v823
        %v825 = vsel %vm819, %v824, %v823
        %vm826 = vcmp.lt.s32.totalorder %v590, 0
        %v827 = vsub.s32 0, %v590
        %v828 = vsel %vm826, %v827, %v590
        %v829 = vshrl.u32 %v828, 4
        %v830 = vand.u32 %v828, 15
        %v831 = vsub.s32 0, %v830
        %v832 = vsel %vm826, %v831, %v830
        %vm833 = vcmp.lt.s32.totalorder %v591, 0
        %v834 = vsub.s32 0, %v591
        %v835 = vsel %vm833, %v834, %v591
        %v836 = vshrl.u32 %v835, 4
        %v837 = vand.u32 %v835, 15
        %v838 = vsub.s32 0, %v837
        %v839 = vsel %vm833, %v838, %v837
        %vm840 = vcmp.lt.s32.totalorder %v592, 0
        %v841 = vsub.s32 0, %v592
        %v842 = vsel %vm840, %v841, %v592
        %v843 = vshrl.u32 %v842, 4
        %v844 = vand.u32 %v842, 15
        %v845 = vsub.s32 0, %v844
        %v846 = vsel %vm840, %v845, %v844
        %vm847 = vcmp.lt.s32.totalorder %v593, 0
        %v848 = vsub.s32 0, %v593
        %v849 = vsel %vm847, %v848, %v593
        %v850 = vshrl.u32 %v849, 4
        %v851 = vand.u32 %v849, 15
        %v852 = vsub.s32 0, %v851
        %v853 = vsel %vm847, %v852, %v851
        %vm854 = vcmp.lt.s32.totalorder %v594, 0
        %v855 = vsub.s32 0, %v594
        %v856 = vsel %vm854, %v855, %v594
        %v857 = vshrl.u32 %v856, 4
        %v858 = vand.u32 %v856, 15
        %v859 = vsub.s32 0, %v858
        %v860 = vsel %vm854, %v859, %v858
        %vm861 = vcmp.lt.s32.totalorder %v595, 0
        %v862 = vsub.s32 0, %v595
        %v863 = vsel %vm861, %v862, %v595
        %v864 = vshrl.u32 %v863, 4
        %v865 = vand.u32 %v863, 15
        %v866 = vsub.s32 0, %v865
        %v867 = vsel %vm861, %v866, %v865
        %vm868 = vcmp.lt.s32.totalorder %v596, 0
        %v869 = vsub.s32 0, %v596
        %v870 = vsel %vm868, %v869, %v596
        %v871 = vshrl.u32 %v870, 4
        %v872 = vand.u32 %v870, 15
        %v873 = vsub.s32 0, %v872
        %v874 = vsel %vm868, %v873, %v872
        %vm875 = vcmp.lt.s32.totalorder %v597, 0
        %v876 = vsub.s32 0, %v597
        %v877 = vsel %vm875, %v876, %v597
        %v878 = vshrl.u32 %v877, 4
        %v879 = vand.u32 %v877, 15
        %v880 = vsub.s32 0, %v879
        %v881 = vsel %vm875, %v880, %v879
        %vm882 = vcmp.lt.s32.totalorder %v598, 0
        %v883 = vsub.s32 0, %v598
        %v884 = vsel %vm882, %v883, %v598
        %v885 = vshrl.u32 %v884, 4
        %v886 = vand.u32 %v884, 15
        %v887 = vsub.s32 0, %v886
        %v888 = vsel %vm882, %v887, %v886
        %vm889 = vcmp.lt.s32.totalorder %v599, 0
        %v890 = vsub.s32 0, %v599
        %v891 = vsel %vm889, %v890, %v599
        %v892 = vshrl.u32 %v891, 4
        %v893 = vand.u32 %v891, 15
        %v894 = vsub.s32 0, %v893
        %v895 = vsel %vm889, %v894, %v893
        %vm896 = vcmp.lt.s32.totalorder %v600, 0
        %v897 = vsub.s32 0, %v600
        %v898 = vsel %vm896, %v897, %v600
        %v899 = vshrl.u32 %v898, 4
        %v900 = vand.u32 %v898, 15
        %v901 = vsub.s32 0, %v900
        %v902 = vsel %vm896, %v901, %v900
        %vm903 = vcmp.lt.s32.totalorder %v601, 0
        %v904 = vsub.s32 0, %v601
        %v905 = vsel %vm903, %v904, %v601
        %v906 = vshrl.u32 %v905, 4
        %v907 = vand.u32 %v905, 15
        %v908 = vsub.s32 0, %v907
        %v909 = vsel %vm903, %v908, %v907
        %vm910 = vcmp.lt.s32.totalorder %v602, 0
        %v911 = vsub.s32 0, %v602
        %v912 = vsel %vm910, %v911, %v602
        %v913 = vshrl.u32 %v912, 4
        %v914 = vand.u32 %v912, 15
        %v915 = vsub.s32 0, %v914
        %v916 = vsel %vm910, %v915, %v914
        %vm917 = vcmp.lt.s32.totalorder %v603, 0
        %v918 = vsub.s32 0, %v603
        %v919 = vsel %vm917, %v918, %v603
        %v920 = vshrl.u32 %v919, 4
        %v921 = vand.u32 %v919, 15
        %v922 = vsub.s32 0, %v921
        %v923 = vsel %vm917, %v922, %v921
        %vm924 = vcmp.lt.s32.totalorder %v604, 0
        %v925 = vsub.s32 0, %v604
        %v926 = vsel %vm924, %v925, %v604
        %v927 = vshrl.u32 %v926, 4
        %v928 = vand.u32 %v926, 15
        %v929 = vsub.s32 0, %v928
        %v930 = vsel %vm924, %v929, %v928
        %vm931 = vcmp.lt.s32.totalorder %v605, 0
        %v932 = vsub.s32 0, %v605
        %v933 = vsel %vm931, %v932, %v605
        %v934 = vshrl.u32 %v933, 4
        %v935 = vand.u32 %v933, 15
        %v936 = vsub.s32 0, %v935
        %v937 = vsel %vm931, %v936, %v935
        %vm938 = vcmp.lt.s32.totalorder %v606, 0
        %v939 = vsub.s32 0, %v606
        %v940 = vsel %vm938, %v939, %v606
        %v941 = vshrl.u32 %v940, 4
        %v942 = vand.u32 %v940, 15
        %v943 = vsub.s32 0, %v942
        %v944 = vsel %vm938, %v943, %v942
        %vm945 = vcmp.lt.s32.totalorder %v607, 0
        %v946 = vsub.s32 0, %v607
        %v947 = vsel %vm945, %v946, %v607
        %v948 = vshrl.u32 %v947, 4
        %v949 = vand.u32 %v947, 15
        %v950 = vsub.s32 0, %v949
        %v951 = vsel %vm945, %v950, %v949
        %vm952 = vcmp.lt.s32.totalorder %v608, 0
        %v953 = vsub.s32 0, %v608
        %v954 = vsel %vm952, %v953, %v608
        %v955 = vshrl.u32 %v954, 4
        %v956 = vand.u32 %v954, 15
        %v957 = vsub.s32 0, %v956
        %v958 = vsel %vm952, %v957, %v956
        %vm959 = vcmp.lt.s32.totalorder %v609, 0
        %v960 = vsub.s32 0, %v609
        %v961 = vsel %vm959, %v960, %v609
        %v962 = vshrl.u32 %v961, 4
        %v963 = vand.u32 %v961, 15
        %v964 = vsub.s32 0, %v963
        %v965 = vsel %vm959, %v964, %v963
        %vm966 = vcmp.lt.s32.totalorder %v610, 0
        %v967 = vsub.s32 0, %v610
        %v968 = vsel %vm966, %v967, %v610
        %v969 = vshrl.u32 %v968, 4
        %v970 = vand.u32 %v968, 15
        %v971 = vsub.s32 0, %v970
        %v972 = vsel %vm966, %v971, %v970
        %vm973 = vcmp.lt.s32.totalorder %v611, 0
        %v974 = vsub.s32 0, %v611
        %v975 = vsel %vm973, %v974, %v611
        %v976 = vshrl.u32 %v975, 4
        %v977 = vand.u32 %v975, 15
        %v978 = vsub.s32 0, %v977
        %v979 = vsel %vm973, %v978, %v977
        %vm980 = vcmp.lt.s32.totalorder %v612, 0
        %v981 = vsub.s32 0, %v612
        %v982 = vsel %vm980, %v981, %v612
        %v983 = vshrl.u32 %v982, 4
        %v984 = vand.u32 %v982, 15
        %v985 = vsub.s32 0, %v984
        %v986 = vsel %vm980, %v985, %v984
        %vm987 = vcmp.lt.s32.totalorder %v613, 0
        %v988 = vsub.s32 0, %v613
        %v989 = vsel %vm987, %v988, %v613
        %v990 = vshrl.u32 %v989, 4
        %v991 = vand.u32 %v989, 15
        %v992 = vsub.s32 0, %v991
        %v993 = vsel %vm987, %v992, %v991
        %vm994 = vcmp.lt.s32.totalorder %v614, 0
        %v995 = vsub.s32 0, %v614
        %v996 = vsel %vm994, %v995, %v614
        %v997 = vshrl.u32 %v996, 4
        %v998 = vand.u32 %v996, 15
        %v999 = vsub.s32 0, %v998
        %v1000 = vsel %vm994, %v999, %v998
        %vm1001 = vcmp.lt.s32.totalorder %v615, 0
        %v1002 = vsub.s32 0, %v615
        %v1003 = vsel %vm1001, %v1002, %v615
        %v1004 = vshrl.u32 %v1003, 4
        %v1005 = vand.u32 %v1003, 15
        %v1006 = vsub.s32 0, %v1005
        %v1007 = vsel %vm1001, %v1006, %v1005
        %vm1008 = vcmp.lt.s32.totalorder %v616, 0
        %v1009 = vsub.s32 0, %v616
        %v1010 = vsel %vm1008, %v1009, %v616
        %v1011 = vshrl.u32 %v1010, 4
        %v1012 = vand.u32 %v1010, 15
        %v1013 = vsub.s32 0, %v1012
        %v1014 = vsel %vm1008, %v1013, %v1012
        %vm1015 = vcmp.lt.s32.totalorder %v617, 0
        %v1016 = vsub.s32 0, %v617
        %v1017 = vsel %vm1015, %v1016, %v617
        %v1018 = vshrl.u32 %v1017, 4
        %v1019 = vand.u32 %v1017, 15
        %v1020 = vsub.s32 0, %v1019
        %v1021 = vsel %vm1015, %v1020, %v1019
        %vm1022 = vcmp.lt.s32.totalorder %v618, 0
        %v1023 = vsub.s32 0, %v618
        %v1024 = vsel %vm1022, %v1023, %v618
        %v1025 = vshrl.u32 %v1024, 4
        %v1026 = vand.u32 %v1024, 15
        %v1027 = vsub.s32 0, %v1026
        %v1028 = vsel %vm1022, %v1027, %v1026
        %vm1029 = vcmp.lt.s32.totalorder %v619, 0
        %v1030 = vsub.s32 0, %v619
        %v1031 = vsel %vm1029, %v1030, %v619
        %v1032 = vshrl.u32 %v1031, 4
        %v1033 = vand.u32 %v1031, 15
        %v1034 = vsub.s32 0, %v1033
        %v1035 = vsel %vm1029, %v1034, %v1033
        %vm1036 = vcmp.lt.s32.totalorder %v620, 0
        %v1037 = vsub.s32 0, %v620
        %v1038 = vsel %vm1036, %v1037, %v620
        %v1039 = vshrl.u32 %v1038, 4
        %v1040 = vand.u32 %v1038, 15
        %v1041 = vsub.s32 0, %v1040
        %v1042 = vsel %vm1036, %v1041, %v1040
        %vm1043 = vcmp.lt.s32.totalorder %v621, 0
        %v1044 = vsub.s32 0, %v621
        %v1045 = vsel %vm1043, %v1044, %v621
        %v1046 = vshrl.u32 %v1045, 4
        %v1047 = vand.u32 %v1045, 15
        %v1048 = vsub.s32 0, %v1047
        %v1049 = vsel %vm1043, %v1048, %v1047
        %vm1050 = vcmp.lt.s32.totalorder %v622, 0
        %v1051 = vsub.s32 0, %v622
        %v1052 = vsel %vm1050, %v1051, %v622
        %v1053 = vshrl.u32 %v1052, 4
        %v1054 = vand.u32 %v1052, 15
        %v1055 = vsub.s32 0, %v1054
        %v1056 = vsel %vm1050, %v1055, %v1054
        %vm1057 = vcmp.lt.s32.totalorder %v623, 0
        %v1058 = vsub.s32 0, %v623
        %v1059 = vsel %vm1057, %v1058, %v623
        %v1060 = vshrl.u32 %v1059, 4
        %v1061 = vand.u32 %v1059, 15
        %v1062 = vsub.s32 0, %v1061
        %v1063 = vsel %vm1057, %v1062, %v1061
        %vm1064 = vcmp.lt.s32.totalorder %v624, 0
        %v1065 = vsub.s32 0, %v624
        %v1066 = vsel %vm1064, %v1065, %v624
        %v1067 = vshrl.u32 %v1066, 4
        %v1068 = vand.u32 %v1066, 15
        %v1069 = vsub.s32 0, %v1068
        %v1070 = vsel %vm1064, %v1069, %v1068
        %vm1071 = vcmp.lt.s32.totalorder %v625, 0
        %v1072 = vsub.s32 0, %v625
        %v1073 = vsel %vm1071, %v1072, %v625
        %v1074 = vshrl.u32 %v1073, 4
        %v1075 = vand.u32 %v1073, 15
        %v1076 = vsub.s32 0, %v1075
        %v1077 = vsel %vm1071, %v1076, %v1075
        %vm1078 = vcmp.lt.s32.totalorder %v626, 0
        %v1079 = vsub.s32 0, %v626
        %v1080 = vsel %vm1078, %v1079, %v626
        %v1081 = vshrl.u32 %v1080, 4
        %v1082 = vand.u32 %v1080, 15
        %v1083 = vsub.s32 0, %v1082
        %v1084 = vsel %vm1078, %v1083, %v1082
        %vm1085 = vcmp.lt.s32.totalorder %v627, 0
        %v1086 = vsub.s32 0, %v627
        %v1087 = vsel %vm1085, %v1086, %v627
        %v1088 = vshrl.u32 %v1087, 4
        %v1089 = vand.u32 %v1087, 15
        %v1090 = vsub.s32 0, %v1089
        %v1091 = vsel %vm1085, %v1090, %v1089
        %vm1092 = vcmp.lt.s32.totalorder %v628, 0
        %v1093 = vsub.s32 0, %v628
        %v1094 = vsel %vm1092, %v1093, %v628
        %v1095 = vshrl.u32 %v1094, 4
        %v1096 = vand.u32 %v1094, 15
        %v1097 = vsub.s32 0, %v1096
        %v1098 = vsel %vm1092, %v1097, %v1096
        %vm1099 = vcmp.lt.s32.totalorder %v629, 0
        %v1100 = vsub.s32 0, %v629
        %v1101 = vsel %vm1099, %v1100, %v629
        %v1102 = vshrl.u32 %v1101, 4
        %v1103 = vand.u32 %v1101, 15
        %v1104 = vsub.s32 0, %v1103
        %v1105 = vsel %vm1099, %v1104, %v1103
        %vm1106 = vcmp.lt.s32.totalorder %v630, 0
        %v1107 = vsub.s32 0, %v630
        %v1108 = vsel %vm1106, %v1107, %v630
        %v1109 = vshrl.u32 %v1108, 4
        %v1110 = vand.u32 %v1108, 15
        %v1111 = vsub.s32 0, %v1110
        %v1112 = vsel %vm1106, %v1111, %v1110
        %vm1113 = vcmp.lt.s32.totalorder %v631, 0
        %v1114 = vsub.s32 0, %v631
        %v1115 = vsel %vm1113, %v1114, %v631
        %v1116 = vshrl.u32 %v1115, 4
        %v1117 = vand.u32 %v1115, 15
        %v1118 = vsub.s32 0, %v1117
        %v1119 = vsel %vm1113, %v1118, %v1117
        %vm1120 = vcmp.lt.s32.totalorder %v632, 0
        %v1121 = vsub.s32 0, %v632
        %v1122 = vsel %vm1120, %v1121, %v632
        %v1123 = vshrl.u32 %v1122, 4
        %v1124 = vand.u32 %v1122, 15
        %v1125 = vsub.s32 0, %v1124
        %v1126 = vsel %vm1120, %v1125, %v1124
        %vm1127 = vcmp.lt.s32.totalorder %v633, 0
        %v1128 = vsub.s32 0, %v633
        %v1129 = vsel %vm1127, %v1128, %v633
        %v1130 = vshrl.u32 %v1129, 4
        %v1131 = vand.u32 %v1129, 15
        %v1132 = vsub.s32 0, %v1131
        %v1133 = vsel %vm1127, %v1132, %v1131
        %vm1134 = vcmp.lt.s32.totalorder %v634, 0
        %v1135 = vsub.s32 0, %v634
        %v1136 = vsel %vm1134, %v1135, %v634
        %v1137 = vshrl.u32 %v1136, 4
        %v1138 = vand.u32 %v1136, 15
        %v1139 = vsub.s32 0, %v1138
        %v1140 = vsel %vm1134, %v1139, %v1138
        %vm1141 = vcmp.lt.s32.totalorder %v635, 0
        %v1142 = vsub.s32 0, %v635
        %v1143 = vsel %vm1141, %v1142, %v635
        %v1144 = vshrl.u32 %v1143, 4
        %v1145 = vand.u32 %v1143, 15
        %v1146 = vsub.s32 0, %v1145
        %v1147 = vsel %vm1141, %v1146, %v1145
        %vm1148 = vcmp.lt.s32.totalorder %v636, 0
        %v1149 = vsub.s32 0, %v636
        %v1150 = vsel %vm1148, %v1149, %v636
        %v1151 = vshrl.u32 %v1150, 4
        %v1152 = vand.u32 %v1150, 15
        %v1153 = vsub.s32 0, %v1152
        %v1154 = vsel %vm1148, %v1153, %v1152
        %vm1155 = vcmp.lt.s32.totalorder %v637, 0
        %v1156 = vsub.s32 0, %v637
        %v1157 = vsel %vm1155, %v1156, %v637
        %v1158 = vshrl.u32 %v1157, 4
        %v1159 = vand.u32 %v1157, 15
        %v1160 = vsub.s32 0, %v1159
        %v1161 = vsel %vm1155, %v1160, %v1159
        %vm1162 = vcmp.lt.s32.totalorder %v638, 0
        %v1163 = vsub.s32 0, %v638
        %v1164 = vsel %vm1162, %v1163, %v638
        %v1165 = vshrl.u32 %v1164, 4
        %v1166 = vand.u32 %v1164, 15
        %v1167 = vsub.s32 0, %v1166
        %v1168 = vsel %vm1162, %v1167, %v1166
        %vm1169 = vcmp.lt.s32.totalorder %v639, 0
        %v1170 = vsub.s32 0, %v639
        %v1171 = vsel %vm1169, %v1170, %v639
        %v1172 = vshrl.u32 %v1171, 4
        %v1173 = vand.u32 %v1171, 15
        %v1174 = vsub.s32 0, %v1173
        %v1175 = vsel %vm1169, %v1174, %v1173
        %vm1176 = vcmp.lt.s32.totalorder %v640, 0
        %v1177 = vsub.s32 0, %v640
        %v1178 = vsel %vm1176, %v1177, %v640
        %v1179 = vshrl.u32 %v1178, 4
        %v1180 = vand.u32 %v1178, 15
        %v1181 = vsub.s32 0, %v1180
        %v1182 = vsel %vm1176, %v1181, %v1180
        %vm1183 = vcmp.lt.s32.totalorder %v641, 0
        %v1184 = vsub.s32 0, %v641
        %v1185 = vsel %vm1183, %v1184, %v641
        %v1186 = vshrl.u32 %v1185, 4
        %v1187 = vand.u32 %v1185, 15
        %v1188 = vsub.s32 0, %v1187
        %v1189 = vsel %vm1183, %v1188, %v1187
        %vm1190 = vcmp.lt.s32.totalorder %v642, 0
        %v1191 = vsub.s32 0, %v642
        %v1192 = vsel %vm1190, %v1191, %v642
        %v1193 = vshrl.u32 %v1192, 4
        %v1194 = vand.u32 %v1192, 15
        %v1195 = vsub.s32 0, %v1194
        %v1196 = vsel %vm1190, %v1195, %v1194
        %vm1197 = vcmp.lt.s32.totalorder %v643, 0
        %v1198 = vsub.s32 0, %v643
        %v1199 = vsel %vm1197, %v1198, %v643
        %v1200 = vshrl.u32 %v1199, 4
        %v1201 = vand.u32 %v1199, 15
        %v1202 = vsub.s32 0, %v1201
        %v1203 = vsel %vm1197, %v1202, %v1201
        %vm1204 = vcmp.lt.s32.totalorder %v644, 0
        %v1205 = vsub.s32 0, %v644
        %v1206 = vsel %vm1204, %v1205, %v644
        %v1207 = vshrl.u32 %v1206, 4
        %v1208 = vand.u32 %v1206, 15
        %v1209 = vsub.s32 0, %v1208
        %v1210 = vsel %vm1204, %v1209, %v1208
        %vm1211 = vcmp.lt.s32.totalorder %v645, 0
        %v1212 = vsub.s32 0, %v645
        %v1213 = vsel %vm1211, %v1212, %v645
        %v1214 = vshrl.u32 %v1213, 4
        %v1215 = vand.u32 %v1213, 15
        %v1216 = vsub.s32 0, %v1215
        %v1217 = vsel %vm1211, %v1216, %v1215
        %vm1218 = vcmp.lt.s32.totalorder %v646, 0
        %v1219 = vsub.s32 0, %v646
        %v1220 = vsel %vm1218, %v1219, %v646
        %v1221 = vshrl.u32 %v1220, 4
        %v1222 = vand.u32 %v1220, 15
        %v1223 = vsub.s32 0, %v1222
        %v1224 = vsel %vm1218, %v1223, %v1222
        %vm1225 = vcmp.lt.s32.totalorder %v647, 0
        %v1226 = vsub.s32 0, %v647
        %v1227 = vsel %vm1225, %v1226, %v647
        %v1228 = vshrl.u32 %v1227, 4
        %v1229 = vand.u32 %v1227, 15
        %v1230 = vsub.s32 0, %v1229
        %v1231 = vsel %vm1225, %v1230, %v1229
        %vm1232 = vcmp.lt.s32.totalorder %v648, 0
        %v1233 = vsub.s32 0, %v648
        %v1234 = vsel %vm1232, %v1233, %v648
        %v1235 = vshrl.u32 %v1234, 4
        %v1236 = vand.u32 %v1234, 15
        %v1237 = vsub.s32 0, %v1236
        %v1238 = vsel %vm1232, %v1237, %v1236
        %vm1239 = vcmp.lt.s32.totalorder %v649, 0
        %v1240 = vsub.s32 0, %v649
        %v1241 = vsel %vm1239, %v1240, %v649
        %v1242 = vshrl.u32 %v1241, 4
        %v1243 = vand.u32 %v1241, 15
        %v1244 = vsub.s32 0, %v1243
        %v1245 = vsel %vm1239, %v1244, %v1243
        %vm1246 = vcmp.lt.s32.totalorder %v650, 0
        %v1247 = vsub.s32 0, %v650
        %v1248 = vsel %vm1246, %v1247, %v650
        %v1249 = vshrl.u32 %v1248, 4
        %v1250 = vand.u32 %v1248, 15
        %v1251 = vsub.s32 0, %v1250
        %v1252 = vsel %vm1246, %v1251, %v1250
        %vm1253 = vcmp.lt.s32.totalorder %v651, 0
        %v1254 = vsub.s32 0, %v651
        %v1255 = vsel %vm1253, %v1254, %v651
        %v1256 = vshrl.u32 %v1255, 4
        %v1257 = vand.u32 %v1255, 15
        %v1258 = vsub.s32 0, %v1257
        %v1259 = vsel %vm1253, %v1258, %v1257
        %vm1260 = vcmp.lt.s32.totalorder %v652, 0
        %v1261 = vsub.s32 0, %v652
        %v1262 = vsel %vm1260, %v1261, %v652
        %v1263 = vshrl.u32 %v1262, 4
        %v1264 = vand.u32 %v1262, 15
        %v1265 = vsub.s32 0, %v1264
        %v1266 = vsel %vm1260, %v1265, %v1264
        %vm1267 = vcmp.lt.s32.totalorder %v653, 0
        %v1268 = vsub.s32 0, %v653
        %v1269 = vsel %vm1267, %v1268, %v653
        %v1270 = vshrl.u32 %v1269, 4
        %v1271 = vand.u32 %v1269, 15
        %v1272 = vsub.s32 0, %v1271
        %v1273 = vsel %vm1267, %v1272, %v1271
        %vm1274 = vcmp.lt.s32.totalorder %v654, 0
        %v1275 = vsub.s32 0, %v654
        %v1276 = vsel %vm1274, %v1275, %v654
        %v1277 = vshrl.u32 %v1276, 4
        %v1278 = vand.u32 %v1276, 15
        %v1279 = vsub.s32 0, %v1278
        %v1280 = vsel %vm1274, %v1279, %v1278
        %vm1281 = vcmp.lt.s32.totalorder %v655, 0
        %v1282 = vsub.s32 0, %v655
        %v1283 = vsel %vm1281, %v1282, %v655
        %v1284 = vshrl.u32 %v1283, 4
        %v1285 = vand.u32 %v1283, 15
        %v1286 = vsub.s32 0, %v1285
        %v1287 = vsel %vm1281, %v1286, %v1285
        %vm1288 = vcmp.lt.s32.totalorder %v656, 0
        %v1289 = vsub.s32 0, %v656
        %v1290 = vsel %vm1288, %v1289, %v656
        %v1291 = vshrl.u32 %v1290, 4
        %v1292 = vand.u32 %v1290, 15
        %v1293 = vsub.s32 0, %v1292
        %v1294 = vsel %vm1288, %v1293, %v1292
        %vm1295 = vcmp.lt.s32.totalorder %v657, 0
        %v1296 = vsub.s32 0, %v657
        %v1297 = vsel %vm1295, %v1296, %v657
        %v1298 = vshrl.u32 %v1297, 4
        %v1299 = vand.u32 %v1297, 15
        %v1300 = vsub.s32 0, %v1299
        %v1301 = vsel %vm1295, %v1300, %v1299
        %vm1302 = vcmp.lt.s32.totalorder %v658, 0
        %v1303 = vsub.s32 0, %v658
        %v1304 = vsel %vm1302, %v1303, %v658
        %v1305 = vshrl.u32 %v1304, 4
        %v1306 = vand.u32 %v1304, 15
        %v1307 = vsub.s32 0, %v1306
        %v1308 = vsel %vm1302, %v1307, %v1306
        %vm1309 = vcmp.lt.s32.totalorder %v659, 0
        %v1310 = vsub.s32 0, %v659
        %v1311 = vsel %vm1309, %v1310, %v659
        %v1312 = vshrl.u32 %v1311, 4
        %v1313 = vand.u32 %v1311, 15
        %v1314 = vsub.s32 0, %v1313
        %v1315 = vsel %vm1309, %v1314, %v1313
        %vm1316 = vcmp.lt.s32.totalorder %v660, 0
        %v1317 = vsub.s32 0, %v660
        %v1318 = vsel %vm1316, %v1317, %v660
        %v1319 = vshrl.u32 %v1318, 4
        %v1320 = vand.u32 %v1318, 15
        %v1321 = vsub.s32 0, %v1320
        %v1322 = vsel %vm1316, %v1321, %v1320
        %vm1323 = vcmp.lt.s32.totalorder %v661, 0
        %v1324 = vsub.s32 0, %v661
        %v1325 = vsel %vm1323, %v1324, %v661
        %v1326 = vshrl.u32 %v1325, 4
        %v1327 = vand.u32 %v1325, 15
        %v1328 = vsub.s32 0, %v1327
        %v1329 = vsel %vm1323, %v1328, %v1327
        %vm1330 = vcmp.lt.s32.totalorder %v662, 0
        %v1331 = vsub.s32 0, %v662
        %v1332 = vsel %vm1330, %v1331, %v662
        %v1333 = vshrl.u32 %v1332, 4
        %v1334 = vand.u32 %v1332, 15
        %v1335 = vsub.s32 0, %v1334
        %v1336 = vsel %vm1330, %v1335, %v1334
        %vm1337 = vcmp.lt.s32.totalorder %v663, 0
        %v1338 = vsub.s32 0, %v663
        %v1339 = vsel %vm1337, %v1338, %v663
        %v1340 = vshrl.u32 %v1339, 4
        %v1341 = vand.u32 %v1339, 15
        %v1342 = vsub.s32 0, %v1341
        %v1343 = vsel %vm1337, %v1342, %v1341
        %vm1344 = vcmp.lt.s32.totalorder %v664, 0
        %v1345 = vsub.s32 0, %v664
        %v1346 = vsel %vm1344, %v1345, %v664
        %v1347 = vshrl.u32 %v1346, 4
        %v1348 = vand.u32 %v1346, 15
        %v1349 = vsub.s32 0, %v1348
        %v1350 = vsel %vm1344, %v1349, %v1348
        %vm1351 = vcmp.lt.s32.totalorder %v665, 0
        %v1352 = vsub.s32 0, %v665
        %v1353 = vsel %vm1351, %v1352, %v665
        %v1354 = vshrl.u32 %v1353, 4
        %v1355 = vand.u32 %v1353, 15
        %v1356 = vsub.s32 0, %v1355
        %v1357 = vsel %vm1351, %v1356, %v1355
        %vm1358 = vcmp.lt.s32.totalorder %v666, 0
        %v1359 = vsub.s32 0, %v666
        %v1360 = vsel %vm1358, %v1359, %v666
        %v1361 = vshrl.u32 %v1360, 4
        %v1362 = vand.u32 %v1360, 15
        %v1363 = vsub.s32 0, %v1362
        %v1364 = vsel %vm1358, %v1363, %v1362
        %vm1365 = vcmp.lt.s32.totalorder %v667, 0
        %v1366 = vsub.s32 0, %v667
        %v1367 = vsel %vm1365, %v1366, %v667
        %v1368 = vshrl.u32 %v1367, 4
        %v1369 = vand.u32 %v1367, 15
        %v1370 = vsub.s32 0, %v1369
        %v1371 = vsel %vm1365, %v1370, %v1369
        %vm1372 = vcmp.lt.s32.totalorder %v668, 0
        %v1373 = vsub.s32 0, %v668
        %v1374 = vsel %vm1372, %v1373, %v668
        %v1375 = vshrl.u32 %v1374, 4
        %v1376 = vand.u32 %v1374, 15
        %v1377 = vsub.s32 0, %v1376
        %v1378 = vsel %vm1372, %v1377, %v1376
        %vm1379 = vcmp.lt.s32.totalorder %v669, 0
        %v1380 = vsub.s32 0, %v669
        %v1381 = vsel %vm1379, %v1380, %v669
        %v1382 = vshrl.u32 %v1381, 4
        %v1383 = vand.u32 %v1381, 15
        %v1384 = vsub.s32 0, %v1383
        %v1385 = vsel %vm1379, %v1384, %v1383
        %vm1386 = vcmp.lt.s32.totalorder %v670, 0
        %v1387 = vsub.s32 0, %v670
        %v1388 = vsel %vm1386, %v1387, %v670
        %v1389 = vshrl.u32 %v1388, 4
        %v1390 = vand.u32 %v1388, 15
        %v1391 = vsub.s32 0, %v1390
        %v1392 = vsel %vm1386, %v1391, %v1390
        %vm1393 = vcmp.lt.s32.totalorder %v671, 0
        %v1394 = vsub.s32 0, %v671
        %v1395 = vsel %vm1393, %v1394, %v671
        %v1396 = vshrl.u32 %v1395, 4
        %v1397 = vand.u32 %v1395, 15
        %v1398 = vsub.s32 0, %v1397
        %v1399 = vsel %vm1393, %v1398, %v1397
        %vm1400 = vcmp.lt.s32.totalorder %v672, 0
        %v1401 = vsub.s32 0, %v672
        %v1402 = vsel %vm1400, %v1401, %v672
        %v1403 = vshrl.u32 %v1402, 4
        %v1404 = vand.u32 %v1402, 15
        %v1405 = vsub.s32 0, %v1404
        %v1406 = vsel %vm1400, %v1405, %v1404
        %vm1407 = vcmp.lt.s32.totalorder %v673, 0
        %v1408 = vsub.s32 0, %v673
        %v1409 = vsel %vm1407, %v1408, %v673
        %v1410 = vshrl.u32 %v1409, 4
        %v1411 = vand.u32 %v1409, 15
        %v1412 = vsub.s32 0, %v1411
        %v1413 = vsel %vm1407, %v1412, %v1411
        %vm1414 = vcmp.lt.s32.totalorder %v674, 0
        %v1415 = vsub.s32 0, %v674
        %v1416 = vsel %vm1414, %v1415, %v674
        %v1417 = vshrl.u32 %v1416, 4
        %v1418 = vand.u32 %v1416, 15
        %v1419 = vsub.s32 0, %v1418
        %v1420 = vsel %vm1414, %v1419, %v1418
        %vm1421 = vcmp.lt.s32.totalorder %v675, 0
        %v1422 = vsub.s32 0, %v675
        %v1423 = vsel %vm1421, %v1422, %v675
        %v1424 = vshrl.u32 %v1423, 4
        %v1425 = vand.u32 %v1423, 15
        %v1426 = vsub.s32 0, %v1425
        %v1427 = vsel %vm1421, %v1426, %v1425
        %vm1428 = vcmp.lt.s32.totalorder %v676, 0
        %v1429 = vsub.s32 0, %v676
        %v1430 = vsel %vm1428, %v1429, %v676
        %v1431 = vshrl.u32 %v1430, 4
        %v1432 = vand.u32 %v1430, 15
        %v1433 = vsub.s32 0, %v1432
        %v1434 = vsel %vm1428, %v1433, %v1432
        %vm1435 = vcmp.lt.s32.totalorder %v677, 0
        %v1436 = vsub.s32 0, %v677
        %v1437 = vsel %vm1435, %v1436, %v677
        %v1438 = vshrl.u32 %v1437, 4
        %v1439 = vand.u32 %v1437, 15
        %v1440 = vsub.s32 0, %v1439
        %v1441 = vsel %vm1435, %v1440, %v1439
        %vm1442 = vcmp.lt.s32.totalorder %v678, 0
        %v1443 = vsub.s32 0, %v678
        %v1444 = vsel %vm1442, %v1443, %v678
        %v1445 = vshrl.u32 %v1444, 4
        %v1446 = vand.u32 %v1444, 15
        %v1447 = vsub.s32 0, %v1446
        %v1448 = vsel %vm1442, %v1447, %v1446
        %vm1449 = vcmp.lt.s32.totalorder %v679, 0
        %v1450 = vsub.s32 0, %v679
        %v1451 = vsel %vm1449, %v1450, %v679
        %v1452 = vshrl.u32 %v1451, 4
        %v1453 = vand.u32 %v1451, 15
        %v1454 = vsub.s32 0, %v1453
        %v1455 = vsel %vm1449, %v1454, %v1453
        %vm1456 = vcmp.lt.s32.totalorder %v680, 0
        %v1457 = vsub.s32 0, %v680
        %v1458 = vsel %vm1456, %v1457, %v680
        %v1459 = vshrl.u32 %v1458, 4
        %v1460 = vand.u32 %v1458, 15
        %v1461 = vsub.s32 0, %v1460
        %v1462 = vsel %vm1456, %v1461, %v1460
        %vm1463 = vcmp.lt.s32.totalorder %v681, 0
        %v1464 = vsub.s32 0, %v681
        %v1465 = vsel %vm1463, %v1464, %v681
        %v1466 = vshrl.u32 %v1465, 4
        %v1467 = vand.u32 %v1465, 15
        %v1468 = vsub.s32 0, %v1467
        %v1469 = vsel %vm1463, %v1468, %v1467
        %vm1470 = vcmp.lt.s32.totalorder %v682, 0
        %v1471 = vsub.s32 0, %v682
        %v1472 = vsel %vm1470, %v1471, %v682
        %v1473 = vshrl.u32 %v1472, 4
        %v1474 = vand.u32 %v1472, 15
        %v1475 = vsub.s32 0, %v1474
        %v1476 = vsel %vm1470, %v1475, %v1474
        %vm1477 = vcmp.lt.s32.totalorder %v683, 0
        %v1478 = vsub.s32 0, %v683
        %v1479 = vsel %vm1477, %v1478, %v683
        %v1480 = vshrl.u32 %v1479, 4
        %v1481 = vand.u32 %v1479, 15
        %v1482 = vsub.s32 0, %v1481
        %v1483 = vsel %vm1477, %v1482, %v1481
        %vm1484 = vcmp.lt.s32.totalorder %v684, 0
        %v1485 = vsub.s32 0, %v684
        %v1486 = vsel %vm1484, %v1485, %v684
        %v1487 = vshrl.u32 %v1486, 4
        %v1488 = vand.u32 %v1486, 15
        %v1489 = vsub.s32 0, %v1488
        %v1490 = vsel %vm1484, %v1489, %v1488
        %vm1491 = vcmp.lt.s32.totalorder %v685, 0
        %v1492 = vsub.s32 0, %v685
        %v1493 = vsel %vm1491, %v1492, %v685
        %v1494 = vshrl.u32 %v1493, 4
        %v1495 = vand.u32 %v1493, 15
        %v1496 = vsub.s32 0, %v1495
        %v1497 = vsel %vm1491, %v1496, %v1495
        %vm1498 = vcmp.lt.s32.totalorder %v686, 0
        %v1499 = vsub.s32 0, %v686
        %v1500 = vsel %vm1498, %v1499, %v686
        %v1501 = vshrl.u32 %v1500, 4
        %v1502 = vand.u32 %v1500, 15
        %v1503 = vsub.s32 0, %v1502
        %v1504 = vsel %vm1498, %v1503, %v1502
        %vm1505 = vcmp.lt.s32.totalorder %v687, 0
        %v1506 = vsub.s32 0, %v687
        %v1507 = vsel %vm1505, %v1506, %v687
        %v1508 = vshrl.u32 %v1507, 4
        %v1509 = vand.u32 %v1507, 15
        %v1510 = vsub.s32 0, %v1509
        %v1511 = vsel %vm1505, %v1510, %v1509
        %vm1512 = vcmp.lt.s32.totalorder %v688, 0
        %v1513 = vsub.s32 0, %v688
        %v1514 = vsel %vm1512, %v1513, %v688
        %v1515 = vshrl.u32 %v1514, 4
        %v1516 = vand.u32 %v1514, 15
        %v1517 = vsub.s32 0, %v1516
        %v1518 = vsel %vm1512, %v1517, %v1516
        %vm1519 = vcmp.lt.s32.totalorder %v689, 0
        %v1520 = vsub.s32 0, %v689
        %v1521 = vsel %vm1519, %v1520, %v689
        %v1522 = vshrl.u32 %v1521, 4
        %v1523 = vand.u32 %v1521, 15
        %v1524 = vsub.s32 0, %v1523
        %v1525 = vsel %vm1519, %v1524, %v1523
        %vm1526 = vcmp.lt.s32.totalorder %v690, 0
        %v1527 = vsub.s32 0, %v690
        %v1528 = vsel %vm1526, %v1527, %v690
        %v1529 = vshrl.u32 %v1528, 4
        %v1530 = vand.u32 %v1528, 15
        %v1531 = vsub.s32 0, %v1530
        %v1532 = vsel %vm1526, %v1531, %v1530
        %vm1533 = vcmp.lt.s32.totalorder %v691, 0
        %v1534 = vsub.s32 0, %v691
        %v1535 = vsel %vm1533, %v1534, %v691
        %v1536 = vshrl.u32 %v1535, 4
        %v1537 = vand.u32 %v1535, 15
        %v1538 = vsub.s32 0, %v1537
        %v1539 = vsel %vm1533, %v1538, %v1537
        %vm1540 = vcmp.lt.s32.totalorder %v692, 0
        %v1541 = vsub.s32 0, %v692
        %v1542 = vsel %vm1540, %v1541, %v692
        %v1543 = vshrl.u32 %v1542, 4
        %v1544 = vand.u32 %v1542, 15
        %v1545 = vsub.s32 0, %v1544
        %v1546 = vsel %vm1540, %v1545, %v1544
        %vm1547 = vcmp.lt.s32.totalorder %v693, 0
        %v1548 = vsub.s32 0, %v693
        %v1549 = vsel %vm1547, %v1548, %v693
        %v1550 = vshrl.u32 %v1549, 4
        %v1551 = vand.u32 %v1549, 15
        %v1552 = vsub.s32 0, %v1551
        %v1553 = vsel %vm1547, %v1552, %v1551
        %vm1554 = vcmp.lt.s32.totalorder %v694, 0
        %v1555 = vsub.s32 0, %v694
        %v1556 = vsel %vm1554, %v1555, %v694
        %v1557 = vshrl.u32 %v1556, 4
        %v1558 = vand.u32 %v1556, 15
        %v1559 = vsub.s32 0, %v1558
        %v1560 = vsel %vm1554, %v1559, %v1558
        %vm1561 = vcmp.lt.s32.totalorder %v695, 0
        %v1562 = vsub.s32 0, %v695
        %v1563 = vsel %vm1561, %v1562, %v695
        %v1564 = vshrl.u32 %v1563, 4
        %v1565 = vand.u32 %v1563, 15
        %v1566 = vsub.s32 0, %v1565
        %v1567 = vsel %vm1561, %v1566, %v1565
        %vm1568 = vcmp.lt.s32.totalorder %v696, 0
        %v1569 = vsub.s32 0, %v696
        %v1570 = vsel %vm1568, %v1569, %v696
        %v1571 = vshrl.u32 %v1570, 4
        %v1572 = vand.u32 %v1570, 15
        %v1573 = vsub.s32 0, %v1572
        %v1574 = vsel %vm1568, %v1573, %v1572
        %vm1575 = vcmp.lt.s32.totalorder %v697, 0
        %v1576 = vsub.s32 0, %v697
        %v1577 = vsel %vm1575, %v1576, %v697
        %v1578 = vshrl.u32 %v1577, 4
        %v1579 = vand.u32 %v1577, 15
        %v1580 = vsub.s32 0, %v1579
        %v1581 = vsel %vm1575, %v1580, %v1579
        %vm1582 = vcmp.lt.s32.totalorder %v698, 0
        %v1583 = vsub.s32 0, %v698
        %v1584 = vsel %vm1582, %v1583, %v698
        %v1585 = vshrl.u32 %v1584, 4
        %v1586 = vand.u32 %v1584, 15
        %v1587 = vsub.s32 0, %v1586
        %v1588 = vsel %vm1582, %v1587, %v1586
        %vm1589 = vcmp.lt.s32.totalorder %v699, 0
        %v1590 = vsub.s32 0, %v699
        %v1591 = vsel %vm1589, %v1590, %v699
        %v1592 = vshrl.u32 %v1591, 4
        %v1593 = vand.u32 %v1591, 15
        %v1594 = vsub.s32 0, %v1593
        %v1595 = vsel %vm1589, %v1594, %v1593
        %vm1596 = vcmp.ne.s32.totalorder %v706, 0
        %vm1597 = vcmp.ne.s32.totalorder %v713, 0
        %vm1598 = vcmp.ne.s32.totalorder %v720, 0
        %vm1599 = vcmp.ne.s32.totalorder %v727, 0
        %vm1600 = vcmp.ne.s32.totalorder %v734, 0
        %vm1601 = vcmp.ne.s32.totalorder %v741, 0
        %vm1602 = vcmp.ne.s32.totalorder %v748, 0
        %vm1603 = vcmp.ne.s32.totalorder %v755, 0
        %vm1604 = vcmp.ne.s32.totalorder %v762, 0
        %vm1605 = vcmp.ne.s32.totalorder %v769, 0
        %vm1606 = vcmp.ne.s32.totalorder %v776, 0
        %vm1607 = vcmp.ne.s32.totalorder %v783, 0
        %vm1608 = vcmp.ne.s32.totalorder %v790, 0
        %vm1609 = vcmp.ne.s32.totalorder %v797, 0
        %vm1610 = vcmp.ne.s32.totalorder %v804, 0
        %vm1611 = vcmp.ne.s32.totalorder %v811, 0
        %vm1612 = vcmp.ne.s32.totalorder %v818, 0
        %vm1613 = vcmp.ne.s32.totalorder %v825, 0
        %vm1614 = vcmp.ne.s32.totalorder %v832, 0
        %vm1615 = vcmp.ne.s32.totalorder %v839, 0
        %vm1616 = vcmp.ne.s32.totalorder %v846, 0
        %vm1617 = vcmp.ne.s32.totalorder %v853, 0
        %vm1618 = vcmp.ne.s32.totalorder %v860, 0
        %vm1619 = vcmp.ne.s32.totalorder %v867, 0
        %vm1620 = vcmp.ne.s32.totalorder %v874, 0
        %vm1621 = vcmp.ne.s32.totalorder %v881, 0
        %vm1622 = vcmp.ne.s32.totalorder %v888, 0
        %vm1623 = vcmp.ne.s32.totalorder %v895, 0
        %vm1624 = vcmp.ne.s32.totalorder %v902, 0
        %vm1625 = vcmp.ne.s32.totalorder %v909, 0
        %vm1626 = vcmp.ne.s32.totalorder %v916, 0
        %vm1627 = vcmp.ne.s32.totalorder %v923, 0
        %vm1628 = vcmp.ne.s32.totalorder %v930, 0
        %vm1629 = vcmp.ne.s32.totalorder %v937, 0
        %vm1630 = vcmp.ne.s32.totalorder %v944, 0
        %vm1631 = vcmp.ne.s32.totalorder %v951, 0
        %vm1632 = vcmp.ne.s32.totalorder %v958, 0
        %vm1633 = vcmp.ne.s32.totalorder %v965, 0
        %vm1634 = vcmp.ne.s32.totalorder %v972, 0
        %vm1635 = vcmp.ne.s32.totalorder %v979, 0
        %vm1636 = vcmp.ne.s32.totalorder %v986, 0
        %vm1637 = vcmp.ne.s32.totalorder %v993, 0
        %vm1638 = vcmp.ne.s32.totalorder %v1000, 0
        %vm1639 = vcmp.ne.s32.totalorder %v1007, 0
        %vm1640 = vcmp.ne.s32.totalorder %v1014, 0
        %vm1641 = vcmp.ne.s32.totalorder %v1021, 0
        %vm1642 = vcmp.ne.s32.totalorder %v1028, 0
        %vm1643 = vcmp.ne.s32.totalorder %v1035, 0
        %vm1644 = vcmp.ne.s32.totalorder %v1042, 0
        %vm1645 = vcmp.ne.s32.totalorder %v1049, 0
        %vm1646 = vcmp.ne.s32.totalorder %v1056, 0
        %vm1647 = vcmp.ne.s32.totalorder %v1063, 0
        %vm1648 = vcmp.ne.s32.totalorder %v1070, 0
        %vm1649 = vcmp.ne.s32.totalorder %v1077, 0
        %vm1650 = vcmp.ne.s32.totalorder %v1084, 0
        %vm1651 = vcmp.ne.s32.totalorder %v1091, 0
        %vm1652 = vcmp.ne.s32.totalorder %v1098, 0
        %vm1653 = vcmp.ne.s32.totalorder %v1105, 0
        %vm1654 = vcmp.ne.s32.totalorder %v1112, 0
        %vm1655 = vcmp.ne.s32.totalorder %v1119, 0
        %vm1656 = vcmp.ne.s32.totalorder %v1126, 0
        %vm1657 = vcmp.ne.s32.totalorder %v1133, 0
        %vm1658 = vcmp.ne.s32.totalorder %v1140, 0
        %vm1659 = vcmp.ne.s32.totalorder %v1147, 0
        %vm1660 = vcmp.ne.s32.totalorder %v1154, 0
        %vm1661 = vcmp.ne.s32.totalorder %v1161, 0
        %vm1662 = vcmp.ne.s32.totalorder %v1168, 0
        %vm1663 = vcmp.ne.s32.totalorder %v1175, 0
        %vm1664 = vcmp.ne.s32.totalorder %v1182, 0
        %vm1665 = vcmp.ne.s32.totalorder %v1189, 0
        %vm1666 = vcmp.ne.s32.totalorder %v1196, 0
        %vm1667 = vcmp.ne.s32.totalorder %v1203, 0
        %vm1668 = vcmp.ne.s32.totalorder %v1210, 0
        %vm1669 = vcmp.ne.s32.totalorder %v1217, 0
        %vm1670 = vcmp.ne.s32.totalorder %v1224, 0
        %vm1671 = vcmp.ne.s32.totalorder %v1231, 0
        %vm1672 = vcmp.ne.s32.totalorder %v1238, 0
        %vm1673 = vcmp.ne.s32.totalorder %v1245, 0
        %vm1674 = vcmp.ne.s32.totalorder %v1252, 0
        %vm1675 = vcmp.ne.s32.totalorder %v1259, 0
        %vm1676 = vcmp.ne.s32.totalorder %v1266, 0
        %vm1677 = vcmp.ne.s32.totalorder %v1273, 0
        %vm1678 = vcmp.ne.s32.totalorder %v1280, 0
        %vm1679 = vcmp.ne.s32.totalorder %v1287, 0
        %vm1680 = vcmp.ne.s32.totalorder %v1294, 0
        %vm1681 = vcmp.ne.s32.totalorder %v1301, 0
        %vm1682 = vcmp.ne.s32.totalorder %v1308, 0
        %vm1683 = vcmp.ne.s32.totalorder %v1315, 0
        %vm1684 = vcmp.ne.s32.totalorder %v1322, 0
        %vm1685 = vcmp.ne.s32.totalorder %v1329, 0
        %vm1686 = vcmp.ne.s32.totalorder %v1336, 0
        %vm1687 = vcmp.ne.s32.totalorder %v1343, 0
        %vm1688 = vcmp.ne.s32.totalorder %v1350, 0
        %vm1689 = vcmp.ne.s32.totalorder %v1357, 0
        %vm1690 = vcmp.ne.s32.totalorder %v1364, 0
        %vm1691 = vcmp.ne.s32.totalorder %v1371, 0
        %vm1692 = vcmp.ne.s32.totalorder %v1378, 0
        %vm1693 = vcmp.ne.s32.totalorder %v1385, 0
        %vm1694 = vcmp.ne.s32.totalorder %v1392, 0
        %vm1695 = vcmp.ne.s32.totalorder %v1399, 0
        %vm1696 = vcmp.ne.s32.totalorder %v1406, 0
        %vm1697 = vcmp.ne.s32.totalorder %v1413, 0
        %vm1698 = vcmp.ne.s32.totalorder %v1420, 0
        %vm1699 = vcmp.ne.s32.totalorder %v1427, 0
        %vm1700 = vcmp.ne.s32.totalorder %v1434, 0
        %vm1701 = vcmp.ne.s32.totalorder %v1441, 0
        %vm1702 = vcmp.ne.s32.totalorder %v1448, 0
        %vm1703 = vcmp.ne.s32.totalorder %v1455, 0
        %vm1704 = vcmp.ne.s32.totalorder %v1462, 0
        %vm1705 = vcmp.ne.s32.totalorder %v1469, 0
        %vm1706 = vcmp.ne.s32.totalorder %v1476, 0
        %vm1707 = vcmp.ne.s32.totalorder %v1483, 0
        %vm1708 = vcmp.ne.s32.totalorder %v1490, 0
        %vm1709 = vcmp.ne.s32.totalorder %v1497, 0
        %vm1710 = vcmp.ne.s32.totalorder %v1504, 0
        %vm1711 = vcmp.ne.s32.totalorder %v1511, 0
        %vm1712 = vcmp.ne.s32.totalorder %v1518, 0
        %vm1713 = vcmp.ne.s32.totalorder %v1525, 0
        %vm1714 = vcmp.ne.s32.totalorder %v1532, 0
        %vm1715 = vcmp.ne.s32.totalorder %v1539, 0
        %vm1716 = vcmp.ne.s32.totalorder %v1546, 0
        %vm1717 = vcmp.ne.s32.totalorder %v1553, 0
        %vm1718 = vcmp.ne.s32.totalorder %v1560, 0
        %vm1719 = vcmp.ne.s32.totalorder %v1567, 0
        %vm1720 = vcmp.ne.s32.totalorder %v1574, 0
        %vm1721 = vcmp.ne.s32.totalorder %v1581, 0
        %vm1722 = vcmp.ne.s32.totalorder %v1588, 0
        %vm1723 = vcmp.ne.s32.totalorder %v1595, 0
        %vm1724 = vcmp.lt.s32.totalorder %v706, 0
        %vm1725 = vcmp.lt.s32.totalorder %v713, 0
        %vm1726 = vcmp.lt.s32.totalorder %v720, 0
        %vm1727 = vcmp.lt.s32.totalorder %v727, 0
        %vm1728 = vcmp.lt.s32.totalorder %v734, 0
        %vm1729 = vcmp.lt.s32.totalorder %v741, 0
        %vm1730 = vcmp.lt.s32.totalorder %v748, 0
        %vm1731 = vcmp.lt.s32.totalorder %v755, 0
        %vm1732 = vcmp.lt.s32.totalorder %v762, 0
        %vm1733 = vcmp.lt.s32.totalorder %v769, 0
        %vm1734 = vcmp.lt.s32.totalorder %v776, 0
        %vm1735 = vcmp.lt.s32.totalorder %v783, 0
        %vm1736 = vcmp.lt.s32.totalorder %v790, 0
        %vm1737 = vcmp.lt.s32.totalorder %v797, 0
        %vm1738 = vcmp.lt.s32.totalorder %v804, 0
        %vm1739 = vcmp.lt.s32.totalorder %v811, 0
        %vm1740 = vcmp.lt.s32.totalorder %v818, 0
        %vm1741 = vcmp.lt.s32.totalorder %v825, 0
        %vm1742 = vcmp.lt.s32.totalorder %v832, 0
        %vm1743 = vcmp.lt.s32.totalorder %v839, 0
        %vm1744 = vcmp.lt.s32.totalorder %v846, 0
        %vm1745 = vcmp.lt.s32.totalorder %v853, 0
        %vm1746 = vcmp.lt.s32.totalorder %v860, 0
        %vm1747 = vcmp.lt.s32.totalorder %v867, 0
        %vm1748 = vcmp.lt.s32.totalorder %v874, 0
        %vm1749 = vcmp.lt.s32.totalorder %v881, 0
        %vm1750 = vcmp.lt.s32.totalorder %v888, 0
        %vm1751 = vcmp.lt.s32.totalorder %v895, 0
        %vm1752 = vcmp.lt.s32.totalorder %v902, 0
        %vm1753 = vcmp.lt.s32.totalorder %v909, 0
        %vm1754 = vcmp.lt.s32.totalorder %v916, 0
        %vm1755 = vcmp.lt.s32.totalorder %v923, 0
        %vm1756 = vcmp.lt.s32.totalorder %v930, 0
        %vm1757 = vcmp.lt.s32.totalorder %v937, 0
        %vm1758 = vcmp.lt.s32.totalorder %v944, 0
        %vm1759 = vcmp.lt.s32.totalorder %v951, 0
        %vm1760 = vcmp.lt.s32.totalorder %v958, 0
        %vm1761 = vcmp.lt.s32.totalorder %v965, 0
        %vm1762 = vcmp.lt.s32.totalorder %v972, 0
        %vm1763 = vcmp.lt.s32.totalorder %v979, 0
        %vm1764 = vcmp.lt.s32.totalorder %v986, 0
        %vm1765 = vcmp.lt.s32.totalorder %v993, 0
        %vm1766 = vcmp.lt.s32.totalorder %v1000, 0
        %vm1767 = vcmp.lt.s32.totalorder %v1007, 0
        %vm1768 = vcmp.lt.s32.totalorder %v1014, 0
        %vm1769 = vcmp.lt.s32.totalorder %v1021, 0
        %vm1770 = vcmp.lt.s32.totalorder %v1028, 0
        %vm1771 = vcmp.lt.s32.totalorder %v1035, 0
        %vm1772 = vcmp.lt.s32.totalorder %v1042, 0
        %vm1773 = vcmp.lt.s32.totalorder %v1049, 0
        %vm1774 = vcmp.lt.s32.totalorder %v1056, 0
        %vm1775 = vcmp.lt.s32.totalorder %v1063, 0
        %vm1776 = vcmp.lt.s32.totalorder %v1070, 0
        %vm1777 = vcmp.lt.s32.totalorder %v1077, 0
        %vm1778 = vcmp.lt.s32.totalorder %v1084, 0
        %vm1779 = vcmp.lt.s32.totalorder %v1091, 0
        %vm1780 = vcmp.lt.s32.totalorder %v1098, 0
        %vm1781 = vcmp.lt.s32.totalorder %v1105, 0
        %vm1782 = vcmp.lt.s32.totalorder %v1112, 0
        %vm1783 = vcmp.lt.s32.totalorder %v1119, 0
        %vm1784 = vcmp.lt.s32.totalorder %v1126, 0
        %vm1785 = vcmp.lt.s32.totalorder %v1133, 0
        %vm1786 = vcmp.lt.s32.totalorder %v1140, 0
        %vm1787 = vcmp.lt.s32.totalorder %v1147, 0
        %vm1788 = vcmp.lt.s32.totalorder %v1154, 0
        %vm1789 = vcmp.lt.s32.totalorder %v1161, 0
        %vm1790 = vcmp.lt.s32.totalorder %v1168, 0
        %vm1791 = vcmp.lt.s32.totalorder %v1175, 0
        %vm1792 = vcmp.lt.s32.totalorder %v1182, 0
        %vm1793 = vcmp.lt.s32.totalorder %v1189, 0
        %vm1794 = vcmp.lt.s32.totalorder %v1196, 0
        %vm1795 = vcmp.lt.s32.totalorder %v1203, 0
        %vm1796 = vcmp.lt.s32.totalorder %v1210, 0
        %vm1797 = vcmp.lt.s32.totalorder %v1217, 0
        %vm1798 = vcmp.lt.s32.totalorder %v1224, 0
        %vm1799 = vcmp.lt.s32.totalorder %v1231, 0
        %vm1800 = vcmp.lt.s32.totalorder %v1238, 0
        %vm1801 = vcmp.lt.s32.totalorder %v1245, 0
        %vm1802 = vcmp.lt.s32.totalorder %v1252, 0
        %vm1803 = vcmp.lt.s32.totalorder %v1259, 0
        %vm1804 = vcmp.lt.s32.totalorder %v1266, 0
        %vm1805 = vcmp.lt.s32.totalorder %v1273, 0
        %vm1806 = vcmp.lt.s32.totalorder %v1280, 0
        %vm1807 = vcmp.lt.s32.totalorder %v1287, 0
        %vm1808 = vcmp.lt.s32.totalorder %v1294, 0
        %vm1809 = vcmp.lt.s32.totalorder %v1301, 0
        %vm1810 = vcmp.lt.s32.totalorder %v1308, 0
        %vm1811 = vcmp.lt.s32.totalorder %v1315, 0
        %vm1812 = vcmp.lt.s32.totalorder %v1322, 0
        %vm1813 = vcmp.lt.s32.totalorder %v1329, 0
        %vm1814 = vcmp.lt.s32.totalorder %v1336, 0
        %vm1815 = vcmp.lt.s32.totalorder %v1343, 0
        %vm1816 = vcmp.lt.s32.totalorder %v1350, 0
        %vm1817 = vcmp.lt.s32.totalorder %v1357, 0
        %vm1818 = vcmp.lt.s32.totalorder %v1364, 0
        %vm1819 = vcmp.lt.s32.totalorder %v1371, 0
        %vm1820 = vcmp.lt.s32.totalorder %v1378, 0
        %vm1821 = vcmp.lt.s32.totalorder %v1385, 0
        %vm1822 = vcmp.lt.s32.totalorder %v1392, 0
        %vm1823 = vcmp.lt.s32.totalorder %v1399, 0
        %vm1824 = vcmp.lt.s32.totalorder %v1406, 0
        %vm1825 = vcmp.lt.s32.totalorder %v1413, 0
        %vm1826 = vcmp.lt.s32.totalorder %v1420, 0
        %vm1827 = vcmp.lt.s32.totalorder %v1427, 0
        %vm1828 = vcmp.lt.s32.totalorder %v1434, 0
        %vm1829 = vcmp.lt.s32.totalorder %v1441, 0
        %vm1830 = vcmp.lt.s32.totalorder %v1448, 0
        %vm1831 = vcmp.lt.s32.totalorder %v1455, 0
        %vm1832 = vcmp.lt.s32.totalorder %v1462, 0
        %vm1833 = vcmp.lt.s32.totalorder %v1469, 0
        %vm1834 = vcmp.lt.s32.totalorder %v1476, 0
        %vm1835 = vcmp.lt.s32.totalorder %v1483, 0
        %vm1836 = vcmp.lt.s32.totalorder %v1490, 0
        %vm1837 = vcmp.lt.s32.totalorder %v1497, 0
        %vm1838 = vcmp.lt.s32.totalorder %v1504, 0
        %vm1839 = vcmp.lt.s32.totalorder %v1511, 0
        %vm1840 = vcmp.lt.s32.totalorder %v1518, 0
        %vm1841 = vcmp.lt.s32.totalorder %v1525, 0
        %vm1842 = vcmp.lt.s32.totalorder %v1532, 0
        %vm1843 = vcmp.lt.s32.totalorder %v1539, 0
        %vm1844 = vcmp.lt.s32.totalorder %v1546, 0
        %vm1845 = vcmp.lt.s32.totalorder %v1553, 0
        %vm1846 = vcmp.lt.s32.totalorder %v1560, 0
        %vm1847 = vcmp.lt.s32.totalorder %v1567, 0
        %vm1848 = vcmp.lt.s32.totalorder %v1574, 0
        %vm1849 = vcmp.lt.s32.totalorder %v1581, 0
        %vm1850 = vcmp.lt.s32.totalorder %v1588, 0
        %vm1851 = vcmp.lt.s32.totalorder %v1595, 0
        %vm1852 = vmand %vm1724, %vm1596
        %vm1853 = vmand %vm1725, %vm1597
        %vm1854 = vmand %vm1726, %vm1598
        %vm1855 = vmand %vm1727, %vm1599
        %vm1856 = vmand %vm1728, %vm1600
        %vm1857 = vmand %vm1729, %vm1601
        %vm1858 = vmand %vm1730, %vm1602
        %vm1859 = vmand %vm1731, %vm1603
        %vm1860 = vmand %vm1732, %vm1604
        %vm1861 = vmand %vm1733, %vm1605
        %vm1862 = vmand %vm1734, %vm1606
        %vm1863 = vmand %vm1735, %vm1607
        %vm1864 = vmand %vm1736, %vm1608
        %vm1865 = vmand %vm1737, %vm1609
        %vm1866 = vmand %vm1738, %vm1610
        %vm1867 = vmand %vm1739, %vm1611
        %vm1868 = vmand %vm1740, %vm1612
        %vm1869 = vmand %vm1741, %vm1613
        %vm1870 = vmand %vm1742, %vm1614
        %vm1871 = vmand %vm1743, %vm1615
        %vm1872 = vmand %vm1744, %vm1616
        %vm1873 = vmand %vm1745, %vm1617
        %vm1874 = vmand %vm1746, %vm1618
        %vm1875 = vmand %vm1747, %vm1619
        %vm1876 = vmand %vm1748, %vm1620
        %vm1877 = vmand %vm1749, %vm1621
        %vm1878 = vmand %vm1750, %vm1622
        %vm1879 = vmand %vm1751, %vm1623
        %vm1880 = vmand %vm1752, %vm1624
        %vm1881 = vmand %vm1753, %vm1625
        %vm1882 = vmand %vm1754, %vm1626
        %vm1883 = vmand %vm1755, %vm1627
        %vm1884 = vmand %vm1756, %vm1628
        %vm1885 = vmand %vm1757, %vm1629
        %vm1886 = vmand %vm1758, %vm1630
        %vm1887 = vmand %vm1759, %vm1631
        %vm1888 = vmand %vm1760, %vm1632
        %vm1889 = vmand %vm1761, %vm1633
        %vm1890 = vmand %vm1762, %vm1634
        %vm1891 = vmand %vm1763, %vm1635
        %vm1892 = vmand %vm1764, %vm1636
        %vm1893 = vmand %vm1765, %vm1637
        %vm1894 = vmand %vm1766, %vm1638
        %vm1895 = vmand %vm1767, %vm1639
        %vm1896 = vmand %vm1768, %vm1640
        %vm1897 = vmand %vm1769, %vm1641
        %vm1898 = vmand %vm1770, %vm1642
        %vm1899 = vmand %vm1771, %vm1643
        %vm1900 = vmand %vm1772, %vm1644
        %vm1901 = vmand %vm1773, %vm1645
        %vm1902 = vmand %vm1774, %vm1646
        %vm1903 = vmand %vm1775, %vm1647
        %vm1904 = vmand %vm1776, %vm1648
        %vm1905 = vmand %vm1777, %vm1649
        %vm1906 = vmand %vm1778, %vm1650
        %vm1907 = vmand %vm1779, %vm1651
        %vm1908 = vmand %vm1780, %vm1652
        %vm1909 = vmand %vm1781, %vm1653
        %vm1910 = vmand %vm1782, %vm1654
        %vm1911 = vmand %vm1783, %vm1655
        %vm1912 = vmand %vm1784, %vm1656
        %vm1913 = vmand %vm1785, %vm1657
        %vm1914 = vmand %vm1786, %vm1658
        %vm1915 = vmand %vm1787, %vm1659
        %vm1916 = vmand %vm1788, %vm1660
        %vm1917 = vmand %vm1789, %vm1661
        %vm1918 = vmand %vm1790, %vm1662
        %vm1919 = vmand %vm1791, %vm1663
        %vm1920 = vmand %vm1792, %vm1664
        %vm1921 = vmand %vm1793, %vm1665
        %vm1922 = vmand %vm1794, %vm1666
        %vm1923 = vmand %vm1795, %vm1667
        %vm1924 = vmand %vm1796, %vm1668
        %vm1925 = vmand %vm1797, %vm1669
        %vm1926 = vmand %vm1798, %vm1670
        %vm1927 = vmand %vm1799, %vm1671
        %vm1928 = vmand %vm1800, %vm1672
        %vm1929 = vmand %vm1801, %vm1673
        %vm1930 = vmand %vm1802, %vm1674
        %vm1931 = vmand %vm1803, %vm1675
        %vm1932 = vmand %vm1804, %vm1676
        %vm1933 = vmand %vm1805, %vm1677
        %vm1934 = vmand %vm1806, %vm1678
        %vm1935 = vmand %vm1807, %vm1679
        %vm1936 = vmand %vm1808, %vm1680
        %vm1937 = vmand %vm1809, %vm1681
        %vm1938 = vmand %vm1810, %vm1682
        %vm1939 = vmand %vm1811, %vm1683
        %vm1940 = vmand %vm1812, %vm1684
        %vm1941 = vmand %vm1813, %vm1685
        %vm1942 = vmand %vm1814, %vm1686
        %vm1943 = vmand %vm1815, %vm1687
        %vm1944 = vmand %vm1816, %vm1688
        %vm1945 = vmand %vm1817, %vm1689
        %vm1946 = vmand %vm1818, %vm1690
        %vm1947 = vmand %vm1819, %vm1691
        %vm1948 = vmand %vm1820, %vm1692
        %vm1949 = vmand %vm1821, %vm1693
        %vm1950 = vmand %vm1822, %vm1694
        %vm1951 = vmand %vm1823, %vm1695
        %vm1952 = vmand %vm1824, %vm1696
        %vm1953 = vmand %vm1825, %vm1697
        %vm1954 = vmand %vm1826, %vm1698
        %vm1955 = vmand %vm1827, %vm1699
        %vm1956 = vmand %vm1828, %vm1700
        %vm1957 = vmand %vm1829, %vm1701
        %vm1958 = vmand %vm1830, %vm1702
        %vm1959 = vmand %vm1831, %vm1703
        %vm1960 = vmand %vm1832, %vm1704
        %vm1961 = vmand %vm1833, %vm1705
        %vm1962 = vmand %vm1834, %vm1706
        %vm1963 = vmand %vm1835, %vm1707
        %vm1964 = vmand %vm1836, %vm1708
        %vm1965 = vmand %vm1837, %vm1709
        %vm1966 = vmand %vm1838, %vm1710
        %vm1967 = vmand %vm1839, %vm1711
        %vm1968 = vmand %vm1840, %vm1712
        %vm1969 = vmand %vm1841, %vm1713
        %vm1970 = vmand %vm1842, %vm1714
        %vm1971 = vmand %vm1843, %vm1715
        %vm1972 = vmand %vm1844, %vm1716
        %vm1973 = vmand %vm1845, %vm1717
        %vm1974 = vmand %vm1846, %vm1718
        %vm1975 = vmand %vm1847, %vm1719
        %vm1976 = vmand %vm1848, %vm1720
        %vm1977 = vmand %vm1849, %vm1721
        %vm1978 = vmand %vm1850, %vm1722
        %vm1979 = vmand %vm1851, %vm1723
        %v1980 = vadd.s32 %v706, 16
        %v1981 = vadd.s32 %v713, 16
        %v1982 = vadd.s32 %v720, 16
        %v1983 = vadd.s32 %v727, 16
        %v1984 = vadd.s32 %v734, 16
        %v1985 = vadd.s32 %v741, 16
        %v1986 = vadd.s32 %v748, 16
        %v1987 = vadd.s32 %v755, 16
        %v1988 = vadd.s32 %v762, 16
        %v1989 = vadd.s32 %v769, 16
        %v1990 = vadd.s32 %v776, 16
        %v1991 = vadd.s32 %v783, 16
        %v1992 = vadd.s32 %v790, 16
        %v1993 = vadd.s32 %v797, 16
        %v1994 = vadd.s32 %v804, 16
        %v1995 = vadd.s32 %v811, 16
        %v1996 = vadd.s32 %v818, 16
        %v1997 = vadd.s32 %v825, 16
        %v1998 = vadd.s32 %v832, 16
        %v1999 = vadd.s32 %v839, 16
        %v2000 = vadd.s32 %v846, 16
        %v2001 = vadd.s32 %v853, 16
        %v2002 = vadd.s32 %v860, 16
        %v2003 = vadd.s32 %v867, 16
        %v2004 = vadd.s32 %v874, 16
        %v2005 = vadd.s32 %v881, 16
        %v2006 = vadd.s32 %v888, 16
        %v2007 = vadd.s32 %v895, 16
        %v2008 = vadd.s32 %v902, 16
        %v2009 = vadd.s32 %v909, 16
        %v2010 = vadd.s32 %v916, 16
        %v2011 = vadd.s32 %v923, 16
        %v2012 = vadd.s32 %v930, 16
        %v2013 = vadd.s32 %v937, 16
        %v2014 = vadd.s32 %v944, 16
        %v2015 = vadd.s32 %v951, 16
        %v2016 = vadd.s32 %v958, 16
        %v2017 = vadd.s32 %v965, 16
        %v2018 = vadd.s32 %v972, 16
        %v2019 = vadd.s32 %v979, 16
        %v2020 = vadd.s32 %v986, 16
        %v2021 = vadd.s32 %v993, 16
        %v2022 = vadd.s32 %v1000, 16
        %v2023 = vadd.s32 %v1007, 16
        %v2024 = vadd.s32 %v1014, 16
        %v2025 = vadd.s32 %v1021, 16
        %v2026 = vadd.s32 %v1028, 16
        %v2027 = vadd.s32 %v1035, 16
        %v2028 = vadd.s32 %v1042, 16
        %v2029 = vadd.s32 %v1049, 16
        %v2030 = vadd.s32 %v1056, 16
        %v2031 = vadd.s32 %v1063, 16
        %v2032 = vadd.s32 %v1070, 16
        %v2033 = vadd.s32 %v1077, 16
        %v2034 = vadd.s32 %v1084, 16
        %v2035 = vadd.s32 %v1091, 16
        %v2036 = vadd.s32 %v1098, 16
        %v2037 = vadd.s32 %v1105, 16
        %v2038 = vadd.s32 %v1112, 16
        %v2039 = vadd.s32 %v1119, 16
        %v2040 = vadd.s32 %v1126, 16
        %v2041 = vadd.s32 %v1133, 16
        %v2042 = vadd.s32 %v1140, 16
        %v2043 = vadd.s32 %v1147, 16
        %v2044 = vadd.s32 %v1154, 16
        %v2045 = vadd.s32 %v1161, 16
        %v2046 = vadd.s32 %v1168, 16
        %v2047 = vadd.s32 %v1175, 16
        %v2048 = vadd.s32 %v1182, 16
        %v2049 = vadd.s32 %v1189, 16
        %v2050 = vadd.s32 %v1196, 16
        %v2051 = vadd.s32 %v1203, 16
        %v2052 = vadd.s32 %v1210, 16
        %v2053 = vadd.s32 %v1217, 16
        %v2054 = vadd.s32 %v1224, 16
        %v2055 = vadd.s32 %v1231, 16
        %v2056 = vadd.s32 %v1238, 16
        %v2057 = vadd.s32 %v1245, 16
        %v2058 = vadd.s32 %v1252, 16
        %v2059 = vadd.s32 %v1259, 16
        %v2060 = vadd.s32 %v1266, 16
        %v2061 = vadd.s32 %v1273, 16
        %v2062 = vadd.s32 %v1280, 16
        %v2063 = vadd.s32 %v1287, 16
        %v2064 = vadd.s32 %v1294, 16
        %v2065 = vadd.s32 %v1301, 16
        %v2066 = vadd.s32 %v1308, 16
        %v2067 = vadd.s32 %v1315, 16
        %v2068 = vadd.s32 %v1322, 16
        %v2069 = vadd.s32 %v1329, 16
        %v2070 = vadd.s32 %v1336, 16
        %v2071 = vadd.s32 %v1343, 16
        %v2072 = vadd.s32 %v1350, 16
        %v2073 = vadd.s32 %v1357, 16
        %v2074 = vadd.s32 %v1364, 16
        %v2075 = vadd.s32 %v1371, 16
        %v2076 = vadd.s32 %v1378, 16
        %v2077 = vadd.s32 %v1385, 16
        %v2078 = vadd.s32 %v1392, 16
        %v2079 = vadd.s32 %v1399, 16
        %v2080 = vadd.s32 %v1406, 16
        %v2081 = vadd.s32 %v1413, 16
        %v2082 = vadd.s32 %v1420, 16
        %v2083 = vadd.s32 %v1427, 16
        %v2084 = vadd.s32 %v1434, 16
        %v2085 = vadd.s32 %v1441, 16
        %v2086 = vadd.s32 %v1448, 16
        %v2087 = vadd.s32 %v1455, 16
        %v2088 = vadd.s32 %v1462, 16
        %v2089 = vadd.s32 %v1469, 16
        %v2090 = vadd.s32 %v1476, 16
        %v2091 = vadd.s32 %v1483, 16
        %v2092 = vadd.s32 %v1490, 16
        %v2093 = vadd.s32 %v1497, 16
        %v2094 = vadd.s32 %v1504, 16
        %v2095 = vadd.s32 %v1511, 16
        %v2096 = vadd.s32 %v1518, 16
        %v2097 = vadd.s32 %v1525, 16
        %v2098 = vadd.s32 %v1532, 16
        %v2099 = vadd.s32 %v1539, 16
        %v2100 = vadd.s32 %v1546, 16
        %v2101 = vadd.s32 %v1553, 16
        %v2102 = vadd.s32 %v1560, 16
        %v2103 = vadd.s32 %v1567, 16
        %v2104 = vadd.s32 %v1574, 16
        %v2105 = vadd.s32 %v1581, 16
        %v2106 = vadd.s32 %v1588, 16
        %v2107 = vadd.s32 %v1595, 16
        %v2108 = vsel %vm1852, %v1980, %v706
        %v2109 = vsel %vm1853, %v1981, %v713
        %v2110 = vsel %vm1854, %v1982, %v720
        %v2111 = vsel %vm1855, %v1983, %v727
        %v2112 = vsel %vm1856, %v1984, %v734
        %v2113 = vsel %vm1857, %v1985, %v741
        %v2114 = vsel %vm1858, %v1986, %v748
        %v2115 = vsel %vm1859, %v1987, %v755
        %v2116 = vsel %vm1860, %v1988, %v762
        %v2117 = vsel %vm1861, %v1989, %v769
        %v2118 = vsel %vm1862, %v1990, %v776
        %v2119 = vsel %vm1863, %v1991, %v783
        %v2120 = vsel %vm1864, %v1992, %v790
        %v2121 = vsel %vm1865, %v1993, %v797
        %v2122 = vsel %vm1866, %v1994, %v804
        %v2123 = vsel %vm1867, %v1995, %v811
        %v2124 = vsel %vm1868, %v1996, %v818
        %v2125 = vsel %vm1869, %v1997, %v825
        %v2126 = vsel %vm1870, %v1998, %v832
        %v2127 = vsel %vm1871, %v1999, %v839
        %v2128 = vsel %vm1872, %v2000, %v846
        %v2129 = vsel %vm1873, %v2001, %v853
        %v2130 = vsel %vm1874, %v2002, %v860
        %v2131 = vsel %vm1875, %v2003, %v867
        %v2132 = vsel %vm1876, %v2004, %v874
        %v2133 = vsel %vm1877, %v2005, %v881
        %v2134 = vsel %vm1878, %v2006, %v888
        %v2135 = vsel %vm1879, %v2007, %v895
        %v2136 = vsel %vm1880, %v2008, %v902
        %v2137 = vsel %vm1881, %v2009, %v909
        %v2138 = vsel %vm1882, %v2010, %v916
        %v2139 = vsel %vm1883, %v2011, %v923
        %v2140 = vsel %vm1884, %v2012, %v930
        %v2141 = vsel %vm1885, %v2013, %v937
        %v2142 = vsel %vm1886, %v2014, %v944
        %v2143 = vsel %vm1887, %v2015, %v951
        %v2144 = vsel %vm1888, %v2016, %v958
        %v2145 = vsel %vm1889, %v2017, %v965
        %v2146 = vsel %vm1890, %v2018, %v972
        %v2147 = vsel %vm1891, %v2019, %v979
        %v2148 = vsel %vm1892, %v2020, %v986
        %v2149 = vsel %vm1893, %v2021, %v993
        %v2150 = vsel %vm1894, %v2022, %v1000
        %v2151 = vsel %vm1895, %v2023, %v1007
        %v2152 = vsel %vm1896, %v2024, %v1014
        %v2153 = vsel %vm1897, %v2025, %v1021
        %v2154 = vsel %vm1898, %v2026, %v1028
        %v2155 = vsel %vm1899, %v2027, %v1035
        %v2156 = vsel %vm1900, %v2028, %v1042
        %v2157 = vsel %vm1901, %v2029, %v1049
        %v2158 = vsel %vm1902, %v2030, %v1056
        %v2159 = vsel %vm1903, %v2031, %v1063
        %v2160 = vsel %vm1904, %v2032, %v1070
        %v2161 = vsel %vm1905, %v2033, %v1077
        %v2162 = vsel %vm1906, %v2034, %v1084
        %v2163 = vsel %vm1907, %v2035, %v1091
        %v2164 = vsel %vm1908, %v2036, %v1098
        %v2165 = vsel %vm1909, %v2037, %v1105
        %v2166 = vsel %vm1910, %v2038, %v1112
        %v2167 = vsel %vm1911, %v2039, %v1119
        %v2168 = vsel %vm1912, %v2040, %v1126
        %v2169 = vsel %vm1913, %v2041, %v1133
        %v2170 = vsel %vm1914, %v2042, %v1140
        %v2171 = vsel %vm1915, %v2043, %v1147
        %v2172 = vsel %vm1916, %v2044, %v1154
        %v2173 = vsel %vm1917, %v2045, %v1161
        %v2174 = vsel %vm1918, %v2046, %v1168
        %v2175 = vsel %vm1919, %v2047, %v1175
        %v2176 = vsel %vm1920, %v2048, %v1182
        %v2177 = vsel %vm1921, %v2049, %v1189
        %v2178 = vsel %vm1922, %v2050, %v1196
        %v2179 = vsel %vm1923, %v2051, %v1203
        %v2180 = vsel %vm1924, %v2052, %v1210
        %v2181 = vsel %vm1925, %v2053, %v1217
        %v2182 = vsel %vm1926, %v2054, %v1224
        %v2183 = vsel %vm1927, %v2055, %v1231
        %v2184 = vsel %vm1928, %v2056, %v1238
        %v2185 = vsel %vm1929, %v2057, %v1245
        %v2186 = vsel %vm1930, %v2058, %v1252
        %v2187 = vsel %vm1931, %v2059, %v1259
        %v2188 = vsel %vm1932, %v2060, %v1266
        %v2189 = vsel %vm1933, %v2061, %v1273
        %v2190 = vsel %vm1934, %v2062, %v1280
        %v2191 = vsel %vm1935, %v2063, %v1287
        %v2192 = vsel %vm1936, %v2064, %v1294
        %v2193 = vsel %vm1937, %v2065, %v1301
        %v2194 = vsel %vm1938, %v2066, %v1308
        %v2195 = vsel %vm1939, %v2067, %v1315
        %v2196 = vsel %vm1940, %v2068, %v1322
        %v2197 = vsel %vm1941, %v2069, %v1329
        %v2198 = vsel %vm1942, %v2070, %v1336
        %v2199 = vsel %vm1943, %v2071, %v1343
        %v2200 = vsel %vm1944, %v2072, %v1350
        %v2201 = vsel %vm1945, %v2073, %v1357
        %v2202 = vsel %vm1946, %v2074, %v1364
        %v2203 = vsel %vm1947, %v2075, %v1371
        %v2204 = vsel %vm1948, %v2076, %v1378
        %v2205 = vsel %vm1949, %v2077, %v1385
        %v2206 = vsel %vm1950, %v2078, %v1392
        %v2207 = vsel %vm1951, %v2079, %v1399
        %v2208 = vsel %vm1952, %v2080, %v1406
        %v2209 = vsel %vm1953, %v2081, %v1413
        %v2210 = vsel %vm1954, %v2082, %v1420
        %v2211 = vsel %vm1955, %v2083, %v1427
        %v2212 = vsel %vm1956, %v2084, %v1434
        %v2213 = vsel %vm1957, %v2085, %v1441
        %v2214 = vsel %vm1958, %v2086, %v1448
        %v2215 = vsel %vm1959, %v2087, %v1455
        %v2216 = vsel %vm1960, %v2088, %v1462
        %v2217 = vsel %vm1961, %v2089, %v1469
        %v2218 = vsel %vm1962, %v2090, %v1476
        %v2219 = vsel %vm1963, %v2091, %v1483
        %v2220 = vsel %vm1964, %v2092, %v1490
        %v2221 = vsel %vm1965, %v2093, %v1497
        %v2222 = vsel %vm1966, %v2094, %v1504
        %v2223 = vsel %vm1967, %v2095, %v1511
        %v2224 = vsel %vm1968, %v2096, %v1518
        %v2225 = vsel %vm1969, %v2097, %v1525
        %v2226 = vsel %vm1970, %v2098, %v1532
        %v2227 = vsel %vm1971, %v2099, %v1539
        %v2228 = vsel %vm1972, %v2100, %v1546
        %v2229 = vsel %vm1973, %v2101, %v1553
        %v2230 = vsel %vm1974, %v2102, %v1560
        %v2231 = vsel %vm1975, %v2103, %v1567
        %v2232 = vsel %vm1976, %v2104, %v1574
        %v2233 = vsel %vm1977, %v2105, %v1581
        %v2234 = vsel %vm1978, %v2106, %v1588
        %v2235 = vsel %vm1979, %v2107, %v1595
        %vm2236 = vcmp.eq.s32.totalorder %v2108, 0
        %vm2237 = vcmp.eq.s32.totalorder %v2109, 0
        %vm2238 = vcmp.eq.s32.totalorder %v2110, 0
        %vm2239 = vcmp.eq.s32.totalorder %v2111, 0
        %vm2240 = vcmp.eq.s32.totalorder %v2112, 0
        %vm2241 = vcmp.eq.s32.totalorder %v2113, 0
        %vm2242 = vcmp.eq.s32.totalorder %v2114, 0
        %vm2243 = vcmp.eq.s32.totalorder %v2115, 0
        %vm2244 = vcmp.eq.s32.totalorder %v2116, 0
        %vm2245 = vcmp.eq.s32.totalorder %v2117, 0
        %vm2246 = vcmp.eq.s32.totalorder %v2118, 0
        %vm2247 = vcmp.eq.s32.totalorder %v2119, 0
        %vm2248 = vcmp.eq.s32.totalorder %v2120, 0
        %vm2249 = vcmp.eq.s32.totalorder %v2121, 0
        %vm2250 = vcmp.eq.s32.totalorder %v2122, 0
        %vm2251 = vcmp.eq.s32.totalorder %v2123, 0
        %vm2252 = vcmp.eq.s32.totalorder %v2124, 0
        %vm2253 = vcmp.eq.s32.totalorder %v2125, 0
        %vm2254 = vcmp.eq.s32.totalorder %v2126, 0
        %vm2255 = vcmp.eq.s32.totalorder %v2127, 0
        %vm2256 = vcmp.eq.s32.totalorder %v2128, 0
        %vm2257 = vcmp.eq.s32.totalorder %v2129, 0
        %vm2258 = vcmp.eq.s32.totalorder %v2130, 0
        %vm2259 = vcmp.eq.s32.totalorder %v2131, 0
        %vm2260 = vcmp.eq.s32.totalorder %v2132, 0
        %vm2261 = vcmp.eq.s32.totalorder %v2133, 0
        %vm2262 = vcmp.eq.s32.totalorder %v2134, 0
        %vm2263 = vcmp.eq.s32.totalorder %v2135, 0
        %vm2264 = vcmp.eq.s32.totalorder %v2136, 0
        %vm2265 = vcmp.eq.s32.totalorder %v2137, 0
        %vm2266 = vcmp.eq.s32.totalorder %v2138, 0
        %vm2267 = vcmp.eq.s32.totalorder %v2139, 0
        %vm2268 = vcmp.eq.s32.totalorder %v2140, 0
        %vm2269 = vcmp.eq.s32.totalorder %v2141, 0
        %vm2270 = vcmp.eq.s32.totalorder %v2142, 0
        %vm2271 = vcmp.eq.s32.totalorder %v2143, 0
        %vm2272 = vcmp.eq.s32.totalorder %v2144, 0
        %vm2273 = vcmp.eq.s32.totalorder %v2145, 0
        %vm2274 = vcmp.eq.s32.totalorder %v2146, 0
        %vm2275 = vcmp.eq.s32.totalorder %v2147, 0
        %vm2276 = vcmp.eq.s32.totalorder %v2148, 0
        %vm2277 = vcmp.eq.s32.totalorder %v2149, 0
        %vm2278 = vcmp.eq.s32.totalorder %v2150, 0
        %vm2279 = vcmp.eq.s32.totalorder %v2151, 0
        %vm2280 = vcmp.eq.s32.totalorder %v2152, 0
        %vm2281 = vcmp.eq.s32.totalorder %v2153, 0
        %vm2282 = vcmp.eq.s32.totalorder %v2154, 0
        %vm2283 = vcmp.eq.s32.totalorder %v2155, 0
        %vm2284 = vcmp.eq.s32.totalorder %v2156, 0
        %vm2285 = vcmp.eq.s32.totalorder %v2157, 0
        %vm2286 = vcmp.eq.s32.totalorder %v2158, 0
        %vm2287 = vcmp.eq.s32.totalorder %v2159, 0
        %vm2288 = vcmp.eq.s32.totalorder %v2160, 0
        %vm2289 = vcmp.eq.s32.totalorder %v2161, 0
        %vm2290 = vcmp.eq.s32.totalorder %v2162, 0
        %vm2291 = vcmp.eq.s32.totalorder %v2163, 0
        %vm2292 = vcmp.eq.s32.totalorder %v2164, 0
        %vm2293 = vcmp.eq.s32.totalorder %v2165, 0
        %vm2294 = vcmp.eq.s32.totalorder %v2166, 0
        %vm2295 = vcmp.eq.s32.totalorder %v2167, 0
        %vm2296 = vcmp.eq.s32.totalorder %v2168, 0
        %vm2297 = vcmp.eq.s32.totalorder %v2169, 0
        %vm2298 = vcmp.eq.s32.totalorder %v2170, 0
        %vm2299 = vcmp.eq.s32.totalorder %v2171, 0
        %vm2300 = vcmp.eq.s32.totalorder %v2172, 0
        %vm2301 = vcmp.eq.s32.totalorder %v2173, 0
        %vm2302 = vcmp.eq.s32.totalorder %v2174, 0
        %vm2303 = vcmp.eq.s32.totalorder %v2175, 0
        %vm2304 = vcmp.eq.s32.totalorder %v2176, 0
        %vm2305 = vcmp.eq.s32.totalorder %v2177, 0
        %vm2306 = vcmp.eq.s32.totalorder %v2178, 0
        %vm2307 = vcmp.eq.s32.totalorder %v2179, 0
        %vm2308 = vcmp.eq.s32.totalorder %v2180, 0
        %vm2309 = vcmp.eq.s32.totalorder %v2181, 0
        %vm2310 = vcmp.eq.s32.totalorder %v2182, 0
        %vm2311 = vcmp.eq.s32.totalorder %v2183, 0
        %vm2312 = vcmp.eq.s32.totalorder %v2184, 0
        %vm2313 = vcmp.eq.s32.totalorder %v2185, 0
        %vm2314 = vcmp.eq.s32.totalorder %v2186, 0
        %vm2315 = vcmp.eq.s32.totalorder %v2187, 0
        %vm2316 = vcmp.eq.s32.totalorder %v2188, 0
        %vm2317 = vcmp.eq.s32.totalorder %v2189, 0
        %vm2318 = vcmp.eq.s32.totalorder %v2190, 0
        %vm2319 = vcmp.eq.s32.totalorder %v2191, 0
        %vm2320 = vcmp.eq.s32.totalorder %v2192, 0
        %vm2321 = vcmp.eq.s32.totalorder %v2193, 0
        %vm2322 = vcmp.eq.s32.totalorder %v2194, 0
        %vm2323 = vcmp.eq.s32.totalorder %v2195, 0
        %vm2324 = vcmp.eq.s32.totalorder %v2196, 0
        %vm2325 = vcmp.eq.s32.totalorder %v2197, 0
        %vm2326 = vcmp.eq.s32.totalorder %v2198, 0
        %vm2327 = vcmp.eq.s32.totalorder %v2199, 0
        %vm2328 = vcmp.eq.s32.totalorder %v2200, 0
        %vm2329 = vcmp.eq.s32.totalorder %v2201, 0
        %vm2330 = vcmp.eq.s32.totalorder %v2202, 0
        %vm2331 = vcmp.eq.s32.totalorder %v2203, 0
        %vm2332 = vcmp.eq.s32.totalorder %v2204, 0
        %vm2333 = vcmp.eq.s32.totalorder %v2205, 0
        %vm2334 = vcmp.eq.s32.totalorder %v2206, 0
        %vm2335 = vcmp.eq.s32.totalorder %v2207, 0
        %vm2336 = vcmp.eq.s32.totalorder %v2208, 0
        %vm2337 = vcmp.eq.s32.totalorder %v2209, 0
        %vm2338 = vcmp.eq.s32.totalorder %v2210, 0
        %vm2339 = vcmp.eq.s32.totalorder %v2211, 0
        %vm2340 = vcmp.eq.s32.totalorder %v2212, 0
        %vm2341 = vcmp.eq.s32.totalorder %v2213, 0
        %vm2342 = vcmp.eq.s32.totalorder %v2214, 0
        %vm2343 = vcmp.eq.s32.totalorder %v2215, 0
        %vm2344 = vcmp.eq.s32.totalorder %v2216, 0
        %vm2345 = vcmp.eq.s32.totalorder %v2217, 0
        %vm2346 = vcmp.eq.s32.totalorder %v2218, 0
        %vm2347 = vcmp.eq.s32.totalorder %v2219, 0
        %vm2348 = vcmp.eq.s32.totalorder %v2220, 0
        %vm2349 = vcmp.eq.s32.totalorder %v2221, 0
        %vm2350 = vcmp.eq.s32.totalorder %v2222, 0
        %vm2351 = vcmp.eq.s32.totalorder %v2223, 0
        %vm2352 = vcmp.eq.s32.totalorder %v2224, 0
        %vm2353 = vcmp.eq.s32.totalorder %v2225, 0
        %vm2354 = vcmp.eq.s32.totalorder %v2226, 0
        %vm2355 = vcmp.eq.s32.totalorder %v2227, 0
        %vm2356 = vcmp.eq.s32.totalorder %v2228, 0
        %vm2357 = vcmp.eq.s32.totalorder %v2229, 0
        %vm2358 = vcmp.eq.s32.totalorder %v2230, 0
        %vm2359 = vcmp.eq.s32.totalorder %v2231, 0
        %vm2360 = vcmp.eq.s32.totalorder %v2232, 0
        %vm2361 = vcmp.eq.s32.totalorder %v2233, 0
        %vm2362 = vcmp.eq.s32.totalorder %v2234, 0
        %vm2363 = vcmp.eq.s32.totalorder %v2235, 0
        %v2364 = vrot.slane %v443, 7
        %v2365 = vrot.slane %v444, 7
        %v2366 = vrot.slane %v445, 7
        %v2367 = vrot.slane %v446, 7
        %v2368 = vrot.slane %v447, 7
        %v2369 = vrot.slane %v448, 7
        %v2370 = vrot.slane %v449, 7
        %v2371 = vrot.slane %v450, 7
        %v2372 = vrot.slane %v451, 7
        %v2373 = vrot.slane %v452, 7
        %v2374 = vrot.slane %v453, 7
        %v2375 = vrot.slane %v454, 7
        %v2376 = vrot.slane %v455, 7
        %v2377 = vrot.slane %v456, 7
        %v2378 = vrot.slane %v457, 7
        %v2379 = vrot.slane %v458, 7
        %v2380 = vrot.slane %v459, 7
        %v2381 = vrot.slane %v460, 7
        %v2382 = vrot.slane %v461, 7
        %v2383 = vrot.slane %v462, 7
        %v2384 = vrot.slane %v463, 7
        %v2385 = vrot.slane %v464, 7
        %v2386 = vrot.slane %v465, 7
        %v2387 = vrot.slane %v466, 7
        %v2388 = vrot.slane %v467, 7
        %v2389 = vrot.slane %v468, 7
        %v2390 = vrot.slane %v469, 7
        %v2391 = vrot.slane %v470, 7
        %v2392 = vrot.slane %v471, 7
        %v2393 = vrot.slane %v472, 7
        %v2394 = vrot.slane %v473, 7
        %v2395 = vrot.slane %v474, 7
        %v2396 = vrot.slane %v475, 7
        %v2397 = vrot.slane %v476, 7
        %v2398 = vrot.slane %v477, 7
        %v2399 = vrot.slane %v478, 7
        %v2400 = vrot.slane %v479, 7
        %v2401 = vrot.slane %v480, 7
        %v2402 = vrot.slane %v481, 7
        %v2403 = vrot.slane %v482, 7
        %v2404 = vrot.slane %v483, 7
        %v2405 = vrot.slane %v484, 7
        %v2406 = vrot.slane %v485, 7
        %v2407 = vrot.slane %v486, 7
        %v2408 = vrot.slane %v487, 7
        %v2409 = vrot.slane %v488, 7
        %v2410 = vrot.slane %v489, 7
        %v2411 = vrot.slane %v490, 7
        %v2412 = vrot.slane %v491, 7
        %v2413 = vrot.slane %v492, 7
        %v2414 = vrot.slane %v493, 7
        %v2415 = vrot.slane %v494, 7
        %v2416 = vrot.slane %v495, 7
        %v2417 = vrot.slane %v496, 7
        %v2418 = vrot.slane %v497, 7
        %v2419 = vrot.slane %v498, 7
        %v2420 = vrot.slane %v499, 7
        %v2421 = vrot.slane %v500, 7
        %v2422 = vrot.slane %v501, 7
        %v2423 = vrot.slane %v502, 7
        %v2424 = vrot.slane %v503, 7
        %v2425 = vrot.slane %v504, 7
        %v2426 = vrot.slane %v505, 7
        %v2427 = vrot.slane %v506, 7
        %v2428 = vrot.slane %v507, 7
        %v2429 = vrot.slane %v508, 7
        %v2430 = vrot.slane %v509, 7
        %v2431 = vrot.slane %v510, 7
        %v2432 = vrot.slane %v511, 7
        %v2433 = vrot.slane %v512, 7
        %v2434 = vrot.slane %v513, 7
        %v2435 = vrot.slane %v514, 7
        %v2436 = vrot.slane %v515, 7
        %v2437 = vrot.slane %v516, 7
        %v2438 = vrot.slane %v517, 7
        %v2439 = vrot.slane %v518, 7
        %v2440 = vrot.slane %v519, 7
        %v2441 = vrot.slane %v520, 7
        %v2442 = vrot.slane %v521, 7
        %v2443 = vrot.slane %v522, 7
        %v2444 = vrot.slane %v523, 7
        %v2445 = vrot.slane %v524, 7
        %v2446 = vrot.slane %v525, 7
        %v2447 = vrot.slane %v526, 7
        %v2448 = vrot.slane %v527, 7
        %v2449 = vrot.slane %v528, 7
        %v2450 = vrot.slane %v529, 7
        %v2451 = vrot.slane %v530, 7
        %v2452 = vrot.slane %v531, 7
        %v2453 = vrot.slane %v532, 7
        %v2454 = vrot.slane %v533, 7
        %v2455 = vrot.slane %v534, 7
        %v2456 = vrot.slane %v535, 7
        %v2457 = vrot.slane %v536, 7
        %v2458 = vrot.slane %v537, 7
        %v2459 = vrot.slane %v538, 7
        %v2460 = vrot.slane %v539, 7
        %v2461 = vrot.slane %v540, 7
        %v2462 = vrot.slane %v541, 7
        %v2463 = vrot.slane %v542, 7
        %v2464 = vrot.slane %v543, 7
        %v2465 = vrot.slane %v544, 7
        %v2466 = vrot.slane %v545, 7
        %v2467 = vrot.slane %v546, 7
        %v2468 = vrot.slane %v547, 7
        %v2469 = vrot.slane %v548, 7
        %v2470 = vrot.slane %v549, 7
        %v2471 = vrot.slane %v550, 7
        %v2472 = vrot.slane %v551, 7
        %v2473 = vrot.slane %v552, 7
        %v2474 = vrot.slane %v553, 7
        %v2475 = vrot.slane %v554, 7
        %v2476 = vrot.slane %v555, 7
        %v2477 = vrot.slane %v556, 7
        %v2478 = vrot.slane %v557, 7
        %v2479 = vrot.slane %v558, 7
        %v2480 = vrot.slane %v559, 7
        %v2481 = vrot.slane %v560, 7
        %v2482 = vrot.slane %v561, 7
        %v2483 = vrot.slane %v562, 7
        %v2484 = vrot.slane %v563, 7
        %v2485 = vrot.slane %v564, 7
        %v2486 = vrot.slane %v565, 7
        %v2487 = vrot.slane %v566, 7
        %v2488 = vrot.slane %v567, 7
        %v2489 = vrot.slane %v568, 7
        %v2490 = vrot.slane %v569, 7
        %v2491 = vrot.slane %v570, 7
        %vm2492 = vcmp.lt.s32.totalorder %v572, 1
        %v2493 = vsel %vm2492, %v2490, %v2491
        %v2494 = vsel %vm2492, %v2489, %v2490
        %v2495 = vsel %vm2492, %v2488, %v2489
        %v2496 = vsel %vm2492, %v2487, %v2488
        %v2497 = vsel %vm2492, %v2486, %v2487
        %v2498 = vsel %vm2492, %v2485, %v2486
        %v2499 = vsel %vm2492, %v2484, %v2485
        %v2500 = vsel %vm2492, %v2483, %v2484
        %v2501 = vsel %vm2492, %v2482, %v2483
        %v2502 = vsel %vm2492, %v2481, %v2482
        %v2503 = vsel %vm2492, %v2480, %v2481
        %v2504 = vsel %vm2492, %v2479, %v2480
        %v2505 = vsel %vm2492, %v2478, %v2479
        %v2506 = vsel %vm2492, %v2477, %v2478
        %v2507 = vsel %vm2492, %v2476, %v2477
        %v2508 = vsel %vm2492, %v2475, %v2476
        %v2509 = vsel %vm2492, %v2474, %v2475
        %v2510 = vsel %vm2492, %v2473, %v2474
        %v2511 = vsel %vm2492, %v2472, %v2473
        %v2512 = vsel %vm2492, %v2471, %v2472
        %v2513 = vsel %vm2492, %v2470, %v2471
        %v2514 = vsel %vm2492, %v2469, %v2470
        %v2515 = vsel %vm2492, %v2468, %v2469
        %v2516 = vsel %vm2492, %v2467, %v2468
        %v2517 = vsel %vm2492, %v2466, %v2467
        %v2518 = vsel %vm2492, %v2465, %v2466
        %v2519 = vsel %vm2492, %v2464, %v2465
        %v2520 = vsel %vm2492, %v2463, %v2464
        %v2521 = vsel %vm2492, %v2462, %v2463
        %v2522 = vsel %vm2492, %v2461, %v2462
        %v2523 = vsel %vm2492, %v2460, %v2461
        %v2524 = vsel %vm2492, %v2459, %v2460
        %v2525 = vsel %vm2492, %v2458, %v2459
        %v2526 = vsel %vm2492, %v2457, %v2458
        %v2527 = vsel %vm2492, %v2456, %v2457
        %v2528 = vsel %vm2492, %v2455, %v2456
        %v2529 = vsel %vm2492, %v2454, %v2455
        %v2530 = vsel %vm2492, %v2453, %v2454
        %v2531 = vsel %vm2492, %v2452, %v2453
        %v2532 = vsel %vm2492, %v2451, %v2452
        %v2533 = vsel %vm2492, %v2450, %v2451
        %v2534 = vsel %vm2492, %v2449, %v2450
        %v2535 = vsel %vm2492, %v2448, %v2449
        %v2536 = vsel %vm2492, %v2447, %v2448
        %v2537 = vsel %vm2492, %v2446, %v2447
        %v2538 = vsel %vm2492, %v2445, %v2446
        %v2539 = vsel %vm2492, %v2444, %v2445
        %v2540 = vsel %vm2492, %v2443, %v2444
        %v2541 = vsel %vm2492, %v2442, %v2443
        %v2542 = vsel %vm2492, %v2441, %v2442
        %v2543 = vsel %vm2492, %v2440, %v2441
        %v2544 = vsel %vm2492, %v2439, %v2440
        %v2545 = vsel %vm2492, %v2438, %v2439
        %v2546 = vsel %vm2492, %v2437, %v2438
        %v2547 = vsel %vm2492, %v2436, %v2437
        %v2548 = vsel %vm2492, %v2435, %v2436
        %v2549 = vsel %vm2492, %v2434, %v2435
        %v2550 = vsel %vm2492, %v2433, %v2434
        %v2551 = vsel %vm2492, %v2432, %v2433
        %v2552 = vsel %vm2492, %v2431, %v2432
        %v2553 = vsel %vm2492, %v2430, %v2431
        %v2554 = vsel %vm2492, %v2429, %v2430
        %v2555 = vsel %vm2492, %v2428, %v2429
        %v2556 = vsel %vm2492, %v2427, %v2428
        %v2557 = vsel %vm2492, %v2426, %v2427
        %v2558 = vsel %vm2492, %v2425, %v2426
        %v2559 = vsel %vm2492, %v2424, %v2425
        %v2560 = vsel %vm2492, %v2423, %v2424
        %v2561 = vsel %vm2492, %v2422, %v2423
        %v2562 = vsel %vm2492, %v2421, %v2422
        %v2563 = vsel %vm2492, %v2420, %v2421
        %v2564 = vsel %vm2492, %v2419, %v2420
        %v2565 = vsel %vm2492, %v2418, %v2419
        %v2566 = vsel %vm2492, %v2417, %v2418
        %v2567 = vsel %vm2492, %v2416, %v2417
        %v2568 = vsel %vm2492, %v2415, %v2416
        %v2569 = vsel %vm2492, %v2414, %v2415
        %v2570 = vsel %vm2492, %v2413, %v2414
        %v2571 = vsel %vm2492, %v2412, %v2413
        %v2572 = vsel %vm2492, %v2411, %v2412
        %v2573 = vsel %vm2492, %v2410, %v2411
        %v2574 = vsel %vm2492, %v2409, %v2410
        %v2575 = vsel %vm2492, %v2408, %v2409
        %v2576 = vsel %vm2492, %v2407, %v2408
        %v2577 = vsel %vm2492, %v2406, %v2407
        %v2578 = vsel %vm2492, %v2405, %v2406
        %v2579 = vsel %vm2492, %v2404, %v2405
        %v2580 = vsel %vm2492, %v2403, %v2404
        %v2581 = vsel %vm2492, %v2402, %v2403
        %v2582 = vsel %vm2492, %v2401, %v2402
        %v2583 = vsel %vm2492, %v2400, %v2401
        %v2584 = vsel %vm2492, %v2399, %v2400
        %v2585 = vsel %vm2492, %v2398, %v2399
        %v2586 = vsel %vm2492, %v2397, %v2398
        %v2587 = vsel %vm2492, %v2396, %v2397
        %v2588 = vsel %vm2492, %v2395, %v2396
        %v2589 = vsel %vm2492, %v2394, %v2395
        %v2590 = vsel %vm2492, %v2393, %v2394
        %v2591 = vsel %vm2492, %v2392, %v2393
        %v2592 = vsel %vm2492, %v2391, %v2392
        %v2593 = vsel %vm2492, %v2390, %v2391
        %v2594 = vsel %vm2492, %v2389, %v2390
        %v2595 = vsel %vm2492, %v2388, %v2389
        %v2596 = vsel %vm2492, %v2387, %v2388
        %v2597 = vsel %vm2492, %v2386, %v2387
        %v2598 = vsel %vm2492, %v2385, %v2386
        %v2599 = vsel %vm2492, %v2384, %v2385
        %v2600 = vsel %vm2492, %v2383, %v2384
        %v2601 = vsel %vm2492, %v2382, %v2383
        %v2602 = vsel %vm2492, %v2381, %v2382
        %v2603 = vsel %vm2492, %v2380, %v2381
        %v2604 = vsel %vm2492, %v2379, %v2380
        %v2605 = vsel %vm2492, %v2378, %v2379
        %v2606 = vsel %vm2492, %v2377, %v2378
        %v2607 = vsel %vm2492, %v2376, %v2377
        %v2608 = vsel %vm2492, %v2375, %v2376
        %v2609 = vsel %vm2492, %v2374, %v2375
        %v2610 = vsel %vm2492, %v2373, %v2374
        %v2611 = vsel %vm2492, %v2372, %v2373
        %v2612 = vsel %vm2492, %v2371, %v2372
        %v2613 = vsel %vm2492, %v2370, %v2371
        %v2614 = vsel %vm2492, %v2369, %v2370
        %v2615 = vsel %vm2492, %v2368, %v2369
        %v2616 = vsel %vm2492, %v2367, %v2368
        %v2617 = vsel %vm2492, %v2366, %v2367
        %v2618 = vsel %vm2492, %v2365, %v2366
        %v2619 = vsel %vm2492, %v2364, %v2365
        %v2620 = vsel %vm2492, %v2491, %v2364
        %v2621 = vsel %vm2236, 0.0, %v2620
        %v2622 = vsel %vm2237, 0.0, %v2619
        %v2623 = vsel %vm2238, 0.0, %v2618
        %v2624 = vsel %vm2239, 0.0, %v2617
        %v2625 = vsel %vm2240, 0.0, %v2616
        %v2626 = vsel %vm2241, 0.0, %v2615
        %v2627 = vsel %vm2242, 0.0, %v2614
        %v2628 = vsel %vm2243, 0.0, %v2613
        %v2629 = vsel %vm2244, 0.0, %v2612
        %v2630 = vsel %vm2245, 0.0, %v2611
        %v2631 = vsel %vm2246, 0.0, %v2610
        %v2632 = vsel %vm2247, 0.0, %v2609
        %v2633 = vsel %vm2248, 0.0, %v2608
        %v2634 = vsel %vm2249, 0.0, %v2607
        %v2635 = vsel %vm2250, 0.0, %v2606
        %v2636 = vsel %vm2251, 0.0, %v2605
        %v2637 = vsel %vm2252, 0.0, %v2604
        %v2638 = vsel %vm2253, 0.0, %v2603
        %v2639 = vsel %vm2254, 0.0, %v2602
        %v2640 = vsel %vm2255, 0.0, %v2601
        %v2641 = vsel %vm2256, 0.0, %v2600
        %v2642 = vsel %vm2257, 0.0, %v2599
        %v2643 = vsel %vm2258, 0.0, %v2598
        %v2644 = vsel %vm2259, 0.0, %v2597
        %v2645 = vsel %vm2260, 0.0, %v2596
        %v2646 = vsel %vm2261, 0.0, %v2595
        %v2647 = vsel %vm2262, 0.0, %v2594
        %v2648 = vsel %vm2263, 0.0, %v2593
        %v2649 = vsel %vm2264, 0.0, %v2592
        %v2650 = vsel %vm2265, 0.0, %v2591
        %v2651 = vsel %vm2266, 0.0, %v2590
        %v2652 = vsel %vm2267, 0.0, %v2589
        %v2653 = vsel %vm2268, 0.0, %v2588
        %v2654 = vsel %vm2269, 0.0, %v2587
        %v2655 = vsel %vm2270, 0.0, %v2586
        %v2656 = vsel %vm2271, 0.0, %v2585
        %v2657 = vsel %vm2272, 0.0, %v2584
        %v2658 = vsel %vm2273, 0.0, %v2583
        %v2659 = vsel %vm2274, 0.0, %v2582
        %v2660 = vsel %vm2275, 0.0, %v2581
        %v2661 = vsel %vm2276, 0.0, %v2580
        %v2662 = vsel %vm2277, 0.0, %v2579
        %v2663 = vsel %vm2278, 0.0, %v2578
        %v2664 = vsel %vm2279, 0.0, %v2577
        %v2665 = vsel %vm2280, 0.0, %v2576
        %v2666 = vsel %vm2281, 0.0, %v2575
        %v2667 = vsel %vm2282, 0.0, %v2574
        %v2668 = vsel %vm2283, 0.0, %v2573
        %v2669 = vsel %vm2284, 0.0, %v2572
        %v2670 = vsel %vm2285, 0.0, %v2571
        %v2671 = vsel %vm2286, 0.0, %v2570
        %v2672 = vsel %vm2287, 0.0, %v2569
        %v2673 = vsel %vm2288, 0.0, %v2568
        %v2674 = vsel %vm2289, 0.0, %v2567
        %v2675 = vsel %vm2290, 0.0, %v2566
        %v2676 = vsel %vm2291, 0.0, %v2565
        %v2677 = vsel %vm2292, 0.0, %v2564
        %v2678 = vsel %vm2293, 0.0, %v2563
        %v2679 = vsel %vm2294, 0.0, %v2562
        %v2680 = vsel %vm2295, 0.0, %v2561
        %v2681 = vsel %vm2296, 0.0, %v2560
        %v2682 = vsel %vm2297, 0.0, %v2559
        %v2683 = vsel %vm2298, 0.0, %v2558
        %v2684 = vsel %vm2299, 0.0, %v2557
        %v2685 = vsel %vm2300, 0.0, %v2556
        %v2686 = vsel %vm2301, 0.0, %v2555
        %v2687 = vsel %vm2302, 0.0, %v2554
        %v2688 = vsel %vm2303, 0.0, %v2553
        %v2689 = vsel %vm2304, 0.0, %v2552
        %v2690 = vsel %vm2305, 0.0, %v2551
        %v2691 = vsel %vm2306, 0.0, %v2550
        %v2692 = vsel %vm2307, 0.0, %v2549
        %v2693 = vsel %vm2308, 0.0, %v2548
        %v2694 = vsel %vm2309, 0.0, %v2547
        %v2695 = vsel %vm2310, 0.0, %v2546
        %v2696 = vsel %vm2311, 0.0, %v2545
        %v2697 = vsel %vm2312, 0.0, %v2544
        %v2698 = vsel %vm2313, 0.0, %v2543
        %v2699 = vsel %vm2314, 0.0, %v2542
        %v2700 = vsel %vm2315, 0.0, %v2541
        %v2701 = vsel %vm2316, 0.0, %v2540
        %v2702 = vsel %vm2317, 0.0, %v2539
        %v2703 = vsel %vm2318, 0.0, %v2538
        %v2704 = vsel %vm2319, 0.0, %v2537
        %v2705 = vsel %vm2320, 0.0, %v2536
        %v2706 = vsel %vm2321, 0.0, %v2535
        %v2707 = vsel %vm2322, 0.0, %v2534
        %v2708 = vsel %vm2323, 0.0, %v2533
        %v2709 = vsel %vm2324, 0.0, %v2532
        %v2710 = vsel %vm2325, 0.0, %v2531
        %v2711 = vsel %vm2326, 0.0, %v2530
        %v2712 = vsel %vm2327, 0.0, %v2529
        %v2713 = vsel %vm2328, 0.0, %v2528
        %v2714 = vsel %vm2329, 0.0, %v2527
        %v2715 = vsel %vm2330, 0.0, %v2526
        %v2716 = vsel %vm2331, 0.0, %v2525
        %v2717 = vsel %vm2332, 0.0, %v2524
        %v2718 = vsel %vm2333, 0.0, %v2523
        %v2719 = vsel %vm2334, 0.0, %v2522
        %v2720 = vsel %vm2335, 0.0, %v2521
        %v2721 = vsel %vm2336, 0.0, %v2520
        %v2722 = vsel %vm2337, 0.0, %v2519
        %v2723 = vsel %vm2338, 0.0, %v2518
        %v2724 = vsel %vm2339, 0.0, %v2517
        %v2725 = vsel %vm2340, 0.0, %v2516
        %v2726 = vsel %vm2341, 0.0, %v2515
        %v2727 = vsel %vm2342, 0.0, %v2514
        %v2728 = vsel %vm2343, 0.0, %v2513
        %v2729 = vsel %vm2344, 0.0, %v2512
        %v2730 = vsel %vm2345, 0.0, %v2511
        %v2731 = vsel %vm2346, 0.0, %v2510
        %v2732 = vsel %vm2347, 0.0, %v2509
        %v2733 = vsel %vm2348, 0.0, %v2508
        %v2734 = vsel %vm2349, 0.0, %v2507
        %v2735 = vsel %vm2350, 0.0, %v2506
        %v2736 = vsel %vm2351, 0.0, %v2505
        %v2737 = vsel %vm2352, 0.0, %v2504
        %v2738 = vsel %vm2353, 0.0, %v2503
        %v2739 = vsel %vm2354, 0.0, %v2502
        %v2740 = vsel %vm2355, 0.0, %v2501
        %v2741 = vsel %vm2356, 0.0, %v2500
        %v2742 = vsel %vm2357, 0.0, %v2499
        %v2743 = vsel %vm2358, 0.0, %v2498
        %v2744 = vsel %vm2359, 0.0, %v2497
        %v2745 = vsel %vm2360, 0.0, %v2496
        %v2746 = vsel %vm2361, 0.0, %v2495
        %v2747 = vsel %vm2362, 0.0, %v2494
        %v2748 = vsel %vm2363, 0.0, %v2493
        %vm2749 = vcmp.eq.s32.totalorder %v2108, 15
        %vm2750 = vcmp.eq.s32.totalorder %v2109, 15
        %vm2751 = vcmp.eq.s32.totalorder %v2110, 15
        %vm2752 = vcmp.eq.s32.totalorder %v2111, 15
        %vm2753 = vcmp.eq.s32.totalorder %v2112, 15
        %vm2754 = vcmp.eq.s32.totalorder %v2113, 15
        %vm2755 = vcmp.eq.s32.totalorder %v2114, 15
        %vm2756 = vcmp.eq.s32.totalorder %v2115, 15
        %vm2757 = vcmp.eq.s32.totalorder %v2116, 15
        %vm2758 = vcmp.eq.s32.totalorder %v2117, 15
        %vm2759 = vcmp.eq.s32.totalorder %v2118, 15
        %vm2760 = vcmp.eq.s32.totalorder %v2119, 15
        %vm2761 = vcmp.eq.s32.totalorder %v2120, 15
        %vm2762 = vcmp.eq.s32.totalorder %v2121, 15
        %vm2763 = vcmp.eq.s32.totalorder %v2122, 15
        %vm2764 = vcmp.eq.s32.totalorder %v2123, 15
        %vm2765 = vcmp.eq.s32.totalorder %v2124, 15
        %vm2766 = vcmp.eq.s32.totalorder %v2125, 15
        %vm2767 = vcmp.eq.s32.totalorder %v2126, 15
        %vm2768 = vcmp.eq.s32.totalorder %v2127, 15
        %vm2769 = vcmp.eq.s32.totalorder %v2128, 15
        %vm2770 = vcmp.eq.s32.totalorder %v2129, 15
        %vm2771 = vcmp.eq.s32.totalorder %v2130, 15
        %vm2772 = vcmp.eq.s32.totalorder %v2131, 15
        %vm2773 = vcmp.eq.s32.totalorder %v2132, 15
        %vm2774 = vcmp.eq.s32.totalorder %v2133, 15
        %vm2775 = vcmp.eq.s32.totalorder %v2134, 15
        %vm2776 = vcmp.eq.s32.totalorder %v2135, 15
        %vm2777 = vcmp.eq.s32.totalorder %v2136, 15
        %vm2778 = vcmp.eq.s32.totalorder %v2137, 15
        %vm2779 = vcmp.eq.s32.totalorder %v2138, 15
        %vm2780 = vcmp.eq.s32.totalorder %v2139, 15
        %vm2781 = vcmp.eq.s32.totalorder %v2140, 15
        %vm2782 = vcmp.eq.s32.totalorder %v2141, 15
        %vm2783 = vcmp.eq.s32.totalorder %v2142, 15
        %vm2784 = vcmp.eq.s32.totalorder %v2143, 15
        %vm2785 = vcmp.eq.s32.totalorder %v2144, 15
        %vm2786 = vcmp.eq.s32.totalorder %v2145, 15
        %vm2787 = vcmp.eq.s32.totalorder %v2146, 15
        %vm2788 = vcmp.eq.s32.totalorder %v2147, 15
        %vm2789 = vcmp.eq.s32.totalorder %v2148, 15
        %vm2790 = vcmp.eq.s32.totalorder %v2149, 15
        %vm2791 = vcmp.eq.s32.totalorder %v2150, 15
        %vm2792 = vcmp.eq.s32.totalorder %v2151, 15
        %vm2793 = vcmp.eq.s32.totalorder %v2152, 15
        %vm2794 = vcmp.eq.s32.totalorder %v2153, 15
        %vm2795 = vcmp.eq.s32.totalorder %v2154, 15
        %vm2796 = vcmp.eq.s32.totalorder %v2155, 15
        %vm2797 = vcmp.eq.s32.totalorder %v2156, 15
        %vm2798 = vcmp.eq.s32.totalorder %v2157, 15
        %vm2799 = vcmp.eq.s32.totalorder %v2158, 15
        %vm2800 = vcmp.eq.s32.totalorder %v2159, 15
        %vm2801 = vcmp.eq.s32.totalorder %v2160, 15
        %vm2802 = vcmp.eq.s32.totalorder %v2161, 15
        %vm2803 = vcmp.eq.s32.totalorder %v2162, 15
        %vm2804 = vcmp.eq.s32.totalorder %v2163, 15
        %vm2805 = vcmp.eq.s32.totalorder %v2164, 15
        %vm2806 = vcmp.eq.s32.totalorder %v2165, 15
        %vm2807 = vcmp.eq.s32.totalorder %v2166, 15
        %vm2808 = vcmp.eq.s32.totalorder %v2167, 15
        %vm2809 = vcmp.eq.s32.totalorder %v2168, 15
        %vm2810 = vcmp.eq.s32.totalorder %v2169, 15
        %vm2811 = vcmp.eq.s32.totalorder %v2170, 15
        %vm2812 = vcmp.eq.s32.totalorder %v2171, 15
        %vm2813 = vcmp.eq.s32.totalorder %v2172, 15
        %vm2814 = vcmp.eq.s32.totalorder %v2173, 15
        %vm2815 = vcmp.eq.s32.totalorder %v2174, 15
        %vm2816 = vcmp.eq.s32.totalorder %v2175, 15
        %vm2817 = vcmp.eq.s32.totalorder %v2176, 15
        %vm2818 = vcmp.eq.s32.totalorder %v2177, 15
        %vm2819 = vcmp.eq.s32.totalorder %v2178, 15
        %vm2820 = vcmp.eq.s32.totalorder %v2179, 15
        %vm2821 = vcmp.eq.s32.totalorder %v2180, 15
        %vm2822 = vcmp.eq.s32.totalorder %v2181, 15
        %vm2823 = vcmp.eq.s32.totalorder %v2182, 15
        %vm2824 = vcmp.eq.s32.totalorder %v2183, 15
        %vm2825 = vcmp.eq.s32.totalorder %v2184, 15
        %vm2826 = vcmp.eq.s32.totalorder %v2185, 15
        %vm2827 = vcmp.eq.s32.totalorder %v2186, 15
        %vm2828 = vcmp.eq.s32.totalorder %v2187, 15
        %vm2829 = vcmp.eq.s32.totalorder %v2188, 15
        %vm2830 = vcmp.eq.s32.totalorder %v2189, 15
        %vm2831 = vcmp.eq.s32.totalorder %v2190, 15
        %vm2832 = vcmp.eq.s32.totalorder %v2191, 15
        %vm2833 = vcmp.eq.s32.totalorder %v2192, 15
        %vm2834 = vcmp.eq.s32.totalorder %v2193, 15
        %vm2835 = vcmp.eq.s32.totalorder %v2194, 15
        %vm2836 = vcmp.eq.s32.totalorder %v2195, 15
        %vm2837 = vcmp.eq.s32.totalorder %v2196, 15
        %vm2838 = vcmp.eq.s32.totalorder %v2197, 15
        %vm2839 = vcmp.eq.s32.totalorder %v2198, 15
        %vm2840 = vcmp.eq.s32.totalorder %v2199, 15
        %vm2841 = vcmp.eq.s32.totalorder %v2200, 15
        %vm2842 = vcmp.eq.s32.totalorder %v2201, 15
        %vm2843 = vcmp.eq.s32.totalorder %v2202, 15
        %vm2844 = vcmp.eq.s32.totalorder %v2203, 15
        %vm2845 = vcmp.eq.s32.totalorder %v2204, 15
        %vm2846 = vcmp.eq.s32.totalorder %v2205, 15
        %vm2847 = vcmp.eq.s32.totalorder %v2206, 15
        %vm2848 = vcmp.eq.s32.totalorder %v2207, 15
        %vm2849 = vcmp.eq.s32.totalorder %v2208, 15
        %vm2850 = vcmp.eq.s32.totalorder %v2209, 15
        %vm2851 = vcmp.eq.s32.totalorder %v2210, 15
        %vm2852 = vcmp.eq.s32.totalorder %v2211, 15
        %vm2853 = vcmp.eq.s32.totalorder %v2212, 15
        %vm2854 = vcmp.eq.s32.totalorder %v2213, 15
        %vm2855 = vcmp.eq.s32.totalorder %v2214, 15
        %vm2856 = vcmp.eq.s32.totalorder %v2215, 15
        %vm2857 = vcmp.eq.s32.totalorder %v2216, 15
        %vm2858 = vcmp.eq.s32.totalorder %v2217, 15
        %vm2859 = vcmp.eq.s32.totalorder %v2218, 15
        %vm2860 = vcmp.eq.s32.totalorder %v2219, 15
        %vm2861 = vcmp.eq.s32.totalorder %v2220, 15
        %vm2862 = vcmp.eq.s32.totalorder %v2221, 15
        %vm2863 = vcmp.eq.s32.totalorder %v2222, 15
        %vm2864 = vcmp.eq.s32.totalorder %v2223, 15
        %vm2865 = vcmp.eq.s32.totalorder %v2224, 15
        %vm2866 = vcmp.eq.s32.totalorder %v2225, 15
        %vm2867 = vcmp.eq.s32.totalorder %v2226, 15
        %vm2868 = vcmp.eq.s32.totalorder %v2227, 15
        %vm2869 = vcmp.eq.s32.totalorder %v2228, 15
        %vm2870 = vcmp.eq.s32.totalorder %v2229, 15
        %vm2871 = vcmp.eq.s32.totalorder %v2230, 15
        %vm2872 = vcmp.eq.s32.totalorder %v2231, 15
        %vm2873 = vcmp.eq.s32.totalorder %v2232, 15
        %vm2874 = vcmp.eq.s32.totalorder %v2233, 15
        %vm2875 = vcmp.eq.s32.totalorder %v2234, 15
        %vm2876 = vcmp.eq.s32.totalorder %v2235, 15
        %v2877 = vrot.slane %v443, 1
        %v2878 = vrot.slane %v444, 1
        %v2879 = vrot.slane %v445, 1
        %v2880 = vrot.slane %v446, 1
        %v2881 = vrot.slane %v447, 1
        %v2882 = vrot.slane %v448, 1
        %v2883 = vrot.slane %v449, 1
        %v2884 = vrot.slane %v450, 1
        %v2885 = vrot.slane %v451, 1
        %v2886 = vrot.slane %v452, 1
        %v2887 = vrot.slane %v453, 1
        %v2888 = vrot.slane %v454, 1
        %v2889 = vrot.slane %v455, 1
        %v2890 = vrot.slane %v456, 1
        %v2891 = vrot.slane %v457, 1
        %v2892 = vrot.slane %v458, 1
        %v2893 = vrot.slane %v459, 1
        %v2894 = vrot.slane %v460, 1
        %v2895 = vrot.slane %v461, 1
        %v2896 = vrot.slane %v462, 1
        %v2897 = vrot.slane %v463, 1
        %v2898 = vrot.slane %v464, 1
        %v2899 = vrot.slane %v465, 1
        %v2900 = vrot.slane %v466, 1
        %v2901 = vrot.slane %v467, 1
        %v2902 = vrot.slane %v468, 1
        %v2903 = vrot.slane %v469, 1
        %v2904 = vrot.slane %v470, 1
        %v2905 = vrot.slane %v471, 1
        %v2906 = vrot.slane %v472, 1
        %v2907 = vrot.slane %v473, 1
        %v2908 = vrot.slane %v474, 1
        %v2909 = vrot.slane %v475, 1
        %v2910 = vrot.slane %v476, 1
        %v2911 = vrot.slane %v477, 1
        %v2912 = vrot.slane %v478, 1
        %v2913 = vrot.slane %v479, 1
        %v2914 = vrot.slane %v480, 1
        %v2915 = vrot.slane %v481, 1
        %v2916 = vrot.slane %v482, 1
        %v2917 = vrot.slane %v483, 1
        %v2918 = vrot.slane %v484, 1
        %v2919 = vrot.slane %v485, 1
        %v2920 = vrot.slane %v486, 1
        %v2921 = vrot.slane %v487, 1
        %v2922 = vrot.slane %v488, 1
        %v2923 = vrot.slane %v489, 1
        %v2924 = vrot.slane %v490, 1
        %v2925 = vrot.slane %v491, 1
        %v2926 = vrot.slane %v492, 1
        %v2927 = vrot.slane %v493, 1
        %v2928 = vrot.slane %v494, 1
        %v2929 = vrot.slane %v495, 1
        %v2930 = vrot.slane %v496, 1
        %v2931 = vrot.slane %v497, 1
        %v2932 = vrot.slane %v498, 1
        %v2933 = vrot.slane %v499, 1
        %v2934 = vrot.slane %v500, 1
        %v2935 = vrot.slane %v501, 1
        %v2936 = vrot.slane %v502, 1
        %v2937 = vrot.slane %v503, 1
        %v2938 = vrot.slane %v504, 1
        %v2939 = vrot.slane %v505, 1
        %v2940 = vrot.slane %v506, 1
        %v2941 = vrot.slane %v507, 1
        %v2942 = vrot.slane %v508, 1
        %v2943 = vrot.slane %v509, 1
        %v2944 = vrot.slane %v510, 1
        %v2945 = vrot.slane %v511, 1
        %v2946 = vrot.slane %v512, 1
        %v2947 = vrot.slane %v513, 1
        %v2948 = vrot.slane %v514, 1
        %v2949 = vrot.slane %v515, 1
        %v2950 = vrot.slane %v516, 1
        %v2951 = vrot.slane %v517, 1
        %v2952 = vrot.slane %v518, 1
        %v2953 = vrot.slane %v519, 1
        %v2954 = vrot.slane %v520, 1
        %v2955 = vrot.slane %v521, 1
        %v2956 = vrot.slane %v522, 1
        %v2957 = vrot.slane %v523, 1
        %v2958 = vrot.slane %v524, 1
        %v2959 = vrot.slane %v525, 1
        %v2960 = vrot.slane %v526, 1
        %v2961 = vrot.slane %v527, 1
        %v2962 = vrot.slane %v528, 1
        %v2963 = vrot.slane %v529, 1
        %v2964 = vrot.slane %v530, 1
        %v2965 = vrot.slane %v531, 1
        %v2966 = vrot.slane %v532, 1
        %v2967 = vrot.slane %v533, 1
        %v2968 = vrot.slane %v534, 1
        %v2969 = vrot.slane %v535, 1
        %v2970 = vrot.slane %v536, 1
        %v2971 = vrot.slane %v537, 1
        %v2972 = vrot.slane %v538, 1
        %v2973 = vrot.slane %v539, 1
        %v2974 = vrot.slane %v540, 1
        %v2975 = vrot.slane %v541, 1
        %v2976 = vrot.slane %v542, 1
        %v2977 = vrot.slane %v543, 1
        %v2978 = vrot.slane %v544, 1
        %v2979 = vrot.slane %v545, 1
        %v2980 = vrot.slane %v546, 1
        %v2981 = vrot.slane %v547, 1
        %v2982 = vrot.slane %v548, 1
        %v2983 = vrot.slane %v549, 1
        %v2984 = vrot.slane %v550, 1
        %v2985 = vrot.slane %v551, 1
        %v2986 = vrot.slane %v552, 1
        %v2987 = vrot.slane %v553, 1
        %v2988 = vrot.slane %v554, 1
        %v2989 = vrot.slane %v555, 1
        %v2990 = vrot.slane %v556, 1
        %v2991 = vrot.slane %v557, 1
        %v2992 = vrot.slane %v558, 1
        %v2993 = vrot.slane %v559, 1
        %v2994 = vrot.slane %v560, 1
        %v2995 = vrot.slane %v561, 1
        %v2996 = vrot.slane %v562, 1
        %v2997 = vrot.slane %v563, 1
        %v2998 = vrot.slane %v564, 1
        %v2999 = vrot.slane %v565, 1
        %v3000 = vrot.slane %v566, 1
        %v3001 = vrot.slane %v567, 1
        %v3002 = vrot.slane %v568, 1
        %v3003 = vrot.slane %v569, 1
        %v3004 = vrot.slane %v570, 1
        %vm3005 = vcmp.lt.s32.totalorder %v572, 7
        %v3006 = vsel %vm3005, %v3003, %v3004
        %v3007 = vsel %vm3005, %v3002, %v3003
        %v3008 = vsel %vm3005, %v3001, %v3002
        %v3009 = vsel %vm3005, %v3000, %v3001
        %v3010 = vsel %vm3005, %v2999, %v3000
        %v3011 = vsel %vm3005, %v2998, %v2999
        %v3012 = vsel %vm3005, %v2997, %v2998
        %v3013 = vsel %vm3005, %v2996, %v2997
        %v3014 = vsel %vm3005, %v2995, %v2996
        %v3015 = vsel %vm3005, %v2994, %v2995
        %v3016 = vsel %vm3005, %v2993, %v2994
        %v3017 = vsel %vm3005, %v2992, %v2993
        %v3018 = vsel %vm3005, %v2991, %v2992
        %v3019 = vsel %vm3005, %v2990, %v2991
        %v3020 = vsel %vm3005, %v2989, %v2990
        %v3021 = vsel %vm3005, %v2988, %v2989
        %v3022 = vsel %vm3005, %v2987, %v2988
        %v3023 = vsel %vm3005, %v2986, %v2987
        %v3024 = vsel %vm3005, %v2985, %v2986
        %v3025 = vsel %vm3005, %v2984, %v2985
        %v3026 = vsel %vm3005, %v2983, %v2984
        %v3027 = vsel %vm3005, %v2982, %v2983
        %v3028 = vsel %vm3005, %v2981, %v2982
        %v3029 = vsel %vm3005, %v2980, %v2981
        %v3030 = vsel %vm3005, %v2979, %v2980
        %v3031 = vsel %vm3005, %v2978, %v2979
        %v3032 = vsel %vm3005, %v2977, %v2978
        %v3033 = vsel %vm3005, %v2976, %v2977
        %v3034 = vsel %vm3005, %v2975, %v2976
        %v3035 = vsel %vm3005, %v2974, %v2975
        %v3036 = vsel %vm3005, %v2973, %v2974
        %v3037 = vsel %vm3005, %v2972, %v2973
        %v3038 = vsel %vm3005, %v2971, %v2972
        %v3039 = vsel %vm3005, %v2970, %v2971
        %v3040 = vsel %vm3005, %v2969, %v2970
        %v3041 = vsel %vm3005, %v2968, %v2969
        %v3042 = vsel %vm3005, %v2967, %v2968
        %v3043 = vsel %vm3005, %v2966, %v2967
        %v3044 = vsel %vm3005, %v2965, %v2966
        %v3045 = vsel %vm3005, %v2964, %v2965
        %v3046 = vsel %vm3005, %v2963, %v2964
        %v3047 = vsel %vm3005, %v2962, %v2963
        %v3048 = vsel %vm3005, %v2961, %v2962
        %v3049 = vsel %vm3005, %v2960, %v2961
        %v3050 = vsel %vm3005, %v2959, %v2960
        %v3051 = vsel %vm3005, %v2958, %v2959
        %v3052 = vsel %vm3005, %v2957, %v2958
        %v3053 = vsel %vm3005, %v2956, %v2957
        %v3054 = vsel %vm3005, %v2955, %v2956
        %v3055 = vsel %vm3005, %v2954, %v2955
        %v3056 = vsel %vm3005, %v2953, %v2954
        %v3057 = vsel %vm3005, %v2952, %v2953
        %v3058 = vsel %vm3005, %v2951, %v2952
        %v3059 = vsel %vm3005, %v2950, %v2951
        %v3060 = vsel %vm3005, %v2949, %v2950
        %v3061 = vsel %vm3005, %v2948, %v2949
        %v3062 = vsel %vm3005, %v2947, %v2948
        %v3063 = vsel %vm3005, %v2946, %v2947
        %v3064 = vsel %vm3005, %v2945, %v2946
        %v3065 = vsel %vm3005, %v2944, %v2945
        %v3066 = vsel %vm3005, %v2943, %v2944
        %v3067 = vsel %vm3005, %v2942, %v2943
        %v3068 = vsel %vm3005, %v2941, %v2942
        %v3069 = vsel %vm3005, %v2940, %v2941
        %v3070 = vsel %vm3005, %v2939, %v2940
        %v3071 = vsel %vm3005, %v2938, %v2939
        %v3072 = vsel %vm3005, %v2937, %v2938
        %v3073 = vsel %vm3005, %v2936, %v2937
        %v3074 = vsel %vm3005, %v2935, %v2936
        %v3075 = vsel %vm3005, %v2934, %v2935
        %v3076 = vsel %vm3005, %v2933, %v2934
        %v3077 = vsel %vm3005, %v2932, %v2933
        %v3078 = vsel %vm3005, %v2931, %v2932
        %v3079 = vsel %vm3005, %v2930, %v2931
        %v3080 = vsel %vm3005, %v2929, %v2930
        %v3081 = vsel %vm3005, %v2928, %v2929
        %v3082 = vsel %vm3005, %v2927, %v2928
        %v3083 = vsel %vm3005, %v2926, %v2927
        %v3084 = vsel %vm3005, %v2925, %v2926
        %v3085 = vsel %vm3005, %v2924, %v2925
        %v3086 = vsel %vm3005, %v2923, %v2924
        %v3087 = vsel %vm3005, %v2922, %v2923
        %v3088 = vsel %vm3005, %v2921, %v2922
        %v3089 = vsel %vm3005, %v2920, %v2921
        %v3090 = vsel %vm3005, %v2919, %v2920
        %v3091 = vsel %vm3005, %v2918, %v2919
        %v3092 = vsel %vm3005, %v2917, %v2918
        %v3093 = vsel %vm3005, %v2916, %v2917
        %v3094 = vsel %vm3005, %v2915, %v2916
        %v3095 = vsel %vm3005, %v2914, %v2915
        %v3096 = vsel %vm3005, %v2913, %v2914
        %v3097 = vsel %vm3005, %v2912, %v2913
        %v3098 = vsel %vm3005, %v2911, %v2912
        %v3099 = vsel %vm3005, %v2910, %v2911
        %v3100 = vsel %vm3005, %v2909, %v2910
        %v3101 = vsel %vm3005, %v2908, %v2909
        %v3102 = vsel %vm3005, %v2907, %v2908
        %v3103 = vsel %vm3005, %v2906, %v2907
        %v3104 = vsel %vm3005, %v2905, %v2906
        %v3105 = vsel %vm3005, %v2904, %v2905
        %v3106 = vsel %vm3005, %v2903, %v2904
        %v3107 = vsel %vm3005, %v2902, %v2903
        %v3108 = vsel %vm3005, %v2901, %v2902
        %v3109 = vsel %vm3005, %v2900, %v2901
        %v3110 = vsel %vm3005, %v2899, %v2900
        %v3111 = vsel %vm3005, %v2898, %v2899
        %v3112 = vsel %vm3005, %v2897, %v2898
        %v3113 = vsel %vm3005, %v2896, %v2897
        %v3114 = vsel %vm3005, %v2895, %v2896
        %v3115 = vsel %vm3005, %v2894, %v2895
        %v3116 = vsel %vm3005, %v2893, %v2894
        %v3117 = vsel %vm3005, %v2892, %v2893
        %v3118 = vsel %vm3005, %v2891, %v2892
        %v3119 = vsel %vm3005, %v2890, %v2891
        %v3120 = vsel %vm3005, %v2889, %v2890
        %v3121 = vsel %vm3005, %v2888, %v2889
        %v3122 = vsel %vm3005, %v2887, %v2888
        %v3123 = vsel %vm3005, %v2886, %v2887
        %v3124 = vsel %vm3005, %v2885, %v2886
        %v3125 = vsel %vm3005, %v2884, %v2885
        %v3126 = vsel %vm3005, %v2883, %v2884
        %v3127 = vsel %vm3005, %v2882, %v2883
        %v3128 = vsel %vm3005, %v2881, %v2882
        %v3129 = vsel %vm3005, %v2880, %v2881
        %v3130 = vsel %vm3005, %v2879, %v2880
        %v3131 = vsel %vm3005, %v2878, %v2879
        %v3132 = vsel %vm3005, %v2877, %v2878
        %v3133 = vsel %vm3005, %v3004, %v2877
        %v3134 = vsel %vm2749, 0.0, %v3132
        %v3135 = vsel %vm2750, 0.0, %v3131
        %v3136 = vsel %vm2751, 0.0, %v3130
        %v3137 = vsel %vm2752, 0.0, %v3129
        %v3138 = vsel %vm2753, 0.0, %v3128
        %v3139 = vsel %vm2754, 0.0, %v3127
        %v3140 = vsel %vm2755, 0.0, %v3126
        %v3141 = vsel %vm2756, 0.0, %v3125
        %v3142 = vsel %vm2757, 0.0, %v3124
        %v3143 = vsel %vm2758, 0.0, %v3123
        %v3144 = vsel %vm2759, 0.0, %v3122
        %v3145 = vsel %vm2760, 0.0, %v3121
        %v3146 = vsel %vm2761, 0.0, %v3120
        %v3147 = vsel %vm2762, 0.0, %v3119
        %v3148 = vsel %vm2763, 0.0, %v3118
        %v3149 = vsel %vm2764, 0.0, %v3117
        %v3150 = vsel %vm2765, 0.0, %v3116
        %v3151 = vsel %vm2766, 0.0, %v3115
        %v3152 = vsel %vm2767, 0.0, %v3114
        %v3153 = vsel %vm2768, 0.0, %v3113
        %v3154 = vsel %vm2769, 0.0, %v3112
        %v3155 = vsel %vm2770, 0.0, %v3111
        %v3156 = vsel %vm2771, 0.0, %v3110
        %v3157 = vsel %vm2772, 0.0, %v3109
        %v3158 = vsel %vm2773, 0.0, %v3108
        %v3159 = vsel %vm2774, 0.0, %v3107
        %v3160 = vsel %vm2775, 0.0, %v3106
        %v3161 = vsel %vm2776, 0.0, %v3105
        %v3162 = vsel %vm2777, 0.0, %v3104
        %v3163 = vsel %vm2778, 0.0, %v3103
        %v3164 = vsel %vm2779, 0.0, %v3102
        %v3165 = vsel %vm2780, 0.0, %v3101
        %v3166 = vsel %vm2781, 0.0, %v3100
        %v3167 = vsel %vm2782, 0.0, %v3099
        %v3168 = vsel %vm2783, 0.0, %v3098
        %v3169 = vsel %vm2784, 0.0, %v3097
        %v3170 = vsel %vm2785, 0.0, %v3096
        %v3171 = vsel %vm2786, 0.0, %v3095
        %v3172 = vsel %vm2787, 0.0, %v3094
        %v3173 = vsel %vm2788, 0.0, %v3093
        %v3174 = vsel %vm2789, 0.0, %v3092
        %v3175 = vsel %vm2790, 0.0, %v3091
        %v3176 = vsel %vm2791, 0.0, %v3090
        %v3177 = vsel %vm2792, 0.0, %v3089
        %v3178 = vsel %vm2793, 0.0, %v3088
        %v3179 = vsel %vm2794, 0.0, %v3087
        %v3180 = vsel %vm2795, 0.0, %v3086
        %v3181 = vsel %vm2796, 0.0, %v3085
        %v3182 = vsel %vm2797, 0.0, %v3084
        %v3183 = vsel %vm2798, 0.0, %v3083
        %v3184 = vsel %vm2799, 0.0, %v3082
        %v3185 = vsel %vm2800, 0.0, %v3081
        %v3186 = vsel %vm2801, 0.0, %v3080
        %v3187 = vsel %vm2802, 0.0, %v3079
        %v3188 = vsel %vm2803, 0.0, %v3078
        %v3189 = vsel %vm2804, 0.0, %v3077
        %v3190 = vsel %vm2805, 0.0, %v3076
        %v3191 = vsel %vm2806, 0.0, %v3075
        %v3192 = vsel %vm2807, 0.0, %v3074
        %v3193 = vsel %vm2808, 0.0, %v3073
        %v3194 = vsel %vm2809, 0.0, %v3072
        %v3195 = vsel %vm2810, 0.0, %v3071
        %v3196 = vsel %vm2811, 0.0, %v3070
        %v3197 = vsel %vm2812, 0.0, %v3069
        %v3198 = vsel %vm2813, 0.0, %v3068
        %v3199 = vsel %vm2814, 0.0, %v3067
        %v3200 = vsel %vm2815, 0.0, %v3066
        %v3201 = vsel %vm2816, 0.0, %v3065
        %v3202 = vsel %vm2817, 0.0, %v3064
        %v3203 = vsel %vm2818, 0.0, %v3063
        %v3204 = vsel %vm2819, 0.0, %v3062
        %v3205 = vsel %vm2820, 0.0, %v3061
        %v3206 = vsel %vm2821, 0.0, %v3060
        %v3207 = vsel %vm2822, 0.0, %v3059
        %v3208 = vsel %vm2823, 0.0, %v3058
        %v3209 = vsel %vm2824, 0.0, %v3057
        %v3210 = vsel %vm2825, 0.0, %v3056
        %v3211 = vsel %vm2826, 0.0, %v3055
        %v3212 = vsel %vm2827, 0.0, %v3054
        %v3213 = vsel %vm2828, 0.0, %v3053
        %v3214 = vsel %vm2829, 0.0, %v3052
        %v3215 = vsel %vm2830, 0.0, %v3051
        %v3216 = vsel %vm2831, 0.0, %v3050
        %v3217 = vsel %vm2832, 0.0, %v3049
        %v3218 = vsel %vm2833, 0.0, %v3048
        %v3219 = vsel %vm2834, 0.0, %v3047
        %v3220 = vsel %vm2835, 0.0, %v3046
        %v3221 = vsel %vm2836, 0.0, %v3045
        %v3222 = vsel %vm2837, 0.0, %v3044
        %v3223 = vsel %vm2838, 0.0, %v3043
        %v3224 = vsel %vm2839, 0.0, %v3042
        %v3225 = vsel %vm2840, 0.0, %v3041
        %v3226 = vsel %vm2841, 0.0, %v3040
        %v3227 = vsel %vm2842, 0.0, %v3039
        %v3228 = vsel %vm2843, 0.0, %v3038
        %v3229 = vsel %vm2844, 0.0, %v3037
        %v3230 = vsel %vm2845, 0.0, %v3036
        %v3231 = vsel %vm2846, 0.0, %v3035
        %v3232 = vsel %vm2847, 0.0, %v3034
        %v3233 = vsel %vm2848, 0.0, %v3033
        %v3234 = vsel %vm2849, 0.0, %v3032
        %v3235 = vsel %vm2850, 0.0, %v3031
        %v3236 = vsel %vm2851, 0.0, %v3030
        %v3237 = vsel %vm2852, 0.0, %v3029
        %v3238 = vsel %vm2853, 0.0, %v3028
        %v3239 = vsel %vm2854, 0.0, %v3027
        %v3240 = vsel %vm2855, 0.0, %v3026
        %v3241 = vsel %vm2856, 0.0, %v3025
        %v3242 = vsel %vm2857, 0.0, %v3024
        %v3243 = vsel %vm2858, 0.0, %v3023
        %v3244 = vsel %vm2859, 0.0, %v3022
        %v3245 = vsel %vm2860, 0.0, %v3021
        %v3246 = vsel %vm2861, 0.0, %v3020
        %v3247 = vsel %vm2862, 0.0, %v3019
        %v3248 = vsel %vm2863, 0.0, %v3018
        %v3249 = vsel %vm2864, 0.0, %v3017
        %v3250 = vsel %vm2865, 0.0, %v3016
        %v3251 = vsel %vm2866, 0.0, %v3015
        %v3252 = vsel %vm2867, 0.0, %v3014
        %v3253 = vsel %vm2868, 0.0, %v3013
        %v3254 = vsel %vm2869, 0.0, %v3012
        %v3255 = vsel %vm2870, 0.0, %v3011
        %v3256 = vsel %vm2871, 0.0, %v3010
        %v3257 = vsel %vm2872, 0.0, %v3009
        %v3258 = vsel %vm2873, 0.0, %v3008
        %v3259 = vsel %vm2874, 0.0, %v3007
        %v3260 = vsel %vm2875, 0.0, %v3006
        %v3261 = vsel %vm2876, 0.0, %v3133
        %v3262 = vld [vmem:[%s1] sm:$0x1]
        %3264 = vset.pattern.permute.xlu0 0
        %3265 = vperm.xlu0 %3264, %v2621
        %v3266 = vpop.permute.xlu0 %3265
        %3269 = vset.pattern.permute.xlu0 0
        %3270 = vperm.xlu0 %3269, %v2622
        %v3271 = vpop.permute.xlu0 %3270
        %3274 = vset.pattern.permute.xlu0 0
        %3275 = vperm.xlu0 %3274, %v2623
        %v3276 = vpop.permute.xlu0 %3275
        %3279 = vset.pattern.permute.xlu0 0
        %3280 = vperm.xlu0 %3279, %v2624
        %v3281 = vpop.permute.xlu0 %3280
        %3284 = vset.pattern.permute.xlu0 0
        %3285 = vperm.xlu0 %3284, %v2625
        %v3286 = vpop.permute.xlu0 %3285
        %3289 = vset.pattern.permute.xlu0 0
        %3290 = vperm.xlu0 %3289, %v2626
        %v3291 = vpop.permute.xlu0 %3290
        %3294 = vset.pattern.permute.xlu0 0
        %3295 = vperm.xlu0 %3294, %v2627
        %v3296 = vpop.permute.xlu0 %3295
        %3299 = vset.pattern.permute.xlu0 0
        %3300 = vperm.xlu0 %3299, %v2628
        %v3301 = vpop.permute.xlu0 %3300
        %3304 = vset.pattern.permute.xlu0 0
        %3305 = vperm.xlu0 %3304, %v2629
        %v3306 = vpop.permute.xlu0 %3305
        %3309 = vset.pattern.permute.xlu0 0
        %3310 = vperm.xlu0 %3309, %v2630
        %v3311 = vpop.permute.xlu0 %3310
        %3314 = vset.pattern.permute.xlu0 0
        %3315 = vperm.xlu0 %3314, %v2631
        %v3316 = vpop.permute.xlu0 %3315
        %3319 = vset.pattern.permute.xlu0 0
        %3320 = vperm.xlu0 %3319, %v2632
        %v3321 = vpop.permute.xlu0 %3320
        %3324 = vset.pattern.permute.xlu0 0
        %3325 = vperm.xlu0 %3324, %v2633
        %v3326 = vpop.permute.xlu0 %3325
        %3329 = vset.pattern.permute.xlu0 0
        %3330 = vperm.xlu0 %3329, %v2634
        %v3331 = vpop.permute.xlu0 %3330
        %3334 = vset.pattern.permute.xlu0 0
        %3335 = vperm.xlu0 %3334, %v2635
        %v3336 = vpop.permute.xlu0 %3335
        %3339 = vset.pattern.permute.xlu0 0
        %3340 = vperm.xlu0 %3339, %v2636
        %v3341 = vpop.permute.xlu0 %3340
        %3344 = vset.pattern.permute.xlu0 0
        %3345 = vperm.xlu0 %3344, %v2637
        %v3346 = vpop.permute.xlu0 %3345
        %3349 = vset.pattern.permute.xlu0 0
        %3350 = vperm.xlu0 %3349, %v2638
        %v3351 = vpop.permute.xlu0 %3350
        %3354 = vset.pattern.permute.xlu0 0
        %3355 = vperm.xlu0 %3354, %v2639
        %v3356 = vpop.permute.xlu0 %3355
        %3359 = vset.pattern.permute.xlu0 0
        %3360 = vperm.xlu0 %3359, %v2640
        %v3361 = vpop.permute.xlu0 %3360
        %3364 = vset.pattern.permute.xlu0 0
        %3365 = vperm.xlu0 %3364, %v2641
        %v3366 = vpop.permute.xlu0 %3365
        %3369 = vset.pattern.permute.xlu0 0
        %3370 = vperm.xlu0 %3369, %v2642
        %v3371 = vpop.permute.xlu0 %3370
        %3374 = vset.pattern.permute.xlu0 0
        %3375 = vperm.xlu0 %3374, %v2643
        %v3376 = vpop.permute.xlu0 %3375
        %3379 = vset.pattern.permute.xlu0 0
        %3380 = vperm.xlu0 %3379, %v2644
        %v3381 = vpop.permute.xlu0 %3380
        %3384 = vset.pattern.permute.xlu0 0
        %3385 = vperm.xlu0 %3384, %v2645
        %v3386 = vpop.permute.xlu0 %3385
        %3389 = vset.pattern.permute.xlu0 0
        %3390 = vperm.xlu0 %3389, %v2646
        %v3391 = vpop.permute.xlu0 %3390
        %3394 = vset.pattern.permute.xlu0 0
        %3395 = vperm.xlu0 %3394, %v2647
        %v3396 = vpop.permute.xlu0 %3395
        %3399 = vset.pattern.permute.xlu0 0
        %3400 = vperm.xlu0 %3399, %v2648
        %v3401 = vpop.permute.xlu0 %3400
        %3404 = vset.pattern.permute.xlu0 0
        %3405 = vperm.xlu0 %3404, %v2649
        %v3406 = vpop.permute.xlu0 %3405
        %3409 = vset.pattern.permute.xlu0 0
        %3410 = vperm.xlu0 %3409, %v2650
        %v3411 = vpop.permute.xlu0 %3410
        %3414 = vset.pattern.permute.xlu0 0
        %3415 = vperm.xlu0 %3414, %v2651
        %v3416 = vpop.permute.xlu0 %3415
        %3419 = vset.pattern.permute.xlu0 0
        %3420 = vperm.xlu0 %3419, %v2652
        %v3421 = vpop.permute.xlu0 %3420
        %3424 = vset.pattern.permute.xlu0 0
        %3425 = vperm.xlu0 %3424, %v2653
        %v3426 = vpop.permute.xlu0 %3425
        %3429 = vset.pattern.permute.xlu0 0
        %3430 = vperm.xlu0 %3429, %v2654
        %v3431 = vpop.permute.xlu0 %3430
        %3434 = vset.pattern.permute.xlu0 0
        %3435 = vperm.xlu0 %3434, %v2655
        %v3436 = vpop.permute.xlu0 %3435
        %3439 = vset.pattern.permute.xlu0 0
        %3440 = vperm.xlu0 %3439, %v2656
        %v3441 = vpop.permute.xlu0 %3440
        %3444 = vset.pattern.permute.xlu0 0
        %3445 = vperm.xlu0 %3444, %v2657
        %v3446 = vpop.permute.xlu0 %3445
        %3449 = vset.pattern.permute.xlu0 0
        %3450 = vperm.xlu0 %3449, %v2658
        %v3451 = vpop.permute.xlu0 %3450
        %3454 = vset.pattern.permute.xlu0 0
        %3455 = vperm.xlu0 %3454, %v2659
        %v3456 = vpop.permute.xlu0 %3455
        %3459 = vset.pattern.permute.xlu0 0
        %3460 = vperm.xlu0 %3459, %v2660
        %v3461 = vpop.permute.xlu0 %3460
        %3464 = vset.pattern.permute.xlu0 0
        %3465 = vperm.xlu0 %3464, %v2661
        %v3466 = vpop.permute.xlu0 %3465
        %3469 = vset.pattern.permute.xlu0 0
        %3470 = vperm.xlu0 %3469, %v2662
        %v3471 = vpop.permute.xlu0 %3470
        %3474 = vset.pattern.permute.xlu0 0
        %3475 = vperm.xlu0 %3474, %v2663
        %v3476 = vpop.permute.xlu0 %3475
        %3479 = vset.pattern.permute.xlu0 0
        %3480 = vperm.xlu0 %3479, %v2664
        %v3481 = vpop.permute.xlu0 %3480
        %3484 = vset.pattern.permute.xlu0 0
        %3485 = vperm.xlu0 %3484, %v2665
        %v3486 = vpop.permute.xlu0 %3485
        %3489 = vset.pattern.permute.xlu0 0
        %3490 = vperm.xlu0 %3489, %v2666
        %v3491 = vpop.permute.xlu0 %3490
        %3494 = vset.pattern.permute.xlu0 0
        %3495 = vperm.xlu0 %3494, %v2667
        %v3496 = vpop.permute.xlu0 %3495
        %3499 = vset.pattern.permute.xlu0 0
        %3500 = vperm.xlu0 %3499, %v2668
        %v3501 = vpop.permute.xlu0 %3500
        %3504 = vset.pattern.permute.xlu0 0
        %3505 = vperm.xlu0 %3504, %v2669
        %v3506 = vpop.permute.xlu0 %3505
        %3509 = vset.pattern.permute.xlu0 0
        %3510 = vperm.xlu0 %3509, %v2670
        %v3511 = vpop.permute.xlu0 %3510
        %3514 = vset.pattern.permute.xlu0 0
        %3515 = vperm.xlu0 %3514, %v2671
        %v3516 = vpop.permute.xlu0 %3515
        %3519 = vset.pattern.permute.xlu0 0
        %3520 = vperm.xlu0 %3519, %v2672
        %v3521 = vpop.permute.xlu0 %3520
        %3524 = vset.pattern.permute.xlu0 0
        %3525 = vperm.xlu0 %3524, %v2673
        %v3526 = vpop.permute.xlu0 %3525
        %3529 = vset.pattern.permute.xlu0 0
        %3530 = vperm.xlu0 %3529, %v2674
        %v3531 = vpop.permute.xlu0 %3530
        %3534 = vset.pattern.permute.xlu0 0
        %3535 = vperm.xlu0 %3534, %v2675
        %v3536 = vpop.permute.xlu0 %3535
        %3539 = vset.pattern.permute.xlu0 0
        %3540 = vperm.xlu0 %3539, %v2676
        %v3541 = vpop.permute.xlu0 %3540
        %3544 = vset.pattern.permute.xlu0 0
        %3545 = vperm.xlu0 %3544, %v2677
        %v3546 = vpop.permute.xlu0 %3545
        %3549 = vset.pattern.permute.xlu0 0
        %3550 = vperm.xlu0 %3549, %v2678
        %v3551 = vpop.permute.xlu0 %3550
        %3554 = vset.pattern.permute.xlu0 0
        %3555 = vperm.xlu0 %3554, %v2679
        %v3556 = vpop.permute.xlu0 %3555
        %3559 = vset.pattern.permute.xlu0 0
        %3560 = vperm.xlu0 %3559, %v2680
        %v3561 = vpop.permute.xlu0 %3560
        %3564 = vset.pattern.permute.xlu0 0
        %3565 = vperm.xlu0 %3564, %v2681
        %v3566 = vpop.permute.xlu0 %3565
        %3569 = vset.pattern.permute.xlu0 0
        %3570 = vperm.xlu0 %3569, %v2682
        %v3571 = vpop.permute.xlu0 %3570
        %3574 = vset.pattern.permute.xlu0 0
        %3575 = vperm.xlu0 %3574, %v2683
        %v3576 = vpop.permute.xlu0 %3575
        %3579 = vset.pattern.permute.xlu0 0
        %3580 = vperm.xlu0 %3579, %v2684
        %v3581 = vpop.permute.xlu0 %3580
        %3584 = vset.pattern.permute.xlu0 0
        %3585 = vperm.xlu0 %3584, %v2685
        %v3586 = vpop.permute.xlu0 %3585
        %3589 = vset.pattern.permute.xlu0 0
        %3590 = vperm.xlu0 %3589, %v2686
        %v3591 = vpop.permute.xlu0 %3590
        %3594 = vset.pattern.permute.xlu0 0
        %3595 = vperm.xlu0 %3594, %v2687
        %v3596 = vpop.permute.xlu0 %3595
        %3599 = vset.pattern.permute.xlu0 0
        %3600 = vperm.xlu0 %3599, %v2688
        %v3601 = vpop.permute.xlu0 %3600
        %3604 = vset.pattern.permute.xlu0 0
        %3605 = vperm.xlu0 %3604, %v2689
        %v3606 = vpop.permute.xlu0 %3605
        %3609 = vset.pattern.permute.xlu0 0
        %3610 = vperm.xlu0 %3609, %v2690
        %v3611 = vpop.permute.xlu0 %3610
        %3614 = vset.pattern.permute.xlu0 0
        %3615 = vperm.xlu0 %3614, %v2691
        %v3616 = vpop.permute.xlu0 %3615
        %3619 = vset.pattern.permute.xlu0 0
        %3620 = vperm.xlu0 %3619, %v2692
        %v3621 = vpop.permute.xlu0 %3620
        %3624 = vset.pattern.permute.xlu0 0
        %3625 = vperm.xlu0 %3624, %v2693
        %v3626 = vpop.permute.xlu0 %3625
        %3629 = vset.pattern.permute.xlu0 0
        %3630 = vperm.xlu0 %3629, %v2694
        %v3631 = vpop.permute.xlu0 %3630
        %3634 = vset.pattern.permute.xlu0 0
        %3635 = vperm.xlu0 %3634, %v2695
        %v3636 = vpop.permute.xlu0 %3635
        %3639 = vset.pattern.permute.xlu0 0
        %3640 = vperm.xlu0 %3639, %v2696
        %v3641 = vpop.permute.xlu0 %3640
        %3644 = vset.pattern.permute.xlu0 0
        %3645 = vperm.xlu0 %3644, %v2697
        %v3646 = vpop.permute.xlu0 %3645
        %3649 = vset.pattern.permute.xlu0 0
        %3650 = vperm.xlu0 %3649, %v2698
        %v3651 = vpop.permute.xlu0 %3650
        %3654 = vset.pattern.permute.xlu0 0
        %3655 = vperm.xlu0 %3654, %v2699
        %v3656 = vpop.permute.xlu0 %3655
        %3659 = vset.pattern.permute.xlu0 0
        %3660 = vperm.xlu0 %3659, %v2700
        %v3661 = vpop.permute.xlu0 %3660
        %3664 = vset.pattern.permute.xlu0 0
        %3665 = vperm.xlu0 %3664, %v2701
        %v3666 = vpop.permute.xlu0 %3665
        %3669 = vset.pattern.permute.xlu0 0
        %3670 = vperm.xlu0 %3669, %v2702
        %v3671 = vpop.permute.xlu0 %3670
        %3674 = vset.pattern.permute.xlu0 0
        %3675 = vperm.xlu0 %3674, %v2703
        %v3676 = vpop.permute.xlu0 %3675
        %3679 = vset.pattern.permute.xlu0 0
        %3680 = vperm.xlu0 %3679, %v2704
        %v3681 = vpop.permute.xlu0 %3680
        %3684 = vset.pattern.permute.xlu0 0
        %3685 = vperm.xlu0 %3684, %v2705
        %v3686 = vpop.permute.xlu0 %3685
        %3689 = vset.pattern.permute.xlu0 0
        %3690 = vperm.xlu0 %3689, %v2706
        %v3691 = vpop.permute.xlu0 %3690
        %3694 = vset.pattern.permute.xlu0 0
        %3695 = vperm.xlu0 %3694, %v2707
        %v3696 = vpop.permute.xlu0 %3695
        %3699 = vset.pattern.permute.xlu0 0
        %3700 = vperm.xlu0 %3699, %v2708
        %v3701 = vpop.permute.xlu0 %3700
        %3704 = vset.pattern.permute.xlu0 0
        %3705 = vperm.xlu0 %3704, %v2709
        %v3706 = vpop.permute.xlu0 %3705
        %3709 = vset.pattern.permute.xlu0 0
        %3710 = vperm.xlu0 %3709, %v2710
        %v3711 = vpop.permute.xlu0 %3710
        %3714 = vset.pattern.permute.xlu0 0
        %3715 = vperm.xlu0 %3714, %v2711
        %v3716 = vpop.permute.xlu0 %3715
        %3719 = vset.pattern.permute.xlu0 0
        %3720 = vperm.xlu0 %3719, %v2712
        %v3721 = vpop.permute.xlu0 %3720
        %3724 = vset.pattern.permute.xlu0 0
        %3725 = vperm.xlu0 %3724, %v2713
        %v3726 = vpop.permute.xlu0 %3725
        %3729 = vset.pattern.permute.xlu0 0
        %3730 = vperm.xlu0 %3729, %v2714
        %v3731 = vpop.permute.xlu0 %3730
        %3734 = vset.pattern.permute.xlu0 0
        %3735 = vperm.xlu0 %3734, %v2715
        %v3736 = vpop.permute.xlu0 %3735
        %3739 = vset.pattern.permute.xlu0 0
        %3740 = vperm.xlu0 %3739, %v2716
        %v3741 = vpop.permute.xlu0 %3740
        %3744 = vset.pattern.permute.xlu0 0
        %3745 = vperm.xlu0 %3744, %v2717
        %v3746 = vpop.permute.xlu0 %3745
        %3749 = vset.pattern.permute.xlu0 0
        %3750 = vperm.xlu0 %3749, %v2718
        %v3751 = vpop.permute.xlu0 %3750
        %3754 = vset.pattern.permute.xlu0 0
        %3755 = vperm.xlu0 %3754, %v2719
        %v3756 = vpop.permute.xlu0 %3755
        %3759 = vset.pattern.permute.xlu0 0
        %3760 = vperm.xlu0 %3759, %v2720
        %v3761 = vpop.permute.xlu0 %3760
        %3764 = vset.pattern.permute.xlu0 0
        %3765 = vperm.xlu0 %3764, %v2721
        %v3766 = vpop.permute.xlu0 %3765
        %3769 = vset.pattern.permute.xlu0 0
        %3770 = vperm.xlu0 %3769, %v2722
        %v3771 = vpop.permute.xlu0 %3770
        %3774 = vset.pattern.permute.xlu0 0
        %3775 = vperm.xlu0 %3774, %v2723
        %v3776 = vpop.permute.xlu0 %3775
        %3779 = vset.pattern.permute.xlu0 0
        %3780 = vperm.xlu0 %3779, %v2724
        %v3781 = vpop.permute.xlu0 %3780
        %3784 = vset.pattern.permute.xlu0 0
        %3785 = vperm.xlu0 %3784, %v2725
        %v3786 = vpop.permute.xlu0 %3785
        %3789 = vset.pattern.permute.xlu0 0
        %3790 = vperm.xlu0 %3789, %v2726
        %v3791 = vpop.permute.xlu0 %3790
        %3794 = vset.pattern.permute.xlu0 0
        %3795 = vperm.xlu0 %3794, %v2727
        %v3796 = vpop.permute.xlu0 %3795
        %3799 = vset.pattern.permute.xlu0 0
        %3800 = vperm.xlu0 %3799, %v2728
        %v3801 = vpop.permute.xlu0 %3800
        %3804 = vset.pattern.permute.xlu0 0
        %3805 = vperm.xlu0 %3804, %v2729
        %v3806 = vpop.permute.xlu0 %3805
        %3809 = vset.pattern.permute.xlu0 0
        %3810 = vperm.xlu0 %3809, %v2730
        %v3811 = vpop.permute.xlu0 %3810
        %3814 = vset.pattern.permute.xlu0 0
        %3815 = vperm.xlu0 %3814, %v2731
        %v3816 = vpop.permute.xlu0 %3815
        %3819 = vset.pattern.permute.xlu0 0
        %3820 = vperm.xlu0 %3819, %v2732
        %v3821 = vpop.permute.xlu0 %3820
        %3824 = vset.pattern.permute.xlu0 0
        %3825 = vperm.xlu0 %3824, %v2733
        %v3826 = vpop.permute.xlu0 %3825
        %3829 = vset.pattern.permute.xlu0 0
        %3830 = vperm.xlu0 %3829, %v2734
        %v3831 = vpop.permute.xlu0 %3830
        %3834 = vset.pattern.permute.xlu0 0
        %3835 = vperm.xlu0 %3834, %v2735
        %v3836 = vpop.permute.xlu0 %3835
        %3839 = vset.pattern.permute.xlu0 0
        %3840 = vperm.xlu0 %3839, %v2736
        %v3841 = vpop.permute.xlu0 %3840
        %3844 = vset.pattern.permute.xlu0 0
        %3845 = vperm.xlu0 %3844, %v2737
        %v3846 = vpop.permute.xlu0 %3845
        %3849 = vset.pattern.permute.xlu0 0
        %3850 = vperm.xlu0 %3849, %v2738
        %v3851 = vpop.permute.xlu0 %3850
        %3854 = vset.pattern.permute.xlu0 0
        %3855 = vperm.xlu0 %3854, %v2739
        %v3856 = vpop.permute.xlu0 %3855
        %3859 = vset.pattern.permute.xlu0 0
        %3860 = vperm.xlu0 %3859, %v2740
        %v3861 = vpop.permute.xlu0 %3860
        %3864 = vset.pattern.permute.xlu0 0
        %3865 = vperm.xlu0 %3864, %v2741
        %v3866 = vpop.permute.xlu0 %3865
        %3869 = vset.pattern.permute.xlu0 0
        %3870 = vperm.xlu0 %3869, %v2742
        %v3871 = vpop.permute.xlu0 %3870
        %3874 = vset.pattern.permute.xlu0 0
        %3875 = vperm.xlu0 %3874, %v2743
        %v3876 = vpop.permute.xlu0 %3875
        %3879 = vset.pattern.permute.xlu0 0
        %3880 = vperm.xlu0 %3879, %v2744
        %v3881 = vpop.permute.xlu0 %3880
        %3884 = vset.pattern.permute.xlu0 0
        %3885 = vperm.xlu0 %3884, %v2745
        %v3886 = vpop.permute.xlu0 %3885
        %3889 = vset.pattern.permute.xlu0 0
        %3890 = vperm.xlu0 %3889, %v2746
        %v3891 = vpop.permute.xlu0 %3890
        %3894 = vset.pattern.permute.xlu0 0
        %3895 = vperm.xlu0 %3894, %v2747
        %v3896 = vpop.permute.xlu0 %3895
        %3899 = vset.pattern.permute.xlu0 0
        %3900 = vperm.xlu0 %3899, %v2748
        %v3901 = vpop.permute.xlu0 %3900
        %v3903 = vlaneseq
        %v3904 = vshrl.u32 %v3903, 7
        %v3905 = vsub.s32 0, %v3904
        %v3906 = vrot.slane %v3262, %v3905
        %v3907 = vmul.f32 %v3266, %v3906
        %v3908 = vmul.f32 %v3271, %v3906
        %v3909 = vmul.f32 %v3276, %v3906
        %v3910 = vmul.f32 %v3281, %v3906
        %v3911 = vmul.f32 %v3286, %v3906
        %v3912 = vmul.f32 %v3291, %v3906
        %v3913 = vmul.f32 %v3296, %v3906
        %v3914 = vmul.f32 %v3301, %v3906
        %v3915 = vmul.f32 %v3306, %v3906
        %v3916 = vmul.f32 %v3311, %v3906
        %v3917 = vmul.f32 %v3316, %v3906
        %v3918 = vmul.f32 %v3321, %v3906
        %v3919 = vmul.f32 %v3326, %v3906
        %v3920 = vmul.f32 %v3331, %v3906
        %v3921 = vmul.f32 %v3336, %v3906
        %v3922 = vmul.f32 %v3341, %v3906
        %v3923 = vmul.f32 %v3346, %v3906
        %v3924 = vmul.f32 %v3351, %v3906
        %v3925 = vmul.f32 %v3356, %v3906
        %v3926 = vmul.f32 %v3361, %v3906
        %v3927 = vmul.f32 %v3366, %v3906
        %v3928 = vmul.f32 %v3371, %v3906
        %v3929 = vmul.f32 %v3376, %v3906
        %v3930 = vmul.f32 %v3381, %v3906
        %v3931 = vmul.f32 %v3386, %v3906
        %v3932 = vmul.f32 %v3391, %v3906
        %v3933 = vmul.f32 %v3396, %v3906
        %v3934 = vmul.f32 %v3401, %v3906
        %v3935 = vmul.f32 %v3406, %v3906
        %v3936 = vmul.f32 %v3411, %v3906
        %v3937 = vmul.f32 %v3416, %v3906
        %v3938 = vmul.f32 %v3421, %v3906
        %v3939 = vmul.f32 %v3426, %v3906
        %v3940 = vmul.f32 %v3431, %v3906
        %v3941 = vmul.f32 %v3436, %v3906
        %v3942 = vmul.f32 %v3441, %v3906
        %v3943 = vmul.f32 %v3446, %v3906
        %v3944 = vmul.f32 %v3451, %v3906
        %v3945 = vmul.f32 %v3456, %v3906
        %v3946 = vmul.f32 %v3461, %v3906
        %v3947 = vmul.f32 %v3466, %v3906
        %v3948 = vmul.f32 %v3471, %v3906
        %v3949 = vmul.f32 %v3476, %v3906
        %v3950 = vmul.f32 %v3481, %v3906
        %v3951 = vmul.f32 %v3486, %v3906
        %v3952 = vmul.f32 %v3491, %v3906
        %v3953 = vmul.f32 %v3496, %v3906
        %v3954 = vmul.f32 %v3501, %v3906
        %v3955 = vmul.f32 %v3506, %v3906
        %v3956 = vmul.f32 %v3511, %v3906
        %v3957 = vmul.f32 %v3516, %v3906
        %v3958 = vmul.f32 %v3521, %v3906
        %v3959 = vmul.f32 %v3526, %v3906
        %v3960 = vmul.f32 %v3531, %v3906
        %v3961 = vmul.f32 %v3536, %v3906
        %v3962 = vmul.f32 %v3541, %v3906
        %v3963 = vmul.f32 %v3546, %v3906
        %v3964 = vmul.f32 %v3551, %v3906
        %v3965 = vmul.f32 %v3556, %v3906
        %v3966 = vmul.f32 %v3561, %v3906
        %v3967 = vmul.f32 %v3566, %v3906
        %v3968 = vmul.f32 %v3571, %v3906
        %v3969 = vmul.f32 %v3576, %v3906
        %v3970 = vmul.f32 %v3581, %v3906
        %v3971 = vmul.f32 %v3586, %v3906
        %v3972 = vmul.f32 %v3591, %v3906
        %v3973 = vmul.f32 %v3596, %v3906
        %v3974 = vmul.f32 %v3601, %v3906
        %v3975 = vmul.f32 %v3606, %v3906
        %v3976 = vmul.f32 %v3611, %v3906
        %v3977 = vmul.f32 %v3616, %v3906
        %v3978 = vmul.f32 %v3621, %v3906
        %v3979 = vmul.f32 %v3626, %v3906
        %v3980 = vmul.f32 %v3631, %v3906
        %v3981 = vmul.f32 %v3636, %v3906
        %v3982 = vmul.f32 %v3641, %v3906
        %v3983 = vmul.f32 %v3646, %v3906
        %v3984 = vmul.f32 %v3651, %v3906
        %v3985 = vmul.f32 %v3656, %v3906
        %v3986 = vmul.f32 %v3661, %v3906
        %v3987 = vmul.f32 %v3666, %v3906
        %v3988 = vmul.f32 %v3671, %v3906
        %v3989 = vmul.f32 %v3676, %v3906
        %v3990 = vmul.f32 %v3681, %v3906
        %v3991 = vmul.f32 %v3686, %v3906
        %v3992 = vmul.f32 %v3691, %v3906
        %v3993 = vmul.f32 %v3696, %v3906
        %v3994 = vmul.f32 %v3701, %v3906
        %v3995 = vmul.f32 %v3706, %v3906
        %v3996 = vmul.f32 %v3711, %v3906
        %v3997 = vmul.f32 %v3716, %v3906
        %v3998 = vmul.f32 %v3721, %v3906
        %v3999 = vmul.f32 %v3726, %v3906
        %v4000 = vmul.f32 %v3731, %v3906
        %v4001 = vmul.f32 %v3736, %v3906
        %v4002 = vmul.f32 %v3741, %v3906
        %v4003 = vmul.f32 %v3746, %v3906
        %v4004 = vmul.f32 %v3751, %v3906
        %v4005 = vmul.f32 %v3756, %v3906
        %v4006 = vmul.f32 %v3761, %v3906
        %v4007 = vmul.f32 %v3766, %v3906
        %v4008 = vmul.f32 %v3771, %v3906
        %v4009 = vmul.f32 %v3776, %v3906
        %v4010 = vmul.f32 %v3781, %v3906
        %v4011 = vmul.f32 %v3786, %v3906
        %v4012 = vmul.f32 %v3791, %v3906
        %v4013 = vmul.f32 %v3796, %v3906
        %v4014 = vmul.f32 %v3801, %v3906
        %v4015 = vmul.f32 %v3806, %v3906
        %v4016 = vmul.f32 %v3811, %v3906
        %v4017 = vmul.f32 %v3816, %v3906
        %v4018 = vmul.f32 %v3821, %v3906
        %v4019 = vmul.f32 %v3826, %v3906
        %v4020 = vmul.f32 %v3831, %v3906
        %v4021 = vmul.f32 %v3836, %v3906
        %v4022 = vmul.f32 %v3841, %v3906
        %v4023 = vmul.f32 %v3846, %v3906
        %v4024 = vmul.f32 %v3851, %v3906
        %v4025 = vmul.f32 %v3856, %v3906
        %v4026 = vmul.f32 %v3861, %v3906
        %v4027 = vmul.f32 %v3866, %v3906
        %v4028 = vmul.f32 %v3871, %v3906
        %v4029 = vmul.f32 %v3876, %v3906
        %v4030 = vmul.f32 %v3881, %v3906
        %v4031 = vmul.f32 %v3886, %v3906
        %v4032 = vmul.f32 %v3891, %v3906
        %v4033 = vmul.f32 %v3896, %v3906
        %v4034 = vmul.f32 %v3901, %v3906
        %v4035 = vld [vmem:[%s1 + $0x1] sm:$0x1]
        %4037 = vset.pattern.permute.xlu0 0
        %4038 = vperm.xlu0 %4037, %v443
        %v4039 = vpop.permute.xlu0 %4038
        %4042 = vset.pattern.permute.xlu0 0
        %4043 = vperm.xlu0 %4042, %v444
        %v4044 = vpop.permute.xlu0 %4043
        %4047 = vset.pattern.permute.xlu0 0
        %4048 = vperm.xlu0 %4047, %v445
        %v4049 = vpop.permute.xlu0 %4048
        %4052 = vset.pattern.permute.xlu0 0
        %4053 = vperm.xlu0 %4052, %v446
        %v4054 = vpop.permute.xlu0 %4053
        %4057 = vset.pattern.permute.xlu0 0
        %4058 = vperm.xlu0 %4057, %v447
        %v4059 = vpop.permute.xlu0 %4058
        %4062 = vset.pattern.permute.xlu0 0
        %4063 = vperm.xlu0 %4062, %v448
        %v4064 = vpop.permute.xlu0 %4063
        %4067 = vset.pattern.permute.xlu0 0
        %4068 = vperm.xlu0 %4067, %v449
        %v4069 = vpop.permute.xlu0 %4068
        %4072 = vset.pattern.permute.xlu0 0
        %4073 = vperm.xlu0 %4072, %v450
        %v4074 = vpop.permute.xlu0 %4073
        %4077 = vset.pattern.permute.xlu0 0
        %4078 = vperm.xlu0 %4077, %v451
        %v4079 = vpop.permute.xlu0 %4078
        %4082 = vset.pattern.permute.xlu0 0
        %4083 = vperm.xlu0 %4082, %v452
        %v4084 = vpop.permute.xlu0 %4083
        %4087 = vset.pattern.permute.xlu0 0
        %4088 = vperm.xlu0 %4087, %v453
        %v4089 = vpop.permute.xlu0 %4088
        %4092 = vset.pattern.permute.xlu0 0
        %4093 = vperm.xlu0 %4092, %v454
        %v4094 = vpop.permute.xlu0 %4093
        %4097 = vset.pattern.permute.xlu0 0
        %4098 = vperm.xlu0 %4097, %v455
        %v4099 = vpop.permute.xlu0 %4098
        %4102 = vset.pattern.permute.xlu0 0
        %4103 = vperm.xlu0 %4102, %v456
        %v4104 = vpop.permute.xlu0 %4103
        %4107 = vset.pattern.permute.xlu0 0
        %4108 = vperm.xlu0 %4107, %v457
        %v4109 = vpop.permute.xlu0 %4108
        %4112 = vset.pattern.permute.xlu0 0
        %4113 = vperm.xlu0 %4112, %v458
        %v4114 = vpop.permute.xlu0 %4113
        %4117 = vset.pattern.permute.xlu0 0
        %4118 = vperm.xlu0 %4117, %v459
        %v4119 = vpop.permute.xlu0 %4118
        %4122 = vset.pattern.permute.xlu0 0
        %4123 = vperm.xlu0 %4122, %v460
        %v4124 = vpop.permute.xlu0 %4123
        %4127 = vset.pattern.permute.xlu0 0
        %4128 = vperm.xlu0 %4127, %v461
        %v4129 = vpop.permute.xlu0 %4128
        %4132 = vset.pattern.permute.xlu0 0
        %4133 = vperm.xlu0 %4132, %v462
        %v4134 = vpop.permute.xlu0 %4133
        %4137 = vset.pattern.permute.xlu0 0
        %4138 = vperm.xlu0 %4137, %v463
        %v4139 = vpop.permute.xlu0 %4138
        %4142 = vset.pattern.permute.xlu0 0
        %4143 = vperm.xlu0 %4142, %v464
        %v4144 = vpop.permute.xlu0 %4143
        %4147 = vset.pattern.permute.xlu0 0
        %4148 = vperm.xlu0 %4147, %v465
        %v4149 = vpop.permute.xlu0 %4148
        %4152 = vset.pattern.permute.xlu0 0
        %4153 = vperm.xlu0 %4152, %v466
        %v4154 = vpop.permute.xlu0 %4153
        %4157 = vset.pattern.permute.xlu0 0
        %4158 = vperm.xlu0 %4157, %v467
        %v4159 = vpop.permute.xlu0 %4158
        %4162 = vset.pattern.permute.xlu0 0
        %4163 = vperm.xlu0 %4162, %v468
        %v4164 = vpop.permute.xlu0 %4163
        %4167 = vset.pattern.permute.xlu0 0
        %4168 = vperm.xlu0 %4167, %v469
        %v4169 = vpop.permute.xlu0 %4168
        %4172 = vset.pattern.permute.xlu0 0
        %4173 = vperm.xlu0 %4172, %v470
        %v4174 = vpop.permute.xlu0 %4173
        %4177 = vset.pattern.permute.xlu0 0
        %4178 = vperm.xlu0 %4177, %v471
        %v4179 = vpop.permute.xlu0 %4178
        %4182 = vset.pattern.permute.xlu0 0
        %4183 = vperm.xlu0 %4182, %v472
        %v4184 = vpop.permute.xlu0 %4183
        %4187 = vset.pattern.permute.xlu0 0
        %4188 = vperm.xlu0 %4187, %v473
        %v4189 = vpop.permute.xlu0 %4188
        %4192 = vset.pattern.permute.xlu0 0
        %4193 = vperm.xlu0 %4192, %v474
        %v4194 = vpop.permute.xlu0 %4193
        %4197 = vset.pattern.permute.xlu0 0
        %4198 = vperm.xlu0 %4197, %v475
        %v4199 = vpop.permute.xlu0 %4198
        %4202 = vset.pattern.permute.xlu0 0
        %4203 = vperm.xlu0 %4202, %v476
        %v4204 = vpop.permute.xlu0 %4203
        %4207 = vset.pattern.permute.xlu0 0
        %4208 = vperm.xlu0 %4207, %v477
        %v4209 = vpop.permute.xlu0 %4208
        %4212 = vset.pattern.permute.xlu0 0
        %4213 = vperm.xlu0 %4212, %v478
        %v4214 = vpop.permute.xlu0 %4213
        %4217 = vset.pattern.permute.xlu0 0
        %4218 = vperm.xlu0 %4217, %v479
        %v4219 = vpop.permute.xlu0 %4218
        %4222 = vset.pattern.permute.xlu0 0
        %4223 = vperm.xlu0 %4222, %v480
        %v4224 = vpop.permute.xlu0 %4223
        %4227 = vset.pattern.permute.xlu0 0
        %4228 = vperm.xlu0 %4227, %v481
        %v4229 = vpop.permute.xlu0 %4228
        %4232 = vset.pattern.permute.xlu0 0
        %4233 = vperm.xlu0 %4232, %v482
        %v4234 = vpop.permute.xlu0 %4233
        %4237 = vset.pattern.permute.xlu0 0
        %4238 = vperm.xlu0 %4237, %v483
        %v4239 = vpop.permute.xlu0 %4238
        %4242 = vset.pattern.permute.xlu0 0
        %4243 = vperm.xlu0 %4242, %v484
        %v4244 = vpop.permute.xlu0 %4243
        %4247 = vset.pattern.permute.xlu0 0
        %4248 = vperm.xlu0 %4247, %v485
        %v4249 = vpop.permute.xlu0 %4248
        %4252 = vset.pattern.permute.xlu0 0
        %4253 = vperm.xlu0 %4252, %v486
        %v4254 = vpop.permute.xlu0 %4253
        %4257 = vset.pattern.permute.xlu0 0
        %4258 = vperm.xlu0 %4257, %v487
        %v4259 = vpop.permute.xlu0 %4258
        %4262 = vset.pattern.permute.xlu0 0
        %4263 = vperm.xlu0 %4262, %v488
        %v4264 = vpop.permute.xlu0 %4263
        %4267 = vset.pattern.permute.xlu0 0
        %4268 = vperm.xlu0 %4267, %v489
        %v4269 = vpop.permute.xlu0 %4268
        %4272 = vset.pattern.permute.xlu0 0
        %4273 = vperm.xlu0 %4272, %v490
        %v4274 = vpop.permute.xlu0 %4273
        %4277 = vset.pattern.permute.xlu0 0
        %4278 = vperm.xlu0 %4277, %v491
        %v4279 = vpop.permute.xlu0 %4278
        %4282 = vset.pattern.permute.xlu0 0
        %4283 = vperm.xlu0 %4282, %v492
        %v4284 = vpop.permute.xlu0 %4283
        %4287 = vset.pattern.permute.xlu0 0
        %4288 = vperm.xlu0 %4287, %v493
        %v4289 = vpop.permute.xlu0 %4288
        %4292 = vset.pattern.permute.xlu0 0
        %4293 = vperm.xlu0 %4292, %v494
        %v4294 = vpop.permute.xlu0 %4293
        %4297 = vset.pattern.permute.xlu0 0
        %4298 = vperm.xlu0 %4297, %v495
        %v4299 = vpop.permute.xlu0 %4298
        %4302 = vset.pattern.permute.xlu0 0
        %4303 = vperm.xlu0 %4302, %v496
        %v4304 = vpop.permute.xlu0 %4303
        %4307 = vset.pattern.permute.xlu0 0
        %4308 = vperm.xlu0 %4307, %v497
        %v4309 = vpop.permute.xlu0 %4308
        %4312 = vset.pattern.permute.xlu0 0
        %4313 = vperm.xlu0 %4312, %v498
        %v4314 = vpop.permute.xlu0 %4313
        %4317 = vset.pattern.permute.xlu0 0
        %4318 = vperm.xlu0 %4317, %v499
        %v4319 = vpop.permute.xlu0 %4318
        %4322 = vset.pattern.permute.xlu0 0
        %4323 = vperm.xlu0 %4322, %v500
        %v4324 = vpop.permute.xlu0 %4323
        %4327 = vset.pattern.permute.xlu0 0
        %4328 = vperm.xlu0 %4327, %v501
        %v4329 = vpop.permute.xlu0 %4328
        %4332 = vset.pattern.permute.xlu0 0
        %4333 = vperm.xlu0 %4332, %v502
        %v4334 = vpop.permute.xlu0 %4333
        %4337 = vset.pattern.permute.xlu0 0
        %4338 = vperm.xlu0 %4337, %v503
        %v4339 = vpop.permute.xlu0 %4338
        %4342 = vset.pattern.permute.xlu0 0
        %4343 = vperm.xlu0 %4342, %v504
        %v4344 = vpop.permute.xlu0 %4343
        %4347 = vset.pattern.permute.xlu0 0
        %4348 = vperm.xlu0 %4347, %v505
        %v4349 = vpop.permute.xlu0 %4348
        %4352 = vset.pattern.permute.xlu0 0
        %4353 = vperm.xlu0 %4352, %v506
        %v4354 = vpop.permute.xlu0 %4353
        %4357 = vset.pattern.permute.xlu0 0
        %4358 = vperm.xlu0 %4357, %v507
        %v4359 = vpop.permute.xlu0 %4358
        %4362 = vset.pattern.permute.xlu0 0
        %4363 = vperm.xlu0 %4362, %v508
        %v4364 = vpop.permute.xlu0 %4363
        %4367 = vset.pattern.permute.xlu0 0
        %4368 = vperm.xlu0 %4367, %v509
        %v4369 = vpop.permute.xlu0 %4368
        %4372 = vset.pattern.permute.xlu0 0
        %4373 = vperm.xlu0 %4372, %v510
        %v4374 = vpop.permute.xlu0 %4373
        %4377 = vset.pattern.permute.xlu0 0
        %4378 = vperm.xlu0 %4377, %v511
        %v4379 = vpop.permute.xlu0 %4378
        %4382 = vset.pattern.permute.xlu0 0
        %4383 = vperm.xlu0 %4382, %v512
        %v4384 = vpop.permute.xlu0 %4383
        %4387 = vset.pattern.permute.xlu0 0
        %4388 = vperm.xlu0 %4387, %v513
        %v4389 = vpop.permute.xlu0 %4388
        %4392 = vset.pattern.permute.xlu0 0
        %4393 = vperm.xlu0 %4392, %v514
        %v4394 = vpop.permute.xlu0 %4393
        %4397 = vset.pattern.permute.xlu0 0
        %4398 = vperm.xlu0 %4397, %v515
        %v4399 = vpop.permute.xlu0 %4398
        %4402 = vset.pattern.permute.xlu0 0
        %4403 = vperm.xlu0 %4402, %v516
        %v4404 = vpop.permute.xlu0 %4403
        %4407 = vset.pattern.permute.xlu0 0
        %4408 = vperm.xlu0 %4407, %v517
        %v4409 = vpop.permute.xlu0 %4408
        %4412 = vset.pattern.permute.xlu0 0
        %4413 = vperm.xlu0 %4412, %v518
        %v4414 = vpop.permute.xlu0 %4413
        %4417 = vset.pattern.permute.xlu0 0
        %4418 = vperm.xlu0 %4417, %v519
        %v4419 = vpop.permute.xlu0 %4418
        %4422 = vset.pattern.permute.xlu0 0
        %4423 = vperm.xlu0 %4422, %v520
        %v4424 = vpop.permute.xlu0 %4423
        %4427 = vset.pattern.permute.xlu0 0
        %4428 = vperm.xlu0 %4427, %v521
        %v4429 = vpop.permute.xlu0 %4428
        %4432 = vset.pattern.permute.xlu0 0
        %4433 = vperm.xlu0 %4432, %v522
        %v4434 = vpop.permute.xlu0 %4433
        %4437 = vset.pattern.permute.xlu0 0
        %4438 = vperm.xlu0 %4437, %v523
        %v4439 = vpop.permute.xlu0 %4438
        %4442 = vset.pattern.permute.xlu0 0
        %4443 = vperm.xlu0 %4442, %v524
        %v4444 = vpop.permute.xlu0 %4443
        %4447 = vset.pattern.permute.xlu0 0
        %4448 = vperm.xlu0 %4447, %v525
        %v4449 = vpop.permute.xlu0 %4448
        %4452 = vset.pattern.permute.xlu0 0
        %4453 = vperm.xlu0 %4452, %v526
        %v4454 = vpop.permute.xlu0 %4453
        %4457 = vset.pattern.permute.xlu0 0
        %4458 = vperm.xlu0 %4457, %v527
        %v4459 = vpop.permute.xlu0 %4458
        %4462 = vset.pattern.permute.xlu0 0
        %4463 = vperm.xlu0 %4462, %v528
        %v4464 = vpop.permute.xlu0 %4463
        %4467 = vset.pattern.permute.xlu0 0
        %4468 = vperm.xlu0 %4467, %v529
        %v4469 = vpop.permute.xlu0 %4468
        %4472 = vset.pattern.permute.xlu0 0
        %4473 = vperm.xlu0 %4472, %v530
        %v4474 = vpop.permute.xlu0 %4473
        %4477 = vset.pattern.permute.xlu0 0
        %4478 = vperm.xlu0 %4477, %v531
        %v4479 = vpop.permute.xlu0 %4478
        %4482 = vset.pattern.permute.xlu0 0
        %4483 = vperm.xlu0 %4482, %v532
        %v4484 = vpop.permute.xlu0 %4483
        %4487 = vset.pattern.permute.xlu0 0
        %4488 = vperm.xlu0 %4487, %v533
        %v4489 = vpop.permute.xlu0 %4488
        %4492 = vset.pattern.permute.xlu0 0
        %4493 = vperm.xlu0 %4492, %v534
        %v4494 = vpop.permute.xlu0 %4493
        %4497 = vset.pattern.permute.xlu0 0
        %4498 = vperm.xlu0 %4497, %v535
        %v4499 = vpop.permute.xlu0 %4498
        %4502 = vset.pattern.permute.xlu0 0
        %4503 = vperm.xlu0 %4502, %v536
        %v4504 = vpop.permute.xlu0 %4503
        %4507 = vset.pattern.permute.xlu0 0
        %4508 = vperm.xlu0 %4507, %v537
        %v4509 = vpop.permute.xlu0 %4508
        %4512 = vset.pattern.permute.xlu0 0
        %4513 = vperm.xlu0 %4512, %v538
        %v4514 = vpop.permute.xlu0 %4513
        %4517 = vset.pattern.permute.xlu0 0
        %4518 = vperm.xlu0 %4517, %v539
        %v4519 = vpop.permute.xlu0 %4518
        %4522 = vset.pattern.permute.xlu0 0
        %4523 = vperm.xlu0 %4522, %v540
        %v4524 = vpop.permute.xlu0 %4523
        %4527 = vset.pattern.permute.xlu0 0
        %4528 = vperm.xlu0 %4527, %v541
        %v4529 = vpop.permute.xlu0 %4528
        %4532 = vset.pattern.permute.xlu0 0
        %4533 = vperm.xlu0 %4532, %v542
        %v4534 = vpop.permute.xlu0 %4533
        %4537 = vset.pattern.permute.xlu0 0
        %4538 = vperm.xlu0 %4537, %v543
        %v4539 = vpop.permute.xlu0 %4538
        %4542 = vset.pattern.permute.xlu0 0
        %4543 = vperm.xlu0 %4542, %v544
        %v4544 = vpop.permute.xlu0 %4543
        %4547 = vset.pattern.permute.xlu0 0
        %4548 = vperm.xlu0 %4547, %v545
        %v4549 = vpop.permute.xlu0 %4548
        %4552 = vset.pattern.permute.xlu0 0
        %4553 = vperm.xlu0 %4552, %v546
        %v4554 = vpop.permute.xlu0 %4553
        %4557 = vset.pattern.permute.xlu0 0
        %4558 = vperm.xlu0 %4557, %v547
        %v4559 = vpop.permute.xlu0 %4558
        %4562 = vset.pattern.permute.xlu0 0
        %4563 = vperm.xlu0 %4562, %v548
        %v4564 = vpop.permute.xlu0 %4563
        %4567 = vset.pattern.permute.xlu0 0
        %4568 = vperm.xlu0 %4567, %v549
        %v4569 = vpop.permute.xlu0 %4568
        %4572 = vset.pattern.permute.xlu0 0
        %4573 = vperm.xlu0 %4572, %v550
        %v4574 = vpop.permute.xlu0 %4573
        %4577 = vset.pattern.permute.xlu0 0
        %4578 = vperm.xlu0 %4577, %v551
        %v4579 = vpop.permute.xlu0 %4578
        %4582 = vset.pattern.permute.xlu0 0
        %4583 = vperm.xlu0 %4582, %v552
        %v4584 = vpop.permute.xlu0 %4583
        %4587 = vset.pattern.permute.xlu0 0
        %4588 = vperm.xlu0 %4587, %v553
        %v4589 = vpop.permute.xlu0 %4588
        %4592 = vset.pattern.permute.xlu0 0
        %4593 = vperm.xlu0 %4592, %v554
        %v4594 = vpop.permute.xlu0 %4593
        %4597 = vset.pattern.permute.xlu0 0
        %4598 = vperm.xlu0 %4597, %v555
        %v4599 = vpop.permute.xlu0 %4598
        %4602 = vset.pattern.permute.xlu0 0
        %4603 = vperm.xlu0 %4602, %v556
        %v4604 = vpop.permute.xlu0 %4603
        %4607 = vset.pattern.permute.xlu0 0
        %4608 = vperm.xlu0 %4607, %v557
        %v4609 = vpop.permute.xlu0 %4608
        %4612 = vset.pattern.permute.xlu0 0
        %4613 = vperm.xlu0 %4612, %v558
        %v4614 = vpop.permute.xlu0 %4613
        %4617 = vset.pattern.permute.xlu0 0
        %4618 = vperm.xlu0 %4617, %v559
        %v4619 = vpop.permute.xlu0 %4618
        %4622 = vset.pattern.permute.xlu0 0
        %4623 = vperm.xlu0 %4622, %v560
        %v4624 = vpop.permute.xlu0 %4623
        %4627 = vset.pattern.permute.xlu0 0
        %4628 = vperm.xlu0 %4627, %v561
        %v4629 = vpop.permute.xlu0 %4628
        %4632 = vset.pattern.permute.xlu0 0
        %4633 = vperm.xlu0 %4632, %v562
        %v4634 = vpop.permute.xlu0 %4633
        %4637 = vset.pattern.permute.xlu0 0
        %4638 = vperm.xlu0 %4637, %v563
        %v4639 = vpop.permute.xlu0 %4638
        %4642 = vset.pattern.permute.xlu0 0
        %4643 = vperm.xlu0 %4642, %v564
        %v4644 = vpop.permute.xlu0 %4643
        %4647 = vset.pattern.permute.xlu0 0
        %4648 = vperm.xlu0 %4647, %v565
        %v4649 = vpop.permute.xlu0 %4648
        %4652 = vset.pattern.permute.xlu0 0
        %4653 = vperm.xlu0 %4652, %v566
        %v4654 = vpop.permute.xlu0 %4653
        %4657 = vset.pattern.permute.xlu0 0
        %4658 = vperm.xlu0 %4657, %v567
        %v4659 = vpop.permute.xlu0 %4658
        %4662 = vset.pattern.permute.xlu0 0
        %4663 = vperm.xlu0 %4662, %v568
        %v4664 = vpop.permute.xlu0 %4663
        %4667 = vset.pattern.permute.xlu0 0
        %4668 = vperm.xlu0 %4667, %v569
        %v4669 = vpop.permute.xlu0 %4668
        %4672 = vset.pattern.permute.xlu0 0
        %4673 = vperm.xlu0 %4672, %v570
        %v4674 = vpop.permute.xlu0 %4673
        %v4676 = vlaneseq
        %v4677 = vshrl.u32 %v4676, 7
        %v4678 = vsub.s32 0, %v4677
        %v4679 = vrot.slane %v4035, %v4678
        %v4680 = vmul.f32 %v4039, %v4679
        %v4681 = vmul.f32 %v4044, %v4679
        %v4682 = vmul.f32 %v4049, %v4679
        %v4683 = vmul.f32 %v4054, %v4679
        %v4684 = vmul.f32 %v4059, %v4679
        %v4685 = vmul.f32 %v4064, %v4679
        %v4686 = vmul.f32 %v4069, %v4679
        %v4687 = vmul.f32 %v4074, %v4679
        %v4688 = vmul.f32 %v4079, %v4679
        %v4689 = vmul.f32 %v4084, %v4679
        %v4690 = vmul.f32 %v4089, %v4679
        %v4691 = vmul.f32 %v4094, %v4679
        %v4692 = vmul.f32 %v4099, %v4679
        %v4693 = vmul.f32 %v4104, %v4679
        %v4694 = vmul.f32 %v4109, %v4679
        %v4695 = vmul.f32 %v4114, %v4679
        %v4696 = vmul.f32 %v4119, %v4679
        %v4697 = vmul.f32 %v4124, %v4679
        %v4698 = vmul.f32 %v4129, %v4679
        %v4699 = vmul.f32 %v4134, %v4679
        %v4700 = vmul.f32 %v4139, %v4679
        %v4701 = vmul.f32 %v4144, %v4679
        %v4702 = vmul.f32 %v4149, %v4679
        %v4703 = vmul.f32 %v4154, %v4679
        %v4704 = vmul.f32 %v4159, %v4679
        %v4705 = vmul.f32 %v4164, %v4679
        %v4706 = vmul.f32 %v4169, %v4679
        %v4707 = vmul.f32 %v4174, %v4679
        %v4708 = vmul.f32 %v4179, %v4679
        %v4709 = vmul.f32 %v4184, %v4679
        %v4710 = vmul.f32 %v4189, %v4679
        %v4711 = vmul.f32 %v4194, %v4679
        %v4712 = vmul.f32 %v4199, %v4679
        %v4713 = vmul.f32 %v4204, %v4679
        %v4714 = vmul.f32 %v4209, %v4679
        %v4715 = vmul.f32 %v4214, %v4679
        %v4716 = vmul.f32 %v4219, %v4679
        %v4717 = vmul.f32 %v4224, %v4679
        %v4718 = vmul.f32 %v4229, %v4679
        %v4719 = vmul.f32 %v4234, %v4679
        %v4720 = vmul.f32 %v4239, %v4679
        %v4721 = vmul.f32 %v4244, %v4679
        %v4722 = vmul.f32 %v4249, %v4679
        %v4723 = vmul.f32 %v4254, %v4679
        %v4724 = vmul.f32 %v4259, %v4679
        %v4725 = vmul.f32 %v4264, %v4679
        %v4726 = vmul.f32 %v4269, %v4679
        %v4727 = vmul.f32 %v4274, %v4679
        %v4728 = vmul.f32 %v4279, %v4679
        %v4729 = vmul.f32 %v4284, %v4679
        %v4730 = vmul.f32 %v4289, %v4679
        %v4731 = vmul.f32 %v4294, %v4679
        %v4732 = vmul.f32 %v4299, %v4679
        %v4733 = vmul.f32 %v4304, %v4679
        %v4734 = vmul.f32 %v4309, %v4679
        %v4735 = vmul.f32 %v4314, %v4679
        %v4736 = vmul.f32 %v4319, %v4679
        %v4737 = vmul.f32 %v4324, %v4679
        %v4738 = vmul.f32 %v4329, %v4679
        %v4739 = vmul.f32 %v4334, %v4679
        %v4740 = vmul.f32 %v4339, %v4679
        %v4741 = vmul.f32 %v4344, %v4679
        %v4742 = vmul.f32 %v4349, %v4679
        %v4743 = vmul.f32 %v4354, %v4679
        %v4744 = vmul.f32 %v4359, %v4679
        %v4745 = vmul.f32 %v4364, %v4679
        %v4746 = vmul.f32 %v4369, %v4679
        %v4747 = vmul.f32 %v4374, %v4679
        %v4748 = vmul.f32 %v4379, %v4679
        %v4749 = vmul.f32 %v4384, %v4679
        %v4750 = vmul.f32 %v4389, %v4679
        %v4751 = vmul.f32 %v4394, %v4679
        %v4752 = vmul.f32 %v4399, %v4679
        %v4753 = vmul.f32 %v4404, %v4679
        %v4754 = vmul.f32 %v4409, %v4679
        %v4755 = vmul.f32 %v4414, %v4679
        %v4756 = vmul.f32 %v4419, %v4679
        %v4757 = vmul.f32 %v4424, %v4679
        %v4758 = vmul.f32 %v4429, %v4679
        %v4759 = vmul.f32 %v4434, %v4679
        %v4760 = vmul.f32 %v4439, %v4679
        %v4761 = vmul.f32 %v4444, %v4679
        %v4762 = vmul.f32 %v4449, %v4679
        %v4763 = vmul.f32 %v4454, %v4679
        %v4764 = vmul.f32 %v4459, %v4679
        %v4765 = vmul.f32 %v4464, %v4679
        %v4766 = vmul.f32 %v4469, %v4679
        %v4767 = vmul.f32 %v4474, %v4679
        %v4768 = vmul.f32 %v4479, %v4679
        %v4769 = vmul.f32 %v4484, %v4679
        %v4770 = vmul.f32 %v4489, %v4679
        %v4771 = vmul.f32 %v4494, %v4679
        %v4772 = vmul.f32 %v4499, %v4679
        %v4773 = vmul.f32 %v4504, %v4679
        %v4774 = vmul.f32 %v4509, %v4679
        %v4775 = vmul.f32 %v4514, %v4679
        %v4776 = vmul.f32 %v4519, %v4679
        %v4777 = vmul.f32 %v4524, %v4679
        %v4778 = vmul.f32 %v4529, %v4679
        %v4779 = vmul.f32 %v4534, %v4679
        %v4780 = vmul.f32 %v4539, %v4679
        %v4781 = vmul.f32 %v4544, %v4679
        %v4782 = vmul.f32 %v4549, %v4679
        %v4783 = vmul.f32 %v4554, %v4679
        %v4784 = vmul.f32 %v4559, %v4679
        %v4785 = vmul.f32 %v4564, %v4679
        %v4786 = vmul.f32 %v4569, %v4679
        %v4787 = vmul.f32 %v4574, %v4679
        %v4788 = vmul.f32 %v4579, %v4679
        %v4789 = vmul.f32 %v4584, %v4679
        %v4790 = vmul.f32 %v4589, %v4679
        %v4791 = vmul.f32 %v4594, %v4679
        %v4792 = vmul.f32 %v4599, %v4679
        %v4793 = vmul.f32 %v4604, %v4679
        %v4794 = vmul.f32 %v4609, %v4679
        %v4795 = vmul.f32 %v4614, %v4679
        %v4796 = vmul.f32 %v4619, %v4679
        %v4797 = vmul.f32 %v4624, %v4679
        %v4798 = vmul.f32 %v4629, %v4679
        %v4799 = vmul.f32 %v4634, %v4679
        %v4800 = vmul.f32 %v4639, %v4679
        %v4801 = vmul.f32 %v4644, %v4679
        %v4802 = vmul.f32 %v4649, %v4679
        %v4803 = vmul.f32 %v4654, %v4679
        %v4804 = vmul.f32 %v4659, %v4679
        %v4805 = vmul.f32 %v4664, %v4679
        %v4806 = vmul.f32 %v4669, %v4679
        %v4807 = vmul.f32 %v4674, %v4679
        %v4808 = vadd.f32 %v3907, %v4680
        %v4809 = vadd.f32 %v3908, %v4681
        %v4810 = vadd.f32 %v3909, %v4682
        %v4811 = vadd.f32 %v3910, %v4683
        %v4812 = vadd.f32 %v3911, %v4684
        %v4813 = vadd.f32 %v3912, %v4685
        %v4814 = vadd.f32 %v3913, %v4686
        %v4815 = vadd.f32 %v3914, %v4687
        %v4816 = vadd.f32 %v3915, %v4688
        %v4817 = vadd.f32 %v3916, %v4689
        %v4818 = vadd.f32 %v3917, %v4690
        %v4819 = vadd.f32 %v3918, %v4691
        %v4820 = vadd.f32 %v3919, %v4692
        %v4821 = vadd.f32 %v3920, %v4693
        %v4822 = vadd.f32 %v3921, %v4694
        %v4823 = vadd.f32 %v3922, %v4695
        %v4824 = vadd.f32 %v3923, %v4696
        %v4825 = vadd.f32 %v3924, %v4697
        %v4826 = vadd.f32 %v3925, %v4698
        %v4827 = vadd.f32 %v3926, %v4699
        %v4828 = vadd.f32 %v3927, %v4700
        %v4829 = vadd.f32 %v3928, %v4701
        %v4830 = vadd.f32 %v3929, %v4702
        %v4831 = vadd.f32 %v3930, %v4703
        %v4832 = vadd.f32 %v3931, %v4704
        %v4833 = vadd.f32 %v3932, %v4705
        %v4834 = vadd.f32 %v3933, %v4706
        %v4835 = vadd.f32 %v3934, %v4707
        %v4836 = vadd.f32 %v3935, %v4708
        %v4837 = vadd.f32 %v3936, %v4709
        %v4838 = vadd.f32 %v3937, %v4710
        %v4839 = vadd.f32 %v3938, %v4711
        %v4840 = vadd.f32 %v3939, %v4712
        %v4841 = vadd.f32 %v3940, %v4713
        %v4842 = vadd.f32 %v3941, %v4714
        %v4843 = vadd.f32 %v3942, %v4715
        %v4844 = vadd.f32 %v3943, %v4716
        %v4845 = vadd.f32 %v3944, %v4717
        %v4846 = vadd.f32 %v3945, %v4718
        %v4847 = vadd.f32 %v3946, %v4719
        %v4848 = vadd.f32 %v3947, %v4720
        %v4849 = vadd.f32 %v3948, %v4721
        %v4850 = vadd.f32 %v3949, %v4722
        %v4851 = vadd.f32 %v3950, %v4723
        %v4852 = vadd.f32 %v3951, %v4724
        %v4853 = vadd.f32 %v3952, %v4725
        %v4854 = vadd.f32 %v3953, %v4726
        %v4855 = vadd.f32 %v3954, %v4727
        %v4856 = vadd.f32 %v3955, %v4728
        %v4857 = vadd.f32 %v3956, %v4729
        %v4858 = vadd.f32 %v3957, %v4730
        %v4859 = vadd.f32 %v3958, %v4731
        %v4860 = vadd.f32 %v3959, %v4732
        %v4861 = vadd.f32 %v3960, %v4733
        %v4862 = vadd.f32 %v3961, %v4734
        %v4863 = vadd.f32 %v3962, %v4735
        %v4864 = vadd.f32 %v3963, %v4736
        %v4865 = vadd.f32 %v3964, %v4737
        %v4866 = vadd.f32 %v3965, %v4738
        %v4867 = vadd.f32 %v3966, %v4739
        %v4868 = vadd.f32 %v3967, %v4740
        %v4869 = vadd.f32 %v3968, %v4741
        %v4870 = vadd.f32 %v3969, %v4742
        %v4871 = vadd.f32 %v3970, %v4743
        %v4872 = vadd.f32 %v3971, %v4744
        %v4873 = vadd.f32 %v3972, %v4745
        %v4874 = vadd.f32 %v3973, %v4746
        %v4875 = vadd.f32 %v3974, %v4747
        %v4876 = vadd.f32 %v3975, %v4748
        %v4877 = vadd.f32 %v3976, %v4749
        %v4878 = vadd.f32 %v3977, %v4750
        %v4879 = vadd.f32 %v3978, %v4751
        %v4880 = vadd.f32 %v3979, %v4752
        %v4881 = vadd.f32 %v3980, %v4753
        %v4882 = vadd.f32 %v3981, %v4754
        %v4883 = vadd.f32 %v3982, %v4755
        %v4884 = vadd.f32 %v3983, %v4756
        %v4885 = vadd.f32 %v3984, %v4757
        %v4886 = vadd.f32 %v3985, %v4758
        %v4887 = vadd.f32 %v3986, %v4759
        %v4888 = vadd.f32 %v3987, %v4760
        %v4889 = vadd.f32 %v3988, %v4761
        %v4890 = vadd.f32 %v3989, %v4762
        %v4891 = vadd.f32 %v3990, %v4763
        %v4892 = vadd.f32 %v3991, %v4764
        %v4893 = vadd.f32 %v3992, %v4765
        %v4894 = vadd.f32 %v3993, %v4766
        %v4895 = vadd.f32 %v3994, %v4767
        %v4896 = vadd.f32 %v3995, %v4768
        %v4897 = vadd.f32 %v3996, %v4769
        %v4898 = vadd.f32 %v3997, %v4770
        %v4899 = vadd.f32 %v3998, %v4771
        %v4900 = vadd.f32 %v3999, %v4772
        %v4901 = vadd.f32 %v4000, %v4773
        %v4902 = vadd.f32 %v4001, %v4774
        %v4903 = vadd.f32 %v4002, %v4775
        %v4904 = vadd.f32 %v4003, %v4776
        %v4905 = vadd.f32 %v4004, %v4777
        %v4906 = vadd.f32 %v4005, %v4778
        %v4907 = vadd.f32 %v4006, %v4779
        %v4908 = vadd.f32 %v4007, %v4780
        %v4909 = vadd.f32 %v4008, %v4781
        %v4910 = vadd.f32 %v4009, %v4782
        %v4911 = vadd.f32 %v4010, %v4783
        %v4912 = vadd.f32 %v4011, %v4784
        %v4913 = vadd.f32 %v4012, %v4785
        %v4914 = vadd.f32 %v4013, %v4786
        %v4915 = vadd.f32 %v4014, %v4787
        %v4916 = vadd.f32 %v4015, %v4788
        %v4917 = vadd.f32 %v4016, %v4789
        %v4918 = vadd.f32 %v4017, %v4790
        %v4919 = vadd.f32 %v4018, %v4791
        %v4920 = vadd.f32 %v4019, %v4792
        %v4921 = vadd.f32 %v4020, %v4793
        %v4922 = vadd.f32 %v4021, %v4794
        %v4923 = vadd.f32 %v4022, %v4795
        %v4924 = vadd.f32 %v4023, %v4796
        %v4925 = vadd.f32 %v4024, %v4797
        %v4926 = vadd.f32 %v4025, %v4798
        %v4927 = vadd.f32 %v4026, %v4799
        %v4928 = vadd.f32 %v4027, %v4800
        %v4929 = vadd.f32 %v4028, %v4801
        %v4930 = vadd.f32 %v4029, %v4802
        %v4931 = vadd.f32 %v4030, %v4803
        %v4932 = vadd.f32 %v4031, %v4804
        %v4933 = vadd.f32 %v4032, %v4805
        %v4934 = vadd.f32 %v4033, %v4806
        %v4935 = vadd.f32 %v4034, %v4807
        %v4936 = vld [vmem:[%s1 + $0x2] sm:$0x1]
        %4938 = vset.pattern.permute.xlu0 0
        %4939 = vperm.xlu0 %4938, %v3134
        %v4940 = vpop.permute.xlu0 %4939
        %4943 = vset.pattern.permute.xlu0 0
        %4944 = vperm.xlu0 %4943, %v3135
        %v4945 = vpop.permute.xlu0 %4944
        %4948 = vset.pattern.permute.xlu0 0
        %4949 = vperm.xlu0 %4948, %v3136
        %v4950 = vpop.permute.xlu0 %4949
        %4953 = vset.pattern.permute.xlu0 0
        %4954 = vperm.xlu0 %4953, %v3137
        %v4955 = vpop.permute.xlu0 %4954
        %4958 = vset.pattern.permute.xlu0 0
        %4959 = vperm.xlu0 %4958, %v3138
        %v4960 = vpop.permute.xlu0 %4959
        %4963 = vset.pattern.permute.xlu0 0
        %4964 = vperm.xlu0 %4963, %v3139
        %v4965 = vpop.permute.xlu0 %4964
        %4968 = vset.pattern.permute.xlu0 0
        %4969 = vperm.xlu0 %4968, %v3140
        %v4970 = vpop.permute.xlu0 %4969
        %4973 = vset.pattern.permute.xlu0 0
        %4974 = vperm.xlu0 %4973, %v3141
        %v4975 = vpop.permute.xlu0 %4974
        %4978 = vset.pattern.permute.xlu0 0
        %4979 = vperm.xlu0 %4978, %v3142
        %v4980 = vpop.permute.xlu0 %4979
        %4983 = vset.pattern.permute.xlu0 0
        %4984 = vperm.xlu0 %4983, %v3143
        %v4985 = vpop.permute.xlu0 %4984
        %4988 = vset.pattern.permute.xlu0 0
        %4989 = vperm.xlu0 %4988, %v3144
        %v4990 = vpop.permute.xlu0 %4989
        %4993 = vset.pattern.permute.xlu0 0
        %4994 = vperm.xlu0 %4993, %v3145
        %v4995 = vpop.permute.xlu0 %4994
        %4998 = vset.pattern.permute.xlu0 0
        %4999 = vperm.xlu0 %4998, %v3146
        %v5000 = vpop.permute.xlu0 %4999
        %5003 = vset.pattern.permute.xlu0 0
        %5004 = vperm.xlu0 %5003, %v3147
        %v5005 = vpop.permute.xlu0 %5004
        %5008 = vset.pattern.permute.xlu0 0
        %5009 = vperm.xlu0 %5008, %v3148
        %v5010 = vpop.permute.xlu0 %5009
        %5013 = vset.pattern.permute.xlu0 0
        %5014 = vperm.xlu0 %5013, %v3149
        %v5015 = vpop.permute.xlu0 %5014
        %5018 = vset.pattern.permute.xlu0 0
        %5019 = vperm.xlu0 %5018, %v3150
        %v5020 = vpop.permute.xlu0 %5019
        %5023 = vset.pattern.permute.xlu0 0
        %5024 = vperm.xlu0 %5023, %v3151
        %v5025 = vpop.permute.xlu0 %5024
        %5028 = vset.pattern.permute.xlu0 0
        %5029 = vperm.xlu0 %5028, %v3152
        %v5030 = vpop.permute.xlu0 %5029
        %5033 = vset.pattern.permute.xlu0 0
        %5034 = vperm.xlu0 %5033, %v3153
        %v5035 = vpop.permute.xlu0 %5034
        %5038 = vset.pattern.permute.xlu0 0
        %5039 = vperm.xlu0 %5038, %v3154
        %v5040 = vpop.permute.xlu0 %5039
        %5043 = vset.pattern.permute.xlu0 0
        %5044 = vperm.xlu0 %5043, %v3155
        %v5045 = vpop.permute.xlu0 %5044
        %5048 = vset.pattern.permute.xlu0 0
        %5049 = vperm.xlu0 %5048, %v3156
        %v5050 = vpop.permute.xlu0 %5049
        %5053 = vset.pattern.permute.xlu0 0
        %5054 = vperm.xlu0 %5053, %v3157
        %v5055 = vpop.permute.xlu0 %5054
        %5058 = vset.pattern.permute.xlu0 0
        %5059 = vperm.xlu0 %5058, %v3158
        %v5060 = vpop.permute.xlu0 %5059
        %5063 = vset.pattern.permute.xlu0 0
        %5064 = vperm.xlu0 %5063, %v3159
        %v5065 = vpop.permute.xlu0 %5064
        %5068 = vset.pattern.permute.xlu0 0
        %5069 = vperm.xlu0 %5068, %v3160
        %v5070 = vpop.permute.xlu0 %5069
        %5073 = vset.pattern.permute.xlu0 0
        %5074 = vperm.xlu0 %5073, %v3161
        %v5075 = vpop.permute.xlu0 %5074
        %5078 = vset.pattern.permute.xlu0 0
        %5079 = vperm.xlu0 %5078, %v3162
        %v5080 = vpop.permute.xlu0 %5079
        %5083 = vset.pattern.permute.xlu0 0
        %5084 = vperm.xlu0 %5083, %v3163
        %v5085 = vpop.permute.xlu0 %5084
        %5088 = vset.pattern.permute.xlu0 0
        %5089 = vperm.xlu0 %5088, %v3164
        %v5090 = vpop.permute.xlu0 %5089
        %5093 = vset.pattern.permute.xlu0 0
        %5094 = vperm.xlu0 %5093, %v3165
        %v5095 = vpop.permute.xlu0 %5094
        %5098 = vset.pattern.permute.xlu0 0
        %5099 = vperm.xlu0 %5098, %v3166
        %v5100 = vpop.permute.xlu0 %5099
        %5103 = vset.pattern.permute.xlu0 0
        %5104 = vperm.xlu0 %5103, %v3167
        %v5105 = vpop.permute.xlu0 %5104
        %5108 = vset.pattern.permute.xlu0 0
        %5109 = vperm.xlu0 %5108, %v3168
        %v5110 = vpop.permute.xlu0 %5109
        %5113 = vset.pattern.permute.xlu0 0
        %5114 = vperm.xlu0 %5113, %v3169
        %v5115 = vpop.permute.xlu0 %5114
        %5118 = vset.pattern.permute.xlu0 0
        %5119 = vperm.xlu0 %5118, %v3170
        %v5120 = vpop.permute.xlu0 %5119
        %5123 = vset.pattern.permute.xlu0 0
        %5124 = vperm.xlu0 %5123, %v3171
        %v5125 = vpop.permute.xlu0 %5124
        %5128 = vset.pattern.permute.xlu0 0
        %5129 = vperm.xlu0 %5128, %v3172
        %v5130 = vpop.permute.xlu0 %5129
        %5133 = vset.pattern.permute.xlu0 0
        %5134 = vperm.xlu0 %5133, %v3173
        %v5135 = vpop.permute.xlu0 %5134
        %5138 = vset.pattern.permute.xlu0 0
        %5139 = vperm.xlu0 %5138, %v3174
        %v5140 = vpop.permute.xlu0 %5139
        %5143 = vset.pattern.permute.xlu0 0
        %5144 = vperm.xlu0 %5143, %v3175
        %v5145 = vpop.permute.xlu0 %5144
        %5148 = vset.pattern.permute.xlu0 0
        %5149 = vperm.xlu0 %5148, %v3176
        %v5150 = vpop.permute.xlu0 %5149
        %5153 = vset.pattern.permute.xlu0 0
        %5154 = vperm.xlu0 %5153, %v3177
        %v5155 = vpop.permute.xlu0 %5154
        %5158 = vset.pattern.permute.xlu0 0
        %5159 = vperm.xlu0 %5158, %v3178
        %v5160 = vpop.permute.xlu0 %5159
        %5163 = vset.pattern.permute.xlu0 0
        %5164 = vperm.xlu0 %5163, %v3179
        %v5165 = vpop.permute.xlu0 %5164
        %5168 = vset.pattern.permute.xlu0 0
        %5169 = vperm.xlu0 %5168, %v3180
        %v5170 = vpop.permute.xlu0 %5169
        %5173 = vset.pattern.permute.xlu0 0
        %5174 = vperm.xlu0 %5173, %v3181
        %v5175 = vpop.permute.xlu0 %5174
        %5178 = vset.pattern.permute.xlu0 0
        %5179 = vperm.xlu0 %5178, %v3182
        %v5180 = vpop.permute.xlu0 %5179
        %5183 = vset.pattern.permute.xlu0 0
        %5184 = vperm.xlu0 %5183, %v3183
        %v5185 = vpop.permute.xlu0 %5184
        %5188 = vset.pattern.permute.xlu0 0
        %5189 = vperm.xlu0 %5188, %v3184
        %v5190 = vpop.permute.xlu0 %5189
        %5193 = vset.pattern.permute.xlu0 0
        %5194 = vperm.xlu0 %5193, %v3185
        %v5195 = vpop.permute.xlu0 %5194
        %5198 = vset.pattern.permute.xlu0 0
        %5199 = vperm.xlu0 %5198, %v3186
        %v5200 = vpop.permute.xlu0 %5199
        %5203 = vset.pattern.permute.xlu0 0
        %5204 = vperm.xlu0 %5203, %v3187
        %v5205 = vpop.permute.xlu0 %5204
        %5208 = vset.pattern.permute.xlu0 0
        %5209 = vperm.xlu0 %5208, %v3188
        %v5210 = vpop.permute.xlu0 %5209
        %5213 = vset.pattern.permute.xlu0 0
        %5214 = vperm.xlu0 %5213, %v3189
        %v5215 = vpop.permute.xlu0 %5214
        %5218 = vset.pattern.permute.xlu0 0
        %5219 = vperm.xlu0 %5218, %v3190
        %v5220 = vpop.permute.xlu0 %5219
        %5223 = vset.pattern.permute.xlu0 0
        %5224 = vperm.xlu0 %5223, %v3191
        %v5225 = vpop.permute.xlu0 %5224
        %5228 = vset.pattern.permute.xlu0 0
        %5229 = vperm.xlu0 %5228, %v3192
        %v5230 = vpop.permute.xlu0 %5229
        %5233 = vset.pattern.permute.xlu0 0
        %5234 = vperm.xlu0 %5233, %v3193
        %v5235 = vpop.permute.xlu0 %5234
        %5238 = vset.pattern.permute.xlu0 0
        %5239 = vperm.xlu0 %5238, %v3194
        %v5240 = vpop.permute.xlu0 %5239
        %5243 = vset.pattern.permute.xlu0 0
        %5244 = vperm.xlu0 %5243, %v3195
        %v5245 = vpop.permute.xlu0 %5244
        %5248 = vset.pattern.permute.xlu0 0
        %5249 = vperm.xlu0 %5248, %v3196
        %v5250 = vpop.permute.xlu0 %5249
        %5253 = vset.pattern.permute.xlu0 0
        %5254 = vperm.xlu0 %5253, %v3197
        %v5255 = vpop.permute.xlu0 %5254
        %5258 = vset.pattern.permute.xlu0 0
        %5259 = vperm.xlu0 %5258, %v3198
        %v5260 = vpop.permute.xlu0 %5259
        %5263 = vset.pattern.permute.xlu0 0
        %5264 = vperm.xlu0 %5263, %v3199
        %v5265 = vpop.permute.xlu0 %5264
        %5268 = vset.pattern.permute.xlu0 0
        %5269 = vperm.xlu0 %5268, %v3200
        %v5270 = vpop.permute.xlu0 %5269
        %5273 = vset.pattern.permute.xlu0 0
        %5274 = vperm.xlu0 %5273, %v3201
        %v5275 = vpop.permute.xlu0 %5274
        %5278 = vset.pattern.permute.xlu0 0
        %5279 = vperm.xlu0 %5278, %v3202
        %v5280 = vpop.permute.xlu0 %5279
        %5283 = vset.pattern.permute.xlu0 0
        %5284 = vperm.xlu0 %5283, %v3203
        %v5285 = vpop.permute.xlu0 %5284
        %5288 = vset.pattern.permute.xlu0 0
        %5289 = vperm.xlu0 %5288, %v3204
        %v5290 = vpop.permute.xlu0 %5289
        %5293 = vset.pattern.permute.xlu0 0
        %5294 = vperm.xlu0 %5293, %v3205
        %v5295 = vpop.permute.xlu0 %5294
        %5298 = vset.pattern.permute.xlu0 0
        %5299 = vperm.xlu0 %5298, %v3206
        %v5300 = vpop.permute.xlu0 %5299
        %5303 = vset.pattern.permute.xlu0 0
        %5304 = vperm.xlu0 %5303, %v3207
        %v5305 = vpop.permute.xlu0 %5304
        %5308 = vset.pattern.permute.xlu0 0
        %5309 = vperm.xlu0 %5308, %v3208
        %v5310 = vpop.permute.xlu0 %5309
        %5313 = vset.pattern.permute.xlu0 0
        %5314 = vperm.xlu0 %5313, %v3209
        %v5315 = vpop.permute.xlu0 %5314
        %5318 = vset.pattern.permute.xlu0 0
        %5319 = vperm.xlu0 %5318, %v3210
        %v5320 = vpop.permute.xlu0 %5319
        %5323 = vset.pattern.permute.xlu0 0
        %5324 = vperm.xlu0 %5323, %v3211
        %v5325 = vpop.permute.xlu0 %5324
        %5328 = vset.pattern.permute.xlu0 0
        %5329 = vperm.xlu0 %5328, %v3212
        %v5330 = vpop.permute.xlu0 %5329
        %5333 = vset.pattern.permute.xlu0 0
        %5334 = vperm.xlu0 %5333, %v3213
        %v5335 = vpop.permute.xlu0 %5334
        %5338 = vset.pattern.permute.xlu0 0
        %5339 = vperm.xlu0 %5338, %v3214
        %v5340 = vpop.permute.xlu0 %5339
        %5343 = vset.pattern.permute.xlu0 0
        %5344 = vperm.xlu0 %5343, %v3215
        %v5345 = vpop.permute.xlu0 %5344
        %5348 = vset.pattern.permute.xlu0 0
        %5349 = vperm.xlu0 %5348, %v3216
        %v5350 = vpop.permute.xlu0 %5349
        %5353 = vset.pattern.permute.xlu0 0
        %5354 = vperm.xlu0 %5353, %v3217
        %v5355 = vpop.permute.xlu0 %5354
        %5358 = vset.pattern.permute.xlu0 0
        %5359 = vperm.xlu0 %5358, %v3218
        %v5360 = vpop.permute.xlu0 %5359
        %5363 = vset.pattern.permute.xlu0 0
        %5364 = vperm.xlu0 %5363, %v3219
        %v5365 = vpop.permute.xlu0 %5364
        %5368 = vset.pattern.permute.xlu0 0
        %5369 = vperm.xlu0 %5368, %v3220
        %v5370 = vpop.permute.xlu0 %5369
        %5373 = vset.pattern.permute.xlu0 0
        %5374 = vperm.xlu0 %5373, %v3221
        %v5375 = vpop.permute.xlu0 %5374
        %5378 = vset.pattern.permute.xlu0 0
        %5379 = vperm.xlu0 %5378, %v3222
        %v5380 = vpop.permute.xlu0 %5379
        %5383 = vset.pattern.permute.xlu0 0
        %5384 = vperm.xlu0 %5383, %v3223
        %v5385 = vpop.permute.xlu0 %5384
        %5388 = vset.pattern.permute.xlu0 0
        %5389 = vperm.xlu0 %5388, %v3224
        %v5390 = vpop.permute.xlu0 %5389
        %5393 = vset.pattern.permute.xlu0 0
        %5394 = vperm.xlu0 %5393, %v3225
        %v5395 = vpop.permute.xlu0 %5394
        %5398 = vset.pattern.permute.xlu0 0
        %5399 = vperm.xlu0 %5398, %v3226
        %v5400 = vpop.permute.xlu0 %5399
        %5403 = vset.pattern.permute.xlu0 0
        %5404 = vperm.xlu0 %5403, %v3227
        %v5405 = vpop.permute.xlu0 %5404
        %5408 = vset.pattern.permute.xlu0 0
        %5409 = vperm.xlu0 %5408, %v3228
        %v5410 = vpop.permute.xlu0 %5409
        %5413 = vset.pattern.permute.xlu0 0
        %5414 = vperm.xlu0 %5413, %v3229
        %v5415 = vpop.permute.xlu0 %5414
        %5418 = vset.pattern.permute.xlu0 0
        %5419 = vperm.xlu0 %5418, %v3230
        %v5420 = vpop.permute.xlu0 %5419
        %5423 = vset.pattern.permute.xlu0 0
        %5424 = vperm.xlu0 %5423, %v3231
        %v5425 = vpop.permute.xlu0 %5424
        %5428 = vset.pattern.permute.xlu0 0
        %5429 = vperm.xlu0 %5428, %v3232
        %v5430 = vpop.permute.xlu0 %5429
        %5433 = vset.pattern.permute.xlu0 0
        %5434 = vperm.xlu0 %5433, %v3233
        %v5435 = vpop.permute.xlu0 %5434
        %5438 = vset.pattern.permute.xlu0 0
        %5439 = vperm.xlu0 %5438, %v3234
        %v5440 = vpop.permute.xlu0 %5439
        %5443 = vset.pattern.permute.xlu0 0
        %5444 = vperm.xlu0 %5443, %v3235
        %v5445 = vpop.permute.xlu0 %5444
        %5448 = vset.pattern.permute.xlu0 0
        %5449 = vperm.xlu0 %5448, %v3236
        %v5450 = vpop.permute.xlu0 %5449
        %5453 = vset.pattern.permute.xlu0 0
        %5454 = vperm.xlu0 %5453, %v3237
        %v5455 = vpop.permute.xlu0 %5454
        %5458 = vset.pattern.permute.xlu0 0
        %5459 = vperm.xlu0 %5458, %v3238
        %v5460 = vpop.permute.xlu0 %5459
        %5463 = vset.pattern.permute.xlu0 0
        %5464 = vperm.xlu0 %5463, %v3239
        %v5465 = vpop.permute.xlu0 %5464
        %5468 = vset.pattern.permute.xlu0 0
        %5469 = vperm.xlu0 %5468, %v3240
        %v5470 = vpop.permute.xlu0 %5469
        %5473 = vset.pattern.permute.xlu0 0
        %5474 = vperm.xlu0 %5473, %v3241
        %v5475 = vpop.permute.xlu0 %5474
        %5478 = vset.pattern.permute.xlu0 0
        %5479 = vperm.xlu0 %5478, %v3242
        %v5480 = vpop.permute.xlu0 %5479
        %5483 = vset.pattern.permute.xlu0 0
        %5484 = vperm.xlu0 %5483, %v3243
        %v5485 = vpop.permute.xlu0 %5484
        %5488 = vset.pattern.permute.xlu0 0
        %5489 = vperm.xlu0 %5488, %v3244
        %v5490 = vpop.permute.xlu0 %5489
        %5493 = vset.pattern.permute.xlu0 0
        %5494 = vperm.xlu0 %5493, %v3245
        %v5495 = vpop.permute.xlu0 %5494
        %5498 = vset.pattern.permute.xlu0 0
        %5499 = vperm.xlu0 %5498, %v3246
        %v5500 = vpop.permute.xlu0 %5499
        %5503 = vset.pattern.permute.xlu0 0
        %5504 = vperm.xlu0 %5503, %v3247
        %v5505 = vpop.permute.xlu0 %5504
        %5508 = vset.pattern.permute.xlu0 0
        %5509 = vperm.xlu0 %5508, %v3248
        %v5510 = vpop.permute.xlu0 %5509
        %5513 = vset.pattern.permute.xlu0 0
        %5514 = vperm.xlu0 %5513, %v3249
        %v5515 = vpop.permute.xlu0 %5514
        %5518 = vset.pattern.permute.xlu0 0
        %5519 = vperm.xlu0 %5518, %v3250
        %v5520 = vpop.permute.xlu0 %5519
        %5523 = vset.pattern.permute.xlu0 0
        %5524 = vperm.xlu0 %5523, %v3251
        %v5525 = vpop.permute.xlu0 %5524
        %5528 = vset.pattern.permute.xlu0 0
        %5529 = vperm.xlu0 %5528, %v3252
        %v5530 = vpop.permute.xlu0 %5529
        %5533 = vset.pattern.permute.xlu0 0
        %5534 = vperm.xlu0 %5533, %v3253
        %v5535 = vpop.permute.xlu0 %5534
        %5538 = vset.pattern.permute.xlu0 0
        %5539 = vperm.xlu0 %5538, %v3254
        %v5540 = vpop.permute.xlu0 %5539
        %5543 = vset.pattern.permute.xlu0 0
        %5544 = vperm.xlu0 %5543, %v3255
        %v5545 = vpop.permute.xlu0 %5544
        %5548 = vset.pattern.permute.xlu0 0
        %5549 = vperm.xlu0 %5548, %v3256
        %v5550 = vpop.permute.xlu0 %5549
        %5553 = vset.pattern.permute.xlu0 0
        %5554 = vperm.xlu0 %5553, %v3257
        %v5555 = vpop.permute.xlu0 %5554
        %5558 = vset.pattern.permute.xlu0 0
        %5559 = vperm.xlu0 %5558, %v3258
        %v5560 = vpop.permute.xlu0 %5559
        %5563 = vset.pattern.permute.xlu0 0
        %5564 = vperm.xlu0 %5563, %v3259
        %v5565 = vpop.permute.xlu0 %5564
        %5568 = vset.pattern.permute.xlu0 0
        %5569 = vperm.xlu0 %5568, %v3260
        %v5570 = vpop.permute.xlu0 %5569
        %5573 = vset.pattern.permute.xlu0 0
        %5574 = vperm.xlu0 %5573, %v3261
        %v5575 = vpop.permute.xlu0 %5574
        %v5577 = vlaneseq
        %v5578 = vshrl.u32 %v5577, 7
        %v5579 = vsub.s32 0, %v5578
        %v5580 = vrot.slane %v4936, %v5579
        %v5581 = vmul.f32 %v4940, %v5580
        %v5582 = vmul.f32 %v4945, %v5580
        %v5583 = vmul.f32 %v4950, %v5580
        %v5584 = vmul.f32 %v4955, %v5580
        %v5585 = vmul.f32 %v4960, %v5580
        %v5586 = vmul.f32 %v4965, %v5580
        %v5587 = vmul.f32 %v4970, %v5580
        %v5588 = vmul.f32 %v4975, %v5580
        %v5589 = vmul.f32 %v4980, %v5580
        %v5590 = vmul.f32 %v4985, %v5580
        %v5591 = vmul.f32 %v4990, %v5580
        %v5592 = vmul.f32 %v4995, %v5580
        %v5593 = vmul.f32 %v5000, %v5580
        %v5594 = vmul.f32 %v5005, %v5580
        %v5595 = vmul.f32 %v5010, %v5580
        %v5596 = vmul.f32 %v5015, %v5580
        %v5597 = vmul.f32 %v5020, %v5580
        %v5598 = vmul.f32 %v5025, %v5580
        %v5599 = vmul.f32 %v5030, %v5580
        %v5600 = vmul.f32 %v5035, %v5580
        %v5601 = vmul.f32 %v5040, %v5580
        %v5602 = vmul.f32 %v5045, %v5580
        %v5603 = vmul.f32 %v5050, %v5580
        %v5604 = vmul.f32 %v5055, %v5580
        %v5605 = vmul.f32 %v5060, %v5580
        %v5606 = vmul.f32 %v5065, %v5580
        %v5607 = vmul.f32 %v5070, %v5580
        %v5608 = vmul.f32 %v5075, %v5580
        %v5609 = vmul.f32 %v5080, %v5580
        %v5610 = vmul.f32 %v5085, %v5580
        %v5611 = vmul.f32 %v5090, %v5580
        %v5612 = vmul.f32 %v5095, %v5580
        %v5613 = vmul.f32 %v5100, %v5580
        %v5614 = vmul.f32 %v5105, %v5580
        %v5615 = vmul.f32 %v5110, %v5580
        %v5616 = vmul.f32 %v5115, %v5580
        %v5617 = vmul.f32 %v5120, %v5580
        %v5618 = vmul.f32 %v5125, %v5580
        %v5619 = vmul.f32 %v5130, %v5580
        %v5620 = vmul.f32 %v5135, %v5580
        %v5621 = vmul.f32 %v5140, %v5580
        %v5622 = vmul.f32 %v5145, %v5580
        %v5623 = vmul.f32 %v5150, %v5580
        %v5624 = vmul.f32 %v5155, %v5580
        %v5625 = vmul.f32 %v5160, %v5580
        %v5626 = vmul.f32 %v5165, %v5580
        %v5627 = vmul.f32 %v5170, %v5580
        %v5628 = vmul.f32 %v5175, %v5580
        %v5629 = vmul.f32 %v5180, %v5580
        %v5630 = vmul.f32 %v5185, %v5580
        %v5631 = vmul.f32 %v5190, %v5580
        %v5632 = vmul.f32 %v5195, %v5580
        %v5633 = vmul.f32 %v5200, %v5580
        %v5634 = vmul.f32 %v5205, %v5580
        %v5635 = vmul.f32 %v5210, %v5580
        %v5636 = vmul.f32 %v5215, %v5580
        %v5637 = vmul.f32 %v5220, %v5580
        %v5638 = vmul.f32 %v5225, %v5580
        %v5639 = vmul.f32 %v5230, %v5580
        %v5640 = vmul.f32 %v5235, %v5580
        %v5641 = vmul.f32 %v5240, %v5580
        %v5642 = vmul.f32 %v5245, %v5580
        %v5643 = vmul.f32 %v5250, %v5580
        %v5644 = vmul.f32 %v5255, %v5580
        %v5645 = vmul.f32 %v5260, %v5580
        %v5646 = vmul.f32 %v5265, %v5580
        %v5647 = vmul.f32 %v5270, %v5580
        %v5648 = vmul.f32 %v5275, %v5580
        %v5649 = vmul.f32 %v5280, %v5580
        %v5650 = vmul.f32 %v5285, %v5580
        %v5651 = vmul.f32 %v5290, %v5580
        %v5652 = vmul.f32 %v5295, %v5580
        %v5653 = vmul.f32 %v5300, %v5580
        %v5654 = vmul.f32 %v5305, %v5580
        %v5655 = vmul.f32 %v5310, %v5580
        %v5656 = vmul.f32 %v5315, %v5580
        %v5657 = vmul.f32 %v5320, %v5580
        %v5658 = vmul.f32 %v5325, %v5580
        %v5659 = vmul.f32 %v5330, %v5580
        %v5660 = vmul.f32 %v5335, %v5580
        %v5661 = vmul.f32 %v5340, %v5580
        %v5662 = vmul.f32 %v5345, %v5580
        %v5663 = vmul.f32 %v5350, %v5580
        %v5664 = vmul.f32 %v5355, %v5580
        %v5665 = vmul.f32 %v5360, %v5580
        %v5666 = vmul.f32 %v5365, %v5580
        %v5667 = vmul.f32 %v5370, %v5580
        %v5668 = vmul.f32 %v5375, %v5580
        %v5669 = vmul.f32 %v5380, %v5580
        %v5670 = vmul.f32 %v5385, %v5580
        %v5671 = vmul.f32 %v5390, %v5580
        %v5672 = vmul.f32 %v5395, %v5580
        %v5673 = vmul.f32 %v5400, %v5580
        %v5674 = vmul.f32 %v5405, %v5580
        %v5675 = vmul.f32 %v5410, %v5580
        %v5676 = vmul.f32 %v5415, %v5580
        %v5677 = vmul.f32 %v5420, %v5580
        %v5678 = vmul.f32 %v5425, %v5580
        %v5679 = vmul.f32 %v5430, %v5580
        %v5680 = vmul.f32 %v5435, %v5580
        %v5681 = vmul.f32 %v5440, %v5580
        %v5682 = vmul.f32 %v5445, %v5580
        %v5683 = vmul.f32 %v5450, %v5580
        %v5684 = vmul.f32 %v5455, %v5580
        %v5685 = vmul.f32 %v5460, %v5580
        %v5686 = vmul.f32 %v5465, %v5580
        %v5687 = vmul.f32 %v5470, %v5580
        %v5688 = vmul.f32 %v5475, %v5580
        %v5689 = vmul.f32 %v5480, %v5580
        %v5690 = vmul.f32 %v5485, %v5580
        %v5691 = vmul.f32 %v5490, %v5580
        %v5692 = vmul.f32 %v5495, %v5580
        %v5693 = vmul.f32 %v5500, %v5580
        %v5694 = vmul.f32 %v5505, %v5580
        %v5695 = vmul.f32 %v5510, %v5580
        %v5696 = vmul.f32 %v5515, %v5580
        %v5697 = vmul.f32 %v5520, %v5580
        %v5698 = vmul.f32 %v5525, %v5580
        %v5699 = vmul.f32 %v5530, %v5580
        %v5700 = vmul.f32 %v5535, %v5580
        %v5701 = vmul.f32 %v5540, %v5580
        %v5702 = vmul.f32 %v5545, %v5580
        %v5703 = vmul.f32 %v5550, %v5580
        %v5704 = vmul.f32 %v5555, %v5580
        %v5705 = vmul.f32 %v5560, %v5580
        %v5706 = vmul.f32 %v5565, %v5580
        %v5707 = vmul.f32 %v5570, %v5580
        %v5708 = vmul.f32 %v5575, %v5580
        %v5709 = vadd.f32 %v4808, %v5581
        %v5710 = vadd.f32 %v4809, %v5582
        %v5711 = vadd.f32 %v4810, %v5583
        %v5712 = vadd.f32 %v4811, %v5584
        %v5713 = vadd.f32 %v4812, %v5585
        %v5714 = vadd.f32 %v4813, %v5586
        %v5715 = vadd.f32 %v4814, %v5587
        %v5716 = vadd.f32 %v4815, %v5588
        %v5717 = vadd.f32 %v4816, %v5589
        %v5718 = vadd.f32 %v4817, %v5590
        %v5719 = vadd.f32 %v4818, %v5591
        %v5720 = vadd.f32 %v4819, %v5592
        %v5721 = vadd.f32 %v4820, %v5593
        %v5722 = vadd.f32 %v4821, %v5594
        %v5723 = vadd.f32 %v4822, %v5595
        %v5724 = vadd.f32 %v4823, %v5596
        %v5725 = vadd.f32 %v4824, %v5597
        %v5726 = vadd.f32 %v4825, %v5598
        %v5727 = vadd.f32 %v4826, %v5599
        %v5728 = vadd.f32 %v4827, %v5600
        %v5729 = vadd.f32 %v4828, %v5601
        %v5730 = vadd.f32 %v4829, %v5602
        %v5731 = vadd.f32 %v4830, %v5603
        %v5732 = vadd.f32 %v4831, %v5604
        %v5733 = vadd.f32 %v4832, %v5605
        %v5734 = vadd.f32 %v4833, %v5606
        %v5735 = vadd.f32 %v4834, %v5607
        %v5736 = vadd.f32 %v4835, %v5608
        %v5737 = vadd.f32 %v4836, %v5609
        %v5738 = vadd.f32 %v4837, %v5610
        %v5739 = vadd.f32 %v4838, %v5611
        %v5740 = vadd.f32 %v4839, %v5612
        %v5741 = vadd.f32 %v4840, %v5613
        %v5742 = vadd.f32 %v4841, %v5614
        %v5743 = vadd.f32 %v4842, %v5615
        %v5744 = vadd.f32 %v4843, %v5616
        %v5745 = vadd.f32 %v4844, %v5617
        %v5746 = vadd.f32 %v4845, %v5618
        %v5747 = vadd.f32 %v4846, %v5619
        %v5748 = vadd.f32 %v4847, %v5620
        %v5749 = vadd.f32 %v4848, %v5621
        %v5750 = vadd.f32 %v4849, %v5622
        %v5751 = vadd.f32 %v4850, %v5623
        %v5752 = vadd.f32 %v4851, %v5624
        %v5753 = vadd.f32 %v4852, %v5625
        %v5754 = vadd.f32 %v4853, %v5626
        %v5755 = vadd.f32 %v4854, %v5627
        %v5756 = vadd.f32 %v4855, %v5628
        %v5757 = vadd.f32 %v4856, %v5629
        %v5758 = vadd.f32 %v4857, %v5630
        %v5759 = vadd.f32 %v4858, %v5631
        %v5760 = vadd.f32 %v4859, %v5632
        %v5761 = vadd.f32 %v4860, %v5633
        %v5762 = vadd.f32 %v4861, %v5634
        %v5763 = vadd.f32 %v4862, %v5635
        %v5764 = vadd.f32 %v4863, %v5636
        %v5765 = vadd.f32 %v4864, %v5637
        %v5766 = vadd.f32 %v4865, %v5638
        %v5767 = vadd.f32 %v4866, %v5639
        %v5768 = vadd.f32 %v4867, %v5640
        %v5769 = vadd.f32 %v4868, %v5641
        %v5770 = vadd.f32 %v4869, %v5642
        %v5771 = vadd.f32 %v4870, %v5643
        %v5772 = vadd.f32 %v4871, %v5644
        %v5773 = vadd.f32 %v4872, %v5645
        %v5774 = vadd.f32 %v4873, %v5646
        %v5775 = vadd.f32 %v4874, %v5647
        %v5776 = vadd.f32 %v4875, %v5648
        %v5777 = vadd.f32 %v4876, %v5649
        %v5778 = vadd.f32 %v4877, %v5650
        %v5779 = vadd.f32 %v4878, %v5651
        %v5780 = vadd.f32 %v4879, %v5652
        %v5781 = vadd.f32 %v4880, %v5653
        %v5782 = vadd.f32 %v4881, %v5654
        %v5783 = vadd.f32 %v4882, %v5655
        %v5784 = vadd.f32 %v4883, %v5656
        %v5785 = vadd.f32 %v4884, %v5657
        %v5786 = vadd.f32 %v4885, %v5658
        %v5787 = vadd.f32 %v4886, %v5659
        %v5788 = vadd.f32 %v4887, %v5660
        %v5789 = vadd.f32 %v4888, %v5661
        %v5790 = vadd.f32 %v4889, %v5662
        %v5791 = vadd.f32 %v4890, %v5663
        %v5792 = vadd.f32 %v4891, %v5664
        %v5793 = vadd.f32 %v4892, %v5665
        %v5794 = vadd.f32 %v4893, %v5666
        %v5795 = vadd.f32 %v4894, %v5667
        %v5796 = vadd.f32 %v4895, %v5668
        %v5797 = vadd.f32 %v4896, %v5669
        %v5798 = vadd.f32 %v4897, %v5670
        %v5799 = vadd.f32 %v4898, %v5671
        %v5800 = vadd.f32 %v4899, %v5672
        %v5801 = vadd.f32 %v4900, %v5673
        %v5802 = vadd.f32 %v4901, %v5674
        %v5803 = vadd.f32 %v4902, %v5675
        %v5804 = vadd.f32 %v4903, %v5676
        %v5805 = vadd.f32 %v4904, %v5677
        %v5806 = vadd.f32 %v4905, %v5678
        %v5807 = vadd.f32 %v4906, %v5679
        %v5808 = vadd.f32 %v4907, %v5680
        %v5809 = vadd.f32 %v4908, %v5681
        %v5810 = vadd.f32 %v4909, %v5682
        %v5811 = vadd.f32 %v4910, %v5683
        %v5812 = vadd.f32 %v4911, %v5684
        %v5813 = vadd.f32 %v4912, %v5685
        %v5814 = vadd.f32 %v4913, %v5686
        %v5815 = vadd.f32 %v4914, %v5687
        %v5816 = vadd.f32 %v4915, %v5688
        %v5817 = vadd.f32 %v4916, %v5689
        %v5818 = vadd.f32 %v4917, %v5690
        %v5819 = vadd.f32 %v4918, %v5691
        %v5820 = vadd.f32 %v4919, %v5692
        %v5821 = vadd.f32 %v4920, %v5693
        %v5822 = vadd.f32 %v4921, %v5694
        %v5823 = vadd.f32 %v4922, %v5695
        %v5824 = vadd.f32 %v4923, %v5696
        %v5825 = vadd.f32 %v4924, %v5697
        %v5826 = vadd.f32 %v4925, %v5698
        %v5827 = vadd.f32 %v4926, %v5699
        %v5828 = vadd.f32 %v4927, %v5700
        %v5829 = vadd.f32 %v4928, %v5701
        %v5830 = vadd.f32 %v4929, %v5702
        %v5831 = vadd.f32 %v4930, %v5703
        %v5832 = vadd.f32 %v4931, %v5704
        %v5833 = vadd.f32 %v4932, %v5705
        %v5834 = vadd.f32 %v4933, %v5706
        %v5835 = vadd.f32 %v4934, %v5707
        %v5836 = vadd.f32 %v4935, %v5708
        %v5837 = vld [vmem:[%s2] sm:$0x1]
        %v5839 = vlaneseq
        %v5840 = vshrl.u32 %v5839, 7
        %v5841 = vsub.s32 0, %v5840
        %v5842 = vrot.slane %v5837, %v5841
        %v5844 = vmul.f32 %v5709, %v5842
        %v5845 = vmul.f32 %v5710, %v5842
        %v5846 = vmul.f32 %v5711, %v5842
        %v5847 = vmul.f32 %v5712, %v5842
        %v5848 = vmul.f32 %v5713, %v5842
        %v5849 = vmul.f32 %v5714, %v5842
        %v5850 = vmul.f32 %v5715, %v5842
        %v5851 = vmul.f32 %v5716, %v5842
        %v5852 = vmul.f32 %v5717, %v5842
        %v5853 = vmul.f32 %v5718, %v5842
        %v5854 = vmul.f32 %v5719, %v5842
        %v5855 = vmul.f32 %v5720, %v5842
        %v5856 = vmul.f32 %v5721, %v5842
        %v5857 = vmul.f32 %v5722, %v5842
        %v5858 = vmul.f32 %v5723, %v5842
        %v5859 = vmul.f32 %v5724, %v5842
        %v5860 = vmul.f32 %v5725, %v5842
        %v5861 = vmul.f32 %v5726, %v5842
        %v5862 = vmul.f32 %v5727, %v5842
        %v5863 = vmul.f32 %v5728, %v5842
        %v5864 = vmul.f32 %v5729, %v5842
        %v5865 = vmul.f32 %v5730, %v5842
        %v5866 = vmul.f32 %v5731, %v5842
        %v5867 = vmul.f32 %v5732, %v5842
        %v5868 = vmul.f32 %v5733, %v5842
        %v5869 = vmul.f32 %v5734, %v5842
        %v5870 = vmul.f32 %v5735, %v5842
        %v5871 = vmul.f32 %v5736, %v5842
        %v5872 = vmul.f32 %v5737, %v5842
        %v5873 = vmul.f32 %v5738, %v5842
        %v5874 = vmul.f32 %v5739, %v5842
        %v5875 = vmul.f32 %v5740, %v5842
        %v5876 = vmul.f32 %v5741, %v5842
        %v5877 = vmul.f32 %v5742, %v5842
        %v5878 = vmul.f32 %v5743, %v5842
        %v5879 = vmul.f32 %v5744, %v5842
        %v5880 = vmul.f32 %v5745, %v5842
        %v5881 = vmul.f32 %v5746, %v5842
        %v5882 = vmul.f32 %v5747, %v5842
        %v5883 = vmul.f32 %v5748, %v5842
        %v5884 = vmul.f32 %v5749, %v5842
        %v5885 = vmul.f32 %v5750, %v5842
        %v5886 = vmul.f32 %v5751, %v5842
        %v5887 = vmul.f32 %v5752, %v5842
        %v5888 = vmul.f32 %v5753, %v5842
        %v5889 = vmul.f32 %v5754, %v5842
        %v5890 = vmul.f32 %v5755, %v5842
        %v5891 = vmul.f32 %v5756, %v5842
        %v5892 = vmul.f32 %v5757, %v5842
        %v5893 = vmul.f32 %v5758, %v5842
        %v5894 = vmul.f32 %v5759, %v5842
        %v5895 = vmul.f32 %v5760, %v5842
        %v5896 = vmul.f32 %v5761, %v5842
        %v5897 = vmul.f32 %v5762, %v5842
        %v5898 = vmul.f32 %v5763, %v5842
        %v5899 = vmul.f32 %v5764, %v5842
        %v5900 = vmul.f32 %v5765, %v5842
        %v5901 = vmul.f32 %v5766, %v5842
        %v5902 = vmul.f32 %v5767, %v5842
        %v5903 = vmul.f32 %v5768, %v5842
        %v5904 = vmul.f32 %v5769, %v5842
        %v5905 = vmul.f32 %v5770, %v5842
        %v5906 = vmul.f32 %v5771, %v5842
        %v5907 = vmul.f32 %v5772, %v5842
        %v5908 = vmul.f32 %v5773, %v5842
        %v5909 = vmul.f32 %v5774, %v5842
        %v5910 = vmul.f32 %v5775, %v5842
        %v5911 = vmul.f32 %v5776, %v5842
        %v5912 = vmul.f32 %v5777, %v5842
        %v5913 = vmul.f32 %v5778, %v5842
        %v5914 = vmul.f32 %v5779, %v5842
        %v5915 = vmul.f32 %v5780, %v5842
        %v5916 = vmul.f32 %v5781, %v5842
        %v5917 = vmul.f32 %v5782, %v5842
        %v5918 = vmul.f32 %v5783, %v5842
        %v5919 = vmul.f32 %v5784, %v5842
        %v5920 = vmul.f32 %v5785, %v5842
        %v5921 = vmul.f32 %v5786, %v5842
        %v5922 = vmul.f32 %v5787, %v5842
        %v5923 = vmul.f32 %v5788, %v5842
        %v5924 = vmul.f32 %v5789, %v5842
        %v5925 = vmul.f32 %v5790, %v5842
        %v5926 = vmul.f32 %v5791, %v5842
        %v5927 = vmul.f32 %v5792, %v5842
        %v5928 = vmul.f32 %v5793, %v5842
        %v5929 = vmul.f32 %v5794, %v5842
        %v5930 = vmul.f32 %v5795, %v5842
        %v5931 = vmul.f32 %v5796, %v5842
        %v5932 = vmul.f32 %v5797, %v5842
        %v5933 = vmul.f32 %v5798, %v5842
        %v5934 = vmul.f32 %v5799, %v5842
        %v5935 = vmul.f32 %v5800, %v5842
        %v5936 = vmul.f32 %v5801, %v5842
        %v5937 = vmul.f32 %v5802, %v5842
        %v5938 = vmul.f32 %v5803, %v5842
        %v5939 = vmul.f32 %v5804, %v5842
        %v5940 = vmul.f32 %v5805, %v5842
        %v5941 = vmul.f32 %v5806, %v5842
        %v5942 = vmul.f32 %v5807, %v5842
        %v5943 = vmul.f32 %v5808, %v5842
        %v5944 = vmul.f32 %v5809, %v5842
        %v5945 = vmul.f32 %v5810, %v5842
        %v5946 = vmul.f32 %v5811, %v5842
        %v5947 = vmul.f32 %v5812, %v5842
        %v5948 = vmul.f32 %v5813, %v5842
        %v5949 = vmul.f32 %v5814, %v5842
        %v5950 = vmul.f32 %v5815, %v5842
        %v5951 = vmul.f32 %v5816, %v5842
        %v5952 = vmul.f32 %v5817, %v5842
        %v5953 = vmul.f32 %v5818, %v5842
        %v5954 = vmul.f32 %v5819, %v5842
        %v5955 = vmul.f32 %v5820, %v5842
        %v5956 = vmul.f32 %v5821, %v5842
        %v5957 = vmul.f32 %v5822, %v5842
        %v5958 = vmul.f32 %v5823, %v5842
        %v5959 = vmul.f32 %v5824, %v5842
        %v5960 = vmul.f32 %v5825, %v5842
        %v5961 = vmul.f32 %v5826, %v5842
        %v5962 = vmul.f32 %v5827, %v5842
        %v5963 = vmul.f32 %v5828, %v5842
        %v5964 = vmul.f32 %v5829, %v5842
        %v5965 = vmul.f32 %v5830, %v5842
        %v5966 = vmul.f32 %v5831, %v5842
        %v5967 = vmul.f32 %v5832, %v5842
        %v5968 = vmul.f32 %v5833, %v5842
        %v5969 = vmul.f32 %v5834, %v5842
        %v5970 = vmul.f32 %v5835, %v5842
        %v5971 = vmul.f32 %v5836, %v5842
        %v5972 = vld [vmem:[%s3] sm:$0x1]
        %v5974 = vlaneseq
        %v5975 = vshrl.u32 %v5974, 7
        %v5976 = vsub.s32 0, %v5975
        %v5977 = vrot.slane %v5972, %v5976
        %v5979 = vadd.f32 %v5844, %v5977
        %v5980 = vadd.f32 %v5845, %v5977
        %v5981 = vadd.f32 %v5846, %v5977
        %v5982 = vadd.f32 %v5847, %v5977
        %v5983 = vadd.f32 %v5848, %v5977
        %v5984 = vadd.f32 %v5849, %v5977
        %v5985 = vadd.f32 %v5850, %v5977
        %v5986 = vadd.f32 %v5851, %v5977
        %v5987 = vadd.f32 %v5852, %v5977
        %v5988 = vadd.f32 %v5853, %v5977
        %v5989 = vadd.f32 %v5854, %v5977
        %v5990 = vadd.f32 %v5855, %v5977
        %v5991 = vadd.f32 %v5856, %v5977
        %v5992 = vadd.f32 %v5857, %v5977
        %v5993 = vadd.f32 %v5858, %v5977
        %v5994 = vadd.f32 %v5859, %v5977
        %v5995 = vadd.f32 %v5860, %v5977
        %v5996 = vadd.f32 %v5861, %v5977
        %v5997 = vadd.f32 %v5862, %v5977
        %v5998 = vadd.f32 %v5863, %v5977
        %v5999 = vadd.f32 %v5864, %v5977
        %v6000 = vadd.f32 %v5865, %v5977
        %v6001 = vadd.f32 %v5866, %v5977
        %v6002 = vadd.f32 %v5867, %v5977
        %v6003 = vadd.f32 %v5868, %v5977
        %v6004 = vadd.f32 %v5869, %v5977
        %v6005 = vadd.f32 %v5870, %v5977
        %v6006 = vadd.f32 %v5871, %v5977
        %v6007 = vadd.f32 %v5872, %v5977
        %v6008 = vadd.f32 %v5873, %v5977
        %v6009 = vadd.f32 %v5874, %v5977
        %v6010 = vadd.f32 %v5875, %v5977
        %v6011 = vadd.f32 %v5876, %v5977
        %v6012 = vadd.f32 %v5877, %v5977
        %v6013 = vadd.f32 %v5878, %v5977
        %v6014 = vadd.f32 %v5879, %v5977
        %v6015 = vadd.f32 %v5880, %v5977
        %v6016 = vadd.f32 %v5881, %v5977
        %v6017 = vadd.f32 %v5882, %v5977
        %v6018 = vadd.f32 %v5883, %v5977
        %v6019 = vadd.f32 %v5884, %v5977
        %v6020 = vadd.f32 %v5885, %v5977
        %v6021 = vadd.f32 %v5886, %v5977
        %v6022 = vadd.f32 %v5887, %v5977
        %v6023 = vadd.f32 %v5888, %v5977
        %v6024 = vadd.f32 %v5889, %v5977
        %v6025 = vadd.f32 %v5890, %v5977
        %v6026 = vadd.f32 %v5891, %v5977
        %v6027 = vadd.f32 %v5892, %v5977
        %v6028 = vadd.f32 %v5893, %v5977
        %v6029 = vadd.f32 %v5894, %v5977
        %v6030 = vadd.f32 %v5895, %v5977
        %v6031 = vadd.f32 %v5896, %v5977
        %v6032 = vadd.f32 %v5897, %v5977
        %v6033 = vadd.f32 %v5898, %v5977
        %v6034 = vadd.f32 %v5899, %v5977
        %v6035 = vadd.f32 %v5900, %v5977
        %v6036 = vadd.f32 %v5901, %v5977
        %v6037 = vadd.f32 %v5902, %v5977
        %v6038 = vadd.f32 %v5903, %v5977
        %v6039 = vadd.f32 %v5904, %v5977
        %v6040 = vadd.f32 %v5905, %v5977
        %v6041 = vadd.f32 %v5906, %v5977
        %v6042 = vadd.f32 %v5907, %v5977
        %v6043 = vadd.f32 %v5908, %v5977
        %v6044 = vadd.f32 %v5909, %v5977
        %v6045 = vadd.f32 %v5910, %v5977
        %v6046 = vadd.f32 %v5911, %v5977
        %v6047 = vadd.f32 %v5912, %v5977
        %v6048 = vadd.f32 %v5913, %v5977
        %v6049 = vadd.f32 %v5914, %v5977
        %v6050 = vadd.f32 %v5915, %v5977
        %v6051 = vadd.f32 %v5916, %v5977
        %v6052 = vadd.f32 %v5917, %v5977
        %v6053 = vadd.f32 %v5918, %v5977
        %v6054 = vadd.f32 %v5919, %v5977
        %v6055 = vadd.f32 %v5920, %v5977
        %v6056 = vadd.f32 %v5921, %v5977
        %v6057 = vadd.f32 %v5922, %v5977
        %v6058 = vadd.f32 %v5923, %v5977
        %v6059 = vadd.f32 %v5924, %v5977
        %v6060 = vadd.f32 %v5925, %v5977
        %v6061 = vadd.f32 %v5926, %v5977
        %v6062 = vadd.f32 %v5927, %v5977
        %v6063 = vadd.f32 %v5928, %v5977
        %v6064 = vadd.f32 %v5929, %v5977
        %v6065 = vadd.f32 %v5930, %v5977
        %v6066 = vadd.f32 %v5931, %v5977
        %v6067 = vadd.f32 %v5932, %v5977
        %v6068 = vadd.f32 %v5933, %v5977
        %v6069 = vadd.f32 %v5934, %v5977
        %v6070 = vadd.f32 %v5935, %v5977
        %v6071 = vadd.f32 %v5936, %v5977
        %v6072 = vadd.f32 %v5937, %v5977
        %v6073 = vadd.f32 %v5938, %v5977
        %v6074 = vadd.f32 %v5939, %v5977
        %v6075 = vadd.f32 %v5940, %v5977
        %v6076 = vadd.f32 %v5941, %v5977
        %v6077 = vadd.f32 %v5942, %v5977
        %v6078 = vadd.f32 %v5943, %v5977
        %v6079 = vadd.f32 %v5944, %v5977
        %v6080 = vadd.f32 %v5945, %v5977
        %v6081 = vadd.f32 %v5946, %v5977
        %v6082 = vadd.f32 %v5947, %v5977
        %v6083 = vadd.f32 %v5948, %v5977
        %v6084 = vadd.f32 %v5949, %v5977
        %v6085 = vadd.f32 %v5950, %v5977
        %v6086 = vadd.f32 %v5951, %v5977
        %v6087 = vadd.f32 %v5952, %v5977
        %v6088 = vadd.f32 %v5953, %v5977
        %v6089 = vadd.f32 %v5954, %v5977
        %v6090 = vadd.f32 %v5955, %v5977
        %v6091 = vadd.f32 %v5956, %v5977
        %v6092 = vadd.f32 %v5957, %v5977
        %v6093 = vadd.f32 %v5958, %v5977
        %v6094 = vadd.f32 %v5959, %v5977
        %v6095 = vadd.f32 %v5960, %v5977
        %v6096 = vadd.f32 %v5961, %v5977
        %v6097 = vadd.f32 %v5962, %v5977
        %v6098 = vadd.f32 %v5963, %v5977
        %v6099 = vadd.f32 %v5964, %v5977
        %v6100 = vadd.f32 %v5965, %v5977
        %v6101 = vadd.f32 %v5966, %v5977
        %v6102 = vadd.f32 %v5967, %v5977
        %v6103 = vadd.f32 %v5968, %v5977
        %v6104 = vadd.f32 %v5969, %v5977
        %v6105 = vadd.f32 %v5970, %v5977
        %v6106 = vadd.f32 %v5971, %v5977
        %vm6107 = vcmask 261120
        %6108 = vst.msk [vmem:[#allocation2] sm:$0xff] %vm6107, %v5979
        %6109 = vst.msk [vmem:[#allocation2 + $0x8] sm:$0xff] %vm6107, %v5980
        %6110 = vst.msk [vmem:[#allocation2 + $0x10] sm:$0xff] %vm6107, %v5981
        %6111 = vst.msk [vmem:[#allocation2 + $0x18] sm:$0xff] %vm6107, %v5982
        %6112 = vst.msk [vmem:[#allocation2 + $0x20] sm:$0xff] %vm6107, %v5983
        %6113 = vst.msk [vmem:[#allocation2 + $0x28] sm:$0xff] %vm6107, %v5984
        %6114 = vst.msk [vmem:[#allocation2 + $0x30] sm:$0xff] %vm6107, %v5985
        %6115 = vst.msk [vmem:[#allocation2 + $0x38] sm:$0xff] %vm6107, %v5986
        %6116 = vst.msk [vmem:[#allocation2 + $0x40] sm:$0xff] %vm6107, %v5987
        %6117 = vst.msk [vmem:[#allocation2 + $0x48] sm:$0xff] %vm6107, %v5988
        %6118 = vst.msk [vmem:[#allocation2 + $0x50] sm:$0xff] %vm6107, %v5989
        %6119 = vst.msk [vmem:[#allocation2 + $0x58] sm:$0xff] %vm6107, %v5990
        %6120 = vst.msk [vmem:[#allocation2 + $0x60] sm:$0xff] %vm6107, %v5991
        %6121 = vst.msk [vmem:[#allocation2 + $0x68] sm:$0xff] %vm6107, %v5992
        %6122 = vst.msk [vmem:[#allocation2 + $0x70] sm:$0xff] %vm6107, %v5993
        %6123 = vst.msk [vmem:[#allocation2 + $0x78] sm:$0xff] %vm6107, %v5994
        %6124 = vst.msk [vmem:[#allocation2 + $0x80] sm:$0xff] %vm6107, %v5995
        %6125 = vst.msk [vmem:[#allocation2 + $0x88] sm:$0xff] %vm6107, %v5996
        %6126 = vst.msk [vmem:[#allocation2 + $0x90] sm:$0xff] %vm6107, %v5997
        %6127 = vst.msk [vmem:[#allocation2 + $0x98] sm:$0xff] %vm6107, %v5998
        %6128 = vst.msk [vmem:[#allocation2 + $0xa0] sm:$0xff] %vm6107, %v5999
        %6129 = vst.msk [vmem:[#allocation2 + $0xa8] sm:$0xff] %vm6107, %v6000
        %6130 = vst.msk [vmem:[#allocation2 + $0xb0] sm:$0xff] %vm6107, %v6001
        %6131 = vst.msk [vmem:[#allocation2 + $0xb8] sm:$0xff] %vm6107, %v6002
        %6132 = vst.msk [vmem:[#allocation2 + $0xc0] sm:$0xff] %vm6107, %v6003
        %6133 = vst.msk [vmem:[#allocation2 + $0xc8] sm:$0xff] %vm6107, %v6004
        %6134 = vst.msk [vmem:[#allocation2 + $0xd0] sm:$0xff] %vm6107, %v6005
        %6135 = vst.msk [vmem:[#allocation2 + $0xd8] sm:$0xff] %vm6107, %v6006
        %6136 = vst.msk [vmem:[#allocation2 + $0xe0] sm:$0xff] %vm6107, %v6007
        %6137 = vst.msk [vmem:[#allocation2 + $0xe8] sm:$0xff] %vm6107, %v6008
        %6138 = vst.msk [vmem:[#allocation2 + $0xf0] sm:$0xff] %vm6107, %v6009
        %6139 = vst.msk [vmem:[#allocation2 + $0xf8] sm:$0xff] %vm6107, %v6010
        %6140 = vst.msk [vmem:[#allocation2 + $0x100] sm:$0xff] %vm6107, %v6011
        %6141 = vst.msk [vmem:[#allocation2 + $0x108] sm:$0xff] %vm6107, %v6012
        %6142 = vst.msk [vmem:[#allocation2 + $0x110] sm:$0xff] %vm6107, %v6013
        %6143 = vst.msk [vmem:[#allocation2 + $0x118] sm:$0xff] %vm6107, %v6014
        %6144 = vst.msk [vmem:[#allocation2 + $0x120] sm:$0xff] %vm6107, %v6015
        %6145 = vst.msk [vmem:[#allocation2 + $0x128] sm:$0xff] %vm6107, %v6016
        %6146 = vst.msk [vmem:[#allocation2 + $0x130] sm:$0xff] %vm6107, %v6017
        %6147 = vst.msk [vmem:[#allocation2 + $0x138] sm:$0xff] %vm6107, %v6018
        %6148 = vst.msk [vmem:[#allocation2 + $0x140] sm:$0xff] %vm6107, %v6019
        %6149 = vst.msk [vmem:[#allocation2 + $0x148] sm:$0xff] %vm6107, %v6020
        %6150 = vst.msk [vmem:[#allocation2 + $0x150] sm:$0xff] %vm6107, %v6021
        %6151 = vst.msk [vmem:[#allocation2 + $0x158] sm:$0xff] %vm6107, %v6022
        %6152 = vst.msk [vmem:[#allocation2 + $0x160] sm:$0xff] %vm6107, %v6023
        %6153 = vst.msk [vmem:[#allocation2 + $0x168] sm:$0xff] %vm6107, %v6024
        %6154 = vst.msk [vmem:[#allocation2 + $0x170] sm:$0xff] %vm6107, %v6025
        %6155 = vst.msk [vmem:[#allocation2 + $0x178] sm:$0xff] %vm6107, %v6026
        %6156 = vst.msk [vmem:[#allocation2 + $0x180] sm:$0xff] %vm6107, %v6027
        %6157 = vst.msk [vmem:[#allocation2 + $0x188] sm:$0xff] %vm6107, %v6028
        %6158 = vst.msk [vmem:[#allocation2 + $0x190] sm:$0xff] %vm6107, %v6029
        %6159 = vst.msk [vmem:[#allocation2 + $0x198] sm:$0xff] %vm6107, %v6030
        %6160 = vst.msk [vmem:[#allocation2 + $0x1a0] sm:$0xff] %vm6107, %v6031
        %6161 = vst.msk [vmem:[#allocation2 + $0x1a8] sm:$0xff] %vm6107, %v6032
        %6162 = vst.msk [vmem:[#allocation2 + $0x1b0] sm:$0xff] %vm6107, %v6033
        %6163 = vst.msk [vmem:[#allocation2 + $0x1b8] sm:$0xff] %vm6107, %v6034
        %6164 = vst.msk [vmem:[#allocation2 + $0x1c0] sm:$0xff] %vm6107, %v6035
        %6165 = vst.msk [vmem:[#allocation2 + $0x1c8] sm:$0xff] %vm6107, %v6036
        %6166 = vst.msk [vmem:[#allocation2 + $0x1d0] sm:$0xff] %vm6107, %v6037
        %6167 = vst.msk [vmem:[#allocation2 + $0x1d8] sm:$0xff] %vm6107, %v6038
        %6168 = vst.msk [vmem:[#allocation2 + $0x1e0] sm:$0xff] %vm6107, %v6039
        %6169 = vst.msk [vmem:[#allocation2 + $0x1e8] sm:$0xff] %vm6107, %v6040
        %6170 = vst.msk [vmem:[#allocation2 + $0x1f0] sm:$0xff] %vm6107, %v6041
        %6171 = vst.msk [vmem:[#allocation2 + $0x1f8] sm:$0xff] %vm6107, %v6042
        %6172 = vst.msk [vmem:[#allocation2 + $0x200] sm:$0xff] %vm6107, %v6043
        %6173 = vst.msk [vmem:[#allocation2 + $0x208] sm:$0xff] %vm6107, %v6044
        %6174 = vst.msk [vmem:[#allocation2 + $0x210] sm:$0xff] %vm6107, %v6045
        %6175 = vst.msk [vmem:[#allocation2 + $0x218] sm:$0xff] %vm6107, %v6046
        %6176 = vst.msk [vmem:[#allocation2 + $0x220] sm:$0xff] %vm6107, %v6047
        %6177 = vst.msk [vmem:[#allocation2 + $0x228] sm:$0xff] %vm6107, %v6048
        %6178 = vst.msk [vmem:[#allocation2 + $0x230] sm:$0xff] %vm6107, %v6049
        %6179 = vst.msk [vmem:[#allocation2 + $0x238] sm:$0xff] %vm6107, %v6050
        %6180 = vst.msk [vmem:[#allocation2 + $0x240] sm:$0xff] %vm6107, %v6051
        %6181 = vst.msk [vmem:[#allocation2 + $0x248] sm:$0xff] %vm6107, %v6052
        %6182 = vst.msk [vmem:[#allocation2 + $0x250] sm:$0xff] %vm6107, %v6053
        %6183 = vst.msk [vmem:[#allocation2 + $0x258] sm:$0xff] %vm6107, %v6054
        %6184 = vst.msk [vmem:[#allocation2 + $0x260] sm:$0xff] %vm6107, %v6055
        %6185 = vst.msk [vmem:[#allocation2 + $0x268] sm:$0xff] %vm6107, %v6056
        %6186 = vst.msk [vmem:[#allocation2 + $0x270] sm:$0xff] %vm6107, %v6057
        %6187 = vst.msk [vmem:[#allocation2 + $0x278] sm:$0xff] %vm6107, %v6058
        %6188 = vst.msk [vmem:[#allocation2 + $0x280] sm:$0xff] %vm6107, %v6059
        %6189 = vst.msk [vmem:[#allocation2 + $0x288] sm:$0xff] %vm6107, %v6060
        %6190 = vst.msk [vmem:[#allocation2 + $0x290] sm:$0xff] %vm6107, %v6061
        %6191 = vst.msk [vmem:[#allocation2 + $0x298] sm:$0xff] %vm6107, %v6062
        %6192 = vst.msk [vmem:[#allocation2 + $0x2a0] sm:$0xff] %vm6107, %v6063
        %6193 = vst.msk [vmem:[#allocation2 + $0x2a8] sm:$0xff] %vm6107, %v6064
        %6194 = vst.msk [vmem:[#allocation2 + $0x2b0] sm:$0xff] %vm6107, %v6065
        %6195 = vst.msk [vmem:[#allocation2 + $0x2b8] sm:$0xff] %vm6107, %v6066
        %6196 = vst.msk [vmem:[#allocation2 + $0x2c0] sm:$0xff] %vm6107, %v6067
        %6197 = vst.msk [vmem:[#allocation2 + $0x2c8] sm:$0xff] %vm6107, %v6068
        %6198 = vst.msk [vmem:[#allocation2 + $0x2d0] sm:$0xff] %vm6107, %v6069
        %6199 = vst.msk [vmem:[#allocation2 + $0x2d8] sm:$0xff] %vm6107, %v6070
        %6200 = vst.msk [vmem:[#allocation2 + $0x2e0] sm:$0xff] %vm6107, %v6071
        %6201 = vst.msk [vmem:[#allocation2 + $0x2e8] sm:$0xff] %vm6107, %v6072
        %6202 = vst.msk [vmem:[#allocation2 + $0x2f0] sm:$0xff] %vm6107, %v6073
        %6203 = vst.msk [vmem:[#allocation2 + $0x2f8] sm:$0xff] %vm6107, %v6074
        %6204 = vst.msk [vmem:[#allocation2 + $0x300] sm:$0xff] %vm6107, %v6075
        %6205 = vst.msk [vmem:[#allocation2 + $0x308] sm:$0xff] %vm6107, %v6076
        %6206 = vst.msk [vmem:[#allocation2 + $0x310] sm:$0xff] %vm6107, %v6077
        %6207 = vst.msk [vmem:[#allocation2 + $0x318] sm:$0xff] %vm6107, %v6078
        %6208 = vst.msk [vmem:[#allocation2 + $0x320] sm:$0xff] %vm6107, %v6079
        %6209 = vst.msk [vmem:[#allocation2 + $0x328] sm:$0xff] %vm6107, %v6080
        %6210 = vst.msk [vmem:[#allocation2 + $0x330] sm:$0xff] %vm6107, %v6081
        %6211 = vst.msk [vmem:[#allocation2 + $0x338] sm:$0xff] %vm6107, %v6082
        %6212 = vst.msk [vmem:[#allocation2 + $0x340] sm:$0xff] %vm6107, %v6083
        %6213 = vst.msk [vmem:[#allocation2 + $0x348] sm:$0xff] %vm6107, %v6084
        %6214 = vst.msk [vmem:[#allocation2 + $0x350] sm:$0xff] %vm6107, %v6085
        %6215 = vst.msk [vmem:[#allocation2 + $0x358] sm:$0xff] %vm6107, %v6086
        %6216 = vst.msk [vmem:[#allocation2 + $0x360] sm:$0xff] %vm6107, %v6087
        %6217 = vst.msk [vmem:[#allocation2 + $0x368] sm:$0xff] %vm6107, %v6088
        %6218 = vst.msk [vmem:[#allocation2 + $0x370] sm:$0xff] %vm6107, %v6089
        %6219 = vst.msk [vmem:[#allocation2 + $0x378] sm:$0xff] %vm6107, %v6090
        %6220 = vst.msk [vmem:[#allocation2 + $0x380] sm:$0xff] %vm6107, %v6091
        %6221 = vst.msk [vmem:[#allocation2 + $0x388] sm:$0xff] %vm6107, %v6092
        %6222 = vst.msk [vmem:[#allocation2 + $0x390] sm:$0xff] %vm6107, %v6093
        %6223 = vst.msk [vmem:[#allocation2 + $0x398] sm:$0xff] %vm6107, %v6094
        %6224 = vst.msk [vmem:[#allocation2 + $0x3a0] sm:$0xff] %vm6107, %v6095
        %6225 = vst.msk [vmem:[#allocation2 + $0x3a8] sm:$0xff] %vm6107, %v6096
        %6226 = vst.msk [vmem:[#allocation2 + $0x3b0] sm:$0xff] %vm6107, %v6097
        %6227 = vst.msk [vmem:[#allocation2 + $0x3b8] sm:$0xff] %vm6107, %v6098
        %6228 = vst.msk [vmem:[#allocation2 + $0x3c0] sm:$0xff] %vm6107, %v6099
        %6229 = vst.msk [vmem:[#allocation2 + $0x3c8] sm:$0xff] %vm6107, %v6100
        %6230 = vst.msk [vmem:[#allocation2 + $0x3d0] sm:$0xff] %vm6107, %v6101
        %6231 = vst.msk [vmem:[#allocation2 + $0x3d8] sm:$0xff] %vm6107, %v6102
        %6232 = vst.msk [vmem:[#allocation2 + $0x3e0] sm:$0xff] %vm6107, %v6103
        %6233 = vst.msk [vmem:[#allocation2 + $0x3e8] sm:$0xff] %vm6107, %v6104
        %6234 = vst.msk [vmem:[#allocation2 + $0x3f0] sm:$0xff] %vm6107, %v6105
        %6235 = vst.msk [vmem:[#allocation2 + $0x3f8] sm:$0xff] %vm6107, %v6106
        %v6236 = vld [vmem:[#allocation2] ss:$2 sm:$0xff]
        %s6237 = scalar_lea.vmem [#allocation2], 16
        %v6238 = vld [vmem:[%s6237] ss:$2 sm:$0xff]
        %s6239 = scalar_lea.vmem [#allocation2], 32
        %v6240 = vld [vmem:[%s6239] ss:$2 sm:$0xff]
        %s6241 = scalar_lea.vmem [#allocation2], 48
        %v6242 = vld [vmem:[%s6241] ss:$2 sm:$0xff]
        %s6243 = scalar_lea.vmem [#allocation2], 64
        %v6244 = vld [vmem:[%s6243] ss:$2 sm:$0xff]
        %s6245 = scalar_lea.vmem [#allocation2], 80
        %v6246 = vld [vmem:[%s6245] ss:$2 sm:$0xff]
        %s6247 = scalar_lea.vmem [#allocation2], 96
        %v6248 = vld [vmem:[%s6247] ss:$2 sm:$0xff]
        %s6249 = scalar_lea.vmem [#allocation2], 112
        %v6250 = vld [vmem:[%s6249] ss:$2 sm:$0xff]
        %s6251 = scalar_lea.vmem [#allocation2], 128
        %v6252 = vld [vmem:[%s6251] ss:$2 sm:$0xff]
        %s6253 = scalar_lea.vmem [#allocation2], 144
        %v6254 = vld [vmem:[%s6253] ss:$2 sm:$0xff]
        %s6255 = scalar_lea.vmem [#allocation2], 160
        %v6256 = vld [vmem:[%s6255] ss:$2 sm:$0xff]
        %s6257 = scalar_lea.vmem [#allocation2], 176
        %v6258 = vld [vmem:[%s6257] ss:$2 sm:$0xff]
        %s6259 = scalar_lea.vmem [#allocation2], 192
        %v6260 = vld [vmem:[%s6259] ss:$2 sm:$0xff]
        %s6261 = scalar_lea.vmem [#allocation2], 208
        %v6262 = vld [vmem:[%s6261] ss:$2 sm:$0xff]
        %s6263 = scalar_lea.vmem [#allocation2], 224
        %v6264 = vld [vmem:[%s6263] ss:$2 sm:$0xff]
        %s6265 = scalar_lea.vmem [#allocation2], 240
        %v6266 = vld [vmem:[%s6265] ss:$2 sm:$0xff]
        %s6267 = scalar_lea.vmem [#allocation2], 256
        %v6268 = vld [vmem:[%s6267] ss:$2 sm:$0xff]
        %s6269 = scalar_lea.vmem [#allocation2], 272
        %v6270 = vld [vmem:[%s6269] ss:$2 sm:$0xff]
        %s6271 = scalar_lea.vmem [#allocation2], 288
        %v6272 = vld [vmem:[%s6271] ss:$2 sm:$0xff]
        %s6273 = scalar_lea.vmem [#allocation2], 304
        %v6274 = vld [vmem:[%s6273] ss:$2 sm:$0xff]
        %s6275 = scalar_lea.vmem [#allocation2], 320
        %v6276 = vld [vmem:[%s6275] ss:$2 sm:$0xff]
        %s6277 = scalar_lea.vmem [#allocation2], 336
        %v6278 = vld [vmem:[%s6277] ss:$2 sm:$0xff]
        %s6279 = scalar_lea.vmem [#allocation2], 352
        %v6280 = vld [vmem:[%s6279] ss:$2 sm:$0xff]
        %s6281 = scalar_lea.vmem [#allocation2], 368
        %v6282 = vld [vmem:[%s6281] ss:$2 sm:$0xff]
        %s6283 = scalar_lea.vmem [#allocation2], 384
        %v6284 = vld [vmem:[%s6283] ss:$2 sm:$0xff]
        %s6285 = scalar_lea.vmem [#allocation2], 400
        %v6286 = vld [vmem:[%s6285] ss:$2 sm:$0xff]
        %s6287 = scalar_lea.vmem [#allocation2], 416
        %v6288 = vld [vmem:[%s6287] ss:$2 sm:$0xff]
        %s6289 = scalar_lea.vmem [#allocation2], 432
        %v6290 = vld [vmem:[%s6289] ss:$2 sm:$0xff]
        %s6291 = scalar_lea.vmem [#allocation2], 448
        %v6292 = vld [vmem:[%s6291] ss:$2 sm:$0xff]
        %s6293 = scalar_lea.vmem [#allocation2], 464
        %v6294 = vld [vmem:[%s6293] ss:$2 sm:$0xff]
        %s6295 = scalar_lea.vmem [#allocation2], 480
        %v6296 = vld [vmem:[%s6295] ss:$2 sm:$0xff]
        %s6297 = scalar_lea.vmem [#allocation2], 496
        %v6298 = vld [vmem:[%s6297] ss:$2 sm:$0xff]
        %s6299 = scalar_lea.vmem [#allocation2], 512
        %v6300 = vld [vmem:[%s6299] ss:$2 sm:$0xff]
        %s6301 = scalar_lea.vmem [#allocation2], 528
        %v6302 = vld [vmem:[%s6301] ss:$2 sm:$0xff]
        %s6303 = scalar_lea.vmem [#allocation2], 544
        %v6304 = vld [vmem:[%s6303] ss:$2 sm:$0xff]
        %s6305 = scalar_lea.vmem [#allocation2], 560
        %v6306 = vld [vmem:[%s6305] ss:$2 sm:$0xff]
        %s6307 = scalar_lea.vmem [#allocation2], 576
        %v6308 = vld [vmem:[%s6307] ss:$2 sm:$0xff]
        %s6309 = scalar_lea.vmem [#allocation2], 592
        %v6310 = vld [vmem:[%s6309] ss:$2 sm:$0xff]
        %s6311 = scalar_lea.vmem [#allocation2], 608
        %v6312 = vld [vmem:[%s6311] ss:$2 sm:$0xff]
        %s6313 = scalar_lea.vmem [#allocation2], 624
        %v6314 = vld [vmem:[%s6313] ss:$2 sm:$0xff]
        %s6315 = scalar_lea.vmem [#allocation2], 640
        %v6316 = vld [vmem:[%s6315] ss:$2 sm:$0xff]
        %s6317 = scalar_lea.vmem [#allocation2], 656
        %v6318 = vld [vmem:[%s6317] ss:$2 sm:$0xff]
        %s6319 = scalar_lea.vmem [#allocation2], 672
        %v6320 = vld [vmem:[%s6319] ss:$2 sm:$0xff]
        %s6321 = scalar_lea.vmem [#allocation2], 688
        %v6322 = vld [vmem:[%s6321] ss:$2 sm:$0xff]
        %s6323 = scalar_lea.vmem [#allocation2], 704
        %v6324 = vld [vmem:[%s6323] ss:$2 sm:$0xff]
        %s6325 = scalar_lea.vmem [#allocation2], 720
        %v6326 = vld [vmem:[%s6325] ss:$2 sm:$0xff]
        %s6327 = scalar_lea.vmem [#allocation2], 736
        %v6328 = vld [vmem:[%s6327] ss:$2 sm:$0xff]
        %s6329 = scalar_lea.vmem [#allocation2], 752
        %v6330 = vld [vmem:[%s6329] ss:$2 sm:$0xff]
        %s6331 = scalar_lea.vmem [#allocation2], 768
        %v6332 = vld [vmem:[%s6331] ss:$2 sm:$0xff]
        %s6333 = scalar_lea.vmem [#allocation2], 784
        %v6334 = vld [vmem:[%s6333] ss:$2 sm:$0xff]
        %s6335 = scalar_lea.vmem [#allocation2], 800
        %v6336 = vld [vmem:[%s6335] ss:$2 sm:$0xff]
        %s6337 = scalar_lea.vmem [#allocation2], 816
        %v6338 = vld [vmem:[%s6337] ss:$2 sm:$0xff]
        %s6339 = scalar_lea.vmem [#allocation2], 832
        %v6340 = vld [vmem:[%s6339] ss:$2 sm:$0xff]
        %s6341 = scalar_lea.vmem [#allocation2], 848
        %v6342 = vld [vmem:[%s6341] ss:$2 sm:$0xff]
        %s6343 = scalar_lea.vmem [#allocation2], 864
        %v6344 = vld [vmem:[%s6343] ss:$2 sm:$0xff]
        %s6345 = scalar_lea.vmem [#allocation2], 880
        %v6346 = vld [vmem:[%s6345] ss:$2 sm:$0xff]
        %s6347 = scalar_lea.vmem [#allocation2], 896
        %v6348 = vld [vmem:[%s6347] ss:$2 sm:$0xff]
        %s6349 = scalar_lea.vmem [#allocation2], 912
        %v6350 = vld [vmem:[%s6349] ss:$2 sm:$0xff]
        %s6351 = scalar_lea.vmem [#allocation2], 928
        %v6352 = vld [vmem:[%s6351] ss:$2 sm:$0xff]
        %s6353 = scalar_lea.vmem [#allocation2], 944
        %v6354 = vld [vmem:[%s6353] ss:$2 sm:$0xff]
        %s6355 = scalar_lea.vmem [#allocation2], 960
        %v6356 = vld [vmem:[%s6355] ss:$2 sm:$0xff]
        %s6357 = scalar_lea.vmem [#allocation2], 976
        %v6358 = vld [vmem:[%s6357] ss:$2 sm:$0xff]
        %s6359 = scalar_lea.vmem [#allocation2], 992
        %v6360 = vld [vmem:[%s6359] ss:$2 sm:$0xff]
        %s6361 = scalar_lea.vmem [#allocation2], 1008
        %v6362 = vld [vmem:[%s6361] ss:$2 sm:$0xff]
        %s6363 = scalar_lea.vmem [#allocation2], 1
        %v6364 = vld [vmem:[%s6363] ss:$2 sm:$0xff]
        %s6365 = scalar_lea.vmem [#allocation2], 17
        %v6366 = vld [vmem:[%s6365] ss:$2 sm:$0xff]
        %s6367 = scalar_lea.vmem [#allocation2], 33
        %v6368 = vld [vmem:[%s6367] ss:$2 sm:$0xff]
        %s6369 = scalar_lea.vmem [#allocation2], 49
        %v6370 = vld [vmem:[%s6369] ss:$2 sm:$0xff]
        %s6371 = scalar_lea.vmem [#allocation2], 65
        %v6372 = vld [vmem:[%s6371] ss:$2 sm:$0xff]
        %s6373 = scalar_lea.vmem [#allocation2], 81
        %v6374 = vld [vmem:[%s6373] ss:$2 sm:$0xff]
        %s6375 = scalar_lea.vmem [#allocation2], 97
        %v6376 = vld [vmem:[%s6375] ss:$2 sm:$0xff]
        %s6377 = scalar_lea.vmem [#allocation2], 113
        %v6378 = vld [vmem:[%s6377] ss:$2 sm:$0xff]
        %s6379 = scalar_lea.vmem [#allocation2], 129
        %v6380 = vld [vmem:[%s6379] ss:$2 sm:$0xff]
        %s6381 = scalar_lea.vmem [#allocation2], 145
        %v6382 = vld [vmem:[%s6381] ss:$2 sm:$0xff]
        %s6383 = scalar_lea.vmem [#allocation2], 161
        %v6384 = vld [vmem:[%s6383] ss:$2 sm:$0xff]
        %s6385 = scalar_lea.vmem [#allocation2], 177
        %v6386 = vld [vmem:[%s6385] ss:$2 sm:$0xff]
        %s6387 = scalar_lea.vmem [#allocation2], 193
        %v6388 = vld [vmem:[%s6387] ss:$2 sm:$0xff]
        %s6389 = scalar_lea.vmem [#allocation2], 209
        %v6390 = vld [vmem:[%s6389] ss:$2 sm:$0xff]
        %s6391 = scalar_lea.vmem [#allocation2], 225
        %v6392 = vld [vmem:[%s6391] ss:$2 sm:$0xff]
        %s6393 = scalar_lea.vmem [#allocation2], 241
        %v6394 = vld [vmem:[%s6393] ss:$2 sm:$0xff]
        %s6395 = scalar_lea.vmem [#allocation2], 257
        %v6396 = vld [vmem:[%s6395] ss:$2 sm:$0xff]
        %s6397 = scalar_lea.vmem [#allocation2], 273
        %v6398 = vld [vmem:[%s6397] ss:$2 sm:$0xff]
        %s6399 = scalar_lea.vmem [#allocation2], 289
        %v6400 = vld [vmem:[%s6399] ss:$2 sm:$0xff]
        %s6401 = scalar_lea.vmem [#allocation2], 305
        %v6402 = vld [vmem:[%s6401] ss:$2 sm:$0xff]
        %s6403 = scalar_lea.vmem [#allocation2], 321
        %v6404 = vld [vmem:[%s6403] ss:$2 sm:$0xff]
        %s6405 = scalar_lea.vmem [#allocation2], 337
        %v6406 = vld [vmem:[%s6405] ss:$2 sm:$0xff]
        %s6407 = scalar_lea.vmem [#allocation2], 353
        %v6408 = vld [vmem:[%s6407] ss:$2 sm:$0xff]
        %s6409 = scalar_lea.vmem [#allocation2], 369
        %v6410 = vld [vmem:[%s6409] ss:$2 sm:$0xff]
        %s6411 = scalar_lea.vmem [#allocation2], 385
        %v6412 = vld [vmem:[%s6411] ss:$2 sm:$0xff]
        %s6413 = scalar_lea.vmem [#allocation2], 401
        %v6414 = vld [vmem:[%s6413] ss:$2 sm:$0xff]
        %s6415 = scalar_lea.vmem [#allocation2], 417
        %v6416 = vld [vmem:[%s6415] ss:$2 sm:$0xff]
        %s6417 = scalar_lea.vmem [#allocation2], 433
        %v6418 = vld [vmem:[%s6417] ss:$2 sm:$0xff]
        %s6419 = scalar_lea.vmem [#allocation2], 449
        %v6420 = vld [vmem:[%s6419] ss:$2 sm:$0xff]
        %s6421 = scalar_lea.vmem [#allocation2], 465
        %v6422 = vld [vmem:[%s6421] ss:$2 sm:$0xff]
        %s6423 = scalar_lea.vmem [#allocation2], 481
        %v6424 = vld [vmem:[%s6423] ss:$2 sm:$0xff]
        %s6425 = scalar_lea.vmem [#allocation2], 497
        %v6426 = vld [vmem:[%s6425] ss:$2 sm:$0xff]
        %s6427 = scalar_lea.vmem [#allocation2], 513
        %v6428 = vld [vmem:[%s6427] ss:$2 sm:$0xff]
        %s6429 = scalar_lea.vmem [#allocation2], 529
        %v6430 = vld [vmem:[%s6429] ss:$2 sm:$0xff]
        %s6431 = scalar_lea.vmem [#allocation2], 545
        %v6432 = vld [vmem:[%s6431] ss:$2 sm:$0xff]
        %s6433 = scalar_lea.vmem [#allocation2], 561
        %v6434 = vld [vmem:[%s6433] ss:$2 sm:$0xff]
        %s6435 = scalar_lea.vmem [#allocation2], 577
        %v6436 = vld [vmem:[%s6435] ss:$2 sm:$0xff]
        %s6437 = scalar_lea.vmem [#allocation2], 593
        %v6438 = vld [vmem:[%s6437] ss:$2 sm:$0xff]
        %s6439 = scalar_lea.vmem [#allocation2], 609
        %v6440 = vld [vmem:[%s6439] ss:$2 sm:$0xff]
        %s6441 = scalar_lea.vmem [#allocation2], 625
        %v6442 = vld [vmem:[%s6441] ss:$2 sm:$0xff]
        %s6443 = scalar_lea.vmem [#allocation2], 641
        %v6444 = vld [vmem:[%s6443] ss:$2 sm:$0xff]
        %s6445 = scalar_lea.vmem [#allocation2], 657
        %v6446 = vld [vmem:[%s6445] ss:$2 sm:$0xff]
        %s6447 = scalar_lea.vmem [#allocation2], 673
        %v6448 = vld [vmem:[%s6447] ss:$2 sm:$0xff]
        %s6449 = scalar_lea.vmem [#allocation2], 689
        %v6450 = vld [vmem:[%s6449] ss:$2 sm:$0xff]
        %s6451 = scalar_lea.vmem [#allocation2], 705
        %v6452 = vld [vmem:[%s6451] ss:$2 sm:$0xff]
        %s6453 = scalar_lea.vmem [#allocation2], 721
        %v6454 = vld [vmem:[%s6453] ss:$2 sm:$0xff]
        %s6455 = scalar_lea.vmem [#allocation2], 737
        %v6456 = vld [vmem:[%s6455] ss:$2 sm:$0xff]
        %s6457 = scalar_lea.vmem [#allocation2], 753
        %v6458 = vld [vmem:[%s6457] ss:$2 sm:$0xff]
        %s6459 = scalar_lea.vmem [#allocation2], 769
        %v6460 = vld [vmem:[%s6459] ss:$2 sm:$0xff]
        %s6461 = scalar_lea.vmem [#allocation2], 785
        %v6462 = vld [vmem:[%s6461] ss:$2 sm:$0xff]
        %s6463 = scalar_lea.vmem [#allocation2], 801
        %v6464 = vld [vmem:[%s6463] ss:$2 sm:$0xff]
        %s6465 = scalar_lea.vmem [#allocation2], 817
        %v6466 = vld [vmem:[%s6465] ss:$2 sm:$0xff]
        %s6467 = scalar_lea.vmem [#allocation2], 833
        %v6468 = vld [vmem:[%s6467] ss:$2 sm:$0xff]
        %s6469 = scalar_lea.vmem [#allocation2], 849
        %v6470 = vld [vmem:[%s6469] ss:$2 sm:$0xff]
        %s6471 = scalar_lea.vmem [#allocation2], 865
        %v6472 = vld [vmem:[%s6471] ss:$2 sm:$0xff]
        %s6473 = scalar_lea.vmem [#allocation2], 881
        %v6474 = vld [vmem:[%s6473] ss:$2 sm:$0xff]
        %s6475 = scalar_lea.vmem [#allocation2], 897
        %v6476 = vld [vmem:[%s6475] ss:$2 sm:$0xff]
        %s6477 = scalar_lea.vmem [#allocation2], 913
        %v6478 = vld [vmem:[%s6477] ss:$2 sm:$0xff]
        %s6479 = scalar_lea.vmem [#allocation2], 929
        %v6480 = vld [vmem:[%s6479] ss:$2 sm:$0xff]
        %s6481 = scalar_lea.vmem [#allocation2], 945
        %v6482 = vld [vmem:[%s6481] ss:$2 sm:$0xff]
        %s6483 = scalar_lea.vmem [#allocation2], 961
        %v6484 = vld [vmem:[%s6483] ss:$2 sm:$0xff]
        %s6485 = scalar_lea.vmem [#allocation2], 977
        %v6486 = vld [vmem:[%s6485] ss:$2 sm:$0xff]
        %s6487 = scalar_lea.vmem [#allocation2], 993
        %v6488 = vld [vmem:[%s6487] ss:$2 sm:$0xff]
        %s6489 = scalar_lea.vmem [#allocation2], 1009
        %v6490 = vld [vmem:[%s6489] ss:$2 sm:$0xff]
        %v6491 = vmax.f32 %v6236, %v6364
        %v6492 = vmax.f32 %v6238, %v6366
        %v6493 = vmax.f32 %v6240, %v6368
        %v6494 = vmax.f32 %v6242, %v6370
        %v6495 = vmax.f32 %v6244, %v6372
        %v6496 = vmax.f32 %v6246, %v6374
        %v6497 = vmax.f32 %v6248, %v6376
        %v6498 = vmax.f32 %v6250, %v6378
        %v6499 = vmax.f32 %v6252, %v6380
        %v6500 = vmax.f32 %v6254, %v6382
        %v6501 = vmax.f32 %v6256, %v6384
        %v6502 = vmax.f32 %v6258, %v6386
        %v6503 = vmax.f32 %v6260, %v6388
        %v6504 = vmax.f32 %v6262, %v6390
        %v6505 = vmax.f32 %v6264, %v6392
        %v6506 = vmax.f32 %v6266, %v6394
        %v6507 = vmax.f32 %v6268, %v6396
        %v6508 = vmax.f32 %v6270, %v6398
        %v6509 = vmax.f32 %v6272, %v6400
        %v6510 = vmax.f32 %v6274, %v6402
        %v6511 = vmax.f32 %v6276, %v6404
        %v6512 = vmax.f32 %v6278, %v6406
        %v6513 = vmax.f32 %v6280, %v6408
        %v6514 = vmax.f32 %v6282, %v6410
        %v6515 = vmax.f32 %v6284, %v6412
        %v6516 = vmax.f32 %v6286, %v6414
        %v6517 = vmax.f32 %v6288, %v6416
        %v6518 = vmax.f32 %v6290, %v6418
        %v6519 = vmax.f32 %v6292, %v6420
        %v6520 = vmax.f32 %v6294, %v6422
        %v6521 = vmax.f32 %v6296, %v6424
        %v6522 = vmax.f32 %v6298, %v6426
        %v6523 = vmax.f32 %v6300, %v6428
        %v6524 = vmax.f32 %v6302, %v6430
        %v6525 = vmax.f32 %v6304, %v6432
        %v6526 = vmax.f32 %v6306, %v6434
        %v6527 = vmax.f32 %v6308, %v6436
        %v6528 = vmax.f32 %v6310, %v6438
        %v6529 = vmax.f32 %v6312, %v6440
        %v6530 = vmax.f32 %v6314, %v6442
        %v6531 = vmax.f32 %v6316, %v6444
        %v6532 = vmax.f32 %v6318, %v6446
        %v6533 = vmax.f32 %v6320, %v6448
        %v6534 = vmax.f32 %v6322, %v6450
        %v6535 = vmax.f32 %v6324, %v6452
        %v6536 = vmax.f32 %v6326, %v6454
        %v6537 = vmax.f32 %v6328, %v6456
        %v6538 = vmax.f32 %v6330, %v6458
        %v6539 = vmax.f32 %v6332, %v6460
        %v6540 = vmax.f32 %v6334, %v6462
        %v6541 = vmax.f32 %v6336, %v6464
        %v6542 = vmax.f32 %v6338, %v6466
        %v6543 = vmax.f32 %v6340, %v6468
        %v6544 = vmax.f32 %v6342, %v6470
        %v6545 = vmax.f32 %v6344, %v6472
        %v6546 = vmax.f32 %v6346, %v6474
        %v6547 = vmax.f32 %v6348, %v6476
        %v6548 = vmax.f32 %v6350, %v6478
        %v6549 = vmax.f32 %v6352, %v6480
        %v6550 = vmax.f32 %v6354, %v6482
        %v6551 = vmax.f32 %v6356, %v6484
        %v6552 = vmax.f32 %v6358, %v6486
        %v6553 = vmax.f32 %v6360, %v6488
        %v6554 = vmax.f32 %v6362, %v6490
        %v6555 = vmax.f32 %v6491, 0.0
        %v6556 = vmax.f32 %v6492, 0.0
        %v6557 = vmax.f32 %v6493, 0.0
        %v6558 = vmax.f32 %v6494, 0.0
        %v6559 = vmax.f32 %v6495, 0.0
        %v6560 = vmax.f32 %v6496, 0.0
        %v6561 = vmax.f32 %v6497, 0.0
        %v6562 = vmax.f32 %v6498, 0.0
        %v6563 = vmax.f32 %v6499, 0.0
        %v6564 = vmax.f32 %v6500, 0.0
        %v6565 = vmax.f32 %v6501, 0.0
        %v6566 = vmax.f32 %v6502, 0.0
        %v6567 = vmax.f32 %v6503, 0.0
        %v6568 = vmax.f32 %v6504, 0.0
        %v6569 = vmax.f32 %v6505, 0.0
        %v6570 = vmax.f32 %v6506, 0.0
        %v6571 = vmax.f32 %v6507, 0.0
        %v6572 = vmax.f32 %v6508, 0.0
        %v6573 = vmax.f32 %v6509, 0.0
        %v6574 = vmax.f32 %v6510, 0.0
        %v6575 = vmax.f32 %v6511, 0.0
        %v6576 = vmax.f32 %v6512, 0.0
        %v6577 = vmax.f32 %v6513, 0.0
        %v6578 = vmax.f32 %v6514, 0.0
        %v6579 = vmax.f32 %v6515, 0.0
        %v6580 = vmax.f32 %v6516, 0.0
        %v6581 = vmax.f32 %v6517, 0.0
        %v6582 = vmax.f32 %v6518, 0.0
        %v6583 = vmax.f32 %v6519, 0.0
        %v6584 = vmax.f32 %v6520, 0.0
        %v6585 = vmax.f32 %v6521, 0.0
        %v6586 = vmax.f32 %v6522, 0.0
        %v6587 = vmax.f32 %v6523, 0.0
        %v6588 = vmax.f32 %v6524, 0.0
        %v6589 = vmax.f32 %v6525, 0.0
        %v6590 = vmax.f32 %v6526, 0.0
        %v6591 = vmax.f32 %v6527, 0.0
        %v6592 = vmax.f32 %v6528, 0.0
        %v6593 = vmax.f32 %v6529, 0.0
        %v6594 = vmax.f32 %v6530, 0.0
        %v6595 = vmax.f32 %v6531, 0.0
        %v6596 = vmax.f32 %v6532, 0.0
        %v6597 = vmax.f32 %v6533, 0.0
        %v6598 = vmax.f32 %v6534, 0.0
        %v6599 = vmax.f32 %v6535, 0.0
        %v6600 = vmax.f32 %v6536, 0.0
        %v6601 = vmax.f32 %v6537, 0.0
        %v6602 = vmax.f32 %v6538, 0.0
        %v6603 = vmax.f32 %v6539, 0.0
        %v6604 = vmax.f32 %v6540, 0.0
        %v6605 = vmax.f32 %v6541, 0.0
        %v6606 = vmax.f32 %v6542, 0.0
        %v6607 = vmax.f32 %v6543, 0.0
        %v6608 = vmax.f32 %v6544, 0.0
        %v6609 = vmax.f32 %v6545, 0.0
        %v6610 = vmax.f32 %v6546, 0.0
        %v6611 = vmax.f32 %v6547, 0.0
        %v6612 = vmax.f32 %v6548, 0.0
        %v6613 = vmax.f32 %v6549, 0.0
        %v6614 = vmax.f32 %v6550, 0.0
        %v6615 = vmax.f32 %v6551, 0.0
        %v6616 = vmax.f32 %v6552, 0.0
        %v6617 = vmax.f32 %v6553, 0.0
        %v6618 = vmax.f32 %v6554, 0.0
        %vm6619 = vcmp.lt.s32.totalorder %v572, 0
        %v6620 = vsub.s32 0, %v572
        %v6621 = vsel %vm6619, %v6620, %v572
        %v6622 = vshrl.u32 %v6621, 3
        %v6623 = vand.u32 %v6621, 7
        %v6624 = vsub.s32 0, %v6623
        %v6625 = vsel %vm6619, %v6624, %v6623
        %vm6626 = vcmp.lt.s32.totalorder %v573, 0
        %v6627 = vsub.s32 0, %v573
        %v6628 = vsel %vm6626, %v6627, %v573
        %v6629 = vshrl.u32 %v6628, 3
        %v6630 = vand.u32 %v6628, 7
        %v6631 = vsub.s32 0, %v6630
        %v6632 = vsel %vm6626, %v6631, %v6630
        %vm6633 = vcmp.lt.s32.totalorder %v574, 0
        %v6634 = vsub.s32 0, %v574
        %v6635 = vsel %vm6633, %v6634, %v574
        %v6636 = vshrl.u32 %v6635, 3
        %v6637 = vand.u32 %v6635, 7
        %v6638 = vsub.s32 0, %v6637
        %v6639 = vsel %vm6633, %v6638, %v6637
        %vm6640 = vcmp.lt.s32.totalorder %v575, 0
        %v6641 = vsub.s32 0, %v575
        %v6642 = vsel %vm6640, %v6641, %v575
        %v6643 = vshrl.u32 %v6642, 3
        %v6644 = vand.u32 %v6642, 7
        %v6645 = vsub.s32 0, %v6644
        %v6646 = vsel %vm6640, %v6645, %v6644
        %vm6647 = vcmp.lt.s32.totalorder %v576, 0
        %v6648 = vsub.s32 0, %v576
        %v6649 = vsel %vm6647, %v6648, %v576
        %v6650 = vshrl.u32 %v6649, 3
        %v6651 = vand.u32 %v6649, 7
        %v6652 = vsub.s32 0, %v6651
        %v6653 = vsel %vm6647, %v6652, %v6651
        %vm6654 = vcmp.lt.s32.totalorder %v577, 0
        %v6655 = vsub.s32 0, %v577
        %v6656 = vsel %vm6654, %v6655, %v577
        %v6657 = vshrl.u32 %v6656, 3
        %v6658 = vand.u32 %v6656, 7
        %v6659 = vsub.s32 0, %v6658
        %v6660 = vsel %vm6654, %v6659, %v6658
        %vm6661 = vcmp.lt.s32.totalorder %v578, 0
        %v6662 = vsub.s32 0, %v578
        %v6663 = vsel %vm6661, %v6662, %v578
        %v6664 = vshrl.u32 %v6663, 3
        %v6665 = vand.u32 %v6663, 7
        %v6666 = vsub.s32 0, %v6665
        %v6667 = vsel %vm6661, %v6666, %v6665
        %vm6668 = vcmp.lt.s32.totalorder %v579, 0
        %v6669 = vsub.s32 0, %v579
        %v6670 = vsel %vm6668, %v6669, %v579
        %v6671 = vshrl.u32 %v6670, 3
        %v6672 = vand.u32 %v6670, 7
        %v6673 = vsub.s32 0, %v6672
        %v6674 = vsel %vm6668, %v6673, %v6672
        %vm6675 = vcmp.lt.s32.totalorder %v580, 0
        %v6676 = vsub.s32 0, %v580
        %v6677 = vsel %vm6675, %v6676, %v580
        %v6678 = vshrl.u32 %v6677, 3
        %v6679 = vand.u32 %v6677, 7
        %v6680 = vsub.s32 0, %v6679
        %v6681 = vsel %vm6675, %v6680, %v6679
        %vm6682 = vcmp.lt.s32.totalorder %v581, 0
        %v6683 = vsub.s32 0, %v581
        %v6684 = vsel %vm6682, %v6683, %v581
        %v6685 = vshrl.u32 %v6684, 3
        %v6686 = vand.u32 %v6684, 7
        %v6687 = vsub.s32 0, %v6686
        %v6688 = vsel %vm6682, %v6687, %v6686
        %vm6689 = vcmp.lt.s32.totalorder %v582, 0
        %v6690 = vsub.s32 0, %v582
        %v6691 = vsel %vm6689, %v6690, %v582
        %v6692 = vshrl.u32 %v6691, 3
        %v6693 = vand.u32 %v6691, 7
        %v6694 = vsub.s32 0, %v6693
        %v6695 = vsel %vm6689, %v6694, %v6693
        %vm6696 = vcmp.lt.s32.totalorder %v583, 0
        %v6697 = vsub.s32 0, %v583
        %v6698 = vsel %vm6696, %v6697, %v583
        %v6699 = vshrl.u32 %v6698, 3
        %v6700 = vand.u32 %v6698, 7
        %v6701 = vsub.s32 0, %v6700
        %v6702 = vsel %vm6696, %v6701, %v6700
        %vm6703 = vcmp.lt.s32.totalorder %v584, 0
        %v6704 = vsub.s32 0, %v584
        %v6705 = vsel %vm6703, %v6704, %v584
        %v6706 = vshrl.u32 %v6705, 3
        %v6707 = vand.u32 %v6705, 7
        %v6708 = vsub.s32 0, %v6707
        %v6709 = vsel %vm6703, %v6708, %v6707
        %vm6710 = vcmp.lt.s32.totalorder %v585, 0
        %v6711 = vsub.s32 0, %v585
        %v6712 = vsel %vm6710, %v6711, %v585
        %v6713 = vshrl.u32 %v6712, 3
        %v6714 = vand.u32 %v6712, 7
        %v6715 = vsub.s32 0, %v6714
        %v6716 = vsel %vm6710, %v6715, %v6714
        %vm6717 = vcmp.lt.s32.totalorder %v586, 0
        %v6718 = vsub.s32 0, %v586
        %v6719 = vsel %vm6717, %v6718, %v586
        %v6720 = vshrl.u32 %v6719, 3
        %v6721 = vand.u32 %v6719, 7
        %v6722 = vsub.s32 0, %v6721
        %v6723 = vsel %vm6717, %v6722, %v6721
        %vm6724 = vcmp.lt.s32.totalorder %v587, 0
        %v6725 = vsub.s32 0, %v587
        %v6726 = vsel %vm6724, %v6725, %v587
        %v6727 = vshrl.u32 %v6726, 3
        %v6728 = vand.u32 %v6726, 7
        %v6729 = vsub.s32 0, %v6728
        %v6730 = vsel %vm6724, %v6729, %v6728
        %vm6731 = vcmp.lt.s32.totalorder %v588, 0
        %v6732 = vsub.s32 0, %v588
        %v6733 = vsel %vm6731, %v6732, %v588
        %v6734 = vshrl.u32 %v6733, 3
        %v6735 = vand.u32 %v6733, 7
        %v6736 = vsub.s32 0, %v6735
        %v6737 = vsel %vm6731, %v6736, %v6735
        %vm6738 = vcmp.lt.s32.totalorder %v589, 0
        %v6739 = vsub.s32 0, %v589
        %v6740 = vsel %vm6738, %v6739, %v589
        %v6741 = vshrl.u32 %v6740, 3
        %v6742 = vand.u32 %v6740, 7
        %v6743 = vsub.s32 0, %v6742
        %v6744 = vsel %vm6738, %v6743, %v6742
        %vm6745 = vcmp.lt.s32.totalorder %v590, 0
        %v6746 = vsub.s32 0, %v590
        %v6747 = vsel %vm6745, %v6746, %v590
        %v6748 = vshrl.u32 %v6747, 3
        %v6749 = vand.u32 %v6747, 7
        %v6750 = vsub.s32 0, %v6749
        %v6751 = vsel %vm6745, %v6750, %v6749
        %vm6752 = vcmp.lt.s32.totalorder %v591, 0
        %v6753 = vsub.s32 0, %v591
        %v6754 = vsel %vm6752, %v6753, %v591
        %v6755 = vshrl.u32 %v6754, 3
        %v6756 = vand.u32 %v6754, 7
        %v6757 = vsub.s32 0, %v6756
        %v6758 = vsel %vm6752, %v6757, %v6756
        %vm6759 = vcmp.lt.s32.totalorder %v592, 0
        %v6760 = vsub.s32 0, %v592
        %v6761 = vsel %vm6759, %v6760, %v592
        %v6762 = vshrl.u32 %v6761, 3
        %v6763 = vand.u32 %v6761, 7
        %v6764 = vsub.s32 0, %v6763
        %v6765 = vsel %vm6759, %v6764, %v6763
        %vm6766 = vcmp.lt.s32.totalorder %v593, 0
        %v6767 = vsub.s32 0, %v593
        %v6768 = vsel %vm6766, %v6767, %v593
        %v6769 = vshrl.u32 %v6768, 3
        %v6770 = vand.u32 %v6768, 7
        %v6771 = vsub.s32 0, %v6770
        %v6772 = vsel %vm6766, %v6771, %v6770
        %vm6773 = vcmp.lt.s32.totalorder %v594, 0
        %v6774 = vsub.s32 0, %v594
        %v6775 = vsel %vm6773, %v6774, %v594
        %v6776 = vshrl.u32 %v6775, 3
        %v6777 = vand.u32 %v6775, 7
        %v6778 = vsub.s32 0, %v6777
        %v6779 = vsel %vm6773, %v6778, %v6777
        %vm6780 = vcmp.lt.s32.totalorder %v595, 0
        %v6781 = vsub.s32 0, %v595
        %v6782 = vsel %vm6780, %v6781, %v595
        %v6783 = vshrl.u32 %v6782, 3
        %v6784 = vand.u32 %v6782, 7
        %v6785 = vsub.s32 0, %v6784
        %v6786 = vsel %vm6780, %v6785, %v6784
        %vm6787 = vcmp.lt.s32.totalorder %v596, 0
        %v6788 = vsub.s32 0, %v596
        %v6789 = vsel %vm6787, %v6788, %v596
        %v6790 = vshrl.u32 %v6789, 3
        %v6791 = vand.u32 %v6789, 7
        %v6792 = vsub.s32 0, %v6791
        %v6793 = vsel %vm6787, %v6792, %v6791
        %vm6794 = vcmp.lt.s32.totalorder %v597, 0
        %v6795 = vsub.s32 0, %v597
        %v6796 = vsel %vm6794, %v6795, %v597
        %v6797 = vshrl.u32 %v6796, 3
        %v6798 = vand.u32 %v6796, 7
        %v6799 = vsub.s32 0, %v6798
        %v6800 = vsel %vm6794, %v6799, %v6798
        %vm6801 = vcmp.lt.s32.totalorder %v598, 0
        %v6802 = vsub.s32 0, %v598
        %v6803 = vsel %vm6801, %v6802, %v598
        %v6804 = vshrl.u32 %v6803, 3
        %v6805 = vand.u32 %v6803, 7
        %v6806 = vsub.s32 0, %v6805
        %v6807 = vsel %vm6801, %v6806, %v6805
        %vm6808 = vcmp.lt.s32.totalorder %v599, 0
        %v6809 = vsub.s32 0, %v599
        %v6810 = vsel %vm6808, %v6809, %v599
        %v6811 = vshrl.u32 %v6810, 3
        %v6812 = vand.u32 %v6810, 7
        %v6813 = vsub.s32 0, %v6812
        %v6814 = vsel %vm6808, %v6813, %v6812
        %vm6815 = vcmp.lt.s32.totalorder %v600, 0
        %v6816 = vsub.s32 0, %v600
        %v6817 = vsel %vm6815, %v6816, %v600
        %v6818 = vshrl.u32 %v6817, 3
        %v6819 = vand.u32 %v6817, 7
        %v6820 = vsub.s32 0, %v6819
        %v6821 = vsel %vm6815, %v6820, %v6819
        %vm6822 = vcmp.lt.s32.totalorder %v601, 0
        %v6823 = vsub.s32 0, %v601
        %v6824 = vsel %vm6822, %v6823, %v601
        %v6825 = vshrl.u32 %v6824, 3
        %v6826 = vand.u32 %v6824, 7
        %v6827 = vsub.s32 0, %v6826
        %v6828 = vsel %vm6822, %v6827, %v6826
        %vm6829 = vcmp.lt.s32.totalorder %v602, 0
        %v6830 = vsub.s32 0, %v602
        %v6831 = vsel %vm6829, %v6830, %v602
        %v6832 = vshrl.u32 %v6831, 3
        %v6833 = vand.u32 %v6831, 7
        %v6834 = vsub.s32 0, %v6833
        %v6835 = vsel %vm6829, %v6834, %v6833
        %vm6836 = vcmp.lt.s32.totalorder %v603, 0
        %v6837 = vsub.s32 0, %v603
        %v6838 = vsel %vm6836, %v6837, %v603
        %v6839 = vshrl.u32 %v6838, 3
        %v6840 = vand.u32 %v6838, 7
        %v6841 = vsub.s32 0, %v6840
        %v6842 = vsel %vm6836, %v6841, %v6840
        %vm6843 = vcmp.lt.s32.totalorder %v604, 0
        %v6844 = vsub.s32 0, %v604
        %v6845 = vsel %vm6843, %v6844, %v604
        %v6846 = vshrl.u32 %v6845, 3
        %v6847 = vand.u32 %v6845, 7
        %v6848 = vsub.s32 0, %v6847
        %v6849 = vsel %vm6843, %v6848, %v6847
        %vm6850 = vcmp.lt.s32.totalorder %v605, 0
        %v6851 = vsub.s32 0, %v605
        %v6852 = vsel %vm6850, %v6851, %v605
        %v6853 = vshrl.u32 %v6852, 3
        %v6854 = vand.u32 %v6852, 7
        %v6855 = vsub.s32 0, %v6854
        %v6856 = vsel %vm6850, %v6855, %v6854
        %vm6857 = vcmp.lt.s32.totalorder %v606, 0
        %v6858 = vsub.s32 0, %v606
        %v6859 = vsel %vm6857, %v6858, %v606
        %v6860 = vshrl.u32 %v6859, 3
        %v6861 = vand.u32 %v6859, 7
        %v6862 = vsub.s32 0, %v6861
        %v6863 = vsel %vm6857, %v6862, %v6861
        %vm6864 = vcmp.lt.s32.totalorder %v607, 0
        %v6865 = vsub.s32 0, %v607
        %v6866 = vsel %vm6864, %v6865, %v607
        %v6867 = vshrl.u32 %v6866, 3
        %v6868 = vand.u32 %v6866, 7
        %v6869 = vsub.s32 0, %v6868
        %v6870 = vsel %vm6864, %v6869, %v6868
        %vm6871 = vcmp.lt.s32.totalorder %v608, 0
        %v6872 = vsub.s32 0, %v608
        %v6873 = vsel %vm6871, %v6872, %v608
        %v6874 = vshrl.u32 %v6873, 3
        %v6875 = vand.u32 %v6873, 7
        %v6876 = vsub.s32 0, %v6875
        %v6877 = vsel %vm6871, %v6876, %v6875
        %vm6878 = vcmp.lt.s32.totalorder %v609, 0
        %v6879 = vsub.s32 0, %v609
        %v6880 = vsel %vm6878, %v6879, %v609
        %v6881 = vshrl.u32 %v6880, 3
        %v6882 = vand.u32 %v6880, 7
        %v6883 = vsub.s32 0, %v6882
        %v6884 = vsel %vm6878, %v6883, %v6882
        %vm6885 = vcmp.lt.s32.totalorder %v610, 0
        %v6886 = vsub.s32 0, %v610
        %v6887 = vsel %vm6885, %v6886, %v610
        %v6888 = vshrl.u32 %v6887, 3
        %v6889 = vand.u32 %v6887, 7
        %v6890 = vsub.s32 0, %v6889
        %v6891 = vsel %vm6885, %v6890, %v6889
        %vm6892 = vcmp.lt.s32.totalorder %v611, 0
        %v6893 = vsub.s32 0, %v611
        %v6894 = vsel %vm6892, %v6893, %v611
        %v6895 = vshrl.u32 %v6894, 3
        %v6896 = vand.u32 %v6894, 7
        %v6897 = vsub.s32 0, %v6896
        %v6898 = vsel %vm6892, %v6897, %v6896
        %vm6899 = vcmp.lt.s32.totalorder %v612, 0
        %v6900 = vsub.s32 0, %v612
        %v6901 = vsel %vm6899, %v6900, %v612
        %v6902 = vshrl.u32 %v6901, 3
        %v6903 = vand.u32 %v6901, 7
        %v6904 = vsub.s32 0, %v6903
        %v6905 = vsel %vm6899, %v6904, %v6903
        %vm6906 = vcmp.lt.s32.totalorder %v613, 0
        %v6907 = vsub.s32 0, %v613
        %v6908 = vsel %vm6906, %v6907, %v613
        %v6909 = vshrl.u32 %v6908, 3
        %v6910 = vand.u32 %v6908, 7
        %v6911 = vsub.s32 0, %v6910
        %v6912 = vsel %vm6906, %v6911, %v6910
        %vm6913 = vcmp.lt.s32.totalorder %v614, 0
        %v6914 = vsub.s32 0, %v614
        %v6915 = vsel %vm6913, %v6914, %v614
        %v6916 = vshrl.u32 %v6915, 3
        %v6917 = vand.u32 %v6915, 7
        %v6918 = vsub.s32 0, %v6917
        %v6919 = vsel %vm6913, %v6918, %v6917
        %vm6920 = vcmp.lt.s32.totalorder %v615, 0
        %v6921 = vsub.s32 0, %v615
        %v6922 = vsel %vm6920, %v6921, %v615
        %v6923 = vshrl.u32 %v6922, 3
        %v6924 = vand.u32 %v6922, 7
        %v6925 = vsub.s32 0, %v6924
        %v6926 = vsel %vm6920, %v6925, %v6924
        %vm6927 = vcmp.lt.s32.totalorder %v616, 0
        %v6928 = vsub.s32 0, %v616
        %v6929 = vsel %vm6927, %v6928, %v616
        %v6930 = vshrl.u32 %v6929, 3
        %v6931 = vand.u32 %v6929, 7
        %v6932 = vsub.s32 0, %v6931
        %v6933 = vsel %vm6927, %v6932, %v6931
        %vm6934 = vcmp.lt.s32.totalorder %v617, 0
        %v6935 = vsub.s32 0, %v617
        %v6936 = vsel %vm6934, %v6935, %v617
        %v6937 = vshrl.u32 %v6936, 3
        %v6938 = vand.u32 %v6936, 7
        %v6939 = vsub.s32 0, %v6938
        %v6940 = vsel %vm6934, %v6939, %v6938
        %vm6941 = vcmp.lt.s32.totalorder %v618, 0
        %v6942 = vsub.s32 0, %v618
        %v6943 = vsel %vm6941, %v6942, %v618
        %v6944 = vshrl.u32 %v6943, 3
        %v6945 = vand.u32 %v6943, 7
        %v6946 = vsub.s32 0, %v6945
        %v6947 = vsel %vm6941, %v6946, %v6945
        %vm6948 = vcmp.lt.s32.totalorder %v619, 0
        %v6949 = vsub.s32 0, %v619
        %v6950 = vsel %vm6948, %v6949, %v619
        %v6951 = vshrl.u32 %v6950, 3
        %v6952 = vand.u32 %v6950, 7
        %v6953 = vsub.s32 0, %v6952
        %v6954 = vsel %vm6948, %v6953, %v6952
        %vm6955 = vcmp.lt.s32.totalorder %v620, 0
        %v6956 = vsub.s32 0, %v620
        %v6957 = vsel %vm6955, %v6956, %v620
        %v6958 = vshrl.u32 %v6957, 3
        %v6959 = vand.u32 %v6957, 7
        %v6960 = vsub.s32 0, %v6959
        %v6961 = vsel %vm6955, %v6960, %v6959
        %vm6962 = vcmp.lt.s32.totalorder %v621, 0
        %v6963 = vsub.s32 0, %v621
        %v6964 = vsel %vm6962, %v6963, %v621
        %v6965 = vshrl.u32 %v6964, 3
        %v6966 = vand.u32 %v6964, 7
        %v6967 = vsub.s32 0, %v6966
        %v6968 = vsel %vm6962, %v6967, %v6966
        %vm6969 = vcmp.lt.s32.totalorder %v622, 0
        %v6970 = vsub.s32 0, %v622
        %v6971 = vsel %vm6969, %v6970, %v622
        %v6972 = vshrl.u32 %v6971, 3
        %v6973 = vand.u32 %v6971, 7
        %v6974 = vsub.s32 0, %v6973
        %v6975 = vsel %vm6969, %v6974, %v6973
        %vm6976 = vcmp.lt.s32.totalorder %v623, 0
        %v6977 = vsub.s32 0, %v623
        %v6978 = vsel %vm6976, %v6977, %v623
        %v6979 = vshrl.u32 %v6978, 3
        %v6980 = vand.u32 %v6978, 7
        %v6981 = vsub.s32 0, %v6980
        %v6982 = vsel %vm6976, %v6981, %v6980
        %vm6983 = vcmp.lt.s32.totalorder %v624, 0
        %v6984 = vsub.s32 0, %v624
        %v6985 = vsel %vm6983, %v6984, %v624
        %v6986 = vshrl.u32 %v6985, 3
        %v6987 = vand.u32 %v6985, 7
        %v6988 = vsub.s32 0, %v6987
        %v6989 = vsel %vm6983, %v6988, %v6987
        %vm6990 = vcmp.lt.s32.totalorder %v625, 0
        %v6991 = vsub.s32 0, %v625
        %v6992 = vsel %vm6990, %v6991, %v625
        %v6993 = vshrl.u32 %v6992, 3
        %v6994 = vand.u32 %v6992, 7
        %v6995 = vsub.s32 0, %v6994
        %v6996 = vsel %vm6990, %v6995, %v6994
        %vm6997 = vcmp.lt.s32.totalorder %v626, 0
        %v6998 = vsub.s32 0, %v626
        %v6999 = vsel %vm6997, %v6998, %v626
        %v7000 = vshrl.u32 %v6999, 3
        %v7001 = vand.u32 %v6999, 7
        %v7002 = vsub.s32 0, %v7001
        %v7003 = vsel %vm6997, %v7002, %v7001
        %vm7004 = vcmp.lt.s32.totalorder %v627, 0
        %v7005 = vsub.s32 0, %v627
        %v7006 = vsel %vm7004, %v7005, %v627
        %v7007 = vshrl.u32 %v7006, 3
        %v7008 = vand.u32 %v7006, 7
        %v7009 = vsub.s32 0, %v7008
        %v7010 = vsel %vm7004, %v7009, %v7008
        %vm7011 = vcmp.lt.s32.totalorder %v628, 0
        %v7012 = vsub.s32 0, %v628
        %v7013 = vsel %vm7011, %v7012, %v628
        %v7014 = vshrl.u32 %v7013, 3
        %v7015 = vand.u32 %v7013, 7
        %v7016 = vsub.s32 0, %v7015
        %v7017 = vsel %vm7011, %v7016, %v7015
        %vm7018 = vcmp.lt.s32.totalorder %v629, 0
        %v7019 = vsub.s32 0, %v629
        %v7020 = vsel %vm7018, %v7019, %v629
        %v7021 = vshrl.u32 %v7020, 3
        %v7022 = vand.u32 %v7020, 7
        %v7023 = vsub.s32 0, %v7022
        %v7024 = vsel %vm7018, %v7023, %v7022
        %vm7025 = vcmp.lt.s32.totalorder %v630, 0
        %v7026 = vsub.s32 0, %v630
        %v7027 = vsel %vm7025, %v7026, %v630
        %v7028 = vshrl.u32 %v7027, 3
        %v7029 = vand.u32 %v7027, 7
        %v7030 = vsub.s32 0, %v7029
        %v7031 = vsel %vm7025, %v7030, %v7029
        %vm7032 = vcmp.lt.s32.totalorder %v631, 0
        %v7033 = vsub.s32 0, %v631
        %v7034 = vsel %vm7032, %v7033, %v631
        %v7035 = vshrl.u32 %v7034, 3
        %v7036 = vand.u32 %v7034, 7
        %v7037 = vsub.s32 0, %v7036
        %v7038 = vsel %vm7032, %v7037, %v7036
        %vm7039 = vcmp.lt.s32.totalorder %v632, 0
        %v7040 = vsub.s32 0, %v632
        %v7041 = vsel %vm7039, %v7040, %v632
        %v7042 = vshrl.u32 %v7041, 3
        %v7043 = vand.u32 %v7041, 7
        %v7044 = vsub.s32 0, %v7043
        %v7045 = vsel %vm7039, %v7044, %v7043
        %vm7046 = vcmp.lt.s32.totalorder %v633, 0
        %v7047 = vsub.s32 0, %v633
        %v7048 = vsel %vm7046, %v7047, %v633
        %v7049 = vshrl.u32 %v7048, 3
        %v7050 = vand.u32 %v7048, 7
        %v7051 = vsub.s32 0, %v7050
        %v7052 = vsel %vm7046, %v7051, %v7050
        %vm7053 = vcmp.lt.s32.totalorder %v634, 0
        %v7054 = vsub.s32 0, %v634
        %v7055 = vsel %vm7053, %v7054, %v634
        %v7056 = vshrl.u32 %v7055, 3
        %v7057 = vand.u32 %v7055, 7
        %v7058 = vsub.s32 0, %v7057
        %v7059 = vsel %vm7053, %v7058, %v7057
        %vm7060 = vcmp.lt.s32.totalorder %v635, 0
        %v7061 = vsub.s32 0, %v635
        %v7062 = vsel %vm7060, %v7061, %v635
        %v7063 = vshrl.u32 %v7062, 3
        %v7064 = vand.u32 %v7062, 7
        %v7065 = vsub.s32 0, %v7064
        %v7066 = vsel %vm7060, %v7065, %v7064
        %vm7067 = vcmp.ne.s32.totalorder %v6625, 0
        %vm7068 = vcmp.ne.s32.totalorder %v6632, 0
        %vm7069 = vcmp.ne.s32.totalorder %v6639, 0
        %vm7070 = vcmp.ne.s32.totalorder %v6646, 0
        %vm7071 = vcmp.ne.s32.totalorder %v6653, 0
        %vm7072 = vcmp.ne.s32.totalorder %v6660, 0
        %vm7073 = vcmp.ne.s32.totalorder %v6667, 0
        %vm7074 = vcmp.ne.s32.totalorder %v6674, 0
        %vm7075 = vcmp.ne.s32.totalorder %v6681, 0
        %vm7076 = vcmp.ne.s32.totalorder %v6688, 0
        %vm7077 = vcmp.ne.s32.totalorder %v6695, 0
        %vm7078 = vcmp.ne.s32.totalorder %v6702, 0
        %vm7079 = vcmp.ne.s32.totalorder %v6709, 0
        %vm7080 = vcmp.ne.s32.totalorder %v6716, 0
        %vm7081 = vcmp.ne.s32.totalorder %v6723, 0
        %vm7082 = vcmp.ne.s32.totalorder %v6730, 0
        %vm7083 = vcmp.ne.s32.totalorder %v6737, 0
        %vm7084 = vcmp.ne.s32.totalorder %v6744, 0
        %vm7085 = vcmp.ne.s32.totalorder %v6751, 0
        %vm7086 = vcmp.ne.s32.totalorder %v6758, 0
        %vm7087 = vcmp.ne.s32.totalorder %v6765, 0
        %vm7088 = vcmp.ne.s32.totalorder %v6772, 0
        %vm7089 = vcmp.ne.s32.totalorder %v6779, 0
        %vm7090 = vcmp.ne.s32.totalorder %v6786, 0
        %vm7091 = vcmp.ne.s32.totalorder %v6793, 0
        %vm7092 = vcmp.ne.s32.totalorder %v6800, 0
        %vm7093 = vcmp.ne.s32.totalorder %v6807, 0
        %vm7094 = vcmp.ne.s32.totalorder %v6814, 0
        %vm7095 = vcmp.ne.s32.totalorder %v6821, 0
        %vm7096 = vcmp.ne.s32.totalorder %v6828, 0
        %vm7097 = vcmp.ne.s32.totalorder %v6835, 0
        %vm7098 = vcmp.ne.s32.totalorder %v6842, 0
        %vm7099 = vcmp.ne.s32.totalorder %v6849, 0
        %vm7100 = vcmp.ne.s32.totalorder %v6856, 0
        %vm7101 = vcmp.ne.s32.totalorder %v6863, 0
        %vm7102 = vcmp.ne.s32.totalorder %v6870, 0
        %vm7103 = vcmp.ne.s32.totalorder %v6877, 0
        %vm7104 = vcmp.ne.s32.totalorder %v6884, 0
        %vm7105 = vcmp.ne.s32.totalorder %v6891, 0
        %vm7106 = vcmp.ne.s32.totalorder %v6898, 0
        %vm7107 = vcmp.ne.s32.totalorder %v6905, 0
        %vm7108 = vcmp.ne.s32.totalorder %v6912, 0
        %vm7109 = vcmp.ne.s32.totalorder %v6919, 0
        %vm7110 = vcmp.ne.s32.totalorder %v6926, 0
        %vm7111 = vcmp.ne.s32.totalorder %v6933, 0
        %vm7112 = vcmp.ne.s32.totalorder %v6940, 0
        %vm7113 = vcmp.ne.s32.totalorder %v6947, 0
        %vm7114 = vcmp.ne.s32.totalorder %v6954, 0
        %vm7115 = vcmp.ne.s32.totalorder %v6961, 0
        %vm7116 = vcmp.ne.s32.totalorder %v6968, 0
        %vm7117 = vcmp.ne.s32.totalorder %v6975, 0
        %vm7118 = vcmp.ne.s32.totalorder %v6982, 0
        %vm7119 = vcmp.ne.s32.totalorder %v6989, 0
        %vm7120 = vcmp.ne.s32.totalorder %v6996, 0
        %vm7121 = vcmp.ne.s32.totalorder %v7003, 0
        %vm7122 = vcmp.ne.s32.totalorder %v7010, 0
        %vm7123 = vcmp.ne.s32.totalorder %v7017, 0
        %vm7124 = vcmp.ne.s32.totalorder %v7024, 0
        %vm7125 = vcmp.ne.s32.totalorder %v7031, 0
        %vm7126 = vcmp.ne.s32.totalorder %v7038, 0
        %vm7127 = vcmp.ne.s32.totalorder %v7045, 0
        %vm7128 = vcmp.ne.s32.totalorder %v7052, 0
        %vm7129 = vcmp.ne.s32.totalorder %v7059, 0
        %vm7130 = vcmp.ne.s32.totalorder %v7066, 0
        %vm7131 = vcmp.lt.s32.totalorder %v6625, 0
        %vm7132 = vcmp.lt.s32.totalorder %v6632, 0
        %vm7133 = vcmp.lt.s32.totalorder %v6639, 0
        %vm7134 = vcmp.lt.s32.totalorder %v6646, 0
        %vm7135 = vcmp.lt.s32.totalorder %v6653, 0
        %vm7136 = vcmp.lt.s32.totalorder %v6660, 0
        %vm7137 = vcmp.lt.s32.totalorder %v6667, 0
        %vm7138 = vcmp.lt.s32.totalorder %v6674, 0
        %vm7139 = vcmp.lt.s32.totalorder %v6681, 0
        %vm7140 = vcmp.lt.s32.totalorder %v6688, 0
        %vm7141 = vcmp.lt.s32.totalorder %v6695, 0
        %vm7142 = vcmp.lt.s32.totalorder %v6702, 0
        %vm7143 = vcmp.lt.s32.totalorder %v6709, 0
        %vm7144 = vcmp.lt.s32.totalorder %v6716, 0
        %vm7145 = vcmp.lt.s32.totalorder %v6723, 0
        %vm7146 = vcmp.lt.s32.totalorder %v6730, 0
        %vm7147 = vcmp.lt.s32.totalorder %v6737, 0
        %vm7148 = vcmp.lt.s32.totalorder %v6744, 0
        %vm7149 = vcmp.lt.s32.totalorder %v6751, 0
        %vm7150 = vcmp.lt.s32.totalorder %v6758, 0
        %vm7151 = vcmp.lt.s32.totalorder %v6765, 0
        %vm7152 = vcmp.lt.s32.totalorder %v6772, 0
        %vm7153 = vcmp.lt.s32.totalorder %v6779, 0
        %vm7154 = vcmp.lt.s32.totalorder %v6786, 0
        %vm7155 = vcmp.lt.s32.totalorder %v6793, 0
        %vm7156 = vcmp.lt.s32.totalorder %v6800, 0
        %vm7157 = vcmp.lt.s32.totalorder %v6807, 0
        %vm7158 = vcmp.lt.s32.totalorder %v6814, 0
        %vm7159 = vcmp.lt.s32.totalorder %v6821, 0
        %vm7160 = vcmp.lt.s32.totalorder %v6828, 0
        %vm7161 = vcmp.lt.s32.totalorder %v6835, 0
        %vm7162 = vcmp.lt.s32.totalorder %v6842, 0
        %vm7163 = vcmp.lt.s32.totalorder %v6849, 0
        %vm7164 = vcmp.lt.s32.totalorder %v6856, 0
        %vm7165 = vcmp.lt.s32.totalorder %v6863, 0
        %vm7166 = vcmp.lt.s32.totalorder %v6870, 0
        %vm7167 = vcmp.lt.s32.totalorder %v6877, 0
        %vm7168 = vcmp.lt.s32.totalorder %v6884, 0
        %vm7169 = vcmp.lt.s32.totalorder %v6891, 0
        %vm7170 = vcmp.lt.s32.totalorder %v6898, 0
        %vm7171 = vcmp.lt.s32.totalorder %v6905, 0
        %vm7172 = vcmp.lt.s32.totalorder %v6912, 0
        %vm7173 = vcmp.lt.s32.totalorder %v6919, 0
        %vm7174 = vcmp.lt.s32.totalorder %v6926, 0
        %vm7175 = vcmp.lt.s32.totalorder %v6933, 0
        %vm7176 = vcmp.lt.s32.totalorder %v6940, 0
        %vm7177 = vcmp.lt.s32.totalorder %v6947, 0
        %vm7178 = vcmp.lt.s32.totalorder %v6954, 0
        %vm7179 = vcmp.lt.s32.totalorder %v6961, 0
        %vm7180 = vcmp.lt.s32.totalorder %v6968, 0
        %vm7181 = vcmp.lt.s32.totalorder %v6975, 0
        %vm7182 = vcmp.lt.s32.totalorder %v6982, 0
        %vm7183 = vcmp.lt.s32.totalorder %v6989, 0
        %vm7184 = vcmp.lt.s32.totalorder %v6996, 0
        %vm7185 = vcmp.lt.s32.totalorder %v7003, 0
        %vm7186 = vcmp.lt.s32.totalorder %v7010, 0
        %vm7187 = vcmp.lt.s32.totalorder %v7017, 0
        %vm7188 = vcmp.lt.s32.totalorder %v7024, 0
        %vm7189 = vcmp.lt.s32.totalorder %v7031, 0
        %vm7190 = vcmp.lt.s32.totalorder %v7038, 0
        %vm7191 = vcmp.lt.s32.totalorder %v7045, 0
        %vm7192 = vcmp.lt.s32.totalorder %v7052, 0
        %vm7193 = vcmp.lt.s32.totalorder %v7059, 0
        %vm7194 = vcmp.lt.s32.totalorder %v7066, 0
        %vm7195 = vmand %vm7131, %vm7067
        %vm7196 = vmand %vm7132, %vm7068
        %vm7197 = vmand %vm7133, %vm7069
        %vm7198 = vmand %vm7134, %vm7070
        %vm7199 = vmand %vm7135, %vm7071
        %vm7200 = vmand %vm7136, %vm7072
        %vm7201 = vmand %vm7137, %vm7073
        %vm7202 = vmand %vm7138, %vm7074
        %vm7203 = vmand %vm7139, %vm7075
        %vm7204 = vmand %vm7140, %vm7076
        %vm7205 = vmand %vm7141, %vm7077
        %vm7206 = vmand %vm7142, %vm7078
        %vm7207 = vmand %vm7143, %vm7079
        %vm7208 = vmand %vm7144, %vm7080
        %vm7209 = vmand %vm7145, %vm7081
        %vm7210 = vmand %vm7146, %vm7082
        %vm7211 = vmand %vm7147, %vm7083
        %vm7212 = vmand %vm7148, %vm7084
        %vm7213 = vmand %vm7149, %vm7085
        %vm7214 = vmand %vm7150, %vm7086
        %vm7215 = vmand %vm7151, %vm7087
        %vm7216 = vmand %vm7152, %vm7088
        %vm7217 = vmand %vm7153, %vm7089
        %vm7218 = vmand %vm7154, %vm7090
        %vm7219 = vmand %vm7155, %vm7091
        %vm7220 = vmand %vm7156, %vm7092
        %vm7221 = vmand %vm7157, %vm7093
        %vm7222 = vmand %vm7158, %vm7094
        %vm7223 = vmand %vm7159, %vm7095
        %vm7224 = vmand %vm7160, %vm7096
        %vm7225 = vmand %vm7161, %vm7097
        %vm7226 = vmand %vm7162, %vm7098
        %vm7227 = vmand %vm7163, %vm7099
        %vm7228 = vmand %vm7164, %vm7100
        %vm7229 = vmand %vm7165, %vm7101
        %vm7230 = vmand %vm7166, %vm7102
        %vm7231 = vmand %vm7167, %vm7103
        %vm7232 = vmand %vm7168, %vm7104
        %vm7233 = vmand %vm7169, %vm7105
        %vm7234 = vmand %vm7170, %vm7106
        %vm7235 = vmand %vm7171, %vm7107
        %vm7236 = vmand %vm7172, %vm7108
        %vm7237 = vmand %vm7173, %vm7109
        %vm7238 = vmand %vm7174, %vm7110
        %vm7239 = vmand %vm7175, %vm7111
        %vm7240 = vmand %vm7176, %vm7112
        %vm7241 = vmand %vm7177, %vm7113
        %vm7242 = vmand %vm7178, %vm7114
        %vm7243 = vmand %vm7179, %vm7115
        %vm7244 = vmand %vm7180, %vm7116
        %vm7245 = vmand %vm7181, %vm7117
        %vm7246 = vmand %vm7182, %vm7118
        %vm7247 = vmand %vm7183, %vm7119
        %vm7248 = vmand %vm7184, %vm7120
        %vm7249 = vmand %vm7185, %vm7121
        %vm7250 = vmand %vm7186, %vm7122
        %vm7251 = vmand %vm7187, %vm7123
        %vm7252 = vmand %vm7188, %vm7124
        %vm7253 = vmand %vm7189, %vm7125
        %vm7254 = vmand %vm7190, %vm7126
        %vm7255 = vmand %vm7191, %vm7127
        %vm7256 = vmand %vm7192, %vm7128
        %vm7257 = vmand %vm7193, %vm7129
        %vm7258 = vmand %vm7194, %vm7130
        %v7259 = vadd.s32 %v6625, 8
        %v7260 = vadd.s32 %v6632, 8
        %v7261 = vadd.s32 %v6639, 8
        %v7262 = vadd.s32 %v6646, 8
        %v7263 = vadd.s32 %v6653, 8
        %v7264 = vadd.s32 %v6660, 8
        %v7265 = vadd.s32 %v6667, 8
        %v7266 = vadd.s32 %v6674, 8
        %v7267 = vadd.s32 %v6681, 8
        %v7268 = vadd.s32 %v6688, 8
        %v7269 = vadd.s32 %v6695, 8
        %v7270 = vadd.s32 %v6702, 8
        %v7271 = vadd.s32 %v6709, 8
        %v7272 = vadd.s32 %v6716, 8
        %v7273 = vadd.s32 %v6723, 8
        %v7274 = vadd.s32 %v6730, 8
        %v7275 = vadd.s32 %v6737, 8
        %v7276 = vadd.s32 %v6744, 8
        %v7277 = vadd.s32 %v6751, 8
        %v7278 = vadd.s32 %v6758, 8
        %v7279 = vadd.s32 %v6765, 8
        %v7280 = vadd.s32 %v6772, 8
        %v7281 = vadd.s32 %v6779, 8
        %v7282 = vadd.s32 %v6786, 8
        %v7283 = vadd.s32 %v6793, 8
        %v7284 = vadd.s32 %v6800, 8
        %v7285 = vadd.s32 %v6807, 8
        %v7286 = vadd.s32 %v6814, 8
        %v7287 = vadd.s32 %v6821, 8
        %v7288 = vadd.s32 %v6828, 8
        %v7289 = vadd.s32 %v6835, 8
        %v7290 = vadd.s32 %v6842, 8
        %v7291 = vadd.s32 %v6849, 8
        %v7292 = vadd.s32 %v6856, 8
        %v7293 = vadd.s32 %v6863, 8
        %v7294 = vadd.s32 %v6870, 8
        %v7295 = vadd.s32 %v6877, 8
        %v7296 = vadd.s32 %v6884, 8
        %v7297 = vadd.s32 %v6891, 8
        %v7298 = vadd.s32 %v6898, 8
        %v7299 = vadd.s32 %v6905, 8
        %v7300 = vadd.s32 %v6912, 8
        %v7301 = vadd.s32 %v6919, 8
        %v7302 = vadd.s32 %v6926, 8
        %v7303 = vadd.s32 %v6933, 8
        %v7304 = vadd.s32 %v6940, 8
        %v7305 = vadd.s32 %v6947, 8
        %v7306 = vadd.s32 %v6954, 8
        %v7307 = vadd.s32 %v6961, 8
        %v7308 = vadd.s32 %v6968, 8
        %v7309 = vadd.s32 %v6975, 8
        %v7310 = vadd.s32 %v6982, 8
        %v7311 = vadd.s32 %v6989, 8
        %v7312 = vadd.s32 %v6996, 8
        %v7313 = vadd.s32 %v7003, 8
        %v7314 = vadd.s32 %v7010, 8
        %v7315 = vadd.s32 %v7017, 8
        %v7316 = vadd.s32 %v7024, 8
        %v7317 = vadd.s32 %v7031, 8
        %v7318 = vadd.s32 %v7038, 8
        %v7319 = vadd.s32 %v7045, 8
        %v7320 = vadd.s32 %v7052, 8
        %v7321 = vadd.s32 %v7059, 8
        %v7322 = vadd.s32 %v7066, 8
        %v7323 = vsel %vm7195, %v7259, %v6625
        %v7324 = vsel %vm7196, %v7260, %v6632
        %v7325 = vsel %vm7197, %v7261, %v6639
        %v7326 = vsel %vm7198, %v7262, %v6646
        %v7327 = vsel %vm7199, %v7263, %v6653
        %v7328 = vsel %vm7200, %v7264, %v6660
        %v7329 = vsel %vm7201, %v7265, %v6667
        %v7330 = vsel %vm7202, %v7266, %v6674
        %v7331 = vsel %vm7203, %v7267, %v6681
        %v7332 = vsel %vm7204, %v7268, %v6688
        %v7333 = vsel %vm7205, %v7269, %v6695
        %v7334 = vsel %vm7206, %v7270, %v6702
        %v7335 = vsel %vm7207, %v7271, %v6709
        %v7336 = vsel %vm7208, %v7272, %v6716
        %v7337 = vsel %vm7209, %v7273, %v6723
        %v7338 = vsel %vm7210, %v7274, %v6730
        %v7339 = vsel %vm7211, %v7275, %v6737
        %v7340 = vsel %vm7212, %v7276, %v6744
        %v7341 = vsel %vm7213, %v7277, %v6751
        %v7342 = vsel %vm7214, %v7278, %v6758
        %v7343 = vsel %vm7215, %v7279, %v6765
        %v7344 = vsel %vm7216, %v7280, %v6772
        %v7345 = vsel %vm7217, %v7281, %v6779
        %v7346 = vsel %vm7218, %v7282, %v6786
        %v7347 = vsel %vm7219, %v7283, %v6793
        %v7348 = vsel %vm7220, %v7284, %v6800
        %v7349 = vsel %vm7221, %v7285, %v6807
        %v7350 = vsel %vm7222, %v7286, %v6814
        %v7351 = vsel %vm7223, %v7287, %v6821
        %v7352 = vsel %vm7224, %v7288, %v6828
        %v7353 = vsel %vm7225, %v7289, %v6835
        %v7354 = vsel %vm7226, %v7290, %v6842
        %v7355 = vsel %vm7227, %v7291, %v6849
        %v7356 = vsel %vm7228, %v7292, %v6856
        %v7357 = vsel %vm7229, %v7293, %v6863
        %v7358 = vsel %vm7230, %v7294, %v6870
        %v7359 = vsel %vm7231, %v7295, %v6877
        %v7360 = vsel %vm7232, %v7296, %v6884
        %v7361 = vsel %vm7233, %v7297, %v6891
        %v7362 = vsel %vm7234, %v7298, %v6898
        %v7363 = vsel %vm7235, %v7299, %v6905
        %v7364 = vsel %vm7236, %v7300, %v6912
        %v7365 = vsel %vm7237, %v7301, %v6919
        %v7366 = vsel %vm7238, %v7302, %v6926
        %v7367 = vsel %vm7239, %v7303, %v6933
        %v7368 = vsel %vm7240, %v7304, %v6940
        %v7369 = vsel %vm7241, %v7305, %v6947
        %v7370 = vsel %vm7242, %v7306, %v6954
        %v7371 = vsel %vm7243, %v7307, %v6961
        %v7372 = vsel %vm7244, %v7308, %v6968
        %v7373 = vsel %vm7245, %v7309, %v6975
        %v7374 = vsel %vm7246, %v7310, %v6982
        %v7375 = vsel %vm7247, %v7311, %v6989
        %v7376 = vsel %vm7248, %v7312, %v6996
        %v7377 = vsel %vm7249, %v7313, %v7003
        %v7378 = vsel %vm7250, %v7314, %v7010
        %v7379 = vsel %vm7251, %v7315, %v7017
        %v7380 = vsel %vm7252, %v7316, %v7024
        %v7381 = vsel %vm7253, %v7317, %v7031
        %v7382 = vsel %vm7254, %v7318, %v7038
        %v7383 = vsel %vm7255, %v7319, %v7045
        %v7384 = vsel %vm7256, %v7320, %v7052
        %v7385 = vsel %vm7257, %v7321, %v7059
        %v7386 = vsel %vm7258, %v7322, %v7066
        %vm7387 = vcmp.eq.s32.totalorder %v7323, 0
        %vm7388 = vcmp.eq.s32.totalorder %v7324, 0
        %vm7389 = vcmp.eq.s32.totalorder %v7325, 0
        %vm7390 = vcmp.eq.s32.totalorder %v7326, 0
        %vm7391 = vcmp.eq.s32.totalorder %v7327, 0
        %vm7392 = vcmp.eq.s32.totalorder %v7328, 0
        %vm7393 = vcmp.eq.s32.totalorder %v7329, 0
        %vm7394 = vcmp.eq.s32.totalorder %v7330, 0
        %vm7395 = vcmp.eq.s32.totalorder %v7331, 0
        %vm7396 = vcmp.eq.s32.totalorder %v7332, 0
        %vm7397 = vcmp.eq.s32.totalorder %v7333, 0
        %vm7398 = vcmp.eq.s32.totalorder %v7334, 0
        %vm7399 = vcmp.eq.s32.totalorder %v7335, 0
        %vm7400 = vcmp.eq.s32.totalorder %v7336, 0
        %vm7401 = vcmp.eq.s32.totalorder %v7337, 0
        %vm7402 = vcmp.eq.s32.totalorder %v7338, 0
        %vm7403 = vcmp.eq.s32.totalorder %v7339, 0
        %vm7404 = vcmp.eq.s32.totalorder %v7340, 0
        %vm7405 = vcmp.eq.s32.totalorder %v7341, 0
        %vm7406 = vcmp.eq.s32.totalorder %v7342, 0
        %vm7407 = vcmp.eq.s32.totalorder %v7343, 0
        %vm7408 = vcmp.eq.s32.totalorder %v7344, 0
        %vm7409 = vcmp.eq.s32.totalorder %v7345, 0
        %vm7410 = vcmp.eq.s32.totalorder %v7346, 0
        %vm7411 = vcmp.eq.s32.totalorder %v7347, 0
        %vm7412 = vcmp.eq.s32.totalorder %v7348, 0
        %vm7413 = vcmp.eq.s32.totalorder %v7349, 0
        %vm7414 = vcmp.eq.s32.totalorder %v7350, 0
        %vm7415 = vcmp.eq.s32.totalorder %v7351, 0
        %vm7416 = vcmp.eq.s32.totalorder %v7352, 0
        %vm7417 = vcmp.eq.s32.totalorder %v7353, 0
        %vm7418 = vcmp.eq.s32.totalorder %v7354, 0
        %vm7419 = vcmp.eq.s32.totalorder %v7355, 0
        %vm7420 = vcmp.eq.s32.totalorder %v7356, 0
        %vm7421 = vcmp.eq.s32.totalorder %v7357, 0
        %vm7422 = vcmp.eq.s32.totalorder %v7358, 0
        %vm7423 = vcmp.eq.s32.totalorder %v7359, 0
        %vm7424 = vcmp.eq.s32.totalorder %v7360, 0
        %vm7425 = vcmp.eq.s32.totalorder %v7361, 0
        %vm7426 = vcmp.eq.s32.totalorder %v7362, 0
        %vm7427 = vcmp.eq.s32.totalorder %v7363, 0
        %vm7428 = vcmp.eq.s32.totalorder %v7364, 0
        %vm7429 = vcmp.eq.s32.totalorder %v7365, 0
        %vm7430 = vcmp.eq.s32.totalorder %v7366, 0
        %vm7431 = vcmp.eq.s32.totalorder %v7367, 0
        %vm7432 = vcmp.eq.s32.totalorder %v7368, 0
        %vm7433 = vcmp.eq.s32.totalorder %v7369, 0
        %vm7434 = vcmp.eq.s32.totalorder %v7370, 0
        %vm7435 = vcmp.eq.s32.totalorder %v7371, 0
        %vm7436 = vcmp.eq.s32.totalorder %v7372, 0
        %vm7437 = vcmp.eq.s32.totalorder %v7373, 0
        %vm7438 = vcmp.eq.s32.totalorder %v7374, 0
        %vm7439 = vcmp.eq.s32.totalorder %v7375, 0
        %vm7440 = vcmp.eq.s32.totalorder %v7376, 0
        %vm7441 = vcmp.eq.s32.totalorder %v7377, 0
        %vm7442 = vcmp.eq.s32.totalorder %v7378, 0
        %vm7443 = vcmp.eq.s32.totalorder %v7379, 0
        %vm7444 = vcmp.eq.s32.totalorder %v7380, 0
        %vm7445 = vcmp.eq.s32.totalorder %v7381, 0
        %vm7446 = vcmp.eq.s32.totalorder %v7382, 0
        %vm7447 = vcmp.eq.s32.totalorder %v7383, 0
        %vm7448 = vcmp.eq.s32.totalorder %v7384, 0
        %vm7449 = vcmp.eq.s32.totalorder %v7385, 0
        %vm7450 = vcmp.eq.s32.totalorder %v7386, 0
        %v7451 = vrot.slane %v6555, 7
        %v7452 = vrot.slane %v6556, 7
        %v7453 = vrot.slane %v6557, 7
        %v7454 = vrot.slane %v6558, 7
        %v7455 = vrot.slane %v6559, 7
        %v7456 = vrot.slane %v6560, 7
        %v7457 = vrot.slane %v6561, 7
        %v7458 = vrot.slane %v6562, 7
        %v7459 = vrot.slane %v6563, 7
        %v7460 = vrot.slane %v6564, 7
        %v7461 = vrot.slane %v6565, 7
        %v7462 = vrot.slane %v6566, 7
        %v7463 = vrot.slane %v6567, 7
        %v7464 = vrot.slane %v6568, 7
        %v7465 = vrot.slane %v6569, 7
        %v7466 = vrot.slane %v6570, 7
        %v7467 = vrot.slane %v6571, 7
        %v7468 = vrot.slane %v6572, 7
        %v7469 = vrot.slane %v6573, 7
        %v7470 = vrot.slane %v6574, 7
        %v7471 = vrot.slane %v6575, 7
        %v7472 = vrot.slane %v6576, 7
        %v7473 = vrot.slane %v6577, 7
        %v7474 = vrot.slane %v6578, 7
        %v7475 = vrot.slane %v6579, 7
        %v7476 = vrot.slane %v6580, 7
        %v7477 = vrot.slane %v6581, 7
        %v7478 = vrot.slane %v6582, 7
        %v7479 = vrot.slane %v6583, 7
        %v7480 = vrot.slane %v6584, 7
        %v7481 = vrot.slane %v6585, 7
        %v7482 = vrot.slane %v6586, 7
        %v7483 = vrot.slane %v6587, 7
        %v7484 = vrot.slane %v6588, 7
        %v7485 = vrot.slane %v6589, 7
        %v7486 = vrot.slane %v6590, 7
        %v7487 = vrot.slane %v6591, 7
        %v7488 = vrot.slane %v6592, 7
        %v7489 = vrot.slane %v6593, 7
        %v7490 = vrot.slane %v6594, 7
        %v7491 = vrot.slane %v6595, 7
        %v7492 = vrot.slane %v6596, 7
        %v7493 = vrot.slane %v6597, 7
        %v7494 = vrot.slane %v6598, 7
        %v7495 = vrot.slane %v6599, 7
        %v7496 = vrot.slane %v6600, 7
        %v7497 = vrot.slane %v6601, 7
        %v7498 = vrot.slane %v6602, 7
        %v7499 = vrot.slane %v6603, 7
        %v7500 = vrot.slane %v6604, 7
        %v7501 = vrot.slane %v6605, 7
        %v7502 = vrot.slane %v6606, 7
        %v7503 = vrot.slane %v6607, 7
        %v7504 = vrot.slane %v6608, 7
        %v7505 = vrot.slane %v6609, 7
        %v7506 = vrot.slane %v6610, 7
        %v7507 = vrot.slane %v6611, 7
        %v7508 = vrot.slane %v6612, 7
        %v7509 = vrot.slane %v6613, 7
        %v7510 = vrot.slane %v6614, 7
        %v7511 = vrot.slane %v6615, 7
        %v7512 = vrot.slane %v6616, 7
        %v7513 = vrot.slane %v6617, 7
        %v7514 = vrot.slane %v6618, 7
        %v7515 = vsel %vm2492, %v7513, %v7514
        %v7516 = vsel %vm2492, %v7512, %v7513
        %v7517 = vsel %vm2492, %v7511, %v7512
        %v7518 = vsel %vm2492, %v7510, %v7511
        %v7519 = vsel %vm2492, %v7509, %v7510
        %v7520 = vsel %vm2492, %v7508, %v7509
        %v7521 = vsel %vm2492, %v7507, %v7508
        %v7522 = vsel %vm2492, %v7506, %v7507
        %v7523 = vsel %vm2492, %v7505, %v7506
        %v7524 = vsel %vm2492, %v7504, %v7505
        %v7525 = vsel %vm2492, %v7503, %v7504
        %v7526 = vsel %vm2492, %v7502, %v7503
        %v7527 = vsel %vm2492, %v7501, %v7502
        %v7528 = vsel %vm2492, %v7500, %v7501
        %v7529 = vsel %vm2492, %v7499, %v7500
        %v7530 = vsel %vm2492, %v7498, %v7499
        %v7531 = vsel %vm2492, %v7497, %v7498
        %v7532 = vsel %vm2492, %v7496, %v7497
        %v7533 = vsel %vm2492, %v7495, %v7496
        %v7534 = vsel %vm2492, %v7494, %v7495
        %v7535 = vsel %vm2492, %v7493, %v7494
        %v7536 = vsel %vm2492, %v7492, %v7493
        %v7537 = vsel %vm2492, %v7491, %v7492
        %v7538 = vsel %vm2492, %v7490, %v7491
        %v7539 = vsel %vm2492, %v7489, %v7490
        %v7540 = vsel %vm2492, %v7488, %v7489
        %v7541 = vsel %vm2492, %v7487, %v7488
        %v7542 = vsel %vm2492, %v7486, %v7487
        %v7543 = vsel %vm2492, %v7485, %v7486
        %v7544 = vsel %vm2492, %v7484, %v7485
        %v7545 = vsel %vm2492, %v7483, %v7484
        %v7546 = vsel %vm2492, %v7482, %v7483
        %v7547 = vsel %vm2492, %v7481, %v7482
        %v7548 = vsel %vm2492, %v7480, %v7481
        %v7549 = vsel %vm2492, %v7479, %v7480
        %v7550 = vsel %vm2492, %v7478, %v7479
        %v7551 = vsel %vm2492, %v7477, %v7478
        %v7552 = vsel %vm2492, %v7476, %v7477
        %v7553 = vsel %vm2492, %v7475, %v7476
        %v7554 = vsel %vm2492, %v7474, %v7475
        %v7555 = vsel %vm2492, %v7473, %v7474
        %v7556 = vsel %vm2492, %v7472, %v7473
        %v7557 = vsel %vm2492, %v7471, %v7472
        %v7558 = vsel %vm2492, %v7470, %v7471
        %v7559 = vsel %vm2492, %v7469, %v7470
        %v7560 = vsel %vm2492, %v7468, %v7469
        %v7561 = vsel %vm2492, %v7467, %v7468
        %v7562 = vsel %vm2492, %v7466, %v7467
        %v7563 = vsel %vm2492, %v7465, %v7466
        %v7564 = vsel %vm2492, %v7464, %v7465
        %v7565 = vsel %vm2492, %v7463, %v7464
        %v7566 = vsel %vm2492, %v7462, %v7463
        %v7567 = vsel %vm2492, %v7461, %v7462
        %v7568 = vsel %vm2492, %v7460, %v7461
        %v7569 = vsel %vm2492, %v7459, %v7460
        %v7570 = vsel %vm2492, %v7458, %v7459
        %v7571 = vsel %vm2492, %v7457, %v7458
        %v7572 = vsel %vm2492, %v7456, %v7457
        %v7573 = vsel %vm2492, %v7455, %v7456
        %v7574 = vsel %vm2492, %v7454, %v7455
        %v7575 = vsel %vm2492, %v7453, %v7454
        %v7576 = vsel %vm2492, %v7452, %v7453
        %v7577 = vsel %vm2492, %v7451, %v7452
        %v7578 = vsel %vm2492, %v7514, %v7451
        %v7579 = vsel %vm7387, 1, 0
        %v7580 = vsel %vm7388, 1, 0
        %v7581 = vsel %vm7389, 1, 0
        %v7582 = vsel %vm7390, 1, 0
        %v7583 = vsel %vm7391, 1, 0
        %v7584 = vsel %vm7392, 1, 0
        %v7585 = vsel %vm7393, 1, 0
        %v7586 = vsel %vm7394, 1, 0
        %v7587 = vsel %vm7395, 1, 0
        %v7588 = vsel %vm7396, 1, 0
        %v7589 = vsel %vm7397, 1, 0
        %v7590 = vsel %vm7398, 1, 0
        %v7591 = vsel %vm7399, 1, 0
        %v7592 = vsel %vm7400, 1, 0
        %v7593 = vsel %vm7401, 1, 0
        %v7594 = vsel %vm7402, 1, 0
        %v7595 = vsel %vm7403, 1, 0
        %v7596 = vsel %vm7404, 1, 0
        %v7597 = vsel %vm7405, 1, 0
        %v7598 = vsel %vm7406, 1, 0
        %v7599 = vsel %vm7407, 1, 0
        %v7600 = vsel %vm7408, 1, 0
        %v7601 = vsel %vm7409, 1, 0
        %v7602 = vsel %vm7410, 1, 0
        %v7603 = vsel %vm7411, 1, 0
        %v7604 = vsel %vm7412, 1, 0
        %v7605 = vsel %vm7413, 1, 0
        %v7606 = vsel %vm7414, 1, 0
        %v7607 = vsel %vm7415, 1, 0
        %v7608 = vsel %vm7416, 1, 0
        %v7609 = vsel %vm7417, 1, 0
        %v7610 = vsel %vm7418, 1, 0
        %v7611 = vsel %vm7419, 1, 0
        %v7612 = vsel %vm7420, 1, 0
        %v7613 = vsel %vm7421, 1, 0
        %v7614 = vsel %vm7422, 1, 0
        %v7615 = vsel %vm7423, 1, 0
        %v7616 = vsel %vm7424, 1, 0
        %v7617 = vsel %vm7425, 1, 0
        %v7618 = vsel %vm7426, 1, 0
        %v7619 = vsel %vm7427, 1, 0
        %v7620 = vsel %vm7428, 1, 0
        %v7621 = vsel %vm7429, 1, 0
        %v7622 = vsel %vm7430, 1, 0
        %v7623 = vsel %vm7431, 1, 0
        %v7624 = vsel %vm7432, 1, 0
        %v7625 = vsel %vm7433, 1, 0
        %v7626 = vsel %vm7434, 1, 0
        %v7627 = vsel %vm7435, 1, 0
        %v7628 = vsel %vm7436, 1, 0
        %v7629 = vsel %vm7437, 1, 0
        %v7630 = vsel %vm7438, 1, 0
        %v7631 = vsel %vm7439, 1, 0
        %v7632 = vsel %vm7440, 1, 0
        %v7633 = vsel %vm7441, 1, 0
        %v7634 = vsel %vm7442, 1, 0
        %v7635 = vsel %vm7443, 1, 0
        %v7636 = vsel %vm7444, 1, 0
        %v7637 = vsel %vm7445, 1, 0
        %v7638 = vsel %vm7446, 1, 0
        %v7639 = vsel %vm7447, 1, 0
        %v7640 = vsel %vm7448, 1, 0
        %v7641 = vsel %vm7449, 1, 0
        %v7642 = vsel %vm7450, 1, 0
        %vm7643 = vcmp.eq.s32.totalorder %v7579, 1
        %vm7644 = vcmp.eq.s32.totalorder %v7580, 1
        %vm7645 = vcmp.eq.s32.totalorder %v7581, 1
        %vm7646 = vcmp.eq.s32.totalorder %v7582, 1
        %vm7647 = vcmp.eq.s32.totalorder %v7583, 1
        %vm7648 = vcmp.eq.s32.totalorder %v7584, 1
        %vm7649 = vcmp.eq.s32.totalorder %v7585, 1
        %vm7650 = vcmp.eq.s32.totalorder %v7586, 1
        %vm7651 = vcmp.eq.s32.totalorder %v7587, 1
        %vm7652 = vcmp.eq.s32.totalorder %v7588, 1
        %vm7653 = vcmp.eq.s32.totalorder %v7589, 1
        %vm7654 = vcmp.eq.s32.totalorder %v7590, 1
        %vm7655 = vcmp.eq.s32.totalorder %v7591, 1
        %vm7656 = vcmp.eq.s32.totalorder %v7592, 1
        %vm7657 = vcmp.eq.s32.totalorder %v7593, 1
        %vm7658 = vcmp.eq.s32.totalorder %v7594, 1
        %vm7659 = vcmp.eq.s32.totalorder %v7595, 1
        %vm7660 = vcmp.eq.s32.totalorder %v7596, 1
        %vm7661 = vcmp.eq.s32.totalorder %v7597, 1
        %vm7662 = vcmp.eq.s32.totalorder %v7598, 1
        %vm7663 = vcmp.eq.s32.totalorder %v7599, 1
        %vm7664 = vcmp.eq.s32.totalorder %v7600, 1
        %vm7665 = vcmp.eq.s32.totalorder %v7601, 1
        %vm7666 = vcmp.eq.s32.totalorder %v7602, 1
        %vm7667 = vcmp.eq.s32.totalorder %v7603, 1
        %vm7668 = vcmp.eq.s32.totalorder %v7604, 1
        %vm7669 = vcmp.eq.s32.totalorder %v7605, 1
        %vm7670 = vcmp.eq.s32.totalorder %v7606, 1
        %vm7671 = vcmp.eq.s32.totalorder %v7607, 1
        %vm7672 = vcmp.eq.s32.totalorder %v7608, 1
        %vm7673 = vcmp.eq.s32.totalorder %v7609, 1
        %vm7674 = vcmp.eq.s32.totalorder %v7610, 1
        %vm7675 = vcmp.eq.s32.totalorder %v7611, 1
        %vm7676 = vcmp.eq.s32.totalorder %v7612, 1
        %vm7677 = vcmp.eq.s32.totalorder %v7613, 1
        %vm7678 = vcmp.eq.s32.totalorder %v7614, 1
        %vm7679 = vcmp.eq.s32.totalorder %v7615, 1
        %vm7680 = vcmp.eq.s32.totalorder %v7616, 1
        %vm7681 = vcmp.eq.s32.totalorder %v7617, 1
        %vm7682 = vcmp.eq.s32.totalorder %v7618, 1
        %vm7683 = vcmp.eq.s32.totalorder %v7619, 1
        %vm7684 = vcmp.eq.s32.totalorder %v7620, 1
        %vm7685 = vcmp.eq.s32.totalorder %v7621, 1
        %vm7686 = vcmp.eq.s32.totalorder %v7622, 1
        %vm7687 = vcmp.eq.s32.totalorder %v7623, 1
        %vm7688 = vcmp.eq.s32.totalorder %v7624, 1
        %vm7689 = vcmp.eq.s32.totalorder %v7625, 1
        %vm7690 = vcmp.eq.s32.totalorder %v7626, 1
        %vm7691 = vcmp.eq.s32.totalorder %v7627, 1
        %vm7692 = vcmp.eq.s32.totalorder %v7628, 1
        %vm7693 = vcmp.eq.s32.totalorder %v7629, 1
        %vm7694 = vcmp.eq.s32.totalorder %v7630, 1
        %vm7695 = vcmp.eq.s32.totalorder %v7631, 1
        %vm7696 = vcmp.eq.s32.totalorder %v7632, 1
        %vm7697 = vcmp.eq.s32.totalorder %v7633, 1
        %vm7698 = vcmp.eq.s32.totalorder %v7634, 1
        %vm7699 = vcmp.eq.s32.totalorder %v7635, 1
        %vm7700 = vcmp.eq.s32.totalorder %v7636, 1
        %vm7701 = vcmp.eq.s32.totalorder %v7637, 1
        %vm7702 = vcmp.eq.s32.totalorder %v7638, 1
        %vm7703 = vcmp.eq.s32.totalorder %v7639, 1
        %vm7704 = vcmp.eq.s32.totalorder %v7640, 1
        %vm7705 = vcmp.eq.s32.totalorder %v7641, 1
        %vm7706 = vcmp.eq.s32.totalorder %v7642, 1
        %v7707 = vsel %vm7643, 0.0, %v7578
        %v7708 = vsel %vm7644, 0.0, %v7577
        %v7709 = vsel %vm7645, 0.0, %v7576
        %v7710 = vsel %vm7646, 0.0, %v7575
        %v7711 = vsel %vm7647, 0.0, %v7574
        %v7712 = vsel %vm7648, 0.0, %v7573
        %v7713 = vsel %vm7649, 0.0, %v7572
        %v7714 = vsel %vm7650, 0.0, %v7571
        %v7715 = vsel %vm7651, 0.0, %v7570
        %v7716 = vsel %vm7652, 0.0, %v7569
        %v7717 = vsel %vm7653, 0.0, %v7568
        %v7718 = vsel %vm7654, 0.0, %v7567
        %v7719 = vsel %vm7655, 0.0, %v7566
        %v7720 = vsel %vm7656, 0.0, %v7565
        %v7721 = vsel %vm7657, 0.0, %v7564
        %v7722 = vsel %vm7658, 0.0, %v7563
        %v7723 = vsel %vm7659, 0.0, %v7562
        %v7724 = vsel %vm7660, 0.0, %v7561
        %v7725 = vsel %vm7661, 0.0, %v7560
        %v7726 = vsel %vm7662, 0.0, %v7559
        %v7727 = vsel %vm7663, 0.0, %v7558
        %v7728 = vsel %vm7664, 0.0, %v7557
        %v7729 = vsel %vm7665, 0.0, %v7556
        %v7730 = vsel %vm7666, 0.0, %v7555
        %v7731 = vsel %vm7667, 0.0, %v7554
        %v7732 = vsel %vm7668, 0.0, %v7553
        %v7733 = vsel %vm7669, 0.0, %v7552
        %v7734 = vsel %vm7670, 0.0, %v7551
        %v7735 = vsel %vm7671, 0.0, %v7550
        %v7736 = vsel %vm7672, 0.0, %v7549
        %v7737 = vsel %vm7673, 0.0, %v7548
        %v7738 = vsel %vm7674, 0.0, %v7547
        %v7739 = vsel %vm7675, 0.0, %v7546
        %v7740 = vsel %vm7676, 0.0, %v7545
        %v7741 = vsel %vm7677, 0.0, %v7544
        %v7742 = vsel %vm7678, 0.0, %v7543
        %v7743 = vsel %vm7679, 0.0, %v7542
        %v7744 = vsel %vm7680, 0.0, %v7541
        %v7745 = vsel %vm7681, 0.0, %v7540
        %v7746 = vsel %vm7682, 0.0, %v7539
        %v7747 = vsel %vm7683, 0.0, %v7538
        %v7748 = vsel %vm7684, 0.0, %v7537
        %v7749 = vsel %vm7685, 0.0, %v7536
        %v7750 = vsel %vm7686, 0.0, %v7535
        %v7751 = vsel %vm7687, 0.0, %v7534
        %v7752 = vsel %vm7688, 0.0, %v7533
        %v7753 = vsel %vm7689, 0.0, %v7532
        %v7754 = vsel %vm7690, 0.0, %v7531
        %v7755 = vsel %vm7691, 0.0, %v7530
        %v7756 = vsel %vm7692, 0.0, %v7529
        %v7757 = vsel %vm7693, 0.0, %v7528
        %v7758 = vsel %vm7694, 0.0, %v7527
        %v7759 = vsel %vm7695, 0.0, %v7526
        %v7760 = vsel %vm7696, 0.0, %v7525
        %v7761 = vsel %vm7697, 0.0, %v7524
        %v7762 = vsel %vm7698, 0.0, %v7523
        %v7763 = vsel %vm7699, 0.0, %v7522
        %v7764 = vsel %vm7700, 0.0, %v7521
        %v7765 = vsel %vm7701, 0.0, %v7520
        %v7766 = vsel %vm7702, 0.0, %v7519
        %v7767 = vsel %vm7703, 0.0, %v7518
        %v7768 = vsel %vm7704, 0.0, %v7517
        %v7769 = vsel %vm7705, 0.0, %v7516
        %v7770 = vsel %vm7706, 0.0, %v7515
        %vm7771 = vcmp.eq.s32.totalorder %v7323, 7
        %vm7772 = vcmp.eq.s32.totalorder %v7324, 7
        %vm7773 = vcmp.eq.s32.totalorder %v7325, 7
        %vm7774 = vcmp.eq.s32.totalorder %v7326, 7
        %vm7775 = vcmp.eq.s32.totalorder %v7327, 7
        %vm7776 = vcmp.eq.s32.totalorder %v7328, 7
        %vm7777 = vcmp.eq.s32.totalorder %v7329, 7
        %vm7778 = vcmp.eq.s32.totalorder %v7330, 7
        %vm7779 = vcmp.eq.s32.totalorder %v7331, 7
        %vm7780 = vcmp.eq.s32.totalorder %v7332, 7
        %vm7781 = vcmp.eq.s32.totalorder %v7333, 7
        %vm7782 = vcmp.eq.s32.totalorder %v7334, 7
        %vm7783 = vcmp.eq.s32.totalorder %v7335, 7
        %vm7784 = vcmp.eq.s32.totalorder %v7336, 7
        %vm7785 = vcmp.eq.s32.totalorder %v7337, 7
        %vm7786 = vcmp.eq.s32.totalorder %v7338, 7
        %vm7787 = vcmp.eq.s32.totalorder %v7339, 7
        %vm7788 = vcmp.eq.s32.totalorder %v7340, 7
        %vm7789 = vcmp.eq.s32.totalorder %v7341, 7
        %vm7790 = vcmp.eq.s32.totalorder %v7342, 7
        %vm7791 = vcmp.eq.s32.totalorder %v7343, 7
        %vm7792 = vcmp.eq.s32.totalorder %v7344, 7
        %vm7793 = vcmp.eq.s32.totalorder %v7345, 7
        %vm7794 = vcmp.eq.s32.totalorder %v7346, 7
        %vm7795 = vcmp.eq.s32.totalorder %v7347, 7
        %vm7796 = vcmp.eq.s32.totalorder %v7348, 7
        %vm7797 = vcmp.eq.s32.totalorder %v7349, 7
        %vm7798 = vcmp.eq.s32.totalorder %v7350, 7
        %vm7799 = vcmp.eq.s32.totalorder %v7351, 7
        %vm7800 = vcmp.eq.s32.totalorder %v7352, 7
        %vm7801 = vcmp.eq.s32.totalorder %v7353, 7
        %vm7802 = vcmp.eq.s32.totalorder %v7354, 7
        %vm7803 = vcmp.eq.s32.totalorder %v7355, 7
        %vm7804 = vcmp.eq.s32.totalorder %v7356, 7
        %vm7805 = vcmp.eq.s32.totalorder %v7357, 7
        %vm7806 = vcmp.eq.s32.totalorder %v7358, 7
        %vm7807 = vcmp.eq.s32.totalorder %v7359, 7
        %vm7808 = vcmp.eq.s32.totalorder %v7360, 7
        %vm7809 = vcmp.eq.s32.totalorder %v7361, 7
        %vm7810 = vcmp.eq.s32.totalorder %v7362, 7
        %vm7811 = vcmp.eq.s32.totalorder %v7363, 7
        %vm7812 = vcmp.eq.s32.totalorder %v7364, 7
        %vm7813 = vcmp.eq.s32.totalorder %v7365, 7
        %vm7814 = vcmp.eq.s32.totalorder %v7366, 7
        %vm7815 = vcmp.eq.s32.totalorder %v7367, 7
        %vm7816 = vcmp.eq.s32.totalorder %v7368, 7
        %vm7817 = vcmp.eq.s32.totalorder %v7369, 7
        %vm7818 = vcmp.eq.s32.totalorder %v7370, 7
        %vm7819 = vcmp.eq.s32.totalorder %v7371, 7
        %vm7820 = vcmp.eq.s32.totalorder %v7372, 7
        %vm7821 = vcmp.eq.s32.totalorder %v7373, 7
        %vm7822 = vcmp.eq.s32.totalorder %v7374, 7
        %vm7823 = vcmp.eq.s32.totalorder %v7375, 7
        %vm7824 = vcmp.eq.s32.totalorder %v7376, 7
        %vm7825 = vcmp.eq.s32.totalorder %v7377, 7
        %vm7826 = vcmp.eq.s32.totalorder %v7378, 7
        %vm7827 = vcmp.eq.s32.totalorder %v7379, 7
        %vm7828 = vcmp.eq.s32.totalorder %v7380, 7
        %vm7829 = vcmp.eq.s32.totalorder %v7381, 7
        %vm7830 = vcmp.eq.s32.totalorder %v7382, 7
        %vm7831 = vcmp.eq.s32.totalorder %v7383, 7
        %vm7832 = vcmp.eq.s32.totalorder %v7384, 7
        %vm7833 = vcmp.eq.s32.totalorder %v7385, 7
        %vm7834 = vcmp.eq.s32.totalorder %v7386, 7
        %v7835 = vrot.slane %v6555, 1
        %v7836 = vrot.slane %v6556, 1
        %v7837 = vrot.slane %v6557, 1
        %v7838 = vrot.slane %v6558, 1
        %v7839 = vrot.slane %v6559, 1
        %v7840 = vrot.slane %v6560, 1
        %v7841 = vrot.slane %v6561, 1
        %v7842 = vrot.slane %v6562, 1
        %v7843 = vrot.slane %v6563, 1
        %v7844 = vrot.slane %v6564, 1
        %v7845 = vrot.slane %v6565, 1
        %v7846 = vrot.slane %v6566, 1
        %v7847 = vrot.slane %v6567, 1
        %v7848 = vrot.slane %v6568, 1
        %v7849 = vrot.slane %v6569, 1
        %v7850 = vrot.slane %v6570, 1
        %v7851 = vrot.slane %v6571, 1
        %v7852 = vrot.slane %v6572, 1
        %v7853 = vrot.slane %v6573, 1
        %v7854 = vrot.slane %v6574, 1
        %v7855 = vrot.slane %v6575, 1
        %v7856 = vrot.slane %v6576, 1
        %v7857 = vrot.slane %v6577, 1
        %v7858 = vrot.slane %v6578, 1
        %v7859 = vrot.slane %v6579, 1
        %v7860 = vrot.slane %v6580, 1
        %v7861 = vrot.slane %v6581, 1
        %v7862 = vrot.slane %v6582, 1
        %v7863 = vrot.slane %v6583, 1
        %v7864 = vrot.slane %v6584, 1
        %v7865 = vrot.slane %v6585, 1
        %v7866 = vrot.slane %v6586, 1
        %v7867 = vrot.slane %v6587, 1
        %v7868 = vrot.slane %v6588, 1
        %v7869 = vrot.slane %v6589, 1
        %v7870 = vrot.slane %v6590, 1
        %v7871 = vrot.slane %v6591, 1
        %v7872 = vrot.slane %v6592, 1
        %v7873 = vrot.slane %v6593, 1
        %v7874 = vrot.slane %v6594, 1
        %v7875 = vrot.slane %v6595, 1
        %v7876 = vrot.slane %v6596, 1
        %v7877 = vrot.slane %v6597, 1
        %v7878 = vrot.slane %v6598, 1
        %v7879 = vrot.slane %v6599, 1
        %v7880 = vrot.slane %v6600, 1
        %v7881 = vrot.slane %v6601, 1
        %v7882 = vrot.slane %v6602, 1
        %v7883 = vrot.slane %v6603, 1
        %v7884 = vrot.slane %v6604, 1
        %v7885 = vrot.slane %v6605, 1
        %v7886 = vrot.slane %v6606, 1
        %v7887 = vrot.slane %v6607, 1
        %v7888 = vrot.slane %v6608, 1
        %v7889 = vrot.slane %v6609, 1
        %v7890 = vrot.slane %v6610, 1
        %v7891 = vrot.slane %v6611, 1
        %v7892 = vrot.slane %v6612, 1
        %v7893 = vrot.slane %v6613, 1
        %v7894 = vrot.slane %v6614, 1
        %v7895 = vrot.slane %v6615, 1
        %v7896 = vrot.slane %v6616, 1
        %v7897 = vrot.slane %v6617, 1
        %v7898 = vrot.slane %v6618, 1
        %v7899 = vsel %vm3005, %v7897, %v7898
        %v7900 = vsel %vm3005, %v7896, %v7897
        %v7901 = vsel %vm3005, %v7895, %v7896
        %v7902 = vsel %vm3005, %v7894, %v7895
        %v7903 = vsel %vm3005, %v7893, %v7894
        %v7904 = vsel %vm3005, %v7892, %v7893
        %v7905 = vsel %vm3005, %v7891, %v7892
        %v7906 = vsel %vm3005, %v7890, %v7891
        %v7907 = vsel %vm3005, %v7889, %v7890
        %v7908 = vsel %vm3005, %v7888, %v7889
        %v7909 = vsel %vm3005, %v7887, %v7888
        %v7910 = vsel %vm3005, %v7886, %v7887
        %v7911 = vsel %vm3005, %v7885, %v7886
        %v7912 = vsel %vm3005, %v7884, %v7885
        %v7913 = vsel %vm3005, %v7883, %v7884
        %v7914 = vsel %vm3005, %v7882, %v7883
        %v7915 = vsel %vm3005, %v7881, %v7882
        %v7916 = vsel %vm3005, %v7880, %v7881
        %v7917 = vsel %vm3005, %v7879, %v7880
        %v7918 = vsel %vm3005, %v7878, %v7879
        %v7919 = vsel %vm3005, %v7877, %v7878
        %v7920 = vsel %vm3005, %v7876, %v7877
        %v7921 = vsel %vm3005, %v7875, %v7876
        %v7922 = vsel %vm3005, %v7874, %v7875
        %v7923 = vsel %vm3005, %v7873, %v7874
        %v7924 = vsel %vm3005, %v7872, %v7873
        %v7925 = vsel %vm3005, %v7871, %v7872
        %v7926 = vsel %vm3005, %v7870, %v7871
        %v7927 = vsel %vm3005, %v7869, %v7870
        %v7928 = vsel %vm3005, %v7868, %v7869
        %v7929 = vsel %vm3005, %v7867, %v7868
        %v7930 = vsel %vm3005, %v7866, %v7867
        %v7931 = vsel %vm3005, %v7865, %v7866
        %v7932 = vsel %vm3005, %v7864, %v7865
        %v7933 = vsel %vm3005, %v7863, %v7864
        %v7934 = vsel %vm3005, %v7862, %v7863
        %v7935 = vsel %vm3005, %v7861, %v7862
        %v7936 = vsel %vm3005, %v7860, %v7861
        %v7937 = vsel %vm3005, %v7859, %v7860
        %v7938 = vsel %vm3005, %v7858, %v7859
        %v7939 = vsel %vm3005, %v7857, %v7858
        %v7940 = vsel %vm3005, %v7856, %v7857
        %v7941 = vsel %vm3005, %v7855, %v7856
        %v7942 = vsel %vm3005, %v7854, %v7855
        %v7943 = vsel %vm3005, %v7853, %v7854
        %v7944 = vsel %vm3005, %v7852, %v7853
        %v7945 = vsel %vm3005, %v7851, %v7852
        %v7946 = vsel %vm3005, %v7850, %v7851
        %v7947 = vsel %vm3005, %v7849, %v7850
        %v7948 = vsel %vm3005, %v7848, %v7849
        %v7949 = vsel %vm3005, %v7847, %v7848
        %v7950 = vsel %vm3005, %v7846, %v7847
        %v7951 = vsel %vm3005, %v7845, %v7846
        %v7952 = vsel %vm3005, %v7844, %v7845
        %v7953 = vsel %vm3005, %v7843, %v7844
        %v7954 = vsel %vm3005, %v7842, %v7843
        %v7955 = vsel %vm3005, %v7841, %v7842
        %v7956 = vsel %vm3005, %v7840, %v7841
        %v7957 = vsel %vm3005, %v7839, %v7840
        %v7958 = vsel %vm3005, %v7838, %v7839
        %v7959 = vsel %vm3005, %v7837, %v7838
        %v7960 = vsel %vm3005, %v7836, %v7837
        %v7961 = vsel %vm3005, %v7835, %v7836
        %v7962 = vsel %vm3005, %v7898, %v7835
        %v7963 = vsel %vm7771, 1, 0
        %v7964 = vsel %vm7772, 1, 0
        %v7965 = vsel %vm7773, 1, 0
        %v7966 = vsel %vm7774, 1, 0
        %v7967 = vsel %vm7775, 1, 0
        %v7968 = vsel %vm7776, 1, 0
        %v7969 = vsel %vm7777, 1, 0
        %v7970 = vsel %vm7778, 1, 0
        %v7971 = vsel %vm7779, 1, 0
        %v7972 = vsel %vm7780, 1, 0
        %v7973 = vsel %vm7781, 1, 0
        %v7974 = vsel %vm7782, 1, 0
        %v7975 = vsel %vm7783, 1, 0
        %v7976 = vsel %vm7784, 1, 0
        %v7977 = vsel %vm7785, 1, 0
        %v7978 = vsel %vm7786, 1, 0
        %v7979 = vsel %vm7787, 1, 0
        %v7980 = vsel %vm7788, 1, 0
        %v7981 = vsel %vm7789, 1, 0
        %v7982 = vsel %vm7790, 1, 0
        %v7983 = vsel %vm7791, 1, 0
        %v7984 = vsel %vm7792, 1, 0
        %v7985 = vsel %vm7793, 1, 0
        %v7986 = vsel %vm7794, 1, 0
        %v7987 = vsel %vm7795, 1, 0
        %v7988 = vsel %vm7796, 1, 0
        %v7989 = vsel %vm7797, 1, 0
        %v7990 = vsel %vm7798, 1, 0
        %v7991 = vsel %vm7799, 1, 0
        %v7992 = vsel %vm7800, 1, 0
        %v7993 = vsel %vm7801, 1, 0
        %v7994 = vsel %vm7802, 1, 0
        %v7995 = vsel %vm7803, 1, 0
        %v7996 = vsel %vm7804, 1, 0
        %v7997 = vsel %vm7805, 1, 0
        %v7998 = vsel %vm7806, 1, 0
        %v7999 = vsel %vm7807, 1, 0
        %v8000 = vsel %vm7808, 1, 0
        %v8001 = vsel %vm7809, 1, 0
        %v8002 = vsel %vm7810, 1, 0
        %v8003 = vsel %vm7811, 1, 0
        %v8004 = vsel %vm7812, 1, 0
        %v8005 = vsel %vm7813, 1, 0
        %v8006 = vsel %vm7814, 1, 0
        %v8007 = vsel %vm7815, 1, 0
        %v8008 = vsel %vm7816, 1, 0
        %v8009 = vsel %vm7817, 1, 0
        %v8010 = vsel %vm7818, 1, 0
        %v8011 = vsel %vm7819, 1, 0
        %v8012 = vsel %vm7820, 1, 0
        %v8013 = vsel %vm7821, 1, 0
        %v8014 = vsel %vm7822, 1, 0
        %v8015 = vsel %vm7823, 1, 0
        %v8016 = vsel %vm7824, 1, 0
        %v8017 = vsel %vm7825, 1, 0
        %v8018 = vsel %vm7826, 1, 0
        %v8019 = vsel %vm7827, 1, 0
        %v8020 = vsel %vm7828, 1, 0
        %v8021 = vsel %vm7829, 1, 0
        %v8022 = vsel %vm7830, 1, 0
        %v8023 = vsel %vm7831, 1, 0
        %v8024 = vsel %vm7832, 1, 0
        %v8025 = vsel %vm7833, 1, 0
        %v8026 = vsel %vm7834, 1, 0
        %vm8027 = vcmp.eq.s32.totalorder %v7963, 1
        %vm8028 = vcmp.eq.s32.totalorder %v7964, 1
        %vm8029 = vcmp.eq.s32.totalorder %v7965, 1
        %vm8030 = vcmp.eq.s32.totalorder %v7966, 1
        %vm8031 = vcmp.eq.s32.totalorder %v7967, 1
        %vm8032 = vcmp.eq.s32.totalorder %v7968, 1
        %vm8033 = vcmp.eq.s32.totalorder %v7969, 1
        %vm8034 = vcmp.eq.s32.totalorder %v7970, 1
        %vm8035 = vcmp.eq.s32.totalorder %v7971, 1
        %vm8036 = vcmp.eq.s32.totalorder %v7972, 1
        %vm8037 = vcmp.eq.s32.totalorder %v7973, 1
        %vm8038 = vcmp.eq.s32.totalorder %v7974, 1
        %vm8039 = vcmp.eq.s32.totalorder %v7975, 1
        %vm8040 = vcmp.eq.s32.totalorder %v7976, 1
        %vm8041 = vcmp.eq.s32.totalorder %v7977, 1
        %vm8042 = vcmp.eq.s32.totalorder %v7978, 1
        %vm8043 = vcmp.eq.s32.totalorder %v7979, 1
        %vm8044 = vcmp.eq.s32.totalorder %v7980, 1
        %vm8045 = vcmp.eq.s32.totalorder %v7981, 1
        %vm8046 = vcmp.eq.s32.totalorder %v7982, 1
        %vm8047 = vcmp.eq.s32.totalorder %v7983, 1
        %vm8048 = vcmp.eq.s32.totalorder %v7984, 1
        %vm8049 = vcmp.eq.s32.totalorder %v7985, 1
        %vm8050 = vcmp.eq.s32.totalorder %v7986, 1
        %vm8051 = vcmp.eq.s32.totalorder %v7987, 1
        %vm8052 = vcmp.eq.s32.totalorder %v7988, 1
        %vm8053 = vcmp.eq.s32.totalorder %v7989, 1
        %vm8054 = vcmp.eq.s32.totalorder %v7990, 1
        %vm8055 = vcmp.eq.s32.totalorder %v7991, 1
        %vm8056 = vcmp.eq.s32.totalorder %v7992, 1
        %vm8057 = vcmp.eq.s32.totalorder %v7993, 1
        %vm8058 = vcmp.eq.s32.totalorder %v7994, 1
        %vm8059 = vcmp.eq.s32.totalorder %v7995, 1
        %vm8060 = vcmp.eq.s32.totalorder %v7996, 1
        %vm8061 = vcmp.eq.s32.totalorder %v7997, 1
        %vm8062 = vcmp.eq.s32.totalorder %v7998, 1
        %vm8063 = vcmp.eq.s32.totalorder %v7999, 1
        %vm8064 = vcmp.eq.s32.totalorder %v8000, 1
        %vm8065 = vcmp.eq.s32.totalorder %v8001, 1
        %vm8066 = vcmp.eq.s32.totalorder %v8002, 1
        %vm8067 = vcmp.eq.s32.totalorder %v8003, 1
        %vm8068 = vcmp.eq.s32.totalorder %v8004, 1
        %vm8069 = vcmp.eq.s32.totalorder %v8005, 1
        %vm8070 = vcmp.eq.s32.totalorder %v8006, 1
        %vm8071 = vcmp.eq.s32.totalorder %v8007, 1
        %vm8072 = vcmp.eq.s32.totalorder %v8008, 1
        %vm8073 = vcmp.eq.s32.totalorder %v8009, 1
        %vm8074 = vcmp.eq.s32.totalorder %v8010, 1
        %vm8075 = vcmp.eq.s32.totalorder %v8011, 1
        %vm8076 = vcmp.eq.s32.totalorder %v8012, 1
        %vm8077 = vcmp.eq.s32.totalorder %v8013, 1
        %vm8078 = vcmp.eq.s32.totalorder %v8014, 1
        %vm8079 = vcmp.eq.s32.totalorder %v8015, 1
        %vm8080 = vcmp.eq.s32.totalorder %v8016, 1
        %vm8081 = vcmp.eq.s32.totalorder %v8017, 1
        %vm8082 = vcmp.eq.s32.totalorder %v8018, 1
        %vm8083 = vcmp.eq.s32.totalorder %v8019, 1
        %vm8084 = vcmp.eq.s32.totalorder %v8020, 1
        %vm8085 = vcmp.eq.s32.totalorder %v8021, 1
        %vm8086 = vcmp.eq.s32.totalorder %v8022, 1
        %vm8087 = vcmp.eq.s32.totalorder %v8023, 1
        %vm8088 = vcmp.eq.s32.totalorder %v8024, 1
        %vm8089 = vcmp.eq.s32.totalorder %v8025, 1
        %vm8090 = vcmp.eq.s32.totalorder %v8026, 1
        %v8091 = vsel %vm8027, 0.0, %v7961
        %v8092 = vsel %vm8028, 0.0, %v7960
        %v8093 = vsel %vm8029, 0.0, %v7959
        %v8094 = vsel %vm8030, 0.0, %v7958
        %v8095 = vsel %vm8031, 0.0, %v7957
        %v8096 = vsel %vm8032, 0.0, %v7956
        %v8097 = vsel %vm8033, 0.0, %v7955
        %v8098 = vsel %vm8034, 0.0, %v7954
        %v8099 = vsel %vm8035, 0.0, %v7953
        %v8100 = vsel %vm8036, 0.0, %v7952
        %v8101 = vsel %vm8037, 0.0, %v7951
        %v8102 = vsel %vm8038, 0.0, %v7950
        %v8103 = vsel %vm8039, 0.0, %v7949
        %v8104 = vsel %vm8040, 0.0, %v7948
        %v8105 = vsel %vm8041, 0.0, %v7947
        %v8106 = vsel %vm8042, 0.0, %v7946
        %v8107 = vsel %vm8043, 0.0, %v7945
        %v8108 = vsel %vm8044, 0.0, %v7944
        %v8109 = vsel %vm8045, 0.0, %v7943
        %v8110 = vsel %vm8046, 0.0, %v7942
        %v8111 = vsel %vm8047, 0.0, %v7941
        %v8112 = vsel %vm8048, 0.0, %v7940
        %v8113 = vsel %vm8049, 0.0, %v7939
        %v8114 = vsel %vm8050, 0.0, %v7938
        %v8115 = vsel %vm8051, 0.0, %v7937
        %v8116 = vsel %vm8052, 0.0, %v7936
        %v8117 = vsel %vm8053, 0.0, %v7935
        %v8118 = vsel %vm8054, 0.0, %v7934
        %v8119 = vsel %vm8055, 0.0, %v7933
        %v8120 = vsel %vm8056, 0.0, %v7932
        %v8121 = vsel %vm8057, 0.0, %v7931
        %v8122 = vsel %vm8058, 0.0, %v7930
        %v8123 = vsel %vm8059, 0.0, %v7929
        %v8124 = vsel %vm8060, 0.0, %v7928
        %v8125 = vsel %vm8061, 0.0, %v7927
        %v8126 = vsel %vm8062, 0.0, %v7926
        %v8127 = vsel %vm8063, 0.0, %v7925
        %v8128 = vsel %vm8064, 0.0, %v7924
        %v8129 = vsel %vm8065, 0.0, %v7923
        %v8130 = vsel %vm8066, 0.0, %v7922
        %v8131 = vsel %vm8067, 0.0, %v7921
        %v8132 = vsel %vm8068, 0.0, %v7920
        %v8133 = vsel %vm8069, 0.0, %v7919
        %v8134 = vsel %vm8070, 0.0, %v7918
        %v8135 = vsel %vm8071, 0.0, %v7917
        %v8136 = vsel %vm8072, 0.0, %v7916
        %v8137 = vsel %vm8073, 0.0, %v7915
        %v8138 = vsel %vm8074, 0.0, %v7914
        %v8139 = vsel %vm8075, 0.0, %v7913
        %v8140 = vsel %vm8076, 0.0, %v7912
        %v8141 = vsel %vm8077, 0.0, %v7911
        %v8142 = vsel %vm8078, 0.0, %v7910
        %v8143 = vsel %vm8079, 0.0, %v7909
        %v8144 = vsel %vm8080, 0.0, %v7908
        %v8145 = vsel %vm8081, 0.0, %v7907
        %v8146 = vsel %vm8082, 0.0, %v7906
        %v8147 = vsel %vm8083, 0.0, %v7905
        %v8148 = vsel %vm8084, 0.0, %v7904
        %v8149 = vsel %vm8085, 0.0, %v7903
        %v8150 = vsel %vm8086, 0.0, %v7902
        %v8151 = vsel %vm8087, 0.0, %v7901
        %v8152 = vsel %vm8088, 0.0, %v7900
        %v8153 = vsel %vm8089, 0.0, %v7899
        %v8154 = vsel %vm8090, 0.0, %v7962
        %8219 = vrot.lane.b32.xlu0 %v6555, 32
        %v8220 = vpop.permute.xlu0 %8219
        %8221 = vrot.lane.b32.xlu0 %v6556, 32
        %v8222 = vpop.permute.xlu0 %8221
        %8223 = vrot.lane.b32.xlu0 %v6557, 32
        %v8224 = vpop.permute.xlu0 %8223
        %8225 = vrot.lane.b32.xlu0 %v6558, 32
        %v8226 = vpop.permute.xlu0 %8225
        %8227 = vrot.lane.b32.xlu0 %v6559, 32
        %v8228 = vpop.permute.xlu0 %8227
        %8229 = vrot.lane.b32.xlu0 %v6560, 32
        %v8230 = vpop.permute.xlu0 %8229
        %8231 = vrot.lane.b32.xlu0 %v6561, 32
        %v8232 = vpop.permute.xlu0 %8231
        %8233 = vrot.lane.b32.xlu0 %v6562, 32
        %v8234 = vpop.permute.xlu0 %8233
        %8235 = vrot.lane.b32.xlu0 %v6563, 32
        %v8236 = vpop.permute.xlu0 %8235
        %8237 = vrot.lane.b32.xlu0 %v6564, 32
        %v8238 = vpop.permute.xlu0 %8237
        %8239 = vrot.lane.b32.xlu0 %v6565, 32
        %v8240 = vpop.permute.xlu0 %8239
        %8241 = vrot.lane.b32.xlu0 %v6566, 32
        %v8242 = vpop.permute.xlu0 %8241
        %8243 = vrot.lane.b32.xlu0 %v6567, 32
        %v8244 = vpop.permute.xlu0 %8243
        %8245 = vrot.lane.b32.xlu0 %v6568, 32
        %v8246 = vpop.permute.xlu0 %8245
        %8247 = vrot.lane.b32.xlu0 %v6569, 32
        %v8248 = vpop.permute.xlu0 %8247
        %8249 = vrot.lane.b32.xlu0 %v6570, 32
        %v8250 = vpop.permute.xlu0 %8249
        %8251 = vrot.lane.b32.xlu0 %v6571, 32
        %v8252 = vpop.permute.xlu0 %8251
        %8253 = vrot.lane.b32.xlu0 %v6572, 32
        %v8254 = vpop.permute.xlu0 %8253
        %8255 = vrot.lane.b32.xlu0 %v6573, 32
        %v8256 = vpop.permute.xlu0 %8255
        %8257 = vrot.lane.b32.xlu0 %v6574, 32
        %v8258 = vpop.permute.xlu0 %8257
        %8259 = vrot.lane.b32.xlu0 %v6575, 32
        %v8260 = vpop.permute.xlu0 %8259
        %8261 = vrot.lane.b32.xlu0 %v6576, 32
        %v8262 = vpop.permute.xlu0 %8261
        %8263 = vrot.lane.b32.xlu0 %v6577, 32
        %v8264 = vpop.permute.xlu0 %8263
        %8265 = vrot.lane.b32.xlu0 %v6578, 32
        %v8266 = vpop.permute.xlu0 %8265
        %8267 = vrot.lane.b32.xlu0 %v6579, 32
        %v8268 = vpop.permute.xlu0 %8267
        %8269 = vrot.lane.b32.xlu0 %v6580, 32
        %v8270 = vpop.permute.xlu0 %8269
        %8271 = vrot.lane.b32.xlu0 %v6581, 32
        %v8272 = vpop.permute.xlu0 %8271
        %8273 = vrot.lane.b32.xlu0 %v6582, 32
        %v8274 = vpop.permute.xlu0 %8273
        %8275 = vrot.lane.b32.xlu0 %v6583, 32
        %v8276 = vpop.permute.xlu0 %8275
        %8277 = vrot.lane.b32.xlu0 %v6584, 32
        %v8278 = vpop.permute.xlu0 %8277
        %8279 = vrot.lane.b32.xlu0 %v6585, 32
        %v8280 = vpop.permute.xlu0 %8279
        %8281 = vrot.lane.b32.xlu0 %v6586, 32
        %v8282 = vpop.permute.xlu0 %8281
        %8283 = vrot.lane.b32.xlu0 %v6587, 32
        %v8284 = vpop.permute.xlu0 %8283
        %8285 = vrot.lane.b32.xlu0 %v6588, 32
        %v8286 = vpop.permute.xlu0 %8285
        %8287 = vrot.lane.b32.xlu0 %v6589, 32
        %v8288 = vpop.permute.xlu0 %8287
        %8289 = vrot.lane.b32.xlu0 %v6590, 32
        %v8290 = vpop.permute.xlu0 %8289
        %8291 = vrot.lane.b32.xlu0 %v6591, 32
        %v8292 = vpop.permute.xlu0 %8291
        %8293 = vrot.lane.b32.xlu0 %v6592, 32
        %v8294 = vpop.permute.xlu0 %8293
        %8295 = vrot.lane.b32.xlu0 %v6593, 32
        %v8296 = vpop.permute.xlu0 %8295
        %8297 = vrot.lane.b32.xlu0 %v6594, 32
        %v8298 = vpop.permute.xlu0 %8297
        %8299 = vrot.lane.b32.xlu0 %v6595, 32
        %v8300 = vpop.permute.xlu0 %8299
        %8301 = vrot.lane.b32.xlu0 %v6596, 32
        %v8302 = vpop.permute.xlu0 %8301
        %8303 = vrot.lane.b32.xlu0 %v6597, 32
        %v8304 = vpop.permute.xlu0 %8303
        %8305 = vrot.lane.b32.xlu0 %v6598, 32
        %v8306 = vpop.permute.xlu0 %8305
        %8307 = vrot.lane.b32.xlu0 %v6599, 32
        %v8308 = vpop.permute.xlu0 %8307
        %8309 = vrot.lane.b32.xlu0 %v6600, 32
        %v8310 = vpop.permute.xlu0 %8309
        %8311 = vrot.lane.b32.xlu0 %v6601, 32
        %v8312 = vpop.permute.xlu0 %8311
        %8313 = vrot.lane.b32.xlu0 %v6602, 32
        %v8314 = vpop.permute.xlu0 %8313
        %8315 = vrot.lane.b32.xlu0 %v6603, 32
        %v8316 = vpop.permute.xlu0 %8315
        %8317 = vrot.lane.b32.xlu0 %v6604, 32
        %v8318 = vpop.permute.xlu0 %8317
        %8319 = vrot.lane.b32.xlu0 %v6605, 32
        %v8320 = vpop.permute.xlu0 %8319
        %8321 = vrot.lane.b32.xlu0 %v6606, 32
        %v8322 = vpop.permute.xlu0 %8321
        %8323 = vrot.lane.b32.xlu0 %v6607, 32
        %v8324 = vpop.permute.xlu0 %8323
        %8325 = vrot.lane.b32.xlu0 %v6608, 32
        %v8326 = vpop.permute.xlu0 %8325
        %8327 = vrot.lane.b32.xlu0 %v6609, 32
        %v8328 = vpop.permute.xlu0 %8327
        %8329 = vrot.lane.b32.xlu0 %v6610, 32
        %v8330 = vpop.permute.xlu0 %8329
        %8331 = vrot.lane.b32.xlu0 %v6611, 32
        %v8332 = vpop.permute.xlu0 %8331
        %8333 = vrot.lane.b32.xlu0 %v6612, 32
        %v8334 = vpop.permute.xlu0 %8333
        %8335 = vrot.lane.b32.xlu0 %v6613, 32
        %v8336 = vpop.permute.xlu0 %8335
        %8337 = vrot.lane.b32.xlu0 %v6614, 32
        %v8338 = vpop.permute.xlu0 %8337
        %8339 = vrot.lane.b32.xlu0 %v6615, 32
        %v8340 = vpop.permute.xlu0 %8339
        %8341 = vrot.lane.b32.xlu0 %v6616, 32
        %v8342 = vpop.permute.xlu0 %8341
        %8343 = vrot.lane.b32.xlu0 %v6617, 32
        %v8344 = vpop.permute.xlu0 %8343
        %8345 = vrot.lane.b32.xlu0 %v6618, 32
        %v8346 = vpop.permute.xlu0 %8345
        %8475 = vrot.lane.b32.xlu0 %v8091, 64
        %v8476 = vpop.permute.xlu0 %8475
        %8477 = vrot.lane.b32.xlu0 %v8092, 64
        %v8478 = vpop.permute.xlu0 %8477
        %8479 = vrot.lane.b32.xlu0 %v8093, 64
        %v8480 = vpop.permute.xlu0 %8479
        %8481 = vrot.lane.b32.xlu0 %v8094, 64
        %v8482 = vpop.permute.xlu0 %8481
        %8483 = vrot.lane.b32.xlu0 %v8095, 64
        %v8484 = vpop.permute.xlu0 %8483
        %8485 = vrot.lane.b32.xlu0 %v8096, 64
        %v8486 = vpop.permute.xlu0 %8485
        %8487 = vrot.lane.b32.xlu0 %v8097, 64
        %v8488 = vpop.permute.xlu0 %8487
        %8489 = vrot.lane.b32.xlu0 %v8098, 64
        %v8490 = vpop.permute.xlu0 %8489
        %8491 = vrot.lane.b32.xlu0 %v8099, 64
        %v8492 = vpop.permute.xlu0 %8491
        %8493 = vrot.lane.b32.xlu0 %v8100, 64
        %v8494 = vpop.permute.xlu0 %8493
        %8495 = vrot.lane.b32.xlu0 %v8101, 64
        %v8496 = vpop.permute.xlu0 %8495
        %8497 = vrot.lane.b32.xlu0 %v8102, 64
        %v8498 = vpop.permute.xlu0 %8497
        %8499 = vrot.lane.b32.xlu0 %v8103, 64
        %v8500 = vpop.permute.xlu0 %8499
        %8501 = vrot.lane.b32.xlu0 %v8104, 64
        %v8502 = vpop.permute.xlu0 %8501
        %8503 = vrot.lane.b32.xlu0 %v8105, 64
        %v8504 = vpop.permute.xlu0 %8503
        %8505 = vrot.lane.b32.xlu0 %v8106, 64
        %v8506 = vpop.permute.xlu0 %8505
        %8507 = vrot.lane.b32.xlu0 %v8107, 64
        %v8508 = vpop.permute.xlu0 %8507
        %8509 = vrot.lane.b32.xlu0 %v8108, 64
        %v8510 = vpop.permute.xlu0 %8509
        %8511 = vrot.lane.b32.xlu0 %v8109, 64
        %v8512 = vpop.permute.xlu0 %8511
        %8513 = vrot.lane.b32.xlu0 %v8110, 64
        %v8514 = vpop.permute.xlu0 %8513
        %8515 = vrot.lane.b32.xlu0 %v8111, 64
        %v8516 = vpop.permute.xlu0 %8515
        %8517 = vrot.lane.b32.xlu0 %v8112, 64
        %v8518 = vpop.permute.xlu0 %8517
        %8519 = vrot.lane.b32.xlu0 %v8113, 64
        %v8520 = vpop.permute.xlu0 %8519
        %8521 = vrot.lane.b32.xlu0 %v8114, 64
        %v8522 = vpop.permute.xlu0 %8521
        %8523 = vrot.lane.b32.xlu0 %v8115, 64
        %v8524 = vpop.permute.xlu0 %8523
        %8525 = vrot.lane.b32.xlu0 %v8116, 64
        %v8526 = vpop.permute.xlu0 %8525
        %8527 = vrot.lane.b32.xlu0 %v8117, 64
        %v8528 = vpop.permute.xlu0 %8527
        %8529 = vrot.lane.b32.xlu0 %v8118, 64
        %v8530 = vpop.permute.xlu0 %8529
        %8531 = vrot.lane.b32.xlu0 %v8119, 64
        %v8532 = vpop.permute.xlu0 %8531
        %8533 = vrot.lane.b32.xlu0 %v8120, 64
        %v8534 = vpop.permute.xlu0 %8533
        %8535 = vrot.lane.b32.xlu0 %v8121, 64
        %v8536 = vpop.permute.xlu0 %8535
        %8537 = vrot.lane.b32.xlu0 %v8122, 64
        %v8538 = vpop.permute.xlu0 %8537
        %8539 = vrot.lane.b32.xlu0 %v8123, 64
        %v8540 = vpop.permute.xlu0 %8539
        %8541 = vrot.lane.b32.xlu0 %v8124, 64
        %v8542 = vpop.permute.xlu0 %8541
        %8543 = vrot.lane.b32.xlu0 %v8125, 64
        %v8544 = vpop.permute.xlu0 %8543
        %8545 = vrot.lane.b32.xlu0 %v8126, 64
        %v8546 = vpop.permute.xlu0 %8545
        %8547 = vrot.lane.b32.xlu0 %v8127, 64
        %v8548 = vpop.permute.xlu0 %8547
        %8549 = vrot.lane.b32.xlu0 %v8128, 64
        %v8550 = vpop.permute.xlu0 %8549
        %8551 = vrot.lane.b32.xlu0 %v8129, 64
        %v8552 = vpop.permute.xlu0 %8551
        %8553 = vrot.lane.b32.xlu0 %v8130, 64
        %v8554 = vpop.permute.xlu0 %8553
        %8555 = vrot.lane.b32.xlu0 %v8131, 64
        %v8556 = vpop.permute.xlu0 %8555
        %8557 = vrot.lane.b32.xlu0 %v8132, 64
        %v8558 = vpop.permute.xlu0 %8557
        %8559 = vrot.lane.b32.xlu0 %v8133, 64
        %v8560 = vpop.permute.xlu0 %8559
        %8561 = vrot.lane.b32.xlu0 %v8134, 64
        %v8562 = vpop.permute.xlu0 %8561
        %8563 = vrot.lane.b32.xlu0 %v8135, 64
        %v8564 = vpop.permute.xlu0 %8563
        %8565 = vrot.lane.b32.xlu0 %v8136, 64
        %v8566 = vpop.permute.xlu0 %8565
        %8567 = vrot.lane.b32.xlu0 %v8137, 64
        %v8568 = vpop.permute.xlu0 %8567
        %8569 = vrot.lane.b32.xlu0 %v8138, 64
        %v8570 = vpop.permute.xlu0 %8569
        %8571 = vrot.lane.b32.xlu0 %v8139, 64
        %v8572 = vpop.permute.xlu0 %8571
        %8573 = vrot.lane.b32.xlu0 %v8140, 64
        %v8574 = vpop.permute.xlu0 %8573
        %8575 = vrot.lane.b32.xlu0 %v8141, 64
        %v8576 = vpop.permute.xlu0 %8575
        %8577 = vrot.lane.b32.xlu0 %v8142, 64
        %v8578 = vpop.permute.xlu0 %8577
        %8579 = vrot.lane.b32.xlu0 %v8143, 64
        %v8580 = vpop.permute.xlu0 %8579
        %8581 = vrot.lane.b32.xlu0 %v8144, 64
        %v8582 = vpop.permute.xlu0 %8581
        %8583 = vrot.lane.b32.xlu0 %v8145, 64
        %v8584 = vpop.permute.xlu0 %8583
        %8585 = vrot.lane.b32.xlu0 %v8146, 64
        %v8586 = vpop.permute.xlu0 %8585
        %8587 = vrot.lane.b32.xlu0 %v8147, 64
        %v8588 = vpop.permute.xlu0 %8587
        %8589 = vrot.lane.b32.xlu0 %v8148, 64
        %v8590 = vpop.permute.xlu0 %8589
        %8591 = vrot.lane.b32.xlu0 %v8149, 64
        %v8592 = vpop.permute.xlu0 %8591
        %8593 = vrot.lane.b32.xlu0 %v8150, 64
        %v8594 = vpop.permute.xlu0 %8593
        %8595 = vrot.lane.b32.xlu0 %v8151, 64
        %v8596 = vpop.permute.xlu0 %8595
        %8597 = vrot.lane.b32.xlu0 %v8152, 64
        %v8598 = vpop.permute.xlu0 %8597
        %8599 = vrot.lane.b32.xlu0 %v8153, 64
        %v8600 = vpop.permute.xlu0 %8599
        %8601 = vrot.lane.b32.xlu0 %v8154, 64
        %v8602 = vpop.permute.xlu0 %8601
        %v8667 = vsel %vm6107, %v7707, %v8220
        %v8668 = vsel %vm6107, %v7708, %v8222
        %v8669 = vsel %vm6107, %v7709, %v8224
        %v8670 = vsel %vm6107, %v7710, %v8226
        %v8671 = vsel %vm6107, %v7711, %v8228
        %v8672 = vsel %vm6107, %v7712, %v8230
        %v8673 = vsel %vm6107, %v7713, %v8232
        %v8674 = vsel %vm6107, %v7714, %v8234
        %v8675 = vsel %vm6107, %v7715, %v8236
        %v8676 = vsel %vm6107, %v7716, %v8238
        %v8677 = vsel %vm6107, %v7717, %v8240
        %v8678 = vsel %vm6107, %v7718, %v8242
        %v8679 = vsel %vm6107, %v7719, %v8244
        %v8680 = vsel %vm6107, %v7720, %v8246
        %v8681 = vsel %vm6107, %v7721, %v8248
        %v8682 = vsel %vm6107, %v7722, %v8250
        %v8683 = vsel %vm6107, %v7723, %v8252
        %v8684 = vsel %vm6107, %v7724, %v8254
        %v8685 = vsel %vm6107, %v7725, %v8256
        %v8686 = vsel %vm6107, %v7726, %v8258
        %v8687 = vsel %vm6107, %v7727, %v8260
        %v8688 = vsel %vm6107, %v7728, %v8262
        %v8689 = vsel %vm6107, %v7729, %v8264
        %v8690 = vsel %vm6107, %v7730, %v8266
        %v8691 = vsel %vm6107, %v7731, %v8268
        %v8692 = vsel %vm6107, %v7732, %v8270
        %v8693 = vsel %vm6107, %v7733, %v8272
        %v8694 = vsel %vm6107, %v7734, %v8274
        %v8695 = vsel %vm6107, %v7735, %v8276
        %v8696 = vsel %vm6107, %v7736, %v8278
        %v8697 = vsel %vm6107, %v7737, %v8280
        %v8698 = vsel %vm6107, %v7738, %v8282
        %v8699 = vsel %vm6107, %v7739, %v8284
        %v8700 = vsel %vm6107, %v7740, %v8286
        %v8701 = vsel %vm6107, %v7741, %v8288
        %v8702 = vsel %vm6107, %v7742, %v8290
        %v8703 = vsel %vm6107, %v7743, %v8292
        %v8704 = vsel %vm6107, %v7744, %v8294
        %v8705 = vsel %vm6107, %v7745, %v8296
        %v8706 = vsel %vm6107, %v7746, %v8298
        %v8707 = vsel %vm6107, %v7747, %v8300
        %v8708 = vsel %vm6107, %v7748, %v8302
        %v8709 = vsel %vm6107, %v7749, %v8304
        %v8710 = vsel %vm6107, %v7750, %v8306
        %v8711 = vsel %vm6107, %v7751, %v8308
        %v8712 = vsel %vm6107, %v7752, %v8310
        %v8713 = vsel %vm6107, %v7753, %v8312
        %v8714 = vsel %vm6107, %v7754, %v8314
        %v8715 = vsel %vm6107, %v7755, %v8316
        %v8716 = vsel %vm6107, %v7756, %v8318
        %v8717 = vsel %vm6107, %v7757, %v8320
        %v8718 = vsel %vm6107, %v7758, %v8322
        %v8719 = vsel %vm6107, %v7759, %v8324
        %v8720 = vsel %vm6107, %v7760, %v8326
        %v8721 = vsel %vm6107, %v7761, %v8328
        %v8722 = vsel %vm6107, %v7762, %v8330
        %v8723 = vsel %vm6107, %v7763, %v8332
        %v8724 = vsel %vm6107, %v7764, %v8334
        %v8725 = vsel %vm6107, %v7765, %v8336
        %v8726 = vsel %vm6107, %v7766, %v8338
        %v8727 = vsel %vm6107, %v7767, %v8340
        %v8728 = vsel %vm6107, %v7768, %v8342
        %v8729 = vsel %vm6107, %v7769, %v8344
        %v8730 = vsel %vm6107, %v7770, %v8346
        %vm8731 = vcmask 523264
        %v8732 = vsel %vm8731, %v8667, %v8476
        %v8733 = vsel %vm8731, %v8668, %v8478
        %v8734 = vsel %vm8731, %v8669, %v8480
        %v8735 = vsel %vm8731, %v8670, %v8482
        %v8736 = vsel %vm8731, %v8671, %v8484
        %v8737 = vsel %vm8731, %v8672, %v8486
        %v8738 = vsel %vm8731, %v8673, %v8488
        %v8739 = vsel %vm8731, %v8674, %v8490
        %v8740 = vsel %vm8731, %v8675, %v8492
        %v8741 = vsel %vm8731, %v8676, %v8494
        %v8742 = vsel %vm8731, %v8677, %v8496
        %v8743 = vsel %vm8731, %v8678, %v8498
        %v8744 = vsel %vm8731, %v8679, %v8500
        %v8745 = vsel %vm8731, %v8680, %v8502
        %v8746 = vsel %vm8731, %v8681, %v8504
        %v8747 = vsel %vm8731, %v8682, %v8506
        %v8748 = vsel %vm8731, %v8683, %v8508
        %v8749 = vsel %vm8731, %v8684, %v8510
        %v8750 = vsel %vm8731, %v8685, %v8512
        %v8751 = vsel %vm8731, %v8686, %v8514
        %v8752 = vsel %vm8731, %v8687, %v8516
        %v8753 = vsel %vm8731, %v8688, %v8518
        %v8754 = vsel %vm8731, %v8689, %v8520
        %v8755 = vsel %vm8731, %v8690, %v8522
        %v8756 = vsel %vm8731, %v8691, %v8524
        %v8757 = vsel %vm8731, %v8692, %v8526
        %v8758 = vsel %vm8731, %v8693, %v8528
        %v8759 = vsel %vm8731, %v8694, %v8530
        %v8760 = vsel %vm8731, %v8695, %v8532
        %v8761 = vsel %vm8731, %v8696, %v8534
        %v8762 = vsel %vm8731, %v8697, %v8536
        %v8763 = vsel %vm8731, %v8698, %v8538
        %v8764 = vsel %vm8731, %v8699, %v8540
        %v8765 = vsel %vm8731, %v8700, %v8542
        %v8766 = vsel %vm8731, %v8701, %v8544
        %v8767 = vsel %vm8731, %v8702, %v8546
        %v8768 = vsel %vm8731, %v8703, %v8548
        %v8769 = vsel %vm8731, %v8704, %v8550
        %v8770 = vsel %vm8731, %v8705, %v8552
        %v8771 = vsel %vm8731, %v8706, %v8554
        %v8772 = vsel %vm8731, %v8707, %v8556
        %v8773 = vsel %vm8731, %v8708, %v8558
        %v8774 = vsel %vm8731, %v8709, %v8560
        %v8775 = vsel %vm8731, %v8710, %v8562
        %v8776 = vsel %vm8731, %v8711, %v8564
        %v8777 = vsel %vm8731, %v8712, %v8566
        %v8778 = vsel %vm8731, %v8713, %v8568
        %v8779 = vsel %vm8731, %v8714, %v8570
        %v8780 = vsel %vm8731, %v8715, %v8572
        %v8781 = vsel %vm8731, %v8716, %v8574
        %v8782 = vsel %vm8731, %v8717, %v8576
        %v8783 = vsel %vm8731, %v8718, %v8578
        %v8784 = vsel %vm8731, %v8719, %v8580
        %v8785 = vsel %vm8731, %v8720, %v8582
        %v8786 = vsel %vm8731, %v8721, %v8584
        %v8787 = vsel %vm8731, %v8722, %v8586
        %v8788 = vsel %vm8731, %v8723, %v8588
        %v8789 = vsel %vm8731, %v8724, %v8590
        %v8790 = vsel %vm8731, %v8725, %v8592
        %v8791 = vsel %vm8731, %v8726, %v8594
        %v8792 = vsel %vm8731, %v8727, %v8596
        %v8793 = vsel %vm8731, %v8728, %v8598
        %v8794 = vsel %vm8731, %v8729, %v8600
        %v8795 = vsel %vm8731, %v8730, %v8602
        %v8796 = vpack.c.bf16 %v8733, %v8732
        %v8797 = vpack.c.bf16 %v8735, %v8734
        %v8798 = vpack.c.bf16 %v8737, %v8736
        %v8799 = vpack.c.bf16 %v8739, %v8738
        %v8800 = vpack.c.bf16 %v8741, %v8740
        %v8801 = vpack.c.bf16 %v8743, %v8742
        %v8802 = vpack.c.bf16 %v8745, %v8744
        %v8803 = vpack.c.bf16 %v8747, %v8746
        %v8804 = vpack.c.bf16 %v8749, %v8748
        %v8805 = vpack.c.bf16 %v8751, %v8750
        %v8806 = vpack.c.bf16 %v8753, %v8752
        %v8807 = vpack.c.bf16 %v8755, %v8754
        %v8808 = vpack.c.bf16 %v8757, %v8756
        %v8809 = vpack.c.bf16 %v8759, %v8758
        %v8810 = vpack.c.bf16 %v8761, %v8760
        %v8811 = vpack.c.bf16 %v8763, %v8762
        %v8812 = vpack.c.bf16 %v8765, %v8764
        %v8813 = vpack.c.bf16 %v8767, %v8766
        %v8814 = vpack.c.bf16 %v8769, %v8768
        %v8815 = vpack.c.bf16 %v8771, %v8770
        %v8816 = vpack.c.bf16 %v8773, %v8772
        %v8817 = vpack.c.bf16 %v8775, %v8774
        %v8818 = vpack.c.bf16 %v8777, %v8776
        %v8819 = vpack.c.bf16 %v8779, %v8778
        %v8820 = vpack.c.bf16 %v8781, %v8780
        %v8821 = vpack.c.bf16 %v8783, %v8782
        %v8822 = vpack.c.bf16 %v8785, %v8784
        %v8823 = vpack.c.bf16 %v8787, %v8786
        %v8824 = vpack.c.bf16 %v8789, %v8788
        %v8825 = vpack.c.bf16 %v8791, %v8790
        %v8826 = vpack.c.bf16 %v8793, %v8792
        %v8827 = vpack.c.bf16 %v8795, %v8794
        %v8828 = vld [vmem:[%s4] sm:$0xf]
        %v8829 = vld [vmem:[%s4 + $0x4] sm:$0xf]
        %v8830 = vld [vmem:[%s4 + $0x8] sm:$0xf]
        %v8831 = vld [vmem:[%s4 + $0xc] sm:$0xf]
        %v8832 = vld [vmem:[%s4 + $0x10] sm:$0xf]
        %v8833 = vld [vmem:[%s4 + $0x14] sm:$0xf]
        %v8834 = vld [vmem:[%s4 + $0x18] sm:$0xf]
        %v8835 = vld [vmem:[%s4 + $0x1c] sm:$0xf]
        %v8836 = vld [vmem:[%s4 + $0x20] sm:$0xf]
        %v8837 = vld [vmem:[%s4 + $0x24] sm:$0xf]
        %v8838 = vld [vmem:[%s4 + $0x28] sm:$0xf]
        %v8839 = vld [vmem:[%s4 + $0x2c] sm:$0xf]
        %v8840 = vld [vmem:[%s5] sm:$0x1]
        %v8842 = vlaneseq
        %v8843 = vshrl.u32 %v8842, 7
        %v8844 = vsub.s32 0, %v8843
        %v8845 = vrot.slane %v8840, %v8844
        %v8859 = vunpack.c.l.b16 %v8828
        %v8860 = vunpack.c.l.b16 %v8829
        %v8861 = vunpack.c.l.b16 %v8830
        %v8862 = vunpack.c.l.b16 %v8831
        %v8863 = vunpack.c.l.b16 %v8832
        %v8864 = vunpack.c.l.b16 %v8833
        %v8865 = vunpack.c.l.b16 %v8834
        %v8866 = vunpack.c.l.b16 %v8835
        %v8867 = vunpack.c.l.b16 %v8836
        %v8868 = vunpack.c.l.b16 %v8837
        %v8869 = vunpack.c.l.b16 %v8838
        %v8870 = vunpack.c.l.b16 %v8839
        %v8871 = vpack.c.b16 %v8860, %v8859
        %v8872 = vpack.c.b16 %v8862, %v8861
        %v8873 = vpack.c.b16 %v8864, %v8863
        %v8874 = vpack.c.b16 %v8866, %v8865
        %v8875 = vpack.c.b16 %v8868, %v8867
        %v8876 = vpack.c.b16 %v8870, %v8869
        %vm8883 = vcmask 785408
        %v8885 = vsel %vm8883, %v8796, 0
        %v8888 = vsel %vm8883, %v8797, 0
        %v8891 = vsel %vm8883, %v8798, 0
        %v8894 = vsel %vm8883, %v8799, 0
        %v8897 = vsel %vm8883, %v8800, 0
        %v8900 = vsel %vm8883, %v8801, 0
        %v8903 = vsel %vm8883, %v8802, 0
        %v8906 = vsel %vm8883, %v8803, 0
        %v8909 = vsel %vm8883, %v8804, 0
        %v8912 = vsel %vm8883, %v8805, 0
        %v8915 = vsel %vm8883, %v8806, 0
        %v8918 = vsel %vm8883, %v8807, 0
        %v8921 = vsel %vm8883, %v8808, 0
        %v8924 = vsel %vm8883, %v8809, 0
        %v8927 = vsel %vm8883, %v8810, 0
        %v8930 = vsel %vm8883, %v8811, 0
        %v8933 = vsel %vm8883, %v8812, 0
        %v8936 = vsel %vm8883, %v8813, 0
        %v8939 = vsel %vm8883, %v8814, 0
        %v8942 = vsel %vm8883, %v8815, 0
        %v8945 = vsel %vm8883, %v8816, 0
        %v8948 = vsel %vm8883, %v8817, 0
        %v8951 = vsel %vm8883, %v8818, 0
        %v8954 = vsel %vm8883, %v8819, 0
        %v8957 = vsel %vm8883, %v8820, 0
        %v8960 = vsel %vm8883, %v8821, 0
        %v8963 = vsel %vm8883, %v8822, 0
        %v8966 = vsel %vm8883, %v8823, 0
        %v8969 = vsel %vm8883, %v8824, 0
        %v8972 = vsel %vm8883, %v8825, 0
        %v8975 = vsel %vm8883, %v8826, 0
        %v8978 = vsel %vm8883, %v8827, 0
        %8980 = vmatprep.subr.bf16.mxu0 0
        %8981 = vmatpush1.bf16.msra.mxu0 %v8871
        %8982 = vmatprep.subr.bf16.mxu0 0
        %8983 = vmatpush1.bf16.msra.mxu0 %v8872
        %8984 = vmatprep.subr.bf16.mxu0 0
        %8985 = vmatpush1.bf16.msra.mxu0 %v8873
        %8986 = vmatprep.subr.bf16.mxu0 0
        %8987 = vmatpush1.bf16.msra.mxu0 %v8874
        %8988 = vmatprep.subr.bf16.mxu0 0
        %8989 = vmatpush1.bf16.msra.mxu0 %v8875
        %8990 = vmatprep.subr.bf16.mxu0 0
        %8991 = vmatpush1.bf16.msra.mxu0 %v8876
        %8992 = vmatprep.subr.bf16.mxu0 0
        %8993 = vmatpush1.bf16.msra.mxu0 0
        %8994 = vmatprep.subr.bf16.mxu0 0
        %8995 = vmatpush1.bf16.msra.mxu0 0
        %8996 = vmatprep.subr.bf16.mxu0 0
        %8997 = vmatpush1.bf16.msra.mxu0 0
        %8998 = vmatprep.subr.bf16.mxu0 0
        %8999 = vmatpush1.bf16.msra.mxu0 0
        %9000 = vmatprep.subr.bf16.mxu0 0
        %9001 = vmatpush1.bf16.msra.mxu0 0
        %9002 = vmatprep.subr.bf16.mxu0 0
        %9003 = vmatpush1.bf16.msra.mxu0 0
        %9004 = vmatprep.subr.bf16.mxu0 0
        %9005 = vmatpush1.bf16.msra.mxu0 0
        %9006 = vmatprep.subr.bf16.mxu0 0
        %9007 = vmatpush1.bf16.msra.mxu0 0
        %9008 = vmatprep.subr.bf16.mxu0 0
        %9009 = vmatpush1.bf16.msra.mxu0 0
        %9010 = vmatprep.subr.bf16.mxu0 0
        %9011 = vmatpush1.bf16.msra.mxu0 0
        %9012 = vmatprep.mubr.bf16.mxu0 0
        %9013 = vmatmul.mubr.bf16.gmra.mrb[0].mxu0 %v8885
        %v9014 = vpop.f32.mrb[0].mxu0
        %v9015 = vadd.f32 %v8845, %v9014
        %v9016 = vpop.f32.mrb[0].mxu0
        %v9017 = vpop.f32.mrb[0].mxu0
        %v9018 = vadd.f32 %v8845, %v9017
        %v9019 = vpop.f32.mrb[0].mxu0
        %9020 = vmatprep.mubr.bf16.mxu0 0
        %9021 = vmatmul.mubr.bf16.gmra.mrb[0].mxu0 %v8888
        %v9022 = vpop.f32.mrb[0].mxu0
        %v9023 = vadd.f32 %v8845, %v9022
        %v9024 = vpop.f32.mrb[0].mxu0
        %v9025 = vpop.f32.mrb[0].mxu0
        %v9026 = vadd.f32 %v8845, %v9025
        %v9027 = vpop.f32.mrb[0].mxu0
        %9028 = vmatprep.mubr.bf16.mxu0 0
        %9029 = vmatmul.mubr.bf16.gmra.mrb[0].mxu0 %v8891
        %v9030 = vpop.f32.mrb[0].mxu0
        %v9031 = vadd.f32 %v8845, %v9030
        %v9032 = vpop.f32.mrb[0].mxu0
        %v9033 = vpop.f32.mrb[0].mxu0
        %v9034 = vadd.f32 %v8845, %v9033
        %v9035 = vpop.f32.mrb[0].mxu0
        %9036 = vmatprep.mubr.bf16.mxu0 0
        %9037 = vmatmul.mubr.bf16.gmra.mrb[0].mxu0 %v8894
        %v9038 = vpop.f32.mrb[0].mxu0
        %v9039 = vadd.f32 %v8845, %v9038
        %v9040 = vpop.f32.mrb[0].mxu0
        %v9041 = vpop.f32.mrb[0].mxu0
        %v9042 = vadd.f32 %v8845, %v9041
        %v9043 = vpop.f32.mrb[0].mxu0
        %9044 = vmatprep.mubr.bf16.mxu0 0
        %9045 = vmatmul.mubr.bf16.gmra.mrb[0].mxu0 %v8897
        %v9046 = vpop.f32.mrb[0].mxu0
        %v9047 = vadd.f32 %v8845, %v9046
        %v9048 = vpop.f32.mrb[0].mxu0
        %v9049 = vpop.f32.mrb[0].mxu0
        %v9050 = vadd.f32 %v8845, %v9049
        %v9051 = vpop.f32.mrb[0].mxu0
        %9052 = vmatprep.mubr.bf16.mxu0 0
        %9053 = vmatmul.mubr.bf16.gmra.mrb[0].mxu0 %v8900
        %v9054 = vpop.f32.mrb[0].mxu0
        %v9055 = vadd.f32 %v8845, %v9054
        %v9056 = vpop.f32.mrb[0].mxu0
        %v9057 = vpop.f32.mrb[0].mxu0
        %v9058 = vadd.f32 %v8845, %v9057
        %v9059 = vpop.f32.mrb[0].mxu0
        %9060 = vmatprep.mubr.bf16.mxu0 0
        %9061 = vmatmul.mubr.bf16.gmra.mrb[0].mxu0 %v8903
        %v9062 = vpop.f32.mrb[0].mxu0
        %v9063 = vadd.f32 %v8845, %v9062
        %v9064 = vpop.f32.mrb[0].mxu0
        %v9065 = vpop.f32.mrb[0].mxu0
        %v9066 = vadd.f32 %v8845, %v9065
        %v9067 = vpop.f32.mrb[0].mxu0
        %9068 = vmatprep.mubr.bf16.mxu0 0
        %9069 = vmatmul.mubr.bf16.gmra.mrb[0].mxu0 %v8906
        %v9070 = vpop.f32.mrb[0].mxu0
        %v9071 = vadd.f32 %v8845, %v9070
        %v9072 = vpop.f32.mrb[0].mxu0
        %v9073 = vpop.f32.mrb[0].mxu0
        %v9074 = vadd.f32 %v8845, %v9073
        %v9075 = vpop.f32.mrb[0].mxu0
        %9076 = vmatprep.mubr.bf16.mxu0 0
        %9077 = vmatmul.mubr.bf16.gmra.mrb[0].mxu0 %v8909
        %v9078 = vpop.f32.mrb[0].mxu0
        %v9079 = vadd.f32 %v8845, %v9078
        %v9080 = vpop.f32.mrb[0].mxu0
        %v9081 = vpop.f32.mrb[0].mxu0
        %v9082 = vadd.f32 %v8845, %v9081
        %v9083 = vpop.f32.mrb[0].mxu0
        %9084 = vmatprep.mubr.bf16.mxu0 0
        %9085 = vmatmul.mubr.bf16.gmra.mrb[0].mxu0 %v8912
        %v9086 = vpop.f32.mrb[0].mxu0
        %v9087 = vadd.f32 %v8845, %v9086
        %v9088 = vpop.f32.mrb[0].mxu0
        %v9089 = vpop.f32.mrb[0].mxu0
        %v9090 = vadd.f32 %v8845, %v9089
        %v9091 = vpop.f32.mrb[0].mxu0
        %9092 = vmatprep.mubr.bf16.mxu0 0
        %9093 = vmatmul.mubr.bf16.gmra.mrb[0].mxu0 %v8915
        %v9094 = vpop.f32.mrb[0].mxu0
        %v9095 = vadd.f32 %v8845, %v9094
        %v9096 = vpop.f32.mrb[0].mxu0
        %v9097 = vpop.f32.mrb[0].mxu0
        %v9098 = vadd.f32 %v8845, %v9097
        %v9099 = vpop.f32.mrb[0].mxu0
        %9100 = vmatprep.mubr.bf16.mxu0 0
        %9101 = vmatmul.mubr.bf16.gmra.mrb[0].mxu0 %v8918
        %v9102 = vpop.f32.mrb[0].mxu0
        %v9103 = vadd.f32 %v8845, %v9102
        %v9104 = vpop.f32.mrb[0].mxu0
        %v9105 = vpop.f32.mrb[0].mxu0
        %v9106 = vadd.f32 %v8845, %v9105
        %v9107 = vpop.f32.mrb[0].mxu0
        %9108 = vmatprep.mubr.bf16.mxu0 0
        %9109 = vmatmul.mubr.bf16.gmra.mrb[0].mxu0 %v8921
        %v9110 = vpop.f32.mrb[0].mxu0
        %v9111 = vadd.f32 %v8845, %v9110
        %v9112 = vpop.f32.mrb[0].mxu0
        %v9113 = vpop.f32.mrb[0].mxu0
        %v9114 = vadd.f32 %v8845, %v9113
        %v9115 = vpop.f32.mrb[0].mxu0
        %9116 = vmatprep.mubr.bf16.mxu0 0
        %9117 = vmatmul.mubr.bf16.gmra.mrb[0].mxu0 %v8924
        %v9118 = vpop.f32.mrb[0].mxu0
        %v9119 = vadd.f32 %v8845, %v9118
        %v9120 = vpop.f32.mrb[0].mxu0
        %v9121 = vpop.f32.mrb[0].mxu0
        %v9122 = vadd.f32 %v8845, %v9121
        %v9123 = vpop.f32.mrb[0].mxu0
        %9124 = vmatprep.mubr.bf16.mxu0 0
        %9125 = vmatmul.mubr.bf16.gmra.mrb[0].mxu0 %v8927
        %v9126 = vpop.f32.mrb[0].mxu0
        %v9127 = vadd.f32 %v8845, %v9126
        %v9128 = vpop.f32.mrb[0].mxu0
        %v9129 = vpop.f32.mrb[0].mxu0
        %v9130 = vadd.f32 %v8845, %v9129
        %v9131 = vpop.f32.mrb[0].mxu0
        %9132 = vmatprep.mubr.bf16.mxu0 0
        %9133 = vmatmul.mubr.bf16.gmra.mrb[0].mxu0 %v8930
        %v9134 = vpop.f32.mrb[0].mxu0
        %v9135 = vadd.f32 %v8845, %v9134
        %v9136 = vpop.f32.mrb[0].mxu0
        %v9137 = vpop.f32.mrb[0].mxu0
        %v9138 = vadd.f32 %v8845, %v9137
        %v9139 = vpop.f32.mrb[0].mxu0
        %9140 = vmatprep.mubr.bf16.mxu0 0
        %9141 = vmatmul.mubr.bf16.gmra.mrb[0].mxu0 %v8933
        %v9142 = vpop.f32.mrb[0].mxu0
        %v9143 = vadd.f32 %v8845, %v9142
        %v9144 = vpop.f32.mrb[0].mxu0
        %v9145 = vpop.f32.mrb[0].mxu0
        %v9146 = vadd.f32 %v8845, %v9145
        %v9147 = vpop.f32.mrb[0].mxu0
        %9148 = vmatprep.mubr.bf16.mxu0 0
        %9149 = vmatmul.mubr.bf16.gmra.mrb[0].mxu0 %v8936
        %v9150 = vpop.f32.mrb[0].mxu0
        %v9151 = vadd.f32 %v8845, %v9150
        %v9152 = vpop.f32.mrb[0].mxu0
        %v9153 = vpop.f32.mrb[0].mxu0
        %v9154 = vadd.f32 %v8845, %v9153
        %v9155 = vpop.f32.mrb[0].mxu0
        %9156 = vmatprep.mubr.bf16.mxu0 0
        %9157 = vmatmul.mubr.bf16.gmra.mrb[0].mxu0 %v8939
        %v9158 = vpop.f32.mrb[0].mxu0
        %v9159 = vadd.f32 %v8845, %v9158
        %v9160 = vpop.f32.mrb[0].mxu0
        %v9161 = vpop.f32.mrb[0].mxu0
        %v9162 = vadd.f32 %v8845, %v9161
        %v9163 = vpop.f32.mrb[0].mxu0
        %9164 = vmatprep.mubr.bf16.mxu0 0
        %9165 = vmatmul.mubr.bf16.gmra.mrb[0].mxu0 %v8942
        %v9166 = vpop.f32.mrb[0].mxu0
        %v9167 = vadd.f32 %v8845, %v9166
        %v9168 = vpop.f32.mrb[0].mxu0
        %v9169 = vpop.f32.mrb[0].mxu0
        %v9170 = vadd.f32 %v8845, %v9169
        %v9171 = vpop.f32.mrb[0].mxu0
        %9172 = vmatprep.mubr.bf16.mxu0 0
        %9173 = vmatmul.mubr.bf16.gmra.mrb[0].mxu0 %v8945
        %v9174 = vpop.f32.mrb[0].mxu0
        %v9175 = vadd.f32 %v8845, %v9174
        %v9176 = vpop.f32.mrb[0].mxu0
        %v9177 = vpop.f32.mrb[0].mxu0
        %v9178 = vadd.f32 %v8845, %v9177
        %v9179 = vpop.f32.mrb[0].mxu0
        %9180 = vmatprep.mubr.bf16.mxu0 0
        %9181 = vmatmul.mubr.bf16.gmra.mrb[0].mxu0 %v8948
        %v9182 = vpop.f32.mrb[0].mxu0
        %v9183 = vadd.f32 %v8845, %v9182
        %v9184 = vpop.f32.mrb[0].mxu0
        %v9185 = vpop.f32.mrb[0].mxu0
        %v9186 = vadd.f32 %v8845, %v9185
        %v9187 = vpop.f32.mrb[0].mxu0
        %9188 = vmatprep.mubr.bf16.mxu0 0
        %9189 = vmatmul.mubr.bf16.gmra.mrb[0].mxu0 %v8951
        %v9190 = vpop.f32.mrb[0].mxu0
        %v9191 = vadd.f32 %v8845, %v9190
        %v9192 = vpop.f32.mrb[0].mxu0
        %v9193 = vpop.f32.mrb[0].mxu0
        %v9194 = vadd.f32 %v8845, %v9193
        %v9195 = vpop.f32.mrb[0].mxu0
        %9196 = vmatprep.mubr.bf16.mxu0 0
        %9197 = vmatmul.mubr.bf16.gmra.mrb[0].mxu0 %v8954
        %v9198 = vpop.f32.mrb[0].mxu0
        %v9199 = vadd.f32 %v8845, %v9198
        %v9200 = vpop.f32.mrb[0].mxu0
        %v9201 = vpop.f32.mrb[0].mxu0
        %v9202 = vadd.f32 %v8845, %v9201
        %v9203 = vpop.f32.mrb[0].mxu0
        %9204 = vmatprep.mubr.bf16.mxu0 0
        %9205 = vmatmul.mubr.bf16.gmra.mrb[0].mxu0 %v8957
        %v9206 = vpop.f32.mrb[0].mxu0
        %v9207 = vadd.f32 %v8845, %v9206
        %v9208 = vpop.f32.mrb[0].mxu0
        %v9209 = vpop.f32.mrb[0].mxu0
        %v9210 = vadd.f32 %v8845, %v9209
        %v9211 = vpop.f32.mrb[0].mxu0
        %9212 = vmatprep.mubr.bf16.mxu0 0
        %9213 = vmatmul.mubr.bf16.gmra.mrb[0].mxu0 %v8960
        %v9214 = vpop.f32.mrb[0].mxu0
        %v9215 = vadd.f32 %v8845, %v9214
        %v9216 = vpop.f32.mrb[0].mxu0
        %v9217 = vpop.f32.mrb[0].mxu0
        %v9218 = vadd.f32 %v8845, %v9217
        %v9219 = vpop.f32.mrb[0].mxu0
        %9220 = vmatprep.mubr.bf16.mxu0 0
        %9221 = vmatmul.mubr.bf16.gmra.mrb[0].mxu0 %v8963
        %v9222 = vpop.f32.mrb[0].mxu0
        %v9223 = vadd.f32 %v8845, %v9222
        %v9224 = vpop.f32.mrb[0].mxu0
        %v9225 = vpop.f32.mrb[0].mxu0
        %v9226 = vadd.f32 %v8845, %v9225
        %v9227 = vpop.f32.mrb[0].mxu0
        %9228 = vmatprep.mubr.bf16.mxu0 0
        %9229 = vmatmul.mubr.bf16.gmra.mrb[0].mxu0 %v8966
        %v9230 = vpop.f32.mrb[0].mxu0
        %v9231 = vadd.f32 %v8845, %v9230
        %v9232 = vpop.f32.mrb[0].mxu0
        %v9233 = vpop.f32.mrb[0].mxu0
        %v9234 = vadd.f32 %v8845, %v9233
        %v9235 = vpop.f32.mrb[0].mxu0
        %9236 = vmatprep.mubr.bf16.mxu0 0
        %9237 = vmatmul.mubr.bf16.gmra.mrb[0].mxu0 %v8969
        %v9238 = vpop.f32.mrb[0].mxu0
        %v9239 = vadd.f32 %v8845, %v9238
        %v9240 = vpop.f32.mrb[0].mxu0
        %v9241 = vpop.f32.mrb[0].mxu0
        %v9242 = vadd.f32 %v8845, %v9241
        %v9243 = vpop.f32.mrb[0].mxu0
        %9244 = vmatprep.mubr.bf16.mxu0 0
        %9245 = vmatmul.mubr.bf16.gmra.mrb[0].mxu0 %v8972
        %v9246 = vpop.f32.mrb[0].mxu0
        %v9247 = vadd.f32 %v8845, %v9246
        %v9248 = vpop.f32.mrb[0].mxu0
        %v9249 = vpop.f32.mrb[0].mxu0
        %v9250 = vadd.f32 %v8845, %v9249
        %v9251 = vpop.f32.mrb[0].mxu0
        %9252 = vmatprep.mubr.bf16.mxu0 0
        %9253 = vmatmul.mubr.bf16.gmra.mrb[0].mxu0 %v8975
        %v9254 = vpop.f32.mrb[0].mxu0
        %v9255 = vadd.f32 %v8845, %v9254
        %v9256 = vpop.f32.mrb[0].mxu0
        %v9257 = vpop.f32.mrb[0].mxu0
        %v9258 = vadd.f32 %v8845, %v9257
        %v9259 = vpop.f32.mrb[0].mxu0
        %9260 = vmatprep.mubr.bf16.mxu0 0
        %9261 = vmatmul.mubr.bf16.gmra.mrb[0].mxu0 %v8978
        %v9262 = vpop.f32.mrb[0].mxu0
        %v9263 = vadd.f32 %v8845, %v9262
        %v9264 = vpop.f32.mrb[0].mxu0
        %v9265 = vpop.f32.mrb[0].mxu0
        %v9266 = vadd.f32 %v8845, %v9265
        %v9267 = vpop.f32.mrb[0].mxu0
        %9268 = vdwg.mxu0
        %9269 = vst.msk [vmem:[#allocation3] sm:$0xff] %vm8731, %v9015
        %9270 = vst.msk [vmem:[#allocation3 + $0x8] sm:$0xff] %vm8731, %v9018
        %9271 = vst.msk [vmem:[#allocation3 + $0x10] sm:$0xff] %vm8731, %v9023
        %9272 = vst.msk [vmem:[#allocation3 + $0x18] sm:$0xff] %vm8731, %v9026
        %9273 = vst.msk [vmem:[#allocation3 + $0x20] sm:$0xff] %vm8731, %v9031
        %9274 = vst.msk [vmem:[#allocation3 + $0x28] sm:$0xff] %vm8731, %v9034
        %9275 = vst.msk [vmem:[#allocation3 + $0x30] sm:$0xff] %vm8731, %v9039
        %9276 = vst.msk [vmem:[#allocation3 + $0x38] sm:$0xff] %vm8731, %v9042
        %9277 = vst.msk [vmem:[#allocation3 + $0x40] sm:$0xff] %vm8731, %v9047
        %9278 = vst.msk [vmem:[#allocation3 + $0x48] sm:$0xff] %vm8731, %v9050
        %9279 = vst.msk [vmem:[#allocation3 + $0x50] sm:$0xff] %vm8731, %v9055
        %9280 = vst.msk [vmem:[#allocation3 + $0x58] sm:$0xff] %vm8731, %v9058
        %9281 = vst.msk [vmem:[#allocation3 + $0x60] sm:$0xff] %vm8731, %v9063
        %9282 = vst.msk [vmem:[#allocation3 + $0x68] sm:$0xff] %vm8731, %v9066
        %9283 = vst.msk [vmem:[#allocation3 + $0x70] sm:$0xff] %vm8731, %v9071
        %9284 = vst.msk [vmem:[#allocation3 + $0x78] sm:$0xff] %vm8731, %v9074
        %9285 = vst.msk [vmem:[#allocation3 + $0x80] sm:$0xff] %vm8731, %v9079
        %9286 = vst.msk [vmem:[#allocation3 + $0x88] sm:$0xff] %vm8731, %v9082
        %9287 = vst.msk [vmem:[#allocation3 + $0x90] sm:$0xff] %vm8731, %v9087
        %9288 = vst.msk [vmem:[#allocation3 + $0x98] sm:$0xff] %vm8731, %v9090
        %9289 = vst.msk [vmem:[#allocation3 + $0xa0] sm:$0xff] %vm8731, %v9095
        %9290 = vst.msk [vmem:[#allocation3 + $0xa8] sm:$0xff] %vm8731, %v9098
        %9291 = vst.msk [vmem:[#allocation3 + $0xb0] sm:$0xff] %vm8731, %v9103
        %9292 = vst.msk [vmem:[#allocation3 + $0xb8] sm:$0xff] %vm8731, %v9106
        %9293 = vst.msk [vmem:[#allocation3 + $0xc0] sm:$0xff] %vm8731, %v9111
        %9294 = vst.msk [vmem:[#allocation3 + $0xc8] sm:$0xff] %vm8731, %v9114
        %9295 = vst.msk [vmem:[#allocation3 + $0xd0] sm:$0xff] %vm8731, %v9119
        %9296 = vst.msk [vmem:[#allocation3 + $0xd8] sm:$0xff] %vm8731, %v9122
        %9297 = vst.msk [vmem:[#allocation3 + $0xe0] sm:$0xff] %vm8731, %v9127
        %9298 = vst.msk [vmem:[#allocation3 + $0xe8] sm:$0xff] %vm8731, %v9130
        %9299 = vst.msk [vmem:[#allocation3 + $0xf0] sm:$0xff] %vm8731, %v9135
        %9300 = vst.msk [vmem:[#allocation3 + $0xf8] sm:$0xff] %vm8731, %v9138
        %9301 = vst.msk [vmem:[#allocation3 + $0x100] sm:$0xff] %vm8731, %v9143
        %9302 = vst.msk [vmem:[#allocation3 + $0x108] sm:$0xff] %vm8731, %v9146
        %9303 = vst.msk [vmem:[#allocation3 + $0x110] sm:$0xff] %vm8731, %v9151
        %9304 = vst.msk [vmem:[#allocation3 + $0x118] sm:$0xff] %vm8731, %v9154
        %9305 = vst.msk [vmem:[#allocation3 + $0x120] sm:$0xff] %vm8731, %v9159
        %9306 = vst.msk [vmem:[#allocation3 + $0x128] sm:$0xff] %vm8731, %v9162
        %9307 = vst.msk [vmem:[#allocation3 + $0x130] sm:$0xff] %vm8731, %v9167
        %9308 = vst.msk [vmem:[#allocation3 + $0x138] sm:$0xff] %vm8731, %v9170
        %9309 = vst.msk [vmem:[#allocation3 + $0x140] sm:$0xff] %vm8731, %v9175
        %9310 = vst.msk [vmem:[#allocation3 + $0x148] sm:$0xff] %vm8731, %v9178
        %9311 = vst.msk [vmem:[#allocation3 + $0x150] sm:$0xff] %vm8731, %v9183
        %9312 = vst.msk [vmem:[#allocation3 + $0x158] sm:$0xff] %vm8731, %v9186
        %9313 = vst.msk [vmem:[#allocation3 + $0x160] sm:$0xff] %vm8731, %v9191
        %9314 = vst.msk [vmem:[#allocation3 + $0x168] sm:$0xff] %vm8731, %v9194
        %9315 = vst.msk [vmem:[#allocation3 + $0x170] sm:$0xff] %vm8731, %v9199
        %9316 = vst.msk [vmem:[#allocation3 + $0x178] sm:$0xff] %vm8731, %v9202
        %9317 = vst.msk [vmem:[#allocation3 + $0x180] sm:$0xff] %vm8731, %v9207
        %9318 = vst.msk [vmem:[#allocation3 + $0x188] sm:$0xff] %vm8731, %v9210
        %9319 = vst.msk [vmem:[#allocation3 + $0x190] sm:$0xff] %vm8731, %v9215
        %9320 = vst.msk [vmem:[#allocation3 + $0x198] sm:$0xff] %vm8731, %v9218
        %9321 = vst.msk [vmem:[#allocation3 + $0x1a0] sm:$0xff] %vm8731, %v9223
        %9322 = vst.msk [vmem:[#allocation3 + $0x1a8] sm:$0xff] %vm8731, %v9226
        %9323 = vst.msk [vmem:[#allocation3 + $0x1b0] sm:$0xff] %vm8731, %v9231
        %9324 = vst.msk [vmem:[#allocation3 + $0x1b8] sm:$0xff] %vm8731, %v9234
        %9325 = vst.msk [vmem:[#allocation3 + $0x1c0] sm:$0xff] %vm8731, %v9239
        %9326 = vst.msk [vmem:[#allocation3 + $0x1c8] sm:$0xff] %vm8731, %v9242
        %9327 = vst.msk [vmem:[#allocation3 + $0x1d0] sm:$0xff] %vm8731, %v9247
        %9328 = vst.msk [vmem:[#allocation3 + $0x1d8] sm:$0xff] %vm8731, %v9250
        %9329 = vst.msk [vmem:[#allocation3 + $0x1e0] sm:$0xff] %vm8731, %v9255
        %9330 = vst.msk [vmem:[#allocation3 + $0x1e8] sm:$0xff] %vm8731, %v9258
        %9331 = vst.msk [vmem:[#allocation3 + $0x1f0] sm:$0xff] %vm8731, %v9263
        %9332 = vst.msk [vmem:[#allocation3 + $0x1f8] sm:$0xff] %vm8731, %v9266
        %v9333 = vld [vmem:[#allocation3] ss:$2 sm:$0xff]
        %s9334 = scalar_lea.vmem [#allocation3], 16
        %v9335 = vld [vmem:[%s9334] ss:$2 sm:$0xff]
        %s9336 = scalar_lea.vmem [#allocation3], 32
        %v9337 = vld [vmem:[%s9336] ss:$2 sm:$0xff]
        %s9338 = scalar_lea.vmem [#allocation3], 48
        %v9339 = vld [vmem:[%s9338] ss:$2 sm:$0xff]
        %s9340 = scalar_lea.vmem [#allocation3], 64
        %v9341 = vld [vmem:[%s9340] ss:$2 sm:$0xff]
        %s9342 = scalar_lea.vmem [#allocation3], 80
        %v9343 = vld [vmem:[%s9342] ss:$2 sm:$0xff]
        %s9344 = scalar_lea.vmem [#allocation3], 96
        %v9345 = vld [vmem:[%s9344] ss:$2 sm:$0xff]
        %s9346 = scalar_lea.vmem [#allocation3], 112
        %v9347 = vld [vmem:[%s9346] ss:$2 sm:$0xff]
        %s9348 = scalar_lea.vmem [#allocation3], 128
        %v9349 = vld [vmem:[%s9348] ss:$2 sm:$0xff]
        %s9350 = scalar_lea.vmem [#allocation3], 144
        %v9351 = vld [vmem:[%s9350] ss:$2 sm:$0xff]
        %s9352 = scalar_lea.vmem [#allocation3], 160
        %v9353 = vld [vmem:[%s9352] ss:$2 sm:$0xff]
        %s9354 = scalar_lea.vmem [#allocation3], 176
        %v9355 = vld [vmem:[%s9354] ss:$2 sm:$0xff]
        %s9356 = scalar_lea.vmem [#allocation3], 192
        %v9357 = vld [vmem:[%s9356] ss:$2 sm:$0xff]
        %s9358 = scalar_lea.vmem [#allocation3], 208
        %v9359 = vld [vmem:[%s9358] ss:$2 sm:$0xff]
        %s9360 = scalar_lea.vmem [#allocation3], 224
        %v9361 = vld [vmem:[%s9360] ss:$2 sm:$0xff]
        %s9362 = scalar_lea.vmem [#allocation3], 240
        %v9363 = vld [vmem:[%s9362] ss:$2 sm:$0xff]
        %s9364 = scalar_lea.vmem [#allocation3], 256
        %v9365 = vld [vmem:[%s9364] ss:$2 sm:$0xff]
        %s9366 = scalar_lea.vmem [#allocation3], 272
        %v9367 = vld [vmem:[%s9366] ss:$2 sm:$0xff]
        %s9368 = scalar_lea.vmem [#allocation3], 288
        %v9369 = vld [vmem:[%s9368] ss:$2 sm:$0xff]
        %s9370 = scalar_lea.vmem [#allocation3], 304
        %v9371 = vld [vmem:[%s9370] ss:$2 sm:$0xff]
        %s9372 = scalar_lea.vmem [#allocation3], 320
        %v9373 = vld [vmem:[%s9372] ss:$2 sm:$0xff]
        %s9374 = scalar_lea.vmem [#allocation3], 336
        %v9375 = vld [vmem:[%s9374] ss:$2 sm:$0xff]
        %s9376 = scalar_lea.vmem [#allocation3], 352
        %v9377 = vld [vmem:[%s9376] ss:$2 sm:$0xff]
        %s9378 = scalar_lea.vmem [#allocation3], 368
        %v9379 = vld [vmem:[%s9378] ss:$2 sm:$0xff]
        %s9380 = scalar_lea.vmem [#allocation3], 384
        %v9381 = vld [vmem:[%s9380] ss:$2 sm:$0xff]
        %s9382 = scalar_lea.vmem [#allocation3], 400
        %v9383 = vld [vmem:[%s9382] ss:$2 sm:$0xff]
        %s9384 = scalar_lea.vmem [#allocation3], 416
        %v9385 = vld [vmem:[%s9384] ss:$2 sm:$0xff]
        %s9386 = scalar_lea.vmem [#allocation3], 432
        %v9387 = vld [vmem:[%s9386] ss:$2 sm:$0xff]
        %s9388 = scalar_lea.vmem [#allocation3], 448
        %v9389 = vld [vmem:[%s9388] ss:$2 sm:$0xff]
        %s9390 = scalar_lea.vmem [#allocation3], 464
        %v9391 = vld [vmem:[%s9390] ss:$2 sm:$0xff]
        %s9392 = scalar_lea.vmem [#allocation3], 480
        %v9393 = vld [vmem:[%s9392] ss:$2 sm:$0xff]
        %s9394 = scalar_lea.vmem [#allocation3], 496
        %v9395 = vld [vmem:[%s9394] ss:$2 sm:$0xff]
        %s9396 = scalar_lea.vmem [#allocation3], 1
        %v9397 = vld [vmem:[%s9396] ss:$2 sm:$0xff]
        %s9398 = scalar_lea.vmem [#allocation3], 17
        %v9399 = vld [vmem:[%s9398] ss:$2 sm:$0xff]
        %s9400 = scalar_lea.vmem [#allocation3], 33
        %v9401 = vld [vmem:[%s9400] ss:$2 sm:$0xff]
        %s9402 = scalar_lea.vmem [#allocation3], 49
        %v9403 = vld [vmem:[%s9402] ss:$2 sm:$0xff]
        %s9404 = scalar_lea.vmem [#allocation3], 65
        %v9405 = vld [vmem:[%s9404] ss:$2 sm:$0xff]
        %s9406 = scalar_lea.vmem [#allocation3], 81
        %v9407 = vld [vmem:[%s9406] ss:$2 sm:$0xff]
        %s9408 = scalar_lea.vmem [#allocation3], 97
        %v9409 = vld [vmem:[%s9408] ss:$2 sm:$0xff]
        %s9410 = scalar_lea.vmem [#allocation3], 113
        %v9411 = vld [vmem:[%s9410] ss:$2 sm:$0xff]
        %s9412 = scalar_lea.vmem [#allocation3], 129
        %v9413 = vld [vmem:[%s9412] ss:$2 sm:$0xff]
        %s9414 = scalar_lea.vmem [#allocation3], 145
        %v9415 = vld [vmem:[%s9414] ss:$2 sm:$0xff]
        %s9416 = scalar_lea.vmem [#allocation3], 161
        %v9417 = vld [vmem:[%s9416] ss:$2 sm:$0xff]
        %s9418 = scalar_lea.vmem [#allocation3], 177
        %v9419 = vld [vmem:[%s9418] ss:$2 sm:$0xff]
        %s9420 = scalar_lea.vmem [#allocation3], 193
        %v9421 = vld [vmem:[%s9420] ss:$2 sm:$0xff]
        %s9422 = scalar_lea.vmem [#allocation3], 209
        %v9423 = vld [vmem:[%s9422] ss:$2 sm:$0xff]
        %s9424 = scalar_lea.vmem [#allocation3], 225
        %v9425 = vld [vmem:[%s9424] ss:$2 sm:$0xff]
        %s9426 = scalar_lea.vmem [#allocation3], 241
        %v9427 = vld [vmem:[%s9426] ss:$2 sm:$0xff]
        %s9428 = scalar_lea.vmem [#allocation3], 257
        %v9429 = vld [vmem:[%s9428] ss:$2 sm:$0xff]
        %s9430 = scalar_lea.vmem [#allocation3], 273
        %v9431 = vld [vmem:[%s9430] ss:$2 sm:$0xff]
        %s9432 = scalar_lea.vmem [#allocation3], 289
        %v9433 = vld [vmem:[%s9432] ss:$2 sm:$0xff]
        %s9434 = scalar_lea.vmem [#allocation3], 305
        %v9435 = vld [vmem:[%s9434] ss:$2 sm:$0xff]
        %s9436 = scalar_lea.vmem [#allocation3], 321
        %v9437 = vld [vmem:[%s9436] ss:$2 sm:$0xff]
        %s9438 = scalar_lea.vmem [#allocation3], 337
        %v9439 = vld [vmem:[%s9438] ss:$2 sm:$0xff]
        %s9440 = scalar_lea.vmem [#allocation3], 353
        %v9441 = vld [vmem:[%s9440] ss:$2 sm:$0xff]
        %s9442 = scalar_lea.vmem [#allocation3], 369
        %v9443 = vld [vmem:[%s9442] ss:$2 sm:$0xff]
        %s9444 = scalar_lea.vmem [#allocation3], 385
        %v9445 = vld [vmem:[%s9444] ss:$2 sm:$0xff]
        %s9446 = scalar_lea.vmem [#allocation3], 401
        %v9447 = vld [vmem:[%s9446] ss:$2 sm:$0xff]
        %s9448 = scalar_lea.vmem [#allocation3], 417
        %v9449 = vld [vmem:[%s9448] ss:$2 sm:$0xff]
        %s9450 = scalar_lea.vmem [#allocation3], 433
        %v9451 = vld [vmem:[%s9450] ss:$2 sm:$0xff]
        %s9452 = scalar_lea.vmem [#allocation3], 449
        %v9453 = vld [vmem:[%s9452] ss:$2 sm:$0xff]
        %s9454 = scalar_lea.vmem [#allocation3], 465
        %v9455 = vld [vmem:[%s9454] ss:$2 sm:$0xff]
        %s9456 = scalar_lea.vmem [#allocation3], 481
        %v9457 = vld [vmem:[%s9456] ss:$2 sm:$0xff]
        %s9458 = scalar_lea.vmem [#allocation3], 497
        %v9459 = vld [vmem:[%s9458] ss:$2 sm:$0xff]
        %v9460 = vmax.f32 %v9333, %v9397
        %v9461 = vmax.f32 %v9335, %v9399
        %v9462 = vmax.f32 %v9337, %v9401
        %v9463 = vmax.f32 %v9339, %v9403
        %v9464 = vmax.f32 %v9341, %v9405
        %v9465 = vmax.f32 %v9343, %v9407
        %v9466 = vmax.f32 %v9345, %v9409
        %v9467 = vmax.f32 %v9347, %v9411
        %v9468 = vmax.f32 %v9349, %v9413
        %v9469 = vmax.f32 %v9351, %v9415
        %v9470 = vmax.f32 %v9353, %v9417
        %v9471 = vmax.f32 %v9355, %v9419
        %v9472 = vmax.f32 %v9357, %v9421
        %v9473 = vmax.f32 %v9359, %v9423
        %v9474 = vmax.f32 %v9361, %v9425
        %v9475 = vmax.f32 %v9363, %v9427
        %v9476 = vmax.f32 %v9365, %v9429
        %v9477 = vmax.f32 %v9367, %v9431
        %v9478 = vmax.f32 %v9369, %v9433
        %v9479 = vmax.f32 %v9371, %v9435
        %v9480 = vmax.f32 %v9373, %v9437
        %v9481 = vmax.f32 %v9375, %v9439
        %v9482 = vmax.f32 %v9377, %v9441
        %v9483 = vmax.f32 %v9379, %v9443
        %v9484 = vmax.f32 %v9381, %v9445
        %v9485 = vmax.f32 %v9383, %v9447
        %v9486 = vmax.f32 %v9385, %v9449
        %v9487 = vmax.f32 %v9387, %v9451
        %v9488 = vmax.f32 %v9389, %v9453
        %v9489 = vmax.f32 %v9391, %v9455
        %v9490 = vmax.f32 %v9393, %v9457
        %v9491 = vmax.f32 %v9395, %v9459
        %v9492 = vmax.f32 %v9460, 0.0
        %v9493 = vmax.f32 %v9461, 0.0
        %v9494 = vmax.f32 %v9462, 0.0
        %v9495 = vmax.f32 %v9463, 0.0
        %v9496 = vmax.f32 %v9464, 0.0
        %v9497 = vmax.f32 %v9465, 0.0
        %v9498 = vmax.f32 %v9466, 0.0
        %v9499 = vmax.f32 %v9467, 0.0
        %v9500 = vmax.f32 %v9468, 0.0
        %v9501 = vmax.f32 %v9469, 0.0
        %v9502 = vmax.f32 %v9470, 0.0
        %v9503 = vmax.f32 %v9471, 0.0
        %v9504 = vmax.f32 %v9472, 0.0
        %v9505 = vmax.f32 %v9473, 0.0
        %v9506 = vmax.f32 %v9474, 0.0
        %v9507 = vmax.f32 %v9475, 0.0
        %v9508 = vmax.f32 %v9476, 0.0
        %v9509 = vmax.f32 %v9477, 0.0
        %v9510 = vmax.f32 %v9478, 0.0
        %v9511 = vmax.f32 %v9479, 0.0
        %v9512 = vmax.f32 %v9480, 0.0
        %v9513 = vmax.f32 %v9481, 0.0
        %v9514 = vmax.f32 %v9482, 0.0
        %v9515 = vmax.f32 %v9483, 0.0
        %v9516 = vmax.f32 %v9484, 0.0
        %v9517 = vmax.f32 %v9485, 0.0
        %v9518 = vmax.f32 %v9486, 0.0
        %v9519 = vmax.f32 %v9487, 0.0
        %v9520 = vmax.f32 %v9488, 0.0
        %v9521 = vmax.f32 %v9489, 0.0
        %v9522 = vmax.f32 %v9490, 0.0
        %v9523 = vmax.f32 %v9491, 0.0
        %vm9524 = vcmp.lt.s32.totalorder %v572, 0
        %v9525 = vsub.s32 0, %v572
        %v9526 = vsel %vm9524, %v9525, %v572
        %v9527 = vshrl.u32 %v9526, 2
        %v9528 = vand.u32 %v9526, 3
        %v9529 = vsub.s32 0, %v9528
        %v9530 = vsel %vm9524, %v9529, %v9528
        %vm9531 = vcmp.lt.s32.totalorder %v573, 0
        %v9532 = vsub.s32 0, %v573
        %v9533 = vsel %vm9531, %v9532, %v573
        %v9534 = vshrl.u32 %v9533, 2
        %v9535 = vand.u32 %v9533, 3
        %v9536 = vsub.s32 0, %v9535
        %v9537 = vsel %vm9531, %v9536, %v9535
        %vm9538 = vcmp.lt.s32.totalorder %v574, 0
        %v9539 = vsub.s32 0, %v574
        %v9540 = vsel %vm9538, %v9539, %v574
        %v9541 = vshrl.u32 %v9540, 2
        %v9542 = vand.u32 %v9540, 3
        %v9543 = vsub.s32 0, %v9542
        %v9544 = vsel %vm9538, %v9543, %v9542
        %vm9545 = vcmp.lt.s32.totalorder %v575, 0
        %v9546 = vsub.s32 0, %v575
        %v9547 = vsel %vm9545, %v9546, %v575
        %v9548 = vshrl.u32 %v9547, 2
        %v9549 = vand.u32 %v9547, 3
        %v9550 = vsub.s32 0, %v9549
        %v9551 = vsel %vm9545, %v9550, %v9549
        %vm9552 = vcmp.lt.s32.totalorder %v576, 0
        %v9553 = vsub.s32 0, %v576
        %v9554 = vsel %vm9552, %v9553, %v576
        %v9555 = vshrl.u32 %v9554, 2
        %v9556 = vand.u32 %v9554, 3
        %v9557 = vsub.s32 0, %v9556
        %v9558 = vsel %vm9552, %v9557, %v9556
        %vm9559 = vcmp.lt.s32.totalorder %v577, 0
        %v9560 = vsub.s32 0, %v577
        %v9561 = vsel %vm9559, %v9560, %v577
        %v9562 = vshrl.u32 %v9561, 2
        %v9563 = vand.u32 %v9561, 3
        %v9564 = vsub.s32 0, %v9563
        %v9565 = vsel %vm9559, %v9564, %v9563
        %vm9566 = vcmp.lt.s32.totalorder %v578, 0
        %v9567 = vsub.s32 0, %v578
        %v9568 = vsel %vm9566, %v9567, %v578
        %v9569 = vshrl.u32 %v9568, 2
        %v9570 = vand.u32 %v9568, 3
        %v9571 = vsub.s32 0, %v9570
        %v9572 = vsel %vm9566, %v9571, %v9570
        %vm9573 = vcmp.lt.s32.totalorder %v579, 0
        %v9574 = vsub.s32 0, %v579
        %v9575 = vsel %vm9573, %v9574, %v579
        %v9576 = vshrl.u32 %v9575, 2
        %v9577 = vand.u32 %v9575, 3
        %v9578 = vsub.s32 0, %v9577
        %v9579 = vsel %vm9573, %v9578, %v9577
        %vm9580 = vcmp.lt.s32.totalorder %v580, 0
        %v9581 = vsub.s32 0, %v580
        %v9582 = vsel %vm9580, %v9581, %v580
        %v9583 = vshrl.u32 %v9582, 2
        %v9584 = vand.u32 %v9582, 3
        %v9585 = vsub.s32 0, %v9584
        %v9586 = vsel %vm9580, %v9585, %v9584
        %vm9587 = vcmp.lt.s32.totalorder %v581, 0
        %v9588 = vsub.s32 0, %v581
        %v9589 = vsel %vm9587, %v9588, %v581
        %v9590 = vshrl.u32 %v9589, 2
        %v9591 = vand.u32 %v9589, 3
        %v9592 = vsub.s32 0, %v9591
        %v9593 = vsel %vm9587, %v9592, %v9591
        %vm9594 = vcmp.lt.s32.totalorder %v582, 0
        %v9595 = vsub.s32 0, %v582
        %v9596 = vsel %vm9594, %v9595, %v582
        %v9597 = vshrl.u32 %v9596, 2
        %v9598 = vand.u32 %v9596, 3
        %v9599 = vsub.s32 0, %v9598
        %v9600 = vsel %vm9594, %v9599, %v9598
        %vm9601 = vcmp.lt.s32.totalorder %v583, 0
        %v9602 = vsub.s32 0, %v583
        %v9603 = vsel %vm9601, %v9602, %v583
        %v9604 = vshrl.u32 %v9603, 2
        %v9605 = vand.u32 %v9603, 3
        %v9606 = vsub.s32 0, %v9605
        %v9607 = vsel %vm9601, %v9606, %v9605
        %vm9608 = vcmp.lt.s32.totalorder %v584, 0
        %v9609 = vsub.s32 0, %v584
        %v9610 = vsel %vm9608, %v9609, %v584
        %v9611 = vshrl.u32 %v9610, 2
        %v9612 = vand.u32 %v9610, 3
        %v9613 = vsub.s32 0, %v9612
        %v9614 = vsel %vm9608, %v9613, %v9612
        %vm9615 = vcmp.lt.s32.totalorder %v585, 0
        %v9616 = vsub.s32 0, %v585
        %v9617 = vsel %vm9615, %v9616, %v585
        %v9618 = vshrl.u32 %v9617, 2
        %v9619 = vand.u32 %v9617, 3
        %v9620 = vsub.s32 0, %v9619
        %v9621 = vsel %vm9615, %v9620, %v9619
        %vm9622 = vcmp.lt.s32.totalorder %v586, 0
        %v9623 = vsub.s32 0, %v586
        %v9624 = vsel %vm9622, %v9623, %v586
        %v9625 = vshrl.u32 %v9624, 2
        %v9626 = vand.u32 %v9624, 3
        %v9627 = vsub.s32 0, %v9626
        %v9628 = vsel %vm9622, %v9627, %v9626
        %vm9629 = vcmp.lt.s32.totalorder %v587, 0
        %v9630 = vsub.s32 0, %v587
        %v9631 = vsel %vm9629, %v9630, %v587
        %v9632 = vshrl.u32 %v9631, 2
        %v9633 = vand.u32 %v9631, 3
        %v9634 = vsub.s32 0, %v9633
        %v9635 = vsel %vm9629, %v9634, %v9633
        %vm9636 = vcmp.lt.s32.totalorder %v588, 0
        %v9637 = vsub.s32 0, %v588
        %v9638 = vsel %vm9636, %v9637, %v588
        %v9639 = vshrl.u32 %v9638, 2
        %v9640 = vand.u32 %v9638, 3
        %v9641 = vsub.s32 0, %v9640
        %v9642 = vsel %vm9636, %v9641, %v9640
        %vm9643 = vcmp.lt.s32.totalorder %v589, 0
        %v9644 = vsub.s32 0, %v589
        %v9645 = vsel %vm9643, %v9644, %v589
        %v9646 = vshrl.u32 %v9645, 2
        %v9647 = vand.u32 %v9645, 3
        %v9648 = vsub.s32 0, %v9647
        %v9649 = vsel %vm9643, %v9648, %v9647
        %vm9650 = vcmp.lt.s32.totalorder %v590, 0
        %v9651 = vsub.s32 0, %v590
        %v9652 = vsel %vm9650, %v9651, %v590
        %v9653 = vshrl.u32 %v9652, 2
        %v9654 = vand.u32 %v9652, 3
        %v9655 = vsub.s32 0, %v9654
        %v9656 = vsel %vm9650, %v9655, %v9654
        %vm9657 = vcmp.lt.s32.totalorder %v591, 0
        %v9658 = vsub.s32 0, %v591
        %v9659 = vsel %vm9657, %v9658, %v591
        %v9660 = vshrl.u32 %v9659, 2
        %v9661 = vand.u32 %v9659, 3
        %v9662 = vsub.s32 0, %v9661
        %v9663 = vsel %vm9657, %v9662, %v9661
        %vm9664 = vcmp.lt.s32.totalorder %v592, 0
        %v9665 = vsub.s32 0, %v592
        %v9666 = vsel %vm9664, %v9665, %v592
        %v9667 = vshrl.u32 %v9666, 2
        %v9668 = vand.u32 %v9666, 3
        %v9669 = vsub.s32 0, %v9668
        %v9670 = vsel %vm9664, %v9669, %v9668
        %vm9671 = vcmp.lt.s32.totalorder %v593, 0
        %v9672 = vsub.s32 0, %v593
        %v9673 = vsel %vm9671, %v9672, %v593
        %v9674 = vshrl.u32 %v9673, 2
        %v9675 = vand.u32 %v9673, 3
        %v9676 = vsub.s32 0, %v9675
        %v9677 = vsel %vm9671, %v9676, %v9675
        %vm9678 = vcmp.lt.s32.totalorder %v594, 0
        %v9679 = vsub.s32 0, %v594
        %v9680 = vsel %vm9678, %v9679, %v594
        %v9681 = vshrl.u32 %v9680, 2
        %v9682 = vand.u32 %v9680, 3
        %v9683 = vsub.s32 0, %v9682
        %v9684 = vsel %vm9678, %v9683, %v9682
        %vm9685 = vcmp.lt.s32.totalorder %v595, 0
        %v9686 = vsub.s32 0, %v595
        %v9687 = vsel %vm9685, %v9686, %v595
        %v9688 = vshrl.u32 %v9687, 2
        %v9689 = vand.u32 %v9687, 3
        %v9690 = vsub.s32 0, %v9689
        %v9691 = vsel %vm9685, %v9690, %v9689
        %vm9692 = vcmp.lt.s32.totalorder %v596, 0
        %v9693 = vsub.s32 0, %v596
        %v9694 = vsel %vm9692, %v9693, %v596
        %v9695 = vshrl.u32 %v9694, 2
        %v9696 = vand.u32 %v9694, 3
        %v9697 = vsub.s32 0, %v9696
        %v9698 = vsel %vm9692, %v9697, %v9696
        %vm9699 = vcmp.lt.s32.totalorder %v597, 0
        %v9700 = vsub.s32 0, %v597
        %v9701 = vsel %vm9699, %v9700, %v597
        %v9702 = vshrl.u32 %v9701, 2
        %v9703 = vand.u32 %v9701, 3
        %v9704 = vsub.s32 0, %v9703
        %v9705 = vsel %vm9699, %v9704, %v9703
        %vm9706 = vcmp.lt.s32.totalorder %v598, 0
        %v9707 = vsub.s32 0, %v598
        %v9708 = vsel %vm9706, %v9707, %v598
        %v9709 = vshrl.u32 %v9708, 2
        %v9710 = vand.u32 %v9708, 3
        %v9711 = vsub.s32 0, %v9710
        %v9712 = vsel %vm9706, %v9711, %v9710
        %vm9713 = vcmp.lt.s32.totalorder %v599, 0
        %v9714 = vsub.s32 0, %v599
        %v9715 = vsel %vm9713, %v9714, %v599
        %v9716 = vshrl.u32 %v9715, 2
        %v9717 = vand.u32 %v9715, 3
        %v9718 = vsub.s32 0, %v9717
        %v9719 = vsel %vm9713, %v9718, %v9717
        %vm9720 = vcmp.lt.s32.totalorder %v600, 0
        %v9721 = vsub.s32 0, %v600
        %v9722 = vsel %vm9720, %v9721, %v600
        %v9723 = vshrl.u32 %v9722, 2
        %v9724 = vand.u32 %v9722, 3
        %v9725 = vsub.s32 0, %v9724
        %v9726 = vsel %vm9720, %v9725, %v9724
        %vm9727 = vcmp.lt.s32.totalorder %v601, 0
        %v9728 = vsub.s32 0, %v601
        %v9729 = vsel %vm9727, %v9728, %v601
        %v9730 = vshrl.u32 %v9729, 2
        %v9731 = vand.u32 %v9729, 3
        %v9732 = vsub.s32 0, %v9731
        %v9733 = vsel %vm9727, %v9732, %v9731
        %vm9734 = vcmp.lt.s32.totalorder %v602, 0
        %v9735 = vsub.s32 0, %v602
        %v9736 = vsel %vm9734, %v9735, %v602
        %v9737 = vshrl.u32 %v9736, 2
        %v9738 = vand.u32 %v9736, 3
        %v9739 = vsub.s32 0, %v9738
        %v9740 = vsel %vm9734, %v9739, %v9738
        %vm9741 = vcmp.lt.s32.totalorder %v603, 0
        %v9742 = vsub.s32 0, %v603
        %v9743 = vsel %vm9741, %v9742, %v603
        %v9744 = vshrl.u32 %v9743, 2
        %v9745 = vand.u32 %v9743, 3
        %v9746 = vsub.s32 0, %v9745
        %v9747 = vsel %vm9741, %v9746, %v9745
        %vm9748 = vcmp.ne.s32.totalorder %v9530, 0
        %vm9749 = vcmp.ne.s32.totalorder %v9537, 0
        %vm9750 = vcmp.ne.s32.totalorder %v9544, 0
        %vm9751 = vcmp.ne.s32.totalorder %v9551, 0
        %vm9752 = vcmp.ne.s32.totalorder %v9558, 0
        %vm9753 = vcmp.ne.s32.totalorder %v9565, 0
        %vm9754 = vcmp.ne.s32.totalorder %v9572, 0
        %vm9755 = vcmp.ne.s32.totalorder %v9579, 0
        %vm9756 = vcmp.ne.s32.totalorder %v9586, 0
        %vm9757 = vcmp.ne.s32.totalorder %v9593, 0
        %vm9758 = vcmp.ne.s32.totalorder %v9600, 0
        %vm9759 = vcmp.ne.s32.totalorder %v9607, 0
        %vm9760 = vcmp.ne.s32.totalorder %v9614, 0
        %vm9761 = vcmp.ne.s32.totalorder %v9621, 0
        %vm9762 = vcmp.ne.s32.totalorder %v9628, 0
        %vm9763 = vcmp.ne.s32.totalorder %v9635, 0
        %vm9764 = vcmp.ne.s32.totalorder %v9642, 0
        %vm9765 = vcmp.ne.s32.totalorder %v9649, 0
        %vm9766 = vcmp.ne.s32.totalorder %v9656, 0
        %vm9767 = vcmp.ne.s32.totalorder %v9663, 0
        %vm9768 = vcmp.ne.s32.totalorder %v9670, 0
        %vm9769 = vcmp.ne.s32.totalorder %v9677, 0
        %vm9770 = vcmp.ne.s32.totalorder %v9684, 0
        %vm9771 = vcmp.ne.s32.totalorder %v9691, 0
        %vm9772 = vcmp.ne.s32.totalorder %v9698, 0
        %vm9773 = vcmp.ne.s32.totalorder %v9705, 0
        %vm9774 = vcmp.ne.s32.totalorder %v9712, 0
        %vm9775 = vcmp.ne.s32.totalorder %v9719, 0
        %vm9776 = vcmp.ne.s32.totalorder %v9726, 0
        %vm9777 = vcmp.ne.s32.totalorder %v9733, 0
        %vm9778 = vcmp.ne.s32.totalorder %v9740, 0
        %vm9779 = vcmp.ne.s32.totalorder %v9747, 0
        %vm9780 = vcmp.lt.s32.totalorder %v9530, 0
        %vm9781 = vcmp.lt.s32.totalorder %v9537, 0
        %vm9782 = vcmp.lt.s32.totalorder %v9544, 0
        %vm9783 = vcmp.lt.s32.totalorder %v9551, 0
        %vm9784 = vcmp.lt.s32.totalorder %v9558, 0
        %vm9785 = vcmp.lt.s32.totalorder %v9565, 0
        %vm9786 = vcmp.lt.s32.totalorder %v9572, 0
        %vm9787 = vcmp.lt.s32.totalorder %v9579, 0
        %vm9788 = vcmp.lt.s32.totalorder %v9586, 0
        %vm9789 = vcmp.lt.s32.totalorder %v9593, 0
        %vm9790 = vcmp.lt.s32.totalorder %v9600, 0
        %vm9791 = vcmp.lt.s32.totalorder %v9607, 0
        %vm9792 = vcmp.lt.s32.totalorder %v9614, 0
        %vm9793 = vcmp.lt.s32.totalorder %v9621, 0
        %vm9794 = vcmp.lt.s32.totalorder %v9628, 0
        %vm9795 = vcmp.lt.s32.totalorder %v9635, 0
        %vm9796 = vcmp.lt.s32.totalorder %v9642, 0
        %vm9797 = vcmp.lt.s32.totalorder %v9649, 0
        %vm9798 = vcmp.lt.s32.totalorder %v9656, 0
        %vm9799 = vcmp.lt.s32.totalorder %v9663, 0
        %vm9800 = vcmp.lt.s32.totalorder %v9670, 0
        %vm9801 = vcmp.lt.s32.totalorder %v9677, 0
        %vm9802 = vcmp.lt.s32.totalorder %v9684, 0
        %vm9803 = vcmp.lt.s32.totalorder %v9691, 0
        %vm9804 = vcmp.lt.s32.totalorder %v9698, 0
        %vm9805 = vcmp.lt.s32.totalorder %v9705, 0
        %vm9806 = vcmp.lt.s32.totalorder %v9712, 0
        %vm9807 = vcmp.lt.s32.totalorder %v9719, 0
        %vm9808 = vcmp.lt.s32.totalorder %v9726, 0
        %vm9809 = vcmp.lt.s32.totalorder %v9733, 0
        %vm9810 = vcmp.lt.s32.totalorder %v9740, 0
        %vm9811 = vcmp.lt.s32.totalorder %v9747, 0
        %vm9812 = vmand %vm9780, %vm9748
        %vm9813 = vmand %vm9781, %vm9749
        %vm9814 = vmand %vm9782, %vm9750
        %vm9815 = vmand %vm9783, %vm9751
        %vm9816 = vmand %vm9784, %vm9752
        %vm9817 = vmand %vm9785, %vm9753
        %vm9818 = vmand %vm9786, %vm9754
        %vm9819 = vmand %vm9787, %vm9755
        %vm9820 = vmand %vm9788, %vm9756
        %vm9821 = vmand %vm9789, %vm9757
        %vm9822 = vmand %vm9790, %vm9758
        %vm9823 = vmand %vm9791, %vm9759
        %vm9824 = vmand %vm9792, %vm9760
        %vm9825 = vmand %vm9793, %vm9761
        %vm9826 = vmand %vm9794, %vm9762
        %vm9827 = vmand %vm9795, %vm9763
        %vm9828 = vmand %vm9796, %vm9764
        %vm9829 = vmand %vm9797, %vm9765
        %vm9830 = vmand %vm9798, %vm9766
        %vm9831 = vmand %vm9799, %vm9767
        %vm9832 = vmand %vm9800, %vm9768
        %vm9833 = vmand %vm9801, %vm9769
        %vm9834 = vmand %vm9802, %vm9770
        %vm9835 = vmand %vm9803, %vm9771
        %vm9836 = vmand %vm9804, %vm9772
        %vm9837 = vmand %vm9805, %vm9773
        %vm9838 = vmand %vm9806, %vm9774
        %vm9839 = vmand %vm9807, %vm9775
        %vm9840 = vmand %vm9808, %vm9776
        %vm9841 = vmand %vm9809, %vm9777
        %vm9842 = vmand %vm9810, %vm9778
        %vm9843 = vmand %vm9811, %vm9779
        %v9844 = vadd.s32 %v9530, 4
        %v9845 = vadd.s32 %v9537, 4
        %v9846 = vadd.s32 %v9544, 4
        %v9847 = vadd.s32 %v9551, 4
        %v9848 = vadd.s32 %v9558, 4
        %v9849 = vadd.s32 %v9565, 4
        %v9850 = vadd.s32 %v9572, 4
        %v9851 = vadd.s32 %v9579, 4
        %v9852 = vadd.s32 %v9586, 4
        %v9853 = vadd.s32 %v9593, 4
        %v9854 = vadd.s32 %v9600, 4
        %v9855 = vadd.s32 %v9607, 4
        %v9856 = vadd.s32 %v9614, 4
        %v9857 = vadd.s32 %v9621, 4
        %v9858 = vadd.s32 %v9628, 4
        %v9859 = vadd.s32 %v9635, 4
        %v9860 = vadd.s32 %v9642, 4
        %v9861 = vadd.s32 %v9649, 4
        %v9862 = vadd.s32 %v9656, 4
        %v9863 = vadd.s32 %v9663, 4
        %v9864 = vadd.s32 %v9670, 4
        %v9865 = vadd.s32 %v9677, 4
        %v9866 = vadd.s32 %v9684, 4
        %v9867 = vadd.s32 %v9691, 4
        %v9868 = vadd.s32 %v9698, 4
        %v9869 = vadd.s32 %v9705, 4
        %v9870 = vadd.s32 %v9712, 4
        %v9871 = vadd.s32 %v9719, 4
        %v9872 = vadd.s32 %v9726, 4
        %v9873 = vadd.s32 %v9733, 4
        %v9874 = vadd.s32 %v9740, 4
        %v9875 = vadd.s32 %v9747, 4
        %v9876 = vsel %vm9812, %v9844, %v9530
        %v9877 = vsel %vm9813, %v9845, %v9537
        %v9878 = vsel %vm9814, %v9846, %v9544
        %v9879 = vsel %vm9815, %v9847, %v9551
        %v9880 = vsel %vm9816, %v9848, %v9558
        %v9881 = vsel %vm9817, %v9849, %v9565
        %v9882 = vsel %vm9818, %v9850, %v9572
        %v9883 = vsel %vm9819, %v9851, %v9579
        %v9884 = vsel %vm9820, %v9852, %v9586
        %v9885 = vsel %vm9821, %v9853, %v9593
        %v9886 = vsel %vm9822, %v9854, %v9600
        %v9887 = vsel %vm9823, %v9855, %v9607
        %v9888 = vsel %vm9824, %v9856, %v9614
        %v9889 = vsel %vm9825, %v9857, %v9621
        %v9890 = vsel %vm9826, %v9858, %v9628
        %v9891 = vsel %vm9827, %v9859, %v9635
        %v9892 = vsel %vm9828, %v9860, %v9642
        %v9893 = vsel %vm9829, %v9861, %v9649
        %v9894 = vsel %vm9830, %v9862, %v9656
        %v9895 = vsel %vm9831, %v9863, %v9663
        %v9896 = vsel %vm9832, %v9864, %v9670
        %v9897 = vsel %vm9833, %v9865, %v9677
        %v9898 = vsel %vm9834, %v9866, %v9684
        %v9899 = vsel %vm9835, %v9867, %v9691
        %v9900 = vsel %vm9836, %v9868, %v9698
        %v9901 = vsel %vm9837, %v9869, %v9705
        %v9902 = vsel %vm9838, %v9870, %v9712
        %v9903 = vsel %vm9839, %v9871, %v9719
        %v9904 = vsel %vm9840, %v9872, %v9726
        %v9905 = vsel %vm9841, %v9873, %v9733
        %v9906 = vsel %vm9842, %v9874, %v9740
        %v9907 = vsel %vm9843, %v9875, %v9747
        %vm9908 = vcmp.eq.s32.totalorder %v9876, 0
        %vm9909 = vcmp.eq.s32.totalorder %v9877, 0
        %vm9910 = vcmp.eq.s32.totalorder %v9878, 0
        %vm9911 = vcmp.eq.s32.totalorder %v9879, 0
        %vm9912 = vcmp.eq.s32.totalorder %v9880, 0
        %vm9913 = vcmp.eq.s32.totalorder %v9881, 0
        %vm9914 = vcmp.eq.s32.totalorder %v9882, 0
        %vm9915 = vcmp.eq.s32.totalorder %v9883, 0
        %vm9916 = vcmp.eq.s32.totalorder %v9884, 0
        %vm9917 = vcmp.eq.s32.totalorder %v9885, 0
        %vm9918 = vcmp.eq.s32.totalorder %v9886, 0
        %vm9919 = vcmp.eq.s32.totalorder %v9887, 0
        %vm9920 = vcmp.eq.s32.totalorder %v9888, 0
        %vm9921 = vcmp.eq.s32.totalorder %v9889, 0
        %vm9922 = vcmp.eq.s32.totalorder %v9890, 0
        %vm9923 = vcmp.eq.s32.totalorder %v9891, 0
        %vm9924 = vcmp.eq.s32.totalorder %v9892, 0
        %vm9925 = vcmp.eq.s32.totalorder %v9893, 0
        %vm9926 = vcmp.eq.s32.totalorder %v9894, 0
        %vm9927 = vcmp.eq.s32.totalorder %v9895, 0
        %vm9928 = vcmp.eq.s32.totalorder %v9896, 0
        %vm9929 = vcmp.eq.s32.totalorder %v9897, 0
        %vm9930 = vcmp.eq.s32.totalorder %v9898, 0
        %vm9931 = vcmp.eq.s32.totalorder %v9899, 0
        %vm9932 = vcmp.eq.s32.totalorder %v9900, 0
        %vm9933 = vcmp.eq.s32.totalorder %v9901, 0
        %vm9934 = vcmp.eq.s32.totalorder %v9902, 0
        %vm9935 = vcmp.eq.s32.totalorder %v9903, 0
        %vm9936 = vcmp.eq.s32.totalorder %v9904, 0
        %vm9937 = vcmp.eq.s32.totalorder %v9905, 0
        %vm9938 = vcmp.eq.s32.totalorder %v9906, 0
        %vm9939 = vcmp.eq.s32.totalorder %v9907, 0
        %v9940 = vrot.slane %v9492, 7
        %v9941 = vrot.slane %v9493, 7
        %v9942 = vrot.slane %v9494, 7
        %v9943 = vrot.slane %v9495, 7
        %v9944 = vrot.slane %v9496, 7
        %v9945 = vrot.slane %v9497, 7
        %v9946 = vrot.slane %v9498, 7
        %v9947 = vrot.slane %v9499, 7
        %v9948 = vrot.slane %v9500, 7
        %v9949 = vrot.slane %v9501, 7
        %v9950 = vrot.slane %v9502, 7
        %v9951 = vrot.slane %v9503, 7
        %v9952 = vrot.slane %v9504, 7
        %v9953 = vrot.slane %v9505, 7
        %v9954 = vrot.slane %v9506, 7
        %v9955 = vrot.slane %v9507, 7
        %v9956 = vrot.slane %v9508, 7
        %v9957 = vrot.slane %v9509, 7
        %v9958 = vrot.slane %v9510, 7
        %v9959 = vrot.slane %v9511, 7
        %v9960 = vrot.slane %v9512, 7
        %v9961 = vrot.slane %v9513, 7
        %v9962 = vrot.slane %v9514, 7
        %v9963 = vrot.slane %v9515, 7
        %v9964 = vrot.slane %v9516, 7
        %v9965 = vrot.slane %v9517, 7
        %v9966 = vrot.slane %v9518, 7
        %v9967 = vrot.slane %v9519, 7
        %v9968 = vrot.slane %v9520, 7
        %v9969 = vrot.slane %v9521, 7
        %v9970 = vrot.slane %v9522, 7
        %v9971 = vrot.slane %v9523, 7
        %v9972 = vsel %vm2492, %v9970, %v9971
        %v9973 = vsel %vm2492, %v9969, %v9970
        %v9974 = vsel %vm2492, %v9968, %v9969
        %v9975 = vsel %vm2492, %v9967, %v9968
        %v9976 = vsel %vm2492, %v9966, %v9967
        %v9977 = vsel %vm2492, %v9965, %v9966
        %v9978 = vsel %vm2492, %v9964, %v9965
        %v9979 = vsel %vm2492, %v9963, %v9964
        %v9980 = vsel %vm2492, %v9962, %v9963
        %v9981 = vsel %vm2492, %v9961, %v9962
        %v9982 = vsel %vm2492, %v9960, %v9961
        %v9983 = vsel %vm2492, %v9959, %v9960
        %v9984 = vsel %vm2492, %v9958, %v9959
        %v9985 = vsel %vm2492, %v9957, %v9958
        %v9986 = vsel %vm2492, %v9956, %v9957
        %v9987 = vsel %vm2492, %v9955, %v9956
        %v9988 = vsel %vm2492, %v9954, %v9955
        %v9989 = vsel %vm2492, %v9953, %v9954
        %v9990 = vsel %vm2492, %v9952, %v9953
        %v9991 = vsel %vm2492, %v9951, %v9952
        %v9992 = vsel %vm2492, %v9950, %v9951
        %v9993 = vsel %vm2492, %v9949, %v9950
        %v9994 = vsel %vm2492, %v9948, %v9949
        %v9995 = vsel %vm2492, %v9947, %v9948
        %v9996 = vsel %vm2492, %v9946, %v9947
        %v9997 = vsel %vm2492, %v9945, %v9946
        %v9998 = vsel %vm2492, %v9944, %v9945
        %v9999 = vsel %vm2492, %v9943, %v9944
        %v10000 = vsel %vm2492, %v9942, %v9943
        %v10001 = vsel %vm2492, %v9941, %v9942
        %v10002 = vsel %vm2492, %v9940, %v9941
        %v10003 = vsel %vm2492, %v9971, %v9940
        %v10004 = vsel %vm9908, 1, 0
        %v10005 = vsel %vm9909, 1, 0
        %v10006 = vsel %vm9910, 1, 0
        %v10007 = vsel %vm9911, 1, 0
        %v10008 = vsel %vm9912, 1, 0
        %v10009 = vsel %vm9913, 1, 0
        %v10010 = vsel %vm9914, 1, 0
        %v10011 = vsel %vm9915, 1, 0
        %v10012 = vsel %vm9916, 1, 0
        %v10013 = vsel %vm9917, 1, 0
        %v10014 = vsel %vm9918, 1, 0
        %v10015 = vsel %vm9919, 1, 0
        %v10016 = vsel %vm9920, 1, 0
        %v10017 = vsel %vm9921, 1, 0
        %v10018 = vsel %vm9922, 1, 0
        %v10019 = vsel %vm9923, 1, 0
        %v10020 = vsel %vm9924, 1, 0
        %v10021 = vsel %vm9925, 1, 0
        %v10022 = vsel %vm9926, 1, 0
        %v10023 = vsel %vm9927, 1, 0
        %v10024 = vsel %vm9928, 1, 0
        %v10025 = vsel %vm9929, 1, 0
        %v10026 = vsel %vm9930, 1, 0
        %v10027 = vsel %vm9931, 1, 0
        %v10028 = vsel %vm9932, 1, 0
        %v10029 = vsel %vm9933, 1, 0
        %v10030 = vsel %vm9934, 1, 0
        %v10031 = vsel %vm9935, 1, 0
        %v10032 = vsel %vm9936, 1, 0
        %v10033 = vsel %vm9937, 1, 0
        %v10034 = vsel %vm9938, 1, 0
        %v10035 = vsel %vm9939, 1, 0
        %vm10036 = vcmp.eq.s32.totalorder %v10004, 1
        %vm10037 = vcmp.eq.s32.totalorder %v10005, 1
        %vm10038 = vcmp.eq.s32.totalorder %v10006, 1
        %vm10039 = vcmp.eq.s32.totalorder %v10007, 1
        %vm10040 = vcmp.eq.s32.totalorder %v10008, 1
        %vm10041 = vcmp.eq.s32.totalorder %v10009, 1
        %vm10042 = vcmp.eq.s32.totalorder %v10010, 1
        %vm10043 = vcmp.eq.s32.totalorder %v10011, 1
        %vm10044 = vcmp.eq.s32.totalorder %v10012, 1
        %vm10045 = vcmp.eq.s32.totalorder %v10013, 1
        %vm10046 = vcmp.eq.s32.totalorder %v10014, 1
        %vm10047 = vcmp.eq.s32.totalorder %v10015, 1
        %vm10048 = vcmp.eq.s32.totalorder %v10016, 1
        %vm10049 = vcmp.eq.s32.totalorder %v10017, 1
        %vm10050 = vcmp.eq.s32.totalorder %v10018, 1
        %vm10051 = vcmp.eq.s32.totalorder %v10019, 1
        %vm10052 = vcmp.eq.s32.totalorder %v10020, 1
        %vm10053 = vcmp.eq.s32.totalorder %v10021, 1
        %vm10054 = vcmp.eq.s32.totalorder %v10022, 1
        %vm10055 = vcmp.eq.s32.totalorder %v10023, 1
        %vm10056 = vcmp.eq.s32.totalorder %v10024, 1
        %vm10057 = vcmp.eq.s32.totalorder %v10025, 1
        %vm10058 = vcmp.eq.s32.totalorder %v10026, 1
        %vm10059 = vcmp.eq.s32.totalorder %v10027, 1
        %vm10060 = vcmp.eq.s32.totalorder %v10028, 1
        %vm10061 = vcmp.eq.s32.totalorder %v10029, 1
        %vm10062 = vcmp.eq.s32.totalorder %v10030, 1
        %vm10063 = vcmp.eq.s32.totalorder %v10031, 1
        %vm10064 = vcmp.eq.s32.totalorder %v10032, 1
        %vm10065 = vcmp.eq.s32.totalorder %v10033, 1
        %vm10066 = vcmp.eq.s32.totalorder %v10034, 1
        %vm10067 = vcmp.eq.s32.totalorder %v10035, 1
        %v10068 = vsel %vm10036, 0.0, %v10003
        %v10069 = vsel %vm10037, 0.0, %v10002
        %v10070 = vsel %vm10038, 0.0, %v10001
        %v10071 = vsel %vm10039, 0.0, %v10000
        %v10072 = vsel %vm10040, 0.0, %v9999
        %v10073 = vsel %vm10041, 0.0, %v9998
        %v10074 = vsel %vm10042, 0.0, %v9997
        %v10075 = vsel %vm10043, 0.0, %v9996
        %v10076 = vsel %vm10044, 0.0, %v9995
        %v10077 = vsel %vm10045, 0.0, %v9994
        %v10078 = vsel %vm10046, 0.0, %v9993
        %v10079 = vsel %vm10047, 0.0, %v9992
        %v10080 = vsel %vm10048, 0.0, %v9991
        %v10081 = vsel %vm10049, 0.0, %v9990
        %v10082 = vsel %vm10050, 0.0, %v9989
        %v10083 = vsel %vm10051, 0.0, %v9988
        %v10084 = vsel %vm10052, 0.0, %v9987
        %v10085 = vsel %vm10053, 0.0, %v9986
        %v10086 = vsel %vm10054, 0.0, %v9985
        %v10087 = vsel %vm10055, 0.0, %v9984
        %v10088 = vsel %vm10056, 0.0, %v9983
        %v10089 = vsel %vm10057, 0.0, %v9982
        %v10090 = vsel %vm10058, 0.0, %v9981
        %v10091 = vsel %vm10059, 0.0, %v9980
        %v10092 = vsel %vm10060, 0.0, %v9979
        %v10093 = vsel %vm10061, 0.0, %v9978
        %v10094 = vsel %vm10062, 0.0, %v9977
        %v10095 = vsel %vm10063, 0.0, %v9976
        %v10096 = vsel %vm10064, 0.0, %v9975
        %v10097 = vsel %vm10065, 0.0, %v9974
        %v10098 = vsel %vm10066, 0.0, %v9973
        %v10099 = vsel %vm10067, 0.0, %v9972
        %vm10100 = vcmp.eq.s32.totalorder %v9876, 3
        %vm10101 = vcmp.eq.s32.totalorder %v9877, 3
        %vm10102 = vcmp.eq.s32.totalorder %v9878, 3
        %vm10103 = vcmp.eq.s32.totalorder %v9879, 3
        %vm10104 = vcmp.eq.s32.totalorder %v9880, 3
        %vm10105 = vcmp.eq.s32.totalorder %v9881, 3
        %vm10106 = vcmp.eq.s32.totalorder %v9882, 3
        %vm10107 = vcmp.eq.s32.totalorder %v9883, 3
        %vm10108 = vcmp.eq.s32.totalorder %v9884, 3
        %vm10109 = vcmp.eq.s32.totalorder %v9885, 3
        %vm10110 = vcmp.eq.s32.totalorder %v9886, 3
        %vm10111 = vcmp.eq.s32.totalorder %v9887, 3
        %vm10112 = vcmp.eq.s32.totalorder %v9888, 3
        %vm10113 = vcmp.eq.s32.totalorder %v9889, 3
        %vm10114 = vcmp.eq.s32.totalorder %v9890, 3
        %vm10115 = vcmp.eq.s32.totalorder %v9891, 3
        %vm10116 = vcmp.eq.s32.totalorder %v9892, 3
        %vm10117 = vcmp.eq.s32.totalorder %v9893, 3
        %vm10118 = vcmp.eq.s32.totalorder %v9894, 3
        %vm10119 = vcmp.eq.s32.totalorder %v9895, 3
        %vm10120 = vcmp.eq.s32.totalorder %v9896, 3
        %vm10121 = vcmp.eq.s32.totalorder %v9897, 3
        %vm10122 = vcmp.eq.s32.totalorder %v9898, 3
        %vm10123 = vcmp.eq.s32.totalorder %v9899, 3
        %vm10124 = vcmp.eq.s32.totalorder %v9900, 3
        %vm10125 = vcmp.eq.s32.totalorder %v9901, 3
        %vm10126 = vcmp.eq.s32.totalorder %v9902, 3
        %vm10127 = vcmp.eq.s32.totalorder %v9903, 3
        %vm10128 = vcmp.eq.s32.totalorder %v9904, 3
        %vm10129 = vcmp.eq.s32.totalorder %v9905, 3
        %vm10130 = vcmp.eq.s32.totalorder %v9906, 3
        %vm10131 = vcmp.eq.s32.totalorder %v9907, 3
        %v10132 = vrot.slane %v9492, 1
        %v10133 = vrot.slane %v9493, 1
        %v10134 = vrot.slane %v9494, 1
        %v10135 = vrot.slane %v9495, 1
        %v10136 = vrot.slane %v9496, 1
        %v10137 = vrot.slane %v9497, 1
        %v10138 = vrot.slane %v9498, 1
        %v10139 = vrot.slane %v9499, 1
        %v10140 = vrot.slane %v9500, 1
        %v10141 = vrot.slane %v9501, 1
        %v10142 = vrot.slane %v9502, 1
        %v10143 = vrot.slane %v9503, 1
        %v10144 = vrot.slane %v9504, 1
        %v10145 = vrot.slane %v9505, 1
        %v10146 = vrot.slane %v9506, 1
        %v10147 = vrot.slane %v9507, 1
        %v10148 = vrot.slane %v9508, 1
        %v10149 = vrot.slane %v9509, 1
        %v10150 = vrot.slane %v9510, 1
        %v10151 = vrot.slane %v9511, 1
        %v10152 = vrot.slane %v9512, 1
        %v10153 = vrot.slane %v9513, 1
        %v10154 = vrot.slane %v9514, 1
        %v10155 = vrot.slane %v9515, 1
        %v10156 = vrot.slane %v9516, 1
        %v10157 = vrot.slane %v9517, 1
        %v10158 = vrot.slane %v9518, 1
        %v10159 = vrot.slane %v9519, 1
        %v10160 = vrot.slane %v9520, 1
        %v10161 = vrot.slane %v9521, 1
        %v10162 = vrot.slane %v9522, 1
        %v10163 = vrot.slane %v9523, 1
        %v10164 = vsel %vm3005, %v10162, %v10163
        %v10165 = vsel %vm3005, %v10161, %v10162
        %v10166 = vsel %vm3005, %v10160, %v10161
        %v10167 = vsel %vm3005, %v10159, %v10160
        %v10168 = vsel %vm3005, %v10158, %v10159
        %v10169 = vsel %vm3005, %v10157, %v10158
        %v10170 = vsel %vm3005, %v10156, %v10157
        %v10171 = vsel %vm3005, %v10155, %v10156
        %v10172 = vsel %vm3005, %v10154, %v10155
        %v10173 = vsel %vm3005, %v10153, %v10154
        %v10174 = vsel %vm3005, %v10152, %v10153
        %v10175 = vsel %vm3005, %v10151, %v10152
        %v10176 = vsel %vm3005, %v10150, %v10151
        %v10177 = vsel %vm3005, %v10149, %v10150
        %v10178 = vsel %vm3005, %v10148, %v10149
        %v10179 = vsel %vm3005, %v10147, %v10148
        %v10180 = vsel %vm3005, %v10146, %v10147
        %v10181 = vsel %vm3005, %v10145, %v10146
        %v10182 = vsel %vm3005, %v10144, %v10145
        %v10183 = vsel %vm3005, %v10143, %v10144
        %v10184 = vsel %vm3005, %v10142, %v10143
        %v10185 = vsel %vm3005, %v10141, %v10142
        %v10186 = vsel %vm3005, %v10140, %v10141
        %v10187 = vsel %vm3005, %v10139, %v10140
        %v10188 = vsel %vm3005, %v10138, %v10139
        %v10189 = vsel %vm3005, %v10137, %v10138
        %v10190 = vsel %vm3005, %v10136, %v10137
        %v10191 = vsel %vm3005, %v10135, %v10136
        %v10192 = vsel %vm3005, %v10134, %v10135
        %v10193 = vsel %vm3005, %v10133, %v10134
        %v10194 = vsel %vm3005, %v10132, %v10133
        %v10195 = vsel %vm3005, %v10163, %v10132
        %v10196 = vsel %vm10100, 1, 0
        %v10197 = vsel %vm10101, 1, 0
        %v10198 = vsel %vm10102, 1, 0
        %v10199 = vsel %vm10103, 1, 0
        %v10200 = vsel %vm10104, 1, 0
        %v10201 = vsel %vm10105, 1, 0
        %v10202 = vsel %vm10106, 1, 0
        %v10203 = vsel %vm10107, 1, 0
        %v10204 = vsel %vm10108, 1, 0
        %v10205 = vsel %vm10109, 1, 0
        %v10206 = vsel %vm10110, 1, 0
        %v10207 = vsel %vm10111, 1, 0
        %v10208 = vsel %vm10112, 1, 0
        %v10209 = vsel %vm10113, 1, 0
        %v10210 = vsel %vm10114, 1, 0
        %v10211 = vsel %vm10115, 1, 0
        %v10212 = vsel %vm10116, 1, 0
        %v10213 = vsel %vm10117, 1, 0
        %v10214 = vsel %vm10118, 1, 0
        %v10215 = vsel %vm10119, 1, 0
        %v10216 = vsel %vm10120, 1, 0
        %v10217 = vsel %vm10121, 1, 0
        %v10218 = vsel %vm10122, 1, 0
        %v10219 = vsel %vm10123, 1, 0
        %v10220 = vsel %vm10124, 1, 0
        %v10221 = vsel %vm10125, 1, 0
        %v10222 = vsel %vm10126, 1, 0
        %v10223 = vsel %vm10127, 1, 0
        %v10224 = vsel %vm10128, 1, 0
        %v10225 = vsel %vm10129, 1, 0
        %v10226 = vsel %vm10130, 1, 0
        %v10227 = vsel %vm10131, 1, 0
        %vm10228 = vcmp.eq.s32.totalorder %v10196, 1
        %vm10229 = vcmp.eq.s32.totalorder %v10197, 1
        %vm10230 = vcmp.eq.s32.totalorder %v10198, 1
        %vm10231 = vcmp.eq.s32.totalorder %v10199, 1
        %vm10232 = vcmp.eq.s32.totalorder %v10200, 1
        %vm10233 = vcmp.eq.s32.totalorder %v10201, 1
        %vm10234 = vcmp.eq.s32.totalorder %v10202, 1
        %vm10235 = vcmp.eq.s32.totalorder %v10203, 1
        %vm10236 = vcmp.eq.s32.totalorder %v10204, 1
        %vm10237 = vcmp.eq.s32.totalorder %v10205, 1
        %vm10238 = vcmp.eq.s32.totalorder %v10206, 1
        %vm10239 = vcmp.eq.s32.totalorder %v10207, 1
        %vm10240 = vcmp.eq.s32.totalorder %v10208, 1
        %vm10241 = vcmp.eq.s32.totalorder %v10209, 1
        %vm10242 = vcmp.eq.s32.totalorder %v10210, 1
        %vm10243 = vcmp.eq.s32.totalorder %v10211, 1
        %vm10244 = vcmp.eq.s32.totalorder %v10212, 1
        %vm10245 = vcmp.eq.s32.totalorder %v10213, 1
        %vm10246 = vcmp.eq.s32.totalorder %v10214, 1
        %vm10247 = vcmp.eq.s32.totalorder %v10215, 1
        %vm10248 = vcmp.eq.s32.totalorder %v10216, 1
        %vm10249 = vcmp.eq.s32.totalorder %v10217, 1
        %vm10250 = vcmp.eq.s32.totalorder %v10218, 1
        %vm10251 = vcmp.eq.s32.totalorder %v10219, 1
        %vm10252 = vcmp.eq.s32.totalorder %v10220, 1
        %vm10253 = vcmp.eq.s32.totalorder %v10221, 1
        %vm10254 = vcmp.eq.s32.totalorder %v10222, 1
        %vm10255 = vcmp.eq.s32.totalorder %v10223, 1
        %vm10256 = vcmp.eq.s32.totalorder %v10224, 1
        %vm10257 = vcmp.eq.s32.totalorder %v10225, 1
        %vm10258 = vcmp.eq.s32.totalorder %v10226, 1
        %vm10259 = vcmp.eq.s32.totalorder %v10227, 1
        %v10260 = vsel %vm10228, 0.0, %v10194
        %v10261 = vsel %vm10229, 0.0, %v10193
        %v10262 = vsel %vm10230, 0.0, %v10192
        %v10263 = vsel %vm10231, 0.0, %v10191
        %v10264 = vsel %vm10232, 0.0, %v10190
        %v10265 = vsel %vm10233, 0.0, %v10189
        %v10266 = vsel %vm10234, 0.0, %v10188
        %v10267 = vsel %vm10235, 0.0, %v10187
        %v10268 = vsel %vm10236, 0.0, %v10186
        %v10269 = vsel %vm10237, 0.0, %v10185
        %v10270 = vsel %vm10238, 0.0, %v10184
        %v10271 = vsel %vm10239, 0.0, %v10183
        %v10272 = vsel %vm10240, 0.0, %v10182
        %v10273 = vsel %vm10241, 0.0, %v10181
        %v10274 = vsel %vm10242, 0.0, %v10180
        %v10275 = vsel %vm10243, 0.0, %v10179
        %v10276 = vsel %vm10244, 0.0, %v10178
        %v10277 = vsel %vm10245, 0.0, %v10177
        %v10278 = vsel %vm10246, 0.0, %v10176
        %v10279 = vsel %vm10247, 0.0, %v10175
        %v10280 = vsel %vm10248, 0.0, %v10174
        %v10281 = vsel %vm10249, 0.0, %v10173
        %v10282 = vsel %vm10250, 0.0, %v10172
        %v10283 = vsel %vm10251, 0.0, %v10171
        %v10284 = vsel %vm10252, 0.0, %v10170
        %v10285 = vsel %vm10253, 0.0, %v10169
        %v10286 = vsel %vm10254, 0.0, %v10168
        %v10287 = vsel %vm10255, 0.0, %v10167
        %v10288 = vsel %vm10256, 0.0, %v10166
        %v10289 = vsel %vm10257, 0.0, %v10165
        %v10290 = vsel %vm10258, 0.0, %v10164
        %v10291 = vsel %vm10259, 0.0, %v10195
        %10324 = vrot.lane.b32.xlu0 %v9492, 64
        %v10325 = vpop.permute.xlu0 %10324
        %10326 = vrot.lane.b32.xlu0 %v9493, 64
        %v10327 = vpop.permute.xlu0 %10326
        %10328 = vrot.lane.b32.xlu0 %v9494, 64
        %v10329 = vpop.permute.xlu0 %10328
        %10330 = vrot.lane.b32.xlu0 %v9495, 64
        %v10331 = vpop.permute.xlu0 %10330
        %10332 = vrot.lane.b32.xlu0 %v9496, 64
        %v10333 = vpop.permute.xlu0 %10332
        %10334 = vrot.lane.b32.xlu0 %v9497, 64
        %v10335 = vpop.permute.xlu0 %10334
        %10336 = vrot.lane.b32.xlu0 %v9498, 64
        %v10337 = vpop.permute.xlu0 %10336
        %10338 = vrot.lane.b32.xlu0 %v9499, 64
        %v10339 = vpop.permute.xlu0 %10338
        %10340 = vrot.lane.b32.xlu0 %v9500, 64
        %v10341 = vpop.permute.xlu0 %10340
        %10342 = vrot.lane.b32.xlu0 %v9501, 64
        %v10343 = vpop.permute.xlu0 %10342
        %10344 = vrot.lane.b32.xlu0 %v9502, 64
        %v10345 = vpop.permute.xlu0 %10344
        %10346 = vrot.lane.b32.xlu0 %v9503, 64
        %v10347 = vpop.permute.xlu0 %10346
        %10348 = vrot.lane.b32.xlu0 %v9504, 64
        %v10349 = vpop.permute.xlu0 %10348
        %10350 = vrot.lane.b32.xlu0 %v9505, 64
        %v10351 = vpop.permute.xlu0 %10350
        %10352 = vrot.lane.b32.xlu0 %v9506, 64
        %v10353 = vpop.permute.xlu0 %10352
        %10354 = vrot.lane.b32.xlu0 %v9507, 64
        %v10355 = vpop.permute.xlu0 %10354
        %10356 = vrot.lane.b32.xlu0 %v9508, 64
        %v10357 = vpop.permute.xlu0 %10356
        %10358 = vrot.lane.b32.xlu0 %v9509, 64
        %v10359 = vpop.permute.xlu0 %10358
        %10360 = vrot.lane.b32.xlu0 %v9510, 64
        %v10361 = vpop.permute.xlu0 %10360
        %10362 = vrot.lane.b32.xlu0 %v9511, 64
        %v10363 = vpop.permute.xlu0 %10362
        %10364 = vrot.lane.b32.xlu0 %v9512, 64
        %v10365 = vpop.permute.xlu0 %10364
        %10366 = vrot.lane.b32.xlu0 %v9513, 64
        %v10367 = vpop.permute.xlu0 %10366
        %10368 = vrot.lane.b32.xlu0 %v9514, 64
        %v10369 = vpop.permute.xlu0 %10368
        %10370 = vrot.lane.b32.xlu0 %v9515, 64
        %v10371 = vpop.permute.xlu0 %10370
        %10372 = vrot.lane.b32.xlu0 %v9516, 64
        %v10373 = vpop.permute.xlu0 %10372
        %10374 = vrot.lane.b32.xlu0 %v9517, 64
        %v10375 = vpop.permute.xlu0 %10374
        %10376 = vrot.lane.b32.xlu0 %v9518, 64
        %v10377 = vpop.permute.xlu0 %10376
        %10378 = vrot.lane.b32.xlu0 %v9519, 64
        %v10379 = vpop.permute.xlu0 %10378
        %10380 = vrot.lane.b32.xlu0 %v9520, 64
        %v10381 = vpop.permute.xlu0 %10380
        %10382 = vrot.lane.b32.xlu0 %v9521, 64
        %v10383 = vpop.permute.xlu0 %10382
        %10384 = vrot.lane.b32.xlu0 %v9522, 64
        %v10385 = vpop.permute.xlu0 %10384
        %10386 = vrot.lane.b32.xlu0 %v9523, 64
        %v10387 = vpop.permute.xlu0 %10386
        %v10420 = vsel %vm8731, %v10068, %v10325
        %v10421 = vsel %vm8731, %v10069, %v10327
        %v10422 = vsel %vm8731, %v10070, %v10329
        %v10423 = vsel %vm8731, %v10071, %v10331
        %v10424 = vsel %vm8731, %v10072, %v10333
        %v10425 = vsel %vm8731, %v10073, %v10335
        %v10426 = vsel %vm8731, %v10074, %v10337
        %v10427 = vsel %vm8731, %v10075, %v10339
        %v10428 = vsel %vm8731, %v10076, %v10341
        %v10429 = vsel %vm8731, %v10077, %v10343
        %v10430 = vsel %vm8731, %v10078, %v10345
        %v10431 = vsel %vm8731, %v10079, %v10347
        %v10432 = vsel %vm8731, %v10080, %v10349
        %v10433 = vsel %vm8731, %v10081, %v10351
        %v10434 = vsel %vm8731, %v10082, %v10353
        %v10435 = vsel %vm8731, %v10083, %v10355
        %v10436 = vsel %vm8731, %v10084, %v10357
        %v10437 = vsel %vm8731, %v10085, %v10359
        %v10438 = vsel %vm8731, %v10086, %v10361
        %v10439 = vsel %vm8731, %v10087, %v10363
        %v10440 = vsel %vm8731, %v10088, %v10365
        %v10441 = vsel %vm8731, %v10089, %v10367
        %v10442 = vsel %vm8731, %v10090, %v10369
        %v10443 = vsel %vm8731, %v10091, %v10371
        %v10444 = vsel %vm8731, %v10092, %v10373
        %v10445 = vsel %vm8731, %v10093, %v10375
        %v10446 = vsel %vm8731, %v10094, %v10377
        %v10447 = vsel %vm8731, %v10095, %v10379
        %v10448 = vsel %vm8731, %v10096, %v10381
        %v10449 = vsel %vm8731, %v10097, %v10383
        %v10450 = vsel %vm8731, %v10098, %v10385
        %v10451 = vsel %vm8731, %v10099, %v10387
        %v10452 = vpack.c.bf16 %v10421, %v10420
        %v10453 = vpack.c.bf16 %v10261, %v10260
        %v10454 = vpack.c.bf16 %v10423, %v10422
        %v10455 = vpack.c.bf16 %v10263, %v10262
        %v10456 = vpack.c.bf16 %v10425, %v10424
        %v10457 = vpack.c.bf16 %v10265, %v10264
        %v10458 = vpack.c.bf16 %v10427, %v10426
        %v10459 = vpack.c.bf16 %v10267, %v10266
        %v10460 = vpack.c.bf16 %v10429, %v10428
        %v10461 = vpack.c.bf16 %v10269, %v10268
        %v10462 = vpack.c.bf16 %v10431, %v10430
        %v10463 = vpack.c.bf16 %v10271, %v10270
        %v10464 = vpack.c.bf16 %v10433, %v10432
        %v10465 = vpack.c.bf16 %v10273, %v10272
        %v10466 = vpack.c.bf16 %v10435, %v10434
        %v10467 = vpack.c.bf16 %v10275, %v10274
        %v10468 = vpack.c.bf16 %v10437, %v10436
        %v10469 = vpack.c.bf16 %v10277, %v10276
        %v10470 = vpack.c.bf16 %v10439, %v10438
        %v10471 = vpack.c.bf16 %v10279, %v10278
        %v10472 = vpack.c.bf16 %v10441, %v10440
        %v10473 = vpack.c.bf16 %v10281, %v10280
        %v10474 = vpack.c.bf16 %v10443, %v10442
        %v10475 = vpack.c.bf16 %v10283, %v10282
        %v10476 = vpack.c.bf16 %v10445, %v10444
        %v10477 = vpack.c.bf16 %v10285, %v10284
        %v10478 = vpack.c.bf16 %v10447, %v10446
        %v10479 = vpack.c.bf16 %v10287, %v10286
        %v10480 = vpack.c.bf16 %v10449, %v10448
        %v10481 = vpack.c.bf16 %v10289, %v10288
        %v10482 = vpack.c.bf16 %v10451, %v10450
        %v10483 = vpack.c.bf16 %v10291, %v10290
        %v10484 = vld [vmem:[%s6] sm:$0xf]
        %v10485 = vld [vmem:[%s6 + $0x4] sm:$0xf]
        %v10486 = vld [vmem:[%s6 + $0x8] sm:$0xf]
        %v10487 = vld [vmem:[%s6 + $0xc] sm:$0xf]
        %v10488 = vld [vmem:[%s6 + $0x10] sm:$0xf]
        %v10489 = vld [vmem:[%s6 + $0x14] sm:$0xf]
        %v10490 = vld [vmem:[%s6 + $0x18] sm:$0xf]
        %v10491 = vld [vmem:[%s6 + $0x1c] sm:$0xf]
        %v10492 = vld [vmem:[%s6 + $0x20] sm:$0xf]
        %v10493 = vld [vmem:[%s6 + $0x24] sm:$0xf]
        %v10494 = vld [vmem:[%s6 + $0x28] sm:$0xf]
        %v10495 = vld [vmem:[%s6 + $0x2c] sm:$0xf]
        %v10496 = vld [vmem:[%s6 + $0x30] sm:$0xf]
        %v10497 = vld [vmem:[%s6 + $0x34] sm:$0xf]
        %v10498 = vld [vmem:[%s6 + $0x38] sm:$0xf]
        %v10499 = vld [vmem:[%s6 + $0x3c] sm:$0xf]
        %v10500 = vld [vmem:[%s6 + $0x40] sm:$0xf]
        %v10501 = vld [vmem:[%s6 + $0x44] sm:$0xf]
        %v10502 = vld [vmem:[%s6 + $0x48] sm:$0xf]
        %v10503 = vld [vmem:[%s6 + $0x4c] sm:$0xf]
        %v10504 = vld [vmem:[%s6 + $0x50] sm:$0xf]
        %v10505 = vld [vmem:[%s6 + $0x54] sm:$0xf]
        %v10506 = vld [vmem:[%s6 + $0x58] sm:$0xf]
        %v10507 = vld [vmem:[%s6 + $0x5c] sm:$0xf]
        %v10532 = vunpack.c.l.b16 %v10484
        %v10533 = vunpack.c.l.b16 %v10485
        %v10534 = vunpack.c.l.b16 %v10486
        %v10535 = vunpack.c.l.b16 %v10487
        %v10536 = vunpack.c.l.b16 %v10488
        %v10537 = vunpack.c.l.b16 %v10489
        %v10538 = vunpack.c.l.b16 %v10490
        %v10539 = vunpack.c.l.b16 %v10491
        %v10540 = vunpack.c.l.b16 %v10492
        %v10541 = vunpack.c.l.b16 %v10493
        %v10542 = vunpack.c.l.b16 %v10494
        %v10543 = vunpack.c.l.b16 %v10495
        %v10544 = vunpack.c.l.b16 %v10496
        %v10545 = vunpack.c.l.b16 %v10497
        %v10546 = vunpack.c.l.b16 %v10498
        %v10547 = vunpack.c.l.b16 %v10499
        %v10548 = vunpack.c.l.b16 %v10500
        %v10549 = vunpack.c.l.b16 %v10501
        %v10550 = vunpack.c.l.b16 %v10502
        %v10551 = vunpack.c.l.b16 %v10503
        %v10552 = vunpack.c.l.b16 %v10504
        %v10553 = vunpack.c.l.b16 %v10505
        %v10554 = vunpack.c.l.b16 %v10506
        %v10555 = vunpack.c.l.b16 %v10507
        %v10556 = vpack.c.b16 %v10533, %v10532
        %v10557 = vpack.c.b16 %v10535, %v10534
        %v10558 = vpack.c.b16 %v10537, %v10536
        %v10559 = vpack.c.b16 %v10539, %v10538
        %v10560 = vpack.c.b16 %v10541, %v10540
        %v10561 = vpack.c.b16 %v10543, %v10542
        %v10562 = vpack.c.b16 %v10545, %v10544
        %v10563 = vpack.c.b16 %v10547, %v10546
        %v10564 = vpack.c.b16 %v10549, %v10548
        %v10565 = vpack.c.b16 %v10551, %v10550
        %v10566 = vpack.c.b16 %v10553, %v10552
        %v10567 = vpack.c.b16 %v10555, %v10554
        %v10581 = vsel %vm8731, %v10453, 0
        %v10584 = vsel %vm8731, %v10455, 0
        %v10587 = vsel %vm8731, %v10457, 0
        %v10590 = vsel %vm8731, %v10459, 0
        %v10593 = vsel %vm8731, %v10461, 0
        %v10596 = vsel %vm8731, %v10463, 0
        %v10599 = vsel %vm8731, %v10465, 0
        %v10602 = vsel %vm8731, %v10467, 0
        %v10605 = vsel %vm8731, %v10469, 0
        %v10608 = vsel %vm8731, %v10471, 0
        %v10611 = vsel %vm8731, %v10473, 0
        %v10614 = vsel %vm8731, %v10475, 0
        %v10617 = vsel %vm8731, %v10477, 0
        %v10620 = vsel %vm8731, %v10479, 0
        %v10623 = vsel %vm8731, %v10481, 0
        %v10626 = vsel %vm8731, %v10483, 0
        %10628 = vmatprep.subr.bf16.mxu0 0
        %10629 = vmatpush1.bf16.msra.mxu0 %v10556
        %10630 = vmatprep.subr.bf16.mxu0 0
        %10631 = vmatpush1.bf16.msra.mxu0 %v10557
        %10632 = vmatprep.subr.bf16.mxu0 0
        %10633 = vmatpush1.bf16.msra.mxu0 %v10558
        %10634 = vmatprep.subr.bf16.mxu0 0
        %10635 = vmatpush1.bf16.msra.mxu0 %v10559
        %10636 = vmatprep.subr.bf16.mxu0 0
        %10637 = vmatpush1.bf16.msra.mxu0 %v10560
        %10638 = vmatprep.subr.bf16.mxu0 0
        %10639 = vmatpush1.bf16.msra.mxu0 %v10561
        %10640 = vmatprep.subr.bf16.mxu0 0
        %10641 = vmatpush1.bf16.msra.mxu0 %v10562
        %10642 = vmatprep.subr.bf16.mxu0 0
        %10643 = vmatpush1.bf16.msra.mxu0 %v10563
        %10644 = vmatprep.subr.bf16.mxu0 0
        %10645 = vmatpush1.bf16.msra.mxu0 %v10564
        %10646 = vmatprep.subr.bf16.mxu0 0
        %10647 = vmatpush1.bf16.msra.mxu0 %v10565
        %10648 = vmatprep.subr.bf16.mxu0 0
        %10649 = vmatpush1.bf16.msra.mxu0 %v10566
        %10650 = vmatprep.subr.bf16.mxu0 0
        %10651 = vmatpush1.bf16.msra.mxu0 %v10567
        %10652 = vmatprep.subr.bf16.mxu0 0
        %10653 = vmatpush1.bf16.msra.mxu0 0
        %10654 = vmatprep.subr.bf16.mxu0 0
        %10655 = vmatpush1.bf16.msra.mxu0 0
        %10656 = vmatprep.subr.bf16.mxu0 0
        %10657 = vmatpush1.bf16.msra.mxu0 0
        %10658 = vmatprep.subr.bf16.mxu0 0
        %10659 = vmatpush1.bf16.msra.mxu0 0
        %10660 = vmatprep.mubr.bf16.mxu0 %v10581
        %10661 = vmatmul.mubr.bf16.gmra.mrb[0].mxu0 %v10452
        %v10662 = vpop.f32.mrb[0].mxu0
        %v10663 = vadd.f32 0.0, %v10662
        %v10664 = vpop.f32.mrb[0].mxu0
        %v10665 = vpop.f32.mrb[0].mxu0
        %v10666 = vadd.f32 0.0, %v10665
        %v10667 = vpop.f32.mrb[0].mxu0
        %10668 = vmatprep.mubr.bf16.mxu0 %v10584
        %10669 = vmatmul.mubr.bf16.gmra.mrb[0].mxu0 %v10454
        %v10670 = vpop.f32.mrb[0].mxu0
        %v10671 = vadd.f32 0.0, %v10670
        %v10672 = vpop.f32.mrb[0].mxu0
        %v10673 = vpop.f32.mrb[0].mxu0
        %v10674 = vadd.f32 0.0, %v10673
        %v10675 = vpop.f32.mrb[0].mxu0
        %10676 = vmatprep.mubr.bf16.mxu0 %v10587
        %10677 = vmatmul.mubr.bf16.gmra.mrb[0].mxu0 %v10456
        %v10678 = vpop.f32.mrb[0].mxu0
        %v10679 = vadd.f32 0.0, %v10678
        %v10680 = vpop.f32.mrb[0].mxu0
        %v10681 = vpop.f32.mrb[0].mxu0
        %v10682 = vadd.f32 0.0, %v10681
        %v10683 = vpop.f32.mrb[0].mxu0
        %10684 = vmatprep.mubr.bf16.mxu0 %v10590
        %10685 = vmatmul.mubr.bf16.gmra.mrb[0].mxu0 %v10458
        %v10686 = vpop.f32.mrb[0].mxu0
        %v10687 = vadd.f32 0.0, %v10686
        %v10688 = vpop.f32.mrb[0].mxu0
        %v10689 = vpop.f32.mrb[0].mxu0
        %v10690 = vadd.f32 0.0, %v10689
        %v10691 = vpop.f32.mrb[0].mxu0
        %10692 = vmatprep.mubr.bf16.mxu0 %v10593
        %10693 = vmatmul.mubr.bf16.gmra.mrb[0].mxu0 %v10460
        %v10694 = vpop.f32.mrb[0].mxu0
        %v10695 = vadd.f32 0.0, %v10694
        %v10696 = vpop.f32.mrb[0].mxu0
        %v10697 = vpop.f32.mrb[0].mxu0
        %v10698 = vadd.f32 0.0, %v10697
        %v10699 = vpop.f32.mrb[0].mxu0
        %10700 = vmatprep.mubr.bf16.mxu0 %v10596
        %10701 = vmatmul.mubr.bf16.gmra.mrb[0].mxu0 %v10462
        %v10702 = vpop.f32.mrb[0].mxu0
        %v10703 = vadd.f32 0.0, %v10702
        %v10704 = vpop.f32.mrb[0].mxu0
        %v10705 = vpop.f32.mrb[0].mxu0
        %v10706 = vadd.f32 0.0, %v10705
        %v10707 = vpop.f32.mrb[0].mxu0
        %10708 = vmatprep.mubr.bf16.mxu0 %v10599
        %10709 = vmatmul.mubr.bf16.gmra.mrb[0].mxu0 %v10464
        %v10710 = vpop.f32.mrb[0].mxu0
        %v10711 = vadd.f32 0.0, %v10710
        %v10712 = vpop.f32.mrb[0].mxu0
        %v10713 = vpop.f32.mrb[0].mxu0
        %v10714 = vadd.f32 0.0, %v10713
        %v10715 = vpop.f32.mrb[0].mxu0
        %10716 = vmatprep.mubr.bf16.mxu0 %v10602
        %10717 = vmatmul.mubr.bf16.gmra.mrb[0].mxu0 %v10466
        %v10718 = vpop.f32.mrb[0].mxu0
        %v10719 = vadd.f32 0.0, %v10718
        %v10720 = vpop.f32.mrb[0].mxu0
        %v10721 = vpop.f32.mrb[0].mxu0
        %v10722 = vadd.f32 0.0, %v10721
        %v10723 = vpop.f32.mrb[0].mxu0
        %10724 = vmatprep.mubr.bf16.mxu0 %v10605
        %10725 = vmatmul.mubr.bf16.gmra.mrb[0].mxu0 %v10468
        %v10726 = vpop.f32.mrb[0].mxu0
        %v10727 = vadd.f32 0.0, %v10726
        %v10728 = vpop.f32.mrb[0].mxu0
        %v10729 = vpop.f32.mrb[0].mxu0
        %v10730 = vadd.f32 0.0, %v10729
        %v10731 = vpop.f32.mrb[0].mxu0
        %10732 = vmatprep.mubr.bf16.mxu0 %v10608
        %10733 = vmatmul.mubr.bf16.gmra.mrb[0].mxu0 %v10470
        %v10734 = vpop.f32.mrb[0].mxu0
        %v10735 = vadd.f32 0.0, %v10734
        %v10736 = vpop.f32.mrb[0].mxu0
        %v10737 = vpop.f32.mrb[0].mxu0
        %v10738 = vadd.f32 0.0, %v10737
        %v10739 = vpop.f32.mrb[0].mxu0
        %10740 = vmatprep.mubr.bf16.mxu0 %v10611
        %10741 = vmatmul.mubr.bf16.gmra.mrb[0].mxu0 %v10472
        %v10742 = vpop.f32.mrb[0].mxu0
        %v10743 = vadd.f32 0.0, %v10742
        %v10744 = vpop.f32.mrb[0].mxu0
        %v10745 = vpop.f32.mrb[0].mxu0
        %v10746 = vadd.f32 0.0, %v10745
        %v10747 = vpop.f32.mrb[0].mxu0
        %10748 = vmatprep.mubr.bf16.mxu0 %v10614
        %10749 = vmatmul.mubr.bf16.gmra.mrb[0].mxu0 %v10474
        %v10750 = vpop.f32.mrb[0].mxu0
        %v10751 = vadd.f32 0.0, %v10750
        %v10752 = vpop.f32.mrb[0].mxu0
        %v10753 = vpop.f32.mrb[0].mxu0
        %v10754 = vadd.f32 0.0, %v10753
        %v10755 = vpop.f32.mrb[0].mxu0
        %10756 = vmatprep.mubr.bf16.mxu0 %v10617
        %10757 = vmatmul.mubr.bf16.gmra.mrb[0].mxu0 %v10476
        %v10758 = vpop.f32.mrb[0].mxu0
        %v10759 = vadd.f32 0.0, %v10758
        %v10760 = vpop.f32.mrb[0].mxu0
        %v10761 = vpop.f32.mrb[0].mxu0
        %v10762 = vadd.f32 0.0, %v10761
        %v10763 = vpop.f32.mrb[0].mxu0
        %10764 = vmatprep.mubr.bf16.mxu0 %v10620
        %10765 = vmatmul.mubr.bf16.gmra.mrb[0].mxu0 %v10478
        %v10766 = vpop.f32.mrb[0].mxu0
        %v10767 = vadd.f32 0.0, %v10766
        %v10768 = vpop.f32.mrb[0].mxu0
        %v10769 = vpop.f32.mrb[0].mxu0
        %v10770 = vadd.f32 0.0, %v10769
        %v10771 = vpop.f32.mrb[0].mxu0
        %10772 = vmatprep.mubr.bf16.mxu0 %v10623
        %10773 = vmatmul.mubr.bf16.gmra.mrb[0].mxu0 %v10480
        %v10774 = vpop.f32.mrb[0].mxu0
        %v10775 = vadd.f32 0.0, %v10774
        %v10776 = vpop.f32.mrb[0].mxu0
        %v10777 = vpop.f32.mrb[0].mxu0
        %v10778 = vadd.f32 0.0, %v10777
        %v10779 = vpop.f32.mrb[0].mxu0
        %10780 = vmatprep.mubr.bf16.mxu0 %v10626
        %10781 = vmatmul.mubr.bf16.gmra.mrb[0].mxu0 %v10482
        %v10782 = vpop.f32.mrb[0].mxu0
        %v10783 = vadd.f32 0.0, %v10782
        %v10784 = vpop.f32.mrb[0].mxu0
        %v10785 = vpop.f32.mrb[0].mxu0
        %v10786 = vadd.f32 0.0, %v10785
        %v10787 = vpop.f32.mrb[0].mxu0
        %10788 = vdwg.mxu0
        %v10789 = vld [vmem:[%s7] sm:$0x1]
        %v10791 = vlaneseq
        %v10792 = vshrl.u32 %v10791, 7
        %v10793 = vsub.s32 0, %v10792
        %v10794 = vrot.slane %v10789, %v10793
        %v10796 = vmul.f32 %v10663, %v10794
        %v10797 = vmul.f32 %v10666, %v10794
        %v10798 = vmul.f32 %v10671, %v10794
        %v10799 = vmul.f32 %v10674, %v10794
        %v10800 = vmul.f32 %v10679, %v10794
        %v10801 = vmul.f32 %v10682, %v10794
        %v10802 = vmul.f32 %v10687, %v10794
        %v10803 = vmul.f32 %v10690, %v10794
        %v10804 = vmul.f32 %v10695, %v10794
        %v10805 = vmul.f32 %v10698, %v10794
        %v10806 = vmul.f32 %v10703, %v10794
        %v10807 = vmul.f32 %v10706, %v10794
        %v10808 = vmul.f32 %v10711, %v10794
        %v10809 = vmul.f32 %v10714, %v10794
        %v10810 = vmul.f32 %v10719, %v10794
        %v10811 = vmul.f32 %v10722, %v10794
        %v10812 = vmul.f32 %v10727, %v10794
        %v10813 = vmul.f32 %v10730, %v10794
        %v10814 = vmul.f32 %v10735, %v10794
        %v10815 = vmul.f32 %v10738, %v10794
        %v10816 = vmul.f32 %v10743, %v10794
        %v10817 = vmul.f32 %v10746, %v10794
        %v10818 = vmul.f32 %v10751, %v10794
        %v10819 = vmul.f32 %v10754, %v10794
        %v10820 = vmul.f32 %v10759, %v10794
        %v10821 = vmul.f32 %v10762, %v10794
        %v10822 = vmul.f32 %v10767, %v10794
        %v10823 = vmul.f32 %v10770, %v10794
        %v10824 = vmul.f32 %v10775, %v10794
        %v10825 = vmul.f32 %v10778, %v10794
        %v10826 = vmul.f32 %v10783, %v10794
        %v10827 = vmul.f32 %v10786, %v10794
        %v10828 = vld [vmem:[%s8] sm:$0x1]
        %v10830 = vlaneseq
        %v10831 = vshrl.u32 %v10830, 7
        %v10832 = vsub.s32 0, %v10831
        %v10833 = vrot.slane %v10828, %v10832
        %v10835 = vadd.f32 %v10796, %v10833
        %v10836 = vadd.f32 %v10797, %v10833
        %v10837 = vadd.f32 %v10798, %v10833
        %v10838 = vadd.f32 %v10799, %v10833
        %v10839 = vadd.f32 %v10800, %v10833
        %v10840 = vadd.f32 %v10801, %v10833
        %v10841 = vadd.f32 %v10802, %v10833
        %v10842 = vadd.f32 %v10803, %v10833
        %v10843 = vadd.f32 %v10804, %v10833
        %v10844 = vadd.f32 %v10805, %v10833
        %v10845 = vadd.f32 %v10806, %v10833
        %v10846 = vadd.f32 %v10807, %v10833
        %v10847 = vadd.f32 %v10808, %v10833
        %v10848 = vadd.f32 %v10809, %v10833
        %v10849 = vadd.f32 %v10810, %v10833
        %v10850 = vadd.f32 %v10811, %v10833
        %v10851 = vadd.f32 %v10812, %v10833
        %v10852 = vadd.f32 %v10813, %v10833
        %v10853 = vadd.f32 %v10814, %v10833
        %v10854 = vadd.f32 %v10815, %v10833
        %v10855 = vadd.f32 %v10816, %v10833
        %v10856 = vadd.f32 %v10817, %v10833
        %v10857 = vadd.f32 %v10818, %v10833
        %v10858 = vadd.f32 %v10819, %v10833
        %v10859 = vadd.f32 %v10820, %v10833
        %v10860 = vadd.f32 %v10821, %v10833
        %v10861 = vadd.f32 %v10822, %v10833
        %v10862 = vadd.f32 %v10823, %v10833
        %v10863 = vadd.f32 %v10824, %v10833
        %v10864 = vadd.f32 %v10825, %v10833
        %v10865 = vadd.f32 %v10826, %v10833
        %v10866 = vadd.f32 %v10827, %v10833
        %10867 = vst [vmem:[#allocation4] sm:$0xff] %v10835
        %10868 = vst [vmem:[#allocation4 + $0x8] sm:$0xff] %v10836
        %10869 = vst [vmem:[#allocation4 + $0x10] sm:$0xff] %v10837
        %10870 = vst [vmem:[#allocation4 + $0x18] sm:$0xff] %v10838
        %10871 = vst [vmem:[#allocation4 + $0x20] sm:$0xff] %v10839
        %10872 = vst [vmem:[#allocation4 + $0x28] sm:$0xff] %v10840
        %10873 = vst [vmem:[#allocation4 + $0x30] sm:$0xff] %v10841
        %10874 = vst [vmem:[#allocation4 + $0x38] sm:$0xff] %v10842
        %10875 = vst [vmem:[#allocation4 + $0x40] sm:$0xff] %v10843
        %10876 = vst [vmem:[#allocation4 + $0x48] sm:$0xff] %v10844
        %10877 = vst [vmem:[#allocation4 + $0x50] sm:$0xff] %v10845
        %10878 = vst [vmem:[#allocation4 + $0x58] sm:$0xff] %v10846
        %10879 = vst [vmem:[#allocation4 + $0x60] sm:$0xff] %v10847
        %10880 = vst [vmem:[#allocation4 + $0x68] sm:$0xff] %v10848
        %10881 = vst [vmem:[#allocation4 + $0x70] sm:$0xff] %v10849
        %10882 = vst [vmem:[#allocation4 + $0x78] sm:$0xff] %v10850
        %10883 = vst [vmem:[#allocation4 + $0x80] sm:$0xff] %v10851
        %10884 = vst [vmem:[#allocation4 + $0x88] sm:$0xff] %v10852
        %10885 = vst [vmem:[#allocation4 + $0x90] sm:$0xff] %v10853
        %10886 = vst [vmem:[#allocation4 + $0x98] sm:$0xff] %v10854
        %10887 = vst [vmem:[#allocation4 + $0xa0] sm:$0xff] %v10855
        %10888 = vst [vmem:[#allocation4 + $0xa8] sm:$0xff] %v10856
        %10889 = vst [vmem:[#allocation4 + $0xb0] sm:$0xff] %v10857
        %10890 = vst [vmem:[#allocation4 + $0xb8] sm:$0xff] %v10858
        %10891 = vst [vmem:[#allocation4 + $0xc0] sm:$0xff] %v10859
        %10892 = vst [vmem:[#allocation4 + $0xc8] sm:$0xff] %v10860
        %10893 = vst [vmem:[#allocation4 + $0xd0] sm:$0xff] %v10861
        %10894 = vst [vmem:[#allocation4 + $0xd8] sm:$0xff] %v10862
        %10895 = vst [vmem:[#allocation4 + $0xe0] sm:$0xff] %v10863
        %10896 = vst [vmem:[#allocation4 + $0xe8] sm:$0xff] %v10864
        %10897 = vst [vmem:[#allocation4 + $0xf0] sm:$0xff] %v10865
        %10898 = vst [vmem:[#allocation4 + $0xf8] sm:$0xff] %v10866
        %v10899 = vld [vmem:[#allocation4] ss:$4 sm:$0xff]
        %s10900 = scalar_lea.vmem [#allocation4], 32
        %v10901 = vld [vmem:[%s10900] ss:$4 sm:$0xff]
        %s10902 = scalar_lea.vmem [#allocation4], 64
        %v10903 = vld [vmem:[%s10902] ss:$4 sm:$0xff]
        %s10904 = scalar_lea.vmem [#allocation4], 96
        %v10905 = vld [vmem:[%s10904] ss:$4 sm:$0xff]
        %s10906 = scalar_lea.vmem [#allocation4], 128
        %v10907 = vld [vmem:[%s10906] ss:$4 sm:$0xff]
        %s10908 = scalar_lea.vmem [#allocation4], 160
        %v10909 = vld [vmem:[%s10908] ss:$4 sm:$0xff]
        %s10910 = scalar_lea.vmem [#allocation4], 192
        %v10911 = vld [vmem:[%s10910] ss:$4 sm:$0xff]
        %s10912 = scalar_lea.vmem [#allocation4], 224
        %v10913 = vld [vmem:[%s10912] ss:$4 sm:$0xff]
        %s10914 = scalar_lea.vmem [#allocation4], 1
        %v10915 = vld [vmem:[%s10914] ss:$4 sm:$0xff]
        %s10916 = scalar_lea.vmem [#allocation4], 33
        %v10917 = vld [vmem:[%s10916] ss:$4 sm:$0xff]
        %s10918 = scalar_lea.vmem [#allocation4], 65
        %v10919 = vld [vmem:[%s10918] ss:$4 sm:$0xff]
        %s10920 = scalar_lea.vmem [#allocation4], 97
        %v10921 = vld [vmem:[%s10920] ss:$4 sm:$0xff]
        %s10922 = scalar_lea.vmem [#allocation4], 129
        %v10923 = vld [vmem:[%s10922] ss:$4 sm:$0xff]
        %s10924 = scalar_lea.vmem [#allocation4], 161
        %v10925 = vld [vmem:[%s10924] ss:$4 sm:$0xff]
        %s10926 = scalar_lea.vmem [#allocation4], 193
        %v10927 = vld [vmem:[%s10926] ss:$4 sm:$0xff]
        %s10928 = scalar_lea.vmem [#allocation4], 225
        %v10929 = vld [vmem:[%s10928] ss:$4 sm:$0xff]
        %v10930 = vmax.f32 %v10899, %v10915
        %v10931 = vmax.f32 %v10901, %v10917
        %v10932 = vmax.f32 %v10903, %v10919
        %v10933 = vmax.f32 %v10905, %v10921
        %v10934 = vmax.f32 %v10907, %v10923
        %v10935 = vmax.f32 %v10909, %v10925
        %v10936 = vmax.f32 %v10911, %v10927
        %v10937 = vmax.f32 %v10913, %v10929
        %s10938 = scalar_lea.vmem [#allocation4], 2
        %v10939 = vld [vmem:[%s10938] ss:$4 sm:$0xff]
        %s10940 = scalar_lea.vmem [#allocation4], 34
        %v10941 = vld [vmem:[%s10940] ss:$4 sm:$0xff]
        %s10942 = scalar_lea.vmem [#allocation4], 66
        %v10943 = vld [vmem:[%s10942] ss:$4 sm:$0xff]
        %s10944 = scalar_lea.vmem [#allocation4], 98
        %v10945 = vld [vmem:[%s10944] ss:$4 sm:$0xff]
        %s10946 = scalar_lea.vmem [#allocation4], 130
        %v10947 = vld [vmem:[%s10946] ss:$4 sm:$0xff]
        %s10948 = scalar_lea.vmem [#allocation4], 162
        %v10949 = vld [vmem:[%s10948] ss:$4 sm:$0xff]
        %s10950 = scalar_lea.vmem [#allocation4], 194
        %v10951 = vld [vmem:[%s10950] ss:$4 sm:$0xff]
        %s10952 = scalar_lea.vmem [#allocation4], 226
        %v10953 = vld [vmem:[%s10952] ss:$4 sm:$0xff]
        %s10954 = scalar_lea.vmem [#allocation4], 3
        %v10955 = vld [vmem:[%s10954] ss:$4 sm:$0xff]
        %s10956 = scalar_lea.vmem [#allocation4], 35
        %v10957 = vld [vmem:[%s10956] ss:$4 sm:$0xff]
        %s10958 = scalar_lea.vmem [#allocation4], 67
        %v10959 = vld [vmem:[%s10958] ss:$4 sm:$0xff]
        %s10960 = scalar_lea.vmem [#allocation4], 99
        %v10961 = vld [vmem:[%s10960] ss:$4 sm:$0xff]
        %s10962 = scalar_lea.vmem [#allocation4], 131
        %v10963 = vld [vmem:[%s10962] ss:$4 sm:$0xff]
        %s10964 = scalar_lea.vmem [#allocation4], 163
        %v10965 = vld [vmem:[%s10964] ss:$4 sm:$0xff]
        %s10966 = scalar_lea.vmem [#allocation4], 195
        %v10967 = vld [vmem:[%s10966] ss:$4 sm:$0xff]
        %s10968 = scalar_lea.vmem [#allocation4], 227
        %v10969 = vld [vmem:[%s10968] ss:$4 sm:$0xff]
        %v10970 = vmax.f32 %v10939, %v10955
        %v10971 = vmax.f32 %v10941, %v10957
        %v10972 = vmax.f32 %v10943, %v10959
        %v10973 = vmax.f32 %v10945, %v10961
        %v10974 = vmax.f32 %v10947, %v10963
        %v10975 = vmax.f32 %v10949, %v10965
        %v10976 = vmax.f32 %v10951, %v10967
        %v10977 = vmax.f32 %v10953, %v10969
        %v10978 = vmax.f32 %v10930, 0.0
        %v10979 = vmax.f32 %v10970, 0.0
        %v10980 = vmax.f32 %v10931, 0.0
        %v10981 = vmax.f32 %v10971, 0.0
        %v10982 = vmax.f32 %v10932, 0.0
        %v10983 = vmax.f32 %v10972, 0.0
        %v10984 = vmax.f32 %v10933, 0.0
        %v10985 = vmax.f32 %v10973, 0.0
        %v10986 = vmax.f32 %v10934, 0.0
        %v10987 = vmax.f32 %v10974, 0.0
        %v10988 = vmax.f32 %v10935, 0.0
        %v10989 = vmax.f32 %v10975, 0.0
        %v10990 = vmax.f32 %v10936, 0.0
        %v10991 = vmax.f32 %v10976, 0.0
        %v10992 = vmax.f32 %v10937, 0.0
        %v10993 = vmax.f32 %v10977, 0.0
        %v10994 = vpack.c.bf16 %v10980, %v10978
        %v10995 = vpack.c.bf16 %v10981, %v10979
        %v10996 = vpack.c.bf16 %v10984, %v10982
        %v10997 = vpack.c.bf16 %v10985, %v10983
        %v10998 = vpack.c.bf16 %v10988, %v10986
        %v10999 = vpack.c.bf16 %v10989, %v10987
        %v11000 = vpack.c.bf16 %v10992, %v10990
        %v11001 = vpack.c.bf16 %v10993, %v10991
        %v11002 = vld [vmem:[%s9] sm:$0xf]
        %v11003 = vld [vmem:[%s9 + $0x4] sm:$0xf]
        %v11004 = vld [vmem:[%s9 + $0x8] sm:$0xf]
        %v11005 = vld [vmem:[%s9 + $0xc] sm:$0xf]
        %v11006 = vld [vmem:[%s9 + $0x10] sm:$0xf]
        %v11007 = vld [vmem:[%s9 + $0x14] sm:$0xf]
        %v11008 = vld [vmem:[%s9 + $0x18] sm:$0xf]
        %v11009 = vld [vmem:[%s9 + $0x1c] sm:$0xf]
        %v11010 = vld [vmem:[%s9 + $0x20] sm:$0xf]
        %v11011 = vld [vmem:[%s9 + $0x24] sm:$0xf]
        %v11012 = vld [vmem:[%s9 + $0x28] sm:$0xf]
        %v11013 = vld [vmem:[%s9 + $0x2c] sm:$0xf]
        %v11014 = vld [vmem:[%s9 + $0x30] sm:$0xf]
        %v11015 = vld [vmem:[%s9 + $0x34] sm:$0xf]
        %v11016 = vld [vmem:[%s9 + $0x38] sm:$0xf]
        %v11017 = vld [vmem:[%s9 + $0x3c] sm:$0xf]
        %v11018 = vld [vmem:[%s9 + $0x40] sm:$0xf]
        %v11019 = vld [vmem:[%s9 + $0x44] sm:$0xf]
        %v11020 = vld [vmem:[%s9 + $0x48] sm:$0xf]
        %v11021 = vld [vmem:[%s9 + $0x4c] sm:$0xf]
        %v11022 = vld [vmem:[%s9 + $0x50] sm:$0xf]
        %v11023 = vld [vmem:[%s9 + $0x54] sm:$0xf]
        %v11024 = vld [vmem:[%s9 + $0x58] sm:$0xf]
        %v11025 = vld [vmem:[%s9 + $0x5c] sm:$0xf]
        %v11026 = vld [vmem:[%s9 + $0x60] sm:$0xf]
        %v11027 = vld [vmem:[%s9 + $0x64] sm:$0xf]
        %v11028 = vld [vmem:[%s9 + $0x68] sm:$0xf]
        %v11029 = vld [vmem:[%s9 + $0x6c] sm:$0xf]
        %v11030 = vld [vmem:[%s9 + $0x70] sm:$0xf]
        %v11031 = vld [vmem:[%s9 + $0x74] sm:$0xf]
        %v11032 = vld [vmem:[%s9 + $0x78] sm:$0xf]
        %v11033 = vld [vmem:[%s9 + $0x7c] sm:$0xf]
        %v11034 = vld [vmem:[%s10] sm:$0x1]
        %v11036 = vlaneseq
        %v11037 = vshrl.u32 %v11036, 7
        %v11038 = vsub.s32 0, %v11037
        %v11039 = vrot.slane %v11034, %v11038
        %v11073 = vunpack.c.l.b16 %v11002
        %v11074 = vunpack.c.l.b16 %v11003
        %v11075 = vunpack.c.l.b16 %v11004
        %v11076 = vunpack.c.l.b16 %v11005
        %v11077 = vunpack.c.l.b16 %v11006
        %v11078 = vunpack.c.l.b16 %v11007
        %v11079 = vunpack.c.l.b16 %v11008
        %v11080 = vunpack.c.l.b16 %v11009
        %v11081 = vunpack.c.l.b16 %v11010
        %v11082 = vunpack.c.l.b16 %v11011
        %v11083 = vunpack.c.l.b16 %v11012
        %v11084 = vunpack.c.l.b16 %v11013
        %v11085 = vunpack.c.l.b16 %v11014
        %v11086 = vunpack.c.l.b16 %v11015
        %v11087 = vunpack.c.l.b16 %v11016
        %v11088 = vunpack.c.l.b16 %v11017
        %v11089 = vunpack.c.l.b16 %v11018
        %v11090 = vunpack.c.l.b16 %v11019
        %v11091 = vunpack.c.l.b16 %v11020
        %v11092 = vunpack.c.l.b16 %v11021
        %v11093 = vunpack.c.l.b16 %v11022
        %v11094 = vunpack.c.l.b16 %v11023
        %v11095 = vunpack.c.l.b16 %v11024
        %v11096 = vunpack.c.l.b16 %v11025
        %v11097 = vunpack.c.l.b16 %v11026
        %v11098 = vunpack.c.l.b16 %v11027
        %v11099 = vunpack.c.l.b16 %v11028
        %v11100 = vunpack.c.l.b16 %v11029
        %v11101 = vunpack.c.l.b16 %v11030
        %v11102 = vunpack.c.l.b16 %v11031
        %v11103 = vunpack.c.l.b16 %v11032
        %v11104 = vunpack.c.l.b16 %v11033
        %v11105 = vpack.c.b16 %v11074, %v11073
        %v11106 = vpack.c.b16 %v11076, %v11075
        %v11107 = vpack.c.b16 %v11078, %v11077
        %v11108 = vpack.c.b16 %v11080, %v11079
        %v11109 = vpack.c.b16 %v11082, %v11081
        %v11110 = vpack.c.b16 %v11084, %v11083
        %v11111 = vpack.c.b16 %v11086, %v11085
        %v11112 = vpack.c.b16 %v11088, %v11087
        %v11113 = vpack.c.b16 %v11090, %v11089
        %v11114 = vpack.c.b16 %v11092, %v11091
        %v11115 = vpack.c.b16 %v11094, %v11093
        %v11116 = vpack.c.b16 %v11096, %v11095
        %v11117 = vpack.c.b16 %v11098, %v11097
        %v11118 = vpack.c.b16 %v11100, %v11099
        %v11119 = vpack.c.b16 %v11102, %v11101
        %v11120 = vpack.c.b16 %v11104, %v11103
        %11137 = vmatprep.subr.bf16.mxu0 0
        %11138 = vmatpush1.bf16.msra.mxu0 %v11105
        %11139 = vmatprep.subr.bf16.mxu0 0
        %11140 = vmatpush1.bf16.msra.mxu0 %v11106
        %11141 = vmatprep.subr.bf16.mxu0 0
        %11142 = vmatpush1.bf16.msra.mxu0 %v11107
        %11143 = vmatprep.subr.bf16.mxu0 0
        %11144 = vmatpush1.bf16.msra.mxu0 %v11108
        %11145 = vmatprep.subr.bf16.mxu0 0
        %11146 = vmatpush1.bf16.msra.mxu0 %v11109
        %11147 = vmatprep.subr.bf16.mxu0 0
        %11148 = vmatpush1.bf16.msra.mxu0 %v11110
        %11149 = vmatprep.subr.bf16.mxu0 0
        %11150 = vmatpush1.bf16.msra.mxu0 %v11111
        %11151 = vmatprep.subr.bf16.mxu0 0
        %11152 = vmatpush1.bf16.msra.mxu0 %v11112
        %11153 = vmatprep.subr.bf16.mxu0 0
        %11154 = vmatpush1.bf16.msra.mxu0 %v11113
        %11155 = vmatprep.subr.bf16.mxu0 0
        %11156 = vmatpush1.bf16.msra.mxu0 %v11114
        %11157 = vmatprep.subr.bf16.mxu0 0
        %11158 = vmatpush1.bf16.msra.mxu0 %v11115
        %11159 = vmatprep.subr.bf16.mxu0 0
        %11160 = vmatpush1.bf16.msra.mxu0 %v11116
        %11161 = vmatprep.subr.bf16.mxu0 0
        %11162 = vmatpush1.bf16.msra.mxu0 %v11117
        %11163 = vmatprep.subr.bf16.mxu0 0
        %11164 = vmatpush1.bf16.msra.mxu0 %v11118
        %11165 = vmatprep.subr.bf16.mxu0 0
        %11166 = vmatpush1.bf16.msra.mxu0 %v11119
        %11167 = vmatprep.subr.bf16.mxu0 0
        %11168 = vmatpush1.bf16.msra.mxu0 %v11120
        %11169 = vmatprep.mubr.bf16.mxu0 %v10995
        %11170 = vmatmul.mubr.bf16.gmra.mrb[0].mxu0 %v10994
        %v11171 = vpop.f32.mrb[0].mxu0
        %v11172 = vadd.f32 %v11039, %v11171
        %v11173 = vpop.f32.mrb[0].mxu0
        %v11174 = vpop.f32.mrb[0].mxu0
        %v11175 = vadd.f32 %v11039, %v11174
        %v11176 = vpop.f32.mrb[0].mxu0
        %11177 = vmatprep.mubr.bf16.mxu0 %v10997
        %11178 = vmatmul.mubr.bf16.gmra.mrb[0].mxu0 %v10996
        %v11179 = vpop.f32.mrb[0].mxu0
        %v11180 = vadd.f32 %v11039, %v11179
        %v11181 = vpop.f32.mrb[0].mxu0
        %v11182 = vpop.f32.mrb[0].mxu0
        %v11183 = vadd.f32 %v11039, %v11182
        %v11184 = vpop.f32.mrb[0].mxu0
        %11185 = vmatprep.mubr.bf16.mxu0 %v10999
        %11186 = vmatmul.mubr.bf16.gmra.mrb[0].mxu0 %v10998
        %v11187 = vpop.f32.mrb[0].mxu0
        %v11188 = vadd.f32 %v11039, %v11187
        %v11189 = vpop.f32.mrb[0].mxu0
        %v11190 = vpop.f32.mrb[0].mxu0
        %v11191 = vadd.f32 %v11039, %v11190
        %v11192 = vpop.f32.mrb[0].mxu0
        %11193 = vmatprep.mubr.bf16.mxu0 %v11001
        %11194 = vmatmul.mubr.bf16.gmra.mrb[0].mxu0 %v11000
        %v11195 = vpop.f32.mrb[0].mxu0
        %v11196 = vadd.f32 %v11039, %v11195
        %v11197 = vpop.f32.mrb[0].mxu0
        %v11198 = vpop.f32.mrb[0].mxu0
        %v11199 = vadd.f32 %v11039, %v11198
        %v11200 = vpop.f32.mrb[0].mxu0
        %11201 = vdwg.mxu0
        %v11202 = vmax.f32 %v11172, 0.0
        %v11203 = vmax.f32 %v11175, 0.0
        %v11204 = vmax.f32 %v11180, 0.0
        %v11205 = vmax.f32 %v11183, 0.0
        %v11206 = vmax.f32 %v11188, 0.0
        %v11207 = vmax.f32 %v11191, 0.0
        %v11208 = vmax.f32 %v11196, 0.0
        %v11209 = vmax.f32 %v11199, 0.0
        %v11210 = vpack.c.bf16 %v11203, %v11202
        %v11211 = vpack.c.bf16 %v11205, %v11204
        %v11212 = vpack.c.bf16 %v11207, %v11206
        %v11213 = vpack.c.bf16 %v11209, %v11208
        %v11214 = vld [vmem:[%s11] sm:$0xf]
        %v11215 = vld [vmem:[%s11 + $0x4] sm:$0xf]
        %v11216 = vld [vmem:[%s11 + $0x8] sm:$0xf]
        %v11217 = vld [vmem:[%s11 + $0xc] sm:$0xf]
        %v11218 = vld [vmem:[%s11 + $0x10] sm:$0xf]
        %v11219 = vld [vmem:[%s11 + $0x14] sm:$0xf]
        %v11220 = vld [vmem:[%s11 + $0x18] sm:$0xf]
        %v11221 = vld [vmem:[%s11 + $0x1c] sm:$0xf]
        %v11222 = vld [vmem:[%s11 + $0x20] sm:$0xf]
        %v11223 = vld [vmem:[%s11 + $0x24] sm:$0xf]
        %v11224 = vld [vmem:[%s11 + $0x28] sm:$0xf]
        %v11225 = vld [vmem:[%s11 + $0x2c] sm:$0xf]
        %v11226 = vld [vmem:[%s11 + $0x30] sm:$0xf]
        %v11227 = vld [vmem:[%s11 + $0x34] sm:$0xf]
        %v11228 = vld [vmem:[%s11 + $0x38] sm:$0xf]
        %v11229 = vld [vmem:[%s11 + $0x3c] sm:$0xf]
        %v11230 = vld [vmem:[%s12] sm:$0x1]
        %v11232 = vlaneseq
        %v11233 = vshrl.u32 %v11232, 7
        %v11234 = vsub.s32 0, %v11233
        %v11235 = vrot.slane %v11230, %v11234
        %v11253 = vunpack.c.l.b16 %v11214
        %v11254 = vunpack.c.l.b16 %v11215
        %v11255 = vunpack.c.l.b16 %v11216
        %v11256 = vunpack.c.l.b16 %v11217
        %v11257 = vunpack.c.l.b16 %v11218
        %v11258 = vunpack.c.l.b16 %v11219
        %v11259 = vunpack.c.l.b16 %v11220
        %v11260 = vunpack.c.l.b16 %v11221
        %v11261 = vunpack.c.l.b16 %v11222
        %v11262 = vunpack.c.l.b16 %v11223
        %v11263 = vunpack.c.l.b16 %v11224
        %v11264 = vunpack.c.l.b16 %v11225
        %v11265 = vunpack.c.l.b16 %v11226
        %v11266 = vunpack.c.l.b16 %v11227
        %v11267 = vunpack.c.l.b16 %v11228
        %v11268 = vunpack.c.l.b16 %v11229
        %v11269 = vpack.c.b16 %v11254, %v11253
        %v11270 = vpack.c.b16 %v11256, %v11255
        %v11271 = vpack.c.b16 %v11258, %v11257
        %v11272 = vpack.c.b16 %v11260, %v11259
        %v11273 = vpack.c.b16 %v11262, %v11261
        %v11274 = vpack.c.b16 %v11264, %v11263
        %v11275 = vpack.c.b16 %v11266, %v11265
        %v11276 = vpack.c.b16 %v11268, %v11267
        %11285 = vmatprep.subr.bf16.mxu0 0
        %11286 = vmatpush1.bf16.msra.mxu0 %v11269
        %11287 = vmatprep.subr.bf16.mxu0 0
        %11288 = vmatpush1.bf16.msra.mxu0 %v11270
        %11289 = vmatprep.subr.bf16.mxu0 0
        %11290 = vmatpush1.bf16.msra.mxu0 %v11271
        %11291 = vmatprep.subr.bf16.mxu0 0
        %11292 = vmatpush1.bf16.msra.mxu0 %v11272
        %11293 = vmatprep.subr.bf16.mxu0 0
        %11294 = vmatpush1.bf16.msra.mxu0 %v11273
        %11295 = vmatprep.subr.bf16.mxu0 0
        %11296 = vmatpush1.bf16.msra.mxu0 %v11274
        %11297 = vmatprep.subr.bf16.mxu0 0
        %11298 = vmatpush1.bf16.msra.mxu0 %v11275
        %11299 = vmatprep.subr.bf16.mxu0 0
        %11300 = vmatpush1.bf16.msra.mxu0 %v11276
        %11301 = vmatprep.subr.bf16.mxu0 0
        %11302 = vmatpush1.bf16.msra.mxu0 0
        %11303 = vmatprep.subr.bf16.mxu0 0
        %11304 = vmatpush1.bf16.msra.mxu0 0
        %11305 = vmatprep.subr.bf16.mxu0 0
        %11306 = vmatpush1.bf16.msra.mxu0 0
        %11307 = vmatprep.subr.bf16.mxu0 0
        %11308 = vmatpush1.bf16.msra.mxu0 0
        %11309 = vmatprep.subr.bf16.mxu0 0
        %11310 = vmatpush1.bf16.msra.mxu0 0
        %11311 = vmatprep.subr.bf16.mxu0 0
        %11312 = vmatpush1.bf16.msra.mxu0 0
        %11313 = vmatprep.subr.bf16.mxu0 0
        %11314 = vmatpush1.bf16.msra.mxu0 0
        %11315 = vmatprep.subr.bf16.mxu0 0
        %11316 = vmatpush1.bf16.msra.mxu0 0
        %11317 = vmatprep.mubr.bf16.mxu0 0
        %11318 = vmatmul.mubr.bf16.gmra.mrb[0].mxu0 %v11210
        %v11319 = vpop.f32.mrb[0].mxu0
        %v11320 = vadd.f32 %v11235, %v11319
        %v11321 = vpop.f32.mrb[0].mxu0
        %v11322 = vpop.f32.mrb[0].mxu0
        %v11323 = vadd.f32 %v11235, %v11322
        %v11324 = vpop.f32.mrb[0].mxu0
        %11325 = vmatprep.mubr.bf16.mxu0 0
        %11326 = vmatmul.mubr.bf16.gmra.mrb[0].mxu0 %v11211
        %v11327 = vpop.f32.mrb[0].mxu0
        %v11328 = vadd.f32 %v11235, %v11327
        %v11329 = vpop.f32.mrb[0].mxu0
        %v11330 = vpop.f32.mrb[0].mxu0
        %v11331 = vadd.f32 %v11235, %v11330
        %v11332 = vpop.f32.mrb[0].mxu0
        %11333 = vmatprep.mubr.bf16.mxu0 0
        %11334 = vmatmul.mubr.bf16.gmra.mrb[0].mxu0 %v11212
        %v11335 = vpop.f32.mrb[0].mxu0
        %v11336 = vadd.f32 %v11235, %v11335
        %v11337 = vpop.f32.mrb[0].mxu0
        %v11338 = vpop.f32.mrb[0].mxu0
        %v11339 = vadd.f32 %v11235, %v11338
        %v11340 = vpop.f32.mrb[0].mxu0
        %11341 = vmatprep.mubr.bf16.mxu0 0
        %11342 = vmatmul.mubr.bf16.gmra.mrb[0].mxu0 %v11213
        %v11343 = vpop.f32.mrb[0].mxu0
        %v11344 = vadd.f32 %v11235, %v11343
        %v11345 = vpop.f32.mrb[0].mxu0
        %v11346 = vpop.f32.mrb[0].mxu0
        %v11347 = vadd.f32 %v11235, %v11346
        %v11348 = vpop.f32.mrb[0].mxu0
        %11349 = vdwg.mxu0
        %11350 = vst [vmem:[%s434] sm:$0xff] %v11320
        %11351 = vst [vmem:[%s434 + $0x8] sm:$0xff] %v11323
        %11352 = vst [vmem:[%s434 + $0x10] sm:$0xff] %v11328
        %11353 = vst [vmem:[%s434 + $0x18] sm:$0xff] %v11331
        %11354 = vst [vmem:[%s434 + $0x20] sm:$0xff] %v11336
        %11355 = vst [vmem:[%s434 + $0x28] sm:$0xff] %v11339
        %11356 = vst [vmem:[%s434 + $0x30] sm:$0xff] %v11344
        %11357 = vst [vmem:[%s434 + $0x38] sm:$0xff] %v11347
        %s11358 = sand.u32 %s313, 1
        %s11359 = scalar_lea.sflag [#allocation6], %s11358
        %s11360 = sand.u32 %s313, 1
        %s11361 = smul.addr %s11360, 64
        %s11362 = scalar_lea.vmem [#allocation5], %s11361
        // Predicated region
        $region73: #{tpu_custom_call.1} parent=71 // pred_check
          %p11363 = pneg %p323
        $region74: #{tpu_custom_call.1} parent=71 // pred_check_branch
          %11365 = sbr.rel (%p11363) target = $region76
        $region75: #{tpu_custom_call.1} parent=71 // pred_region
          %s11366 = smul.u32 8, %s27
          %s11368 = ssub.s32 1024, 1024
          %11369 = vsyncadd %s11359, %s11368
          %s11370 = smul.addr %s11366, 128
          %s11371 = scalar_lea.hbm %s13, %s11370
          %s11372 = sshll.u32 %s11362, 4
          %s11373 = int_to_ptr.vmem [resolvable:$true] %s11372
          %11378 = dma.vmem_to_hbm [thread:$0]  %s11373, 1024, %s11371, %s11359, 128, 128, 8
        $region76: #{tpu_custom_call.1} parent=71 // pred_fallthru
          _
      $region72: #{tpu_custom_call.1} parent=5 // pred_fallthru
        _
      %p11379 = scmp.le.s32.totalorder 2, %s22
      // Predicated region
      $region77: #{tpu_custom_call.1} parent=5 // pred_check
        %p11380 = pneg %p11379
      $region78: #{tpu_custom_call.1} parent=5 // pred_check_branch
        %11382 = sbr.rel (%p11380) target = $region80
      $region79: #{tpu_custom_call.1} parent=5 // pred_region
        %s11383 = ssub.s32 %s22, 2
        // Predicated region
        $region81: #{tpu_custom_call.1} parent=79 // pred_check
          %p11384 = pneg %p329
        $region82: #{tpu_custom_call.1} parent=79 // pred_check_branch
          %11386 = sbr.rel (%p11384) target = $region84
        $region83: #{tpu_custom_call.1} parent=79 // pred_region
          %s11387 = sand.u32 %s314, 1
          %s11388 = scalar_lea.sflag [#allocation6], %s11387
          %s11389 = sand.u32 %s314, 1
          %s11390 = smul.addr %s11389, 64
          %s11391 = scalar_lea.vmem [#allocation5], %s11390
          %11392 = dma.done %s11388, 1024
        $region84: #{tpu_custom_call.1} parent=79 // pred_fallthru
          _
      $region80: #{tpu_custom_call.1} parent=5 // pred_fallthru
        _
    $region6: #{tpu_custom_call.1} parent=1 // loop_footer
      %s26 = sadd.s32 1, %s22
    $region7: #{tpu_custom_call.1} parent=1 // loop_footer_branch
      %21 = sbr.rel target = $region3
    $region8: #{tpu_custom_call.1} parent=1 // loop_exit
      _
    %11393 = vsyncpa [#allocation6], 1
    %s11394 = scalar_lea.sflag [#allocation6], 1
    %11395 = vsyncpa %s11394, 1

</llo_original>
